<compile_context>
chip_gen: v7x
topology: tpu7x:2x2x1
jax: 0.10.0
libtpu: 0.0.40
codegen_flags: <defaults>
</compile_context>

<pallas_src>
import functools

import jax
import jax.numpy as jnp
from jax.experimental import pallas as pl
from jax.experimental.pallas import tpu as pltpu

# ---------------- PFNet7 default hyper-parameters ----------------
INPUT_DIM = 12
HIDDEN_DIM = 32
ENCODING_DIM = 256
OUTPUT_DIM_ID = 6
# TODO(synk): module default output_dim_p4=6 is shape-inconsistent with the
# residual `data.x[:, L:L+4] + nn3(...)` (a 4-wide slice); we use 4 so the
# residual add is well defined.
OUTPUT_DIM_P4 = 4
SPACE_DIM = 2
ELEM_TO_ID_LEN = 8        # one-hot element-type width; x[:, 8:12] = input p4
LEAKY_SLOPE = 0.01
RADIUS_DEFAULT = 0.1
PACK_W = 128              # lane-dense packed output: [ids(6) | p4(4) | 0-pad]

NUM_DECODE_IN = INPUT_DIM + ENCODING_DIM          # 268
NN3_IN = NUM_DECODE_IN + OUTPUT_DIM_ID            # 274
GRAVNET_LIN_IN = INPUT_DIM + 2 * HIDDEN_DIM       # 76

NEG_INIT = -1e30          # "empty" fill for the running max (guarded by count)


def _lrelu(v):
    return jnp.where(v > 0, v, LEAKY_SLOPE * v)


def _round_up(v, m):
    return ((v + m - 1) // m) * m


def _vmem_capacity_bytes():
    try:
        cap = int(pltpu.get_tpu_info().vmem_capacity_bytes)
        if cap > 0:
            return cap
    except Exception:
        pass
    return 64 * 2 ** 20   # conservative fallback (v7x per-TensorCore VMEM)


def _has_bf16_valu():
    # v5e and older have no bf16 VALU; v6e/v7x do.
    try:
        kind = jax.devices()[0].device_kind.lower()
    except Exception:
        return False
    return not any(t in kind for t in ("v2", "v3", "v4", "v5"))


def _pick_tiles(n_pad, vmem_cap):
    # neighbour-column chunk: largest of these that divides n_pad
    tile_c = 128
    for c in (2048, 1024, 512, 256, 128):
        if c <= n_pad and n_pad % c == 0:
            tile_c = c
            break
    # ~12 live (T, C) f32 slabs in the unrolled max loop + double-buffered
    # blocks; ~29 MiB budget on 64 MiB v7x, ~58 MiB on 128 MiB v5e/v6e.
    budget = int(vmem_cap * 0.45)
    tile_n = 128
    for t in (512, 256, 128):
        if n_pad % t == 0 and 12 * t * tile_c * 4 <= budget:
            tile_n = t
            break
    # keep >=2 steps on the "parallel" row axis when possible (v7x has 2 TCs)
    while tile_n > 128 and n_pad // tile_n < 2:
        tile_n //= 2
    return tile_n, tile_c


def _pfnet7_kernel(radius, n_valid, mm_dtype, agg_dtype, compute_adj, *refs):
    (x_ref, srow_ref, sTc_ref, hTc_ref,
     wlm_ref, wlM_ref, wlx_ref, bl_ref,
     a1x_ref, a1e_ref, ab1_ref, a2_ref, ab2_ref, a3_ref, ab3_ref,
     a4_ref, ab4_ref,
     c1x_ref, c1e_ref, c1i_ref, cb1_ref, c2_ref, cb2_ref, c3_ref, cb3_ref,
     a4p_ref, c4p_ref, rp_ref, bp_ref) = refs[:29]
    if compute_adj:
        adj_ref, out_ref = refs[29:31]
        acc_sum, acc_max, acc_cnt = refs[31:34]
    else:
        out_ref = refs[29]
        acc_sum, acc_max, acc_cnt = refs[30:33]

    f32 = jnp.float32
    i = pl.program_id(0)
    j = pl.program_id(1)
    nj = pl.num_programs(1)
    tile_n = x_ref.shape[0]
    tile_c = sTc_ref.shape[1]

    # ---- init running accumulators at the first neighbour chunk ----
    @pl.when(j == 0)
    def _():
        acc_sum[...] = jnp.zeros(acc_sum.shape, f32)
        acc_cnt[...] = jnp.zeros(acc_cnt.shape, f32)
        acc_max[...] = jnp.full(acc_max.shape, NEG_INIT, f32)

    s_row = srow_ref[...]                 # (T, 2)
    sT = sTc_ref[...]                     # (2, Tc)
    hT = hTc_ref[...]                     # (32, Tc)

    # ---------------- radius graph on this (T, Tc) block ----------------
    dx = s_row[:, 0:1] - sT[0:1, :]
    dy = s_row[:, 1:2] - sT[1:2, :]
    d2 = dx * dx + dy * dy

    row = jax.lax.broadcasted_iota(jnp.int32, (tile_n, tile_c), 0) + i * tile_n
    col = jax.lax.broadcasted_iota(jnp.int32, (tile_n, tile_c), 1) + j * tile_c
    # radius_graph(loop=False); padded columns (>= n_valid) never neighbours.
    # TODO(synk): radius_graph's max_num_neighbors truncation (data-dependent
    # edge dropping) has no clean dense equivalent; all in-radius edges kept.
    mask = (d2 < radius * radius) & (row != col) & (col < n_valid)
    mask_f = mask.astype(f32)
    w = jnp.where(mask, jnp.exp(-10.0 * d2), 0.0)   # edge weights (f32)

    acc_cnt[...] += jnp.sum(mask_f, axis=1, keepdims=True)

    # mean partial: sum_j(w_ij*h_jk), one MXU matmul per block (bf16 operands)
    w_mm = w.astype(mm_dtype)
    h_mm = hT.astype(mm_dtype)
    acc_sum[...] += jax.lax.dot_general(
        w_mm, h_mm, (((1,), (1,)), ((), ())), preferred_element_type=f32)

    # max partial: 32 lane-max reductions over the (T, Tc) block, folded into
    # the (T, 32) running-max scratch; bf16 on v6e/v7x halves VALU work.
    if agg_dtype == mm_dtype:
        w_ag, h_ag = w_mm, h_mm
    else:
        w_ag, h_ag = w.astype(agg_dtype), hT.astype(agg_dtype)
    neg = jnp.asarray(NEG_INIT, agg_dtype)
    cols = []
    for k in range(HIDDEN_DIM):
        cand = jnp.where(mask, w_ag * h_ag[k:k + 1, :], neg)        # (T, Tc)
        cols.append(jnp.max(cand, axis=1, keepdims=True).astype(f32))
    # per-chunk (T,32) assembly is amortised over tile_c columns of VALU work
    acc_max[...] = jnp.maximum(acc_max[...], jnp.concatenate(cols, axis=-1))

    if compute_adj:
        # bool -> f32 (already materialised for the count) -> int8; no int32
        # intermediate, lane-dense (T, Tc) int8 store.
        adj_ref[...] = mask_f.astype(jnp.int8)

    # ---- finalize + decode MLPs at the last neighbour chunk ----
    @pl.when(j == nj - 1)
    def _():
        x_tile = x_ref[...]                                          # (T, 12)
        cnt = acc_cnt[...]
        mean_agg = acc_sum[...] / jnp.maximum(cnt, 1.0)              # exact mean
        max_agg = jnp.where(cnt > 0.0, acc_max[...], 0.0)

        # lin([mean, max, x]) in split-weight form (no lane-axis concat)
        enc = (jnp.dot(mean_agg, wlm_ref[...], preferred_element_type=f32)
               + jnp.dot(max_agg, wlM_ref[...], preferred_element_type=f32)
               + jnp.dot(x_tile, wlx_ref[...], preferred_element_type=f32)
               + bl_ref[...])                                        # (T, 256)
        x1 = _lrelu(enc)

        # nn2 (first layer split over [x | x1])
        t = _lrelu(jnp.dot(x_tile, a1x_ref[...], preferred_element_type=f32)
                   + jnp.dot(x1, a1e_ref[...], preferred_element_type=f32)
                   + ab1_ref[...])
        t = _lrelu(jnp.dot(t, a2_ref[...], preferred_element_type=f32) + ab2_ref[...])
        t = _lrelu(jnp.dot(t, a3_ref[...], preferred_element_type=f32) + ab3_ref[...])
        cand_ids = jnp.dot(t, a4_ref[...], preferred_element_type=f32) + ab4_ref[...]

        # nn3 (first layer split over [x | x1 | ids])
        u = _lrelu(jnp.dot(x_tile, c1x_ref[...], preferred_element_type=f32)
                   + jnp.dot(x1, c1e_ref[...], preferred_element_type=f32)
                   + jnp.dot(cand_ids, c1i_ref[...], preferred_element_type=f32)
                   + cb1_ref[...])
        u = _lrelu(jnp.dot(u, c2_ref[...], preferred_element_type=f32) + cb2_ref[...])
        u = _lrelu(jnp.dot(u, c3_ref[...], preferred_element_type=f32) + cb3_ref[...])

        # Lane-dense packed output via zero-padded weights (pure MXU):
        #   cols 0:6  = t @ a4 + ab4                  (= cand_ids)
        #   cols 6:10 = u @ c4 + cb4 + x[:, 8:12]     (= cand_p4)
        out_ref[...] = (jnp.dot(t, a4p_ref[...], preferred_element_type=f32)
                        + jnp.dot(u, c4p_ref[...], preferred_element_type=f32)
                        + jnp.dot(x_tile, rp_ref[...], preferred_element_type=f32)
                        + bp_ref[...])                               # (T, 128)


def pfnet7_forward(x, params, radius=RADIUS_DEFAULT, tile_n=None, tile_c=None,
                   matmul_dtype=jnp.bfloat16, agg_dtype=None,
                   compute_adjacency=True):
    """Returns (cand_ids, cand_p4, edge_adjacency) like PFNet7.forward.

    matmul_dtype: MXU operand dtype for the mean aggregation (f32 accumulate).
    agg_dtype:    dtype of the 32-feature max aggregation; default bf16 on
                  chips with a bf16 VALU (v6e/v7x), f32 otherwise (v5e).
    compute_adjacency: skip the (N, N) int8 adjacency output when not needed.
    """
    x = jnp.asarray(x, jnp.float32)
    n = x.shape[0]
    n_pad = _round_up(max(n, 128), 128)

    vmem_cap = _vmem_capacity_bytes()
    auto_tn, auto_tc = _pick_tiles(n_pad, vmem_cap)
    tile_n = min(int(tile_n), n_pad) if tile_n is not None else auto_tn
    tile_c = min(int(tile_c), n_pad) if tile_c is not None else auto_tc
    assert n_pad % tile_n == 0 and tile_n % 32 == 0
    assert n_pad % tile_c == 0 and tile_c % 128 == 0

    mm_dtype = jnp.dtype(matmul_dtype)
    if agg_dtype is None:
        agg_dtype = jnp.bfloat16 if _has_bf16_valu() else jnp.float32
    agg_dtype = jnp.dtype(agg_dtype)

    (ws, bs, wh, bh, wl, bl,
     a1, ab1, a2, ab2, a3, ab3, a4, ab4,
     c1, cb1, c2, cb2, c3, cb3, c4, cb4) = params

    x_pad = jnp.pad(x, ((0, n_pad - n), (0, 0)))

    # Precompute the GravNet encoders once in plain XLA and hand the kernel
    # lane-dense transposed residents (s^T: 2 x Np, h^T: 32 x Np), streamed
    # per column chunk by BlockSpec -- no lane-padded (Np,12) resident copy
    # and no per-tile recompute.
    s = jnp.dot(x_pad, ws) + bs                       # (Np, 2)
    hT = (jnp.dot(x_pad, wh) + bh).T                  # (32, Np)
    sT = s.T                                          # (2, Np)

    # split / pre-sliced weights so the kernel never concatenates lanes
    wl_mean = wl[:HIDDEN_DIM]
    wl_max = wl[HIDDEN_DIM:2 * HIDDEN_DIM]
    wl_x = wl[2 * HIDDEN_DIM:]
    a1_x, a1_e = a1[:INPUT_DIM], a1[INPUT_DIM:]
    c1_x = c1[:INPUT_DIM]
    c1_e = c1[INPUT_DIM:INPUT_DIM + ENCODING_DIM]
    c1_i = c1[INPUT_DIM + ENCODING_DIM:]

    # zero-padded weights for the lane-dense (N, 128) packed output
    a4p = jnp.zeros((HIDDEN_DIM, PACK_W), jnp.float32).at[:, :OUTPUT_DIM_ID].set(a4)
    c4p = jnp.zeros((HIDDEN_DIM, PACK_W), jnp.float32).at[
        :, OUTPUT_DIM_ID:OUTPUT_DIM_ID + OUTPUT_DIM_P4].set(c4)
    rp = jnp.zeros((INPUT_DIM, PACK_W), jnp.float32).at[
        jnp.arange(ELEM_TO_ID_LEN, ELEM_TO_ID_LEN + OUTPUT_DIM_P4),
        jnp.arange(OUTPUT_DIM_ID, OUTPUT_DIM_ID + OUTPUT_DIM_P4)].set(1.0)
    bp = (jnp.zeros((1, PACK_W), jnp.float32)
          .at[:, :OUTPUT_DIM_ID].set(ab4)
          .at[:, OUTPUT_DIM_ID:OUTPUT_DIM_ID + OUTPUT_DIM_P4].set(cb4))

    weights = [wl_mean, wl_max, wl_x, bl,
               a1_x, a1_e, ab1, a2, ab2, a3, ab3, a4, ab4,
               c1_x, c1_e, c1_i, cb1, c2, cb2, c3, cb3,
               a4p, c4p, rp, bp]

    in_specs = [
        pl.BlockSpec((tile_n, INPUT_DIM), lambda i, j: (i, 0)),    # x, row tile
        pl.BlockSpec((tile_n, SPACE_DIM), lambda i, j: (i, 0)),    # s, row tile
        pl.BlockSpec((SPACE_DIM, tile_c), lambda i, j: (0, j)),    # s^T, col chunk
        pl.BlockSpec((HIDDEN_DIM, tile_c), lambda i, j: (0, j)),   # h^T, col chunk
    ]
    in_specs += [pl.BlockSpec(tuple(wt.shape), lambda i, j: (0, 0)) for wt in weights]

    out_shapes, out_specs = [], []
    if compute_adjacency:
        out_shapes.append(jax.ShapeDtypeStruct((n_pad, n_pad), jnp.int8))
        out_specs.append(pl.BlockSpec((tile_n, tile_c), lambda i, j: (i, j)))
    out_shapes.append(jax.ShapeDtypeStruct((n_pad, PACK_W), jnp.float32))
    out_specs.append(pl.BlockSpec((tile_n, PACK_W), lambda i, j: (i, 0)))

    scratch_shapes = [pltpu.VMEM((tile_n, HIDDEN_DIM), jnp.float32),  # sum(w*h)
                      pltpu.VMEM((tile_n, HIDDEN_DIM), jnp.float32),  # max(w*h)
                      pltpu.VMEM((tile_n, 1), jnp.float32)]           # count

    kernel = functools.partial(_pfnet7_kernel, float(radius), int(n),
                               mm_dtype, agg_dtype, bool(compute_adjacency))

    # <= 3/4 of per-core VMEM capacity: ~48 MiB on 64 MiB v7x, ~96 MiB on
    # 128 MiB v5e/v6e -- always enough for the tile heuristic above.
    vmem_limit = max(32 * 2 ** 20, min(vmem_cap * 3 // 4, 112 * 2 ** 20))

    outs = pl.pallas_call(
        kernel,
        out_shape=tuple(out_shapes),
        grid=(n_pad // tile_n, n_pad // tile_c),
        in_specs=in_specs,
        out_specs=tuple(out_specs),
        scratch_shapes=scratch_shapes,
        compiler_params=pltpu.CompilerParams(
            dimension_semantics=("parallel", "arbitrary"),
            vmem_limit_bytes=int(vmem_limit)),
    )(x_pad, s, sT, hT, *weights)

    if compute_adjacency:
        adj, packed = outs
    else:
        packed = outs[0]
        adj = None

    cand_ids = packed[:n, :OUTPUT_DIM_ID]
    cand_p4 = packed[:n, OUTPUT_DIM_ID:OUTPUT_DIM_ID + OUTPUT_DIM_P4]
    edge_adj = adj[:n, :n] if adj is not None else None
    return cand_ids, cand_p4, edge_adj


def init_params(key):
    """Deterministic PyTorch-style Linear init: U(-1/sqrt(fan_in), +1/sqrt(fan_in))."""
    def linear(k, fan_in, fan_out):
        k1, k2 = jax.random.split(k)
        bound = 1.0 / (fan_in ** 0.5)
        w = jax.random.uniform(k1, (fan_in, fan_out), jnp.float32, -bound, bound)
        b = jax.random.uniform(k2, (1, fan_out), jnp.float32, -bound, bound)
        return [w, b]

    keys = jax.random.split(key, 11)
    params = []
    # GravNetConv: lin_s, lin_h, lin
    params += linear(keys[0], INPUT_DIM, SPACE_DIM)
    params += linear(keys[1], INPUT_DIM, HIDDEN_DIM)
    params += linear(keys[2], GRAVNET_LIN_IN, ENCODING_DIM)
    # nn2
    params += linear(keys[3], NUM_DECODE_IN, HIDDEN_DIM)
    params += linear(keys[4], HIDDEN_DIM, HIDDEN_DIM)
    params += linear(keys[5], HIDDEN_DIM, HIDDEN_DIM)
    params += linear(keys[6], HIDDEN_DIM, OUTPUT_DIM_ID)
    # nn3
    params += linear(keys[7], NN3_IN, HIDDEN_DIM)
    params += linear(keys[8], HIDDEN_DIM, HIDDEN_DIM)
    params += linear(keys[9], HIDDEN_DIM, HIDDEN_DIM)
    params += linear(keys[10], HIDDEN_DIM, OUTPUT_DIM_P4)
    return params


def _reference_forward(x, params, radius):
    """Dense pure-JAX forward (same graph semantics) for correctness checking."""
    (ws, bs, wh, bh, wl, bl,
     a1, ab1, a2, ab2, a3, ab3, a4, ab4,
     c1, cb1, c2, cb2, c3, cb3, c4, cb4) = params
    x = jnp.asarray(x, jnp.float32)
    n = x.shape[0]
    s = x @ ws + bs
    h = x @ wh + bh
    dx = s[:, None, 0] - s[None, :, 0]
    dy = s[:, None, 1] - s[None, :, 1]
    d2 = dx * dx + dy * dy
    mask = (d2 < radius * radius) & (~jnp.eye(n, dtype=bool))
    w = jnp.where(mask, jnp.exp(-10.0 * d2), 0.0)
    cnt = jnp.sum(mask, axis=1, keepdims=True).astype(jnp.float32)
    mean_agg = (w @ h) / jnp.maximum(cnt, 1.0)
    prod = jnp.where(mask[:, :, None], w[:, :, None] * h[None, :, :], -jnp.inf)
    max_agg = jnp.where(cnt > 0, jnp.max(prod, axis=1), 0.0)
    x1 = _lrelu(jnp.concatenate([mean_agg, max_agg, x], axis=-1) @ wl + bl)
    t = _lrelu(jnp.concatenate([x, x1], axis=-1) @ a1 + ab1)
    t = _lrelu(t @ a2 + ab2)
    t = _lrelu(t @ a3 + ab3)
    ids = t @ a4 + ab4
    u = _lrelu(jnp.concatenate([x, x1, ids], axis=-1) @ c1 + cb1)
    u = _lrelu(u @ c2 + cb2)
    u = _lrelu(u @ c3 + cb3)
    p4 = x[:, ELEM_TO_ID_LEN:ELEM_TO_ID_LEN + OUTPUT_DIM_P4] + (u @ c4 + cb4)
    return ids, p4, mask.astype(jnp.int8)


if __name__ == "__main__":
    key = jax.random.PRNGKey(0)
    kx, kp = jax.random.split(key)

    # deliberately not a multiple of the tile to exercise the padding path
    N_NODES = 200
    x = jax.random.normal(kx, (N_NODES, INPUT_DIM), jnp.float32)
    params = init_params(kp)

    # radius is a PFNet7 constructor arg; use a larger one so the synthetic
    # s-space actually yields some neighbours.
    RADIUS = 0.5

    # (1) exact-arithmetic run checked against the dense pure-JAX reference;
    #     small explicit tiles force a (2, 2) grid so the cross-chunk
    #     accumulators and the padding path are both exercised.
    ids, p4, adj = pfnet7_forward(x, params, radius=RADIUS, tile_n=128, tile_c=128,
                                  matmul_dtype=jnp.float32, agg_dtype=jnp.float32)
    jax.block_until_ready((ids, p4, adj))
    r_ids, r_p4, r_adj = _reference_forward(x, params, RADIUS)
    assert ids.shape == (N_NODES, OUTPUT_DIM_ID)
    assert p4.shape == (N_NODES, OUTPUT_DIM_P4)
    assert adj.shape == (N_NODES, N_NODES) and adj.dtype == jnp.int8
    assert jnp.array_equal(adj, r_adj)
    assert jnp.allclose(ids, r_ids, rtol=2e-3, atol=2e-3)
    assert jnp.allclose(p4, r_p4, rtol=2e-3, atol=2e-3)

    # (2) default performance path: auto tile sizes, bf16 MXU operands, bf16
    #     max aggregation on chips with a bf16 VALU. Adjacency (f32 distance
    #     math) must still match exactly; candidate outputs loosely.
    ids2, p42, adj2 = pfnet7_forward(x, params, radius=RADIUS)
    jax.block_until_ready((ids2, p42, adj2))
    assert jnp.array_equal(adj2, r_adj)
    assert bool(jnp.all(jnp.isfinite(ids2))) and bool(jnp.all(jnp.isfinite(p42)))
    assert float(jnp.max(jnp.abs(ids2 - r_ids))) < 0.5
    assert float(jnp.max(jnp.abs(p42 - r_p4))) < 0.5

    # (3) adjacency-free path (callers that only need the candidate outputs)
    ids3, p43, none_adj = pfnet7_forward(x, params, radius=RADIUS,
                                         compute_adjacency=False)
    jax.block_until_ready((ids3, p43))
    assert none_adj is None
    assert ids3.shape == (N_NODES, OUTPUT_DIM_ID)

    print("KERNEL_OK")
</pallas_src>

<mosaic_0001>
module attributes {stable_mosaic.version = 11 : i64} {
  func.func @_pfnet7_kernel(%arg0: i32, %arg1: i32, %arg2: memref<128x12xf32, #tpu.memory_space<vmem>>, %arg3: memref<128x2xf32, #tpu.memory_space<vmem>>, %arg4: memref<2x128xf32, #tpu.memory_space<vmem>>, %arg5: memref<32x128xf32, #tpu.memory_space<vmem>>, %arg6: memref<32x256xf32, #tpu.memory_space<vmem>>, %arg7: memref<32x256xf32, #tpu.memory_space<vmem>>, %arg8: memref<12x256xf32, #tpu.memory_space<vmem>>, %arg9: memref<1x256xf32, #tpu.memory_space<vmem>>, %arg10: memref<12x32xf32, #tpu.memory_space<vmem>>, %arg11: memref<256x32xf32, #tpu.memory_space<vmem>>, %arg12: memref<1x32xf32, #tpu.memory_space<vmem>>, %arg13: memref<32x32xf32, #tpu.memory_space<vmem>>, %arg14: memref<1x32xf32, #tpu.memory_space<vmem>>, %arg15: memref<32x32xf32, #tpu.memory_space<vmem>>, %arg16: memref<1x32xf32, #tpu.memory_space<vmem>>, %arg17: memref<32x6xf32, #tpu.memory_space<vmem>>, %arg18: memref<1x6xf32, #tpu.memory_space<vmem>>, %arg19: memref<12x32xf32, #tpu.memory_space<vmem>>, %arg20: memref<256x32xf32, #tpu.memory_space<vmem>>, %arg21: memref<6x32xf32, #tpu.memory_space<vmem>>, %arg22: memref<1x32xf32, #tpu.memory_space<vmem>>, %arg23: memref<32x32xf32, #tpu.memory_space<vmem>>, %arg24: memref<1x32xf32, #tpu.memory_space<vmem>>, %arg25: memref<32x32xf32, #tpu.memory_space<vmem>>, %arg26: memref<1x32xf32, #tpu.memory_space<vmem>>, %arg27: memref<32x128xf32, #tpu.memory_space<vmem>>, %arg28: memref<32x128xf32, #tpu.memory_space<vmem>>, %arg29: memref<12x128xf32, #tpu.memory_space<vmem>>, %arg30: memref<1x128xf32, #tpu.memory_space<vmem>>, %arg31: memref<128x128xi8, #tpu.memory_space<vmem>>, %arg32: memref<128x128xf32, #tpu.memory_space<vmem>>, %arg33: memref<128x32xf32, #tpu.memory_space<vmem>>, %arg34: memref<128x32xf32, #tpu.memory_space<vmem>>, %arg35: memref<128x1xf32, #tpu.memory_space<vmem>>) attributes {dimension_semantics = [#tpu.dimension_semantics<parallel>, #tpu.dimension_semantics<arbitrary>], iteration_bounds = array<i64: 2, 2>, scalar_prefetch = 0 : i64, scratch_operands = 3 : i64, tpu.core_type = #tpu.core_type<tc>, window_params = [{transform_indices = @transform_0, window_bounds = array<i64: 128, 12>}, {transform_indices = @transform_1, window_bounds = array<i64: 128, 2>}, {transform_indices = @transform_2, window_bounds = array<i64: 2, 128>}, {transform_indices = @transform_3, window_bounds = array<i64: 32, 128>}, {pipeline_mode = #tpu.pipeline_mode<synchronous>, transform_indices = @transform_4, window_bounds = array<i64: 32, 256>}, {pipeline_mode = #tpu.pipeline_mode<synchronous>, transform_indices = @transform_5, window_bounds = array<i64: 32, 256>}, {pipeline_mode = #tpu.pipeline_mode<synchronous>, transform_indices = @transform_6, window_bounds = array<i64: 12, 256>}, {pipeline_mode = #tpu.pipeline_mode<synchronous>, transform_indices = @transform_7, window_bounds = array<i64: 1, 256>}, {pipeline_mode = #tpu.pipeline_mode<synchronous>, transform_indices = @transform_8, window_bounds = array<i64: 12, 32>}, {pipeline_mode = #tpu.pipeline_mode<synchronous>, transform_indices = @transform_9, window_bounds = array<i64: 256, 32>}, {pipeline_mode = #tpu.pipeline_mode<synchronous>, transform_indices = @transform_10, window_bounds = array<i64: 1, 32>}, {pipeline_mode = #tpu.pipeline_mode<synchronous>, transform_indices = @transform_11, window_bounds = array<i64: 32, 32>}, {pipeline_mode = #tpu.pipeline_mode<synchronous>, transform_indices = @transform_12, window_bounds = array<i64: 1, 32>}, {pipeline_mode = #tpu.pipeline_mode<synchronous>, transform_indices = @transform_13, window_bounds = array<i64: 32, 32>}, {pipeline_mode = #tpu.pipeline_mode<synchronous>, transform_indices = @transform_14, window_bounds = array<i64: 1, 32>}, {pipeline_mode = #tpu.pipeline_mode<synchronous>, transform_indices = @transform_15, window_bounds = array<i64: 32, 6>}, {pipeline_mode = #tpu.pipeline_mode<synchronous>, transform_indices = @transform_16, window_bounds = array<i64: 1, 6>}, {pipeline_mode = #tpu.pipeline_mode<synchronous>, transform_indices = @transform_17, window_bounds = array<i64: 12, 32>}, {pipeline_mode = #tpu.pipeline_mode<synchronous>, transform_indices = @transform_18, window_bounds = array<i64: 256, 32>}, {pipeline_mode = #tpu.pipeline_mode<synchronous>, transform_indices = @transform_19, window_bounds = array<i64: 6, 32>}, {pipeline_mode = #tpu.pipeline_mode<synchronous>, transform_indices = @transform_20, window_bounds = array<i64: 1, 32>}, {pipeline_mode = #tpu.pipeline_mode<synchronous>, transform_indices = @transform_21, window_bounds = array<i64: 32, 32>}, {pipeline_mode = #tpu.pipeline_mode<synchronous>, transform_indices = @transform_22, window_bounds = array<i64: 1, 32>}, {pipeline_mode = #tpu.pipeline_mode<synchronous>, transform_indices = @transform_23, window_bounds = array<i64: 32, 32>}, {pipeline_mode = #tpu.pipeline_mode<synchronous>, transform_indices = @transform_24, window_bounds = array<i64: 1, 32>}, {pipeline_mode = #tpu.pipeline_mode<synchronous>, transform_indices = @transform_25, window_bounds = array<i64: 32, 128>}, {pipeline_mode = #tpu.pipeline_mode<synchronous>, transform_indices = @transform_26, window_bounds = array<i64: 32, 128>}, {pipeline_mode = #tpu.pipeline_mode<synchronous>, transform_indices = @transform_27, window_bounds = array<i64: 12, 128>}, {pipeline_mode = #tpu.pipeline_mode<synchronous>, transform_indices = @transform_28, window_bounds = array<i64: 1, 128>}, {transform_indices = @transform_29, window_bounds = array<i64: 128, 128>}, {transform_indices = @transform_30, window_bounds = array<i64: 128, 128>}]} {
    %c0_i32 = arith.constant 0 : i32
    %0 = arith.cmpi eq, %arg1, %c0_i32 : i32
    %1 = arith.extui %0 : i1 to i32
    %c0_i32_0 = arith.constant 0 : i32
    %2 = arith.cmpi ne, %1, %c0_i32_0 : i32
    scf.if %2 {
      %cst_90 = arith.constant 0.000000e+00 : f32
      %285 = vector.broadcast %cst_90 : f32 to vector<128x32xf32>
      %c0_91 = arith.constant 0 : index
      %c0_92 = arith.constant 0 : index
      %286 = vector.load %arg33[%c0_91, %c0_92] : memref<128x32xf32, #tpu.memory_space<vmem>>, vector<128x32xf32>
      tpu.vector_store %arg33[%c0_91, %c0_92], %285 {strides = array<i32>} : memref<128x32xf32, #tpu.memory_space<vmem>>, vector<128x32xf32>,
      %cst_93 = arith.constant 0.000000e+00 : f32
      %287 = vector.broadcast %cst_93 : f32 to vector<128x1xf32>
      %c0_94 = arith.constant 0 : index
      %c0_95 = arith.constant 0 : index
      %288 = vector.load %arg35[%c0_94, %c0_95] : memref<128x1xf32, #tpu.memory_space<vmem>>, vector<128x1xf32>
      tpu.vector_store %arg35[%c0_94, %c0_95], %287 {strides = array<i32>} : memref<128x1xf32, #tpu.memory_space<vmem>>, vector<128x1xf32>,
      %cst_96 = arith.constant -1.000000e+30 : f32
      %289 = vector.broadcast %cst_96 : f32 to vector<128x32xf32>
      %c0_97 = arith.constant 0 : index
      %c0_98 = arith.constant 0 : index
      %290 = vector.load %arg34[%c0_97, %c0_98] : memref<128x32xf32, #tpu.memory_space<vmem>>, vector<128x32xf32>
      tpu.vector_store %arg34[%c0_97, %c0_98], %289 {strides = array<i32>} : memref<128x32xf32, #tpu.memory_space<vmem>>, vector<128x32xf32>,
    } else {
    }
    %c0 = arith.constant 0 : index
    %c0_1 = arith.constant 0 : index
    %3 = vector.load %arg3[%c0, %c0_1] : memref<128x2xf32, #tpu.memory_space<vmem>>, vector<128x2xf32>
    %c0_2 = arith.constant 0 : index
    %c0_3 = arith.constant 0 : index
    %4 = vector.load %arg4[%c0_2, %c0_3] : memref<2x128xf32, #tpu.memory_space<vmem>>, vector<2x128xf32>
    %c0_4 = arith.constant 0 : index
    %c0_5 = arith.constant 0 : index
    %5 = vector.load %arg5[%c0_4, %c0_5] : memref<32x128xf32, #tpu.memory_space<vmem>>, vector<32x128xf32>
    %6 = vector.extract_strided_slice %3 {offsets = [0, 0], sizes = [128, 1], strides = [1, 1]} : vector<128x2xf32> to vector<128x1xf32>
    %7 = vector.extract_strided_slice %4 {offsets = [0, 0], sizes = [1, 128], strides = [1, 1]} : vector<2x128xf32> to vector<1x128xf32>
    %8 = vector.broadcast %6 : vector<128x1xf32> to vector<128x128xf32>
    %9 = vector.broadcast %7 : vector<1x128xf32> to vector<128x128xf32>
    %10 = arith.subf %8, %9 : vector<128x128xf32>
    %11 = vector.extract_strided_slice %3 {offsets = [0, 1], sizes = [128, 1], strides = [1, 1]} : vector<128x2xf32> to vector<128x1xf32>
    %12 = vector.extract_strided_slice %4 {offsets = [1, 0], sizes = [1, 128], strides = [1, 1]} : vector<2x128xf32> to vector<1x128xf32>
    %13 = vector.broadcast %11 : vector<128x1xf32> to vector<128x128xf32>
    %14 = vector.broadcast %12 : vector<1x128xf32> to vector<128x128xf32>
    %15 = arith.subf %13, %14 : vector<128x128xf32>
    %16 = arith.mulf %10, %10 : vector<128x128xf32>
    %17 = arith.mulf %15, %15 : vector<128x128xf32>
    %18 = arith.addf %16, %17 : vector<128x128xf32>
    %19 = tpu.iota {dimensions = array<i32: 0>} : vector<128x128xi32>
    %c128_i32 = arith.constant 128 : i32
    %20 = arith.muli %arg0, %c128_i32 : i32
    %21 = vector.broadcast %20 : i32 to vector<128x128xi32>
    %22 = arith.addi %19, %21 : vector<128x128xi32>
    %23 = tpu.iota {dimensions = array<i32: 1>} : vector<128x128xi32>
    %c128_i32_6 = arith.constant 128 : i32
    %24 = arith.muli %arg1, %c128_i32_6 : i32
    %25 = vector.broadcast %24 : i32 to vector<128x128xi32>
    %26 = arith.addi %23, %25 : vector<128x128xi32>
    %cst = arith.constant 2.500000e-01 : f32
    %27 = vector.broadcast %cst : f32 to vector<128x128xf32>
    %28 = arith.cmpf olt, %18, %27 : vector<128x128xf32>
    %29 = arith.cmpi ne, %22, %26 : vector<128x128xi32>
    %30 = arith.andi %28, %29 : vector<128x128xi1>
    %c200_i32 = arith.constant 200 : i32
    %31 = vector.broadcast %c200_i32 : i32 to vector<128x128xi32>
    %32 = arith.cmpi slt, %26, %31 : vector<128x128xi32>
    %33 = arith.andi %30, %32 : vector<128x128xi1>
    %34 = arith.extui %33 : vector<128x128xi1> to vector<128x128xi32>
    %35 = arith.sitofp %34 : vector<128x128xi32> to vector<128x128xf32>
    %cst_7 = arith.constant -1.000000e+01 : f32
    %36 = vector.broadcast %cst_7 : f32 to vector<128x128xf32>
    %37 = arith.mulf %36, %18 : vector<128x128xf32>
    %38 = math.exp %37 : vector<128x128xf32>
    %cst_8 = arith.constant 0.000000e+00 : f32
    %39 = vector.broadcast %cst_8 : f32 to vector<128x128xf32>
    %40 = arith.select %33, %38, %39 : vector<128x128xi1>, vector<128x128xf32>
    %c0_9 = arith.constant 0 : index
    %c0_10 = arith.constant 0 : index
    %41 = vector.load %arg35[%c0_9, %c0_10] : memref<128x1xf32, #tpu.memory_space<vmem>>, vector<128x1xf32>
    %cst_11 = arith.constant dense<0.000000e+00> : vector<128xf32>
    %42 = vector.multi_reduction <add>, %35, %cst_11 [1] : vector<128x128xf32> to vector<128xf32>
    %43 = vector.shape_cast %42 : vector<128xf32> to vector<128x1xf32>
    %44 = arith.addf %41, %43 : vector<128x1xf32>
    %c0_12 = arith.constant 0 : index
    %c0_13 = arith.constant 0 : index
    %45 = vector.load %arg35[%c0_12, %c0_13] : memref<128x1xf32, #tpu.memory_space<vmem>>, vector<128x1xf32>
    tpu.vector_store %arg35[%c0_12, %c0_13], %44 {strides = array<i32>} : memref<128x1xf32, #tpu.memory_space<vmem>>, vector<128x1xf32>,
    %c0_14 = arith.constant 0 : index
    %c0_15 = arith.constant 0 : index
    %46 = vector.load %arg33[%c0_14, %c0_15] : memref<128x32xf32, #tpu.memory_space<vmem>>, vector<128x32xf32>
    %cst_16 = arith.constant dense<0.000000e+00> : vector<128x32xf32>
    %47 = tpu.matmul %40, %5, %cst_16 {dimension_numbers = #tpu.dot_dimension_numbers<[1], [1], [0], [0], [0, 0, 1, 0], [], []>} : vector<128x128xf32>, vector<32x128xf32>, vector<128x32xf32> -> vector<128x32xf32>
    %48 = arith.addf %46, %47 : vector<128x32xf32>
    %c0_17 = arith.constant 0 : index
    %c0_18 = arith.constant 0 : index
    %49 = vector.load %arg33[%c0_17, %c0_18] : memref<128x32xf32, #tpu.memory_space<vmem>>, vector<128x32xf32>
    tpu.vector_store %arg33[%c0_17, %c0_18], %48 {strides = array<i32>} : memref<128x32xf32, #tpu.memory_space<vmem>>, vector<128x32xf32>,
    %50 = vector.extract_strided_slice %5 {offsets = [0, 0], sizes = [1, 128], strides = [1, 1]} : vector<32x128xf32> to vector<1x128xf32>
    %51 = vector.broadcast %50 : vector<1x128xf32> to vector<128x128xf32>
    %52 = arith.mulf %40, %51 : vector<128x128xf32>
    %cst_19 = arith.constant -1.000000e+30 : f32
    %53 = vector.broadcast %cst_19 : f32 to vector<128x128xf32>
    %54 = arith.select %33, %52, %53 : vector<128x128xi1>, vector<128x128xf32>
    %cst_20 = arith.constant dense<0xFF800000> : vector<128xf32>
    %55 = vector.multi_reduction <maximumf>, %54, %cst_20 [1] : vector<128x128xf32> to vector<128xf32>
    %56 = vector.shape_cast %55 : vector<128xf32> to vector<128x1xf32>
    %57 = vector.extract_strided_slice %5 {offsets = [1, 0], sizes = [1, 128], strides = [1, 1]} : vector<32x128xf32> to vector<1x128xf32>
    %58 = vector.broadcast %57 : vector<1x128xf32> to vector<128x128xf32>
    %59 = arith.mulf %40, %58 : vector<128x128xf32>
    %cst_21 = arith.constant -1.000000e+30 : f32
    %60 = vector.broadcast %cst_21 : f32 to vector<128x128xf32>
    %61 = arith.select %33, %59, %60 : vector<128x128xi1>, vector<128x128xf32>
    %cst_22 = arith.constant dense<0xFF800000> : vector<128xf32>
    %62 = vector.multi_reduction <maximumf>, %61, %cst_22 [1] : vector<128x128xf32> to vector<128xf32>
    %63 = vector.shape_cast %62 : vector<128xf32> to vector<128x1xf32>
    %64 = vector.extract_strided_slice %5 {offsets = [2, 0], sizes = [1, 128], strides = [1, 1]} : vector<32x128xf32> to vector<1x128xf32>
    %65 = vector.broadcast %64 : vector<1x128xf32> to vector<128x128xf32>
    %66 = arith.mulf %40, %65 : vector<128x128xf32>
    %cst_23 = arith.constant -1.000000e+30 : f32
    %67 = vector.broadcast %cst_23 : f32 to vector<128x128xf32>
    %68 = arith.select %33, %66, %67 : vector<128x128xi1>, vector<128x128xf32>
    %cst_24 = arith.constant dense<0xFF800000> : vector<128xf32>
    %69 = vector.multi_reduction <maximumf>, %68, %cst_24 [1] : vector<128x128xf32> to vector<128xf32>
    %70 = vector.shape_cast %69 : vector<128xf32> to vector<128x1xf32>
    %71 = vector.extract_strided_slice %5 {offsets = [3, 0], sizes = [1, 128], strides = [1, 1]} : vector<32x128xf32> to vector<1x128xf32>
    %72 = vector.broadcast %71 : vector<1x128xf32> to vector<128x128xf32>
    %73 = arith.mulf %40, %72 : vector<128x128xf32>
    %cst_25 = arith.constant -1.000000e+30 : f32
    %74 = vector.broadcast %cst_25 : f32 to vector<128x128xf32>
    %75 = arith.select %33, %73, %74 : vector<128x128xi1>, vector<128x128xf32>
    %cst_26 = arith.constant dense<0xFF800000> : vector<128xf32>
    %76 = vector.multi_reduction <maximumf>, %75, %cst_26 [1] : vector<128x128xf32> to vector<128xf32>
    %77 = vector.shape_cast %76 : vector<128xf32> to vector<128x1xf32>
    %78 = vector.extract_strided_slice %5 {offsets = [4, 0], sizes = [1, 128], strides = [1, 1]} : vector<32x128xf32> to vector<1x128xf32>
    %79 = vector.broadcast %78 : vector<1x128xf32> to vector<128x128xf32>
    %80 = arith.mulf %40, %79 : vector<128x128xf32>
    %cst_27 = arith.constant -1.000000e+30 : f32
    %81 = vector.broadcast %cst_27 : f32 to vector<128x128xf32>
    %82 = arith.select %33, %80, %81 : vector<128x128xi1>, vector<128x128xf32>
    %cst_28 = arith.constant dense<0xFF800000> : vector<128xf32>
    %83 = vector.multi_reduction <maximumf>, %82, %cst_28 [1] : vector<128x128xf32> to vector<128xf32>
    %84 = vector.shape_cast %83 : vector<128xf32> to vector<128x1xf32>
    %85 = vector.extract_strided_slice %5 {offsets = [5, 0], sizes = [1, 128], strides = [1, 1]} : vector<32x128xf32> to vector<1x128xf32>
    %86 = vector.broadcast %85 : vector<1x128xf32> to vector<128x128xf32>
    %87 = arith.mulf %40, %86 : vector<128x128xf32>
    %cst_29 = arith.constant -1.000000e+30 : f32
    %88 = vector.broadcast %cst_29 : f32 to vector<128x128xf32>
    %89 = arith.select %33, %87, %88 : vector<128x128xi1>, vector<128x128xf32>
    %cst_30 = arith.constant dense<0xFF800000> : vector<128xf32>
    %90 = vector.multi_reduction <maximumf>, %89, %cst_30 [1] : vector<128x128xf32> to vector<128xf32>
    %91 = vector.shape_cast %90 : vector<128xf32> to vector<128x1xf32>
    %92 = vector.extract_strided_slice %5 {offsets = [6, 0], sizes = [1, 128], strides = [1, 1]} : vector<32x128xf32> to vector<1x128xf32>
    %93 = vector.broadcast %92 : vector<1x128xf32> to vector<128x128xf32>
    %94 = arith.mulf %40, %93 : vector<128x128xf32>
    %cst_31 = arith.constant -1.000000e+30 : f32
    %95 = vector.broadcast %cst_31 : f32 to vector<128x128xf32>
    %96 = arith.select %33, %94, %95 : vector<128x128xi1>, vector<128x128xf32>
    %cst_32 = arith.constant dense<0xFF800000> : vector<128xf32>
    %97 = vector.multi_reduction <maximumf>, %96, %cst_32 [1] : vector<128x128xf32> to vector<128xf32>
    %98 = vector.shape_cast %97 : vector<128xf32> to vector<128x1xf32>
    %99 = vector.extract_strided_slice %5 {offsets = [7, 0], sizes = [1, 128], strides = [1, 1]} : vector<32x128xf32> to vector<1x128xf32>
    %100 = vector.broadcast %99 : vector<1x128xf32> to vector<128x128xf32>
    %101 = arith.mulf %40, %100 : vector<128x128xf32>
    %cst_33 = arith.constant -1.000000e+30 : f32
    %102 = vector.broadcast %cst_33 : f32 to vector<128x128xf32>
    %103 = arith.select %33, %101, %102 : vector<128x128xi1>, vector<128x128xf32>
    %cst_34 = arith.constant dense<0xFF800000> : vector<128xf32>
    %104 = vector.multi_reduction <maximumf>, %103, %cst_34 [1] : vector<128x128xf32> to vector<128xf32>
    %105 = vector.shape_cast %104 : vector<128xf32> to vector<128x1xf32>
    %106 = vector.extract_strided_slice %5 {offsets = [8, 0], sizes = [1, 128], strides = [1, 1]} : vector<32x128xf32> to vector<1x128xf32>
    %107 = vector.broadcast %106 : vector<1x128xf32> to vector<128x128xf32>
    %108 = arith.mulf %40, %107 : vector<128x128xf32>
    %cst_35 = arith.constant -1.000000e+30 : f32
    %109 = vector.broadcast %cst_35 : f32 to vector<128x128xf32>
    %110 = arith.select %33, %108, %109 : vector<128x128xi1>, vector<128x128xf32>
    %cst_36 = arith.constant dense<0xFF800000> : vector<128xf32>
    %111 = vector.multi_reduction <maximumf>, %110, %cst_36 [1] : vector<128x128xf32> to vector<128xf32>
    %112 = vector.shape_cast %111 : vector<128xf32> to vector<128x1xf32>
    %113 = vector.extract_strided_slice %5 {offsets = [9, 0], sizes = [1, 128], strides = [1, 1]} : vector<32x128xf32> to vector<1x128xf32>
    %114 = vector.broadcast %113 : vector<1x128xf32> to vector<128x128xf32>
    %115 = arith.mulf %40, %114 : vector<128x128xf32>
    %cst_37 = arith.constant -1.000000e+30 : f32
    %116 = vector.broadcast %cst_37 : f32 to vector<128x128xf32>
    %117 = arith.select %33, %115, %116 : vector<128x128xi1>, vector<128x128xf32>
    %cst_38 = arith.constant dense<0xFF800000> : vector<128xf32>
    %118 = vector.multi_reduction <maximumf>, %117, %cst_38 [1] : vector<128x128xf32> to vector<128xf32>
    %119 = vector.shape_cast %118 : vector<128xf32> to vector<128x1xf32>
    %120 = vector.extract_strided_slice %5 {offsets = [10, 0], sizes = [1, 128], strides = [1, 1]} : vector<32x128xf32> to vector<1x128xf32>
    %121 = vector.broadcast %120 : vector<1x128xf32> to vector<128x128xf32>
    %122 = arith.mulf %40, %121 : vector<128x128xf32>
    %cst_39 = arith.constant -1.000000e+30 : f32
    %123 = vector.broadcast %cst_39 : f32 to vector<128x128xf32>
    %124 = arith.select %33, %122, %123 : vector<128x128xi1>, vector<128x128xf32>
    %cst_40 = arith.constant dense<0xFF800000> : vector<128xf32>
    %125 = vector.multi_reduction <maximumf>, %124, %cst_40 [1] : vector<128x128xf32> to vector<128xf32>
    %126 = vector.shape_cast %125 : vector<128xf32> to vector<128x1xf32>
    %127 = vector.extract_strided_slice %5 {offsets = [11, 0], sizes = [1, 128], strides = [1, 1]} : vector<32x128xf32> to vector<1x128xf32>
    %128 = vector.broadcast %127 : vector<1x128xf32> to vector<128x128xf32>
    %129 = arith.mulf %40, %128 : vector<128x128xf32>
    %cst_41 = arith.constant -1.000000e+30 : f32
    %130 = vector.broadcast %cst_41 : f32 to vector<128x128xf32>
    %131 = arith.select %33, %129, %130 : vector<128x128xi1>, vector<128x128xf32>
    %cst_42 = arith.constant dense<0xFF800000> : vector<128xf32>
    %132 = vector.multi_reduction <maximumf>, %131, %cst_42 [1] : vector<128x128xf32> to vector<128xf32>
    %133 = vector.shape_cast %132 : vector<128xf32> to vector<128x1xf32>
    %134 = vector.extract_strided_slice %5 {offsets = [12, 0], sizes = [1, 128], strides = [1, 1]} : vector<32x128xf32> to vector<1x128xf32>
    %135 = vector.broadcast %134 : vector<1x128xf32> to vector<128x128xf32>
    %136 = arith.mulf %40, %135 : vector<128x128xf32>
    %cst_43 = arith.constant -1.000000e+30 : f32
    %137 = vector.broadcast %cst_43 : f32 to vector<128x128xf32>
    %138 = arith.select %33, %136, %137 : vector<128x128xi1>, vector<128x128xf32>
    %cst_44 = arith.constant dense<0xFF800000> : vector<128xf32>
    %139 = vector.multi_reduction <maximumf>, %138, %cst_44 [1] : vector<128x128xf32> to vector<128xf32>
    %140 = vector.shape_cast %139 : vector<128xf32> to vector<128x1xf32>
    %141 = vector.extract_strided_slice %5 {offsets = [13, 0], sizes = [1, 128], strides = [1, 1]} : vector<32x128xf32> to vector<1x128xf32>
    %142 = vector.broadcast %141 : vector<1x128xf32> to vector<128x128xf32>
    %143 = arith.mulf %40, %142 : vector<128x128xf32>
    %cst_45 = arith.constant -1.000000e+30 : f32
    %144 = vector.broadcast %cst_45 : f32 to vector<128x128xf32>
    %145 = arith.select %33, %143, %144 : vector<128x128xi1>, vector<128x128xf32>
    %cst_46 = arith.constant dense<0xFF800000> : vector<128xf32>
    %146 = vector.multi_reduction <maximumf>, %145, %cst_46 [1] : vector<128x128xf32> to vector<128xf32>
    %147 = vector.shape_cast %146 : vector<128xf32> to vector<128x1xf32>
    %148 = vector.extract_strided_slice %5 {offsets = [14, 0], sizes = [1, 128], strides = [1, 1]} : vector<32x128xf32> to vector<1x128xf32>
    %149 = vector.broadcast %148 : vector<1x128xf32> to vector<128x128xf32>
    %150 = arith.mulf %40, %149 : vector<128x128xf32>
    %cst_47 = arith.constant -1.000000e+30 : f32
    %151 = vector.broadcast %cst_47 : f32 to vector<128x128xf32>
    %152 = arith.select %33, %150, %151 : vector<128x128xi1>, vector<128x128xf32>
    %cst_48 = arith.constant dense<0xFF800000> : vector<128xf32>
    %153 = vector.multi_reduction <maximumf>, %152, %cst_48 [1] : vector<128x128xf32> to vector<128xf32>
    %154 = vector.shape_cast %153 : vector<128xf32> to vector<128x1xf32>
    %155 = vector.extract_strided_slice %5 {offsets = [15, 0], sizes = [1, 128], strides = [1, 1]} : vector<32x128xf32> to vector<1x128xf32>
    %156 = vector.broadcast %155 : vector<1x128xf32> to vector<128x128xf32>
    %157 = arith.mulf %40, %156 : vector<128x128xf32>
    %cst_49 = arith.constant -1.000000e+30 : f32
    %158 = vector.broadcast %cst_49 : f32 to vector<128x128xf32>
    %159 = arith.select %33, %157, %158 : vector<128x128xi1>, vector<128x128xf32>
    %cst_50 = arith.constant dense<0xFF800000> : vector<128xf32>
    %160 = vector.multi_reduction <maximumf>, %159, %cst_50 [1] : vector<128x128xf32> to vector<128xf32>
    %161 = vector.shape_cast %160 : vector<128xf32> to vector<128x1xf32>
    %162 = vector.extract_strided_slice %5 {offsets = [16, 0], sizes = [1, 128], strides = [1, 1]} : vector<32x128xf32> to vector<1x128xf32>
    %163 = vector.broadcast %162 : vector<1x128xf32> to vector<128x128xf32>
    %164 = arith.mulf %40, %163 : vector<128x128xf32>
    %cst_51 = arith.constant -1.000000e+30 : f32
    %165 = vector.broadcast %cst_51 : f32 to vector<128x128xf32>
    %166 = arith.select %33, %164, %165 : vector<128x128xi1>, vector<128x128xf32>
    %cst_52 = arith.constant dense<0xFF800000> : vector<128xf32>
    %167 = vector.multi_reduction <maximumf>, %166, %cst_52 [1] : vector<128x128xf32> to vector<128xf32>
    %168 = vector.shape_cast %167 : vector<128xf32> to vector<128x1xf32>
    %169 = vector.extract_strided_slice %5 {offsets = [17, 0], sizes = [1, 128], strides = [1, 1]} : vector<32x128xf32> to vector<1x128xf32>
    %170 = vector.broadcast %169 : vector<1x128xf32> to vector<128x128xf32>
    %171 = arith.mulf %40, %170 : vector<128x128xf32>
    %cst_53 = arith.constant -1.000000e+30 : f32
    %172 = vector.broadcast %cst_53 : f32 to vector<128x128xf32>
    %173 = arith.select %33, %171, %172 : vector<128x128xi1>, vector<128x128xf32>
    %cst_54 = arith.constant dense<0xFF800000> : vector<128xf32>
    %174 = vector.multi_reduction <maximumf>, %173, %cst_54 [1] : vector<128x128xf32> to vector<128xf32>
    %175 = vector.shape_cast %174 : vector<128xf32> to vector<128x1xf32>
    %176 = vector.extract_strided_slice %5 {offsets = [18, 0], sizes = [1, 128], strides = [1, 1]} : vector<32x128xf32> to vector<1x128xf32>
    %177 = vector.broadcast %176 : vector<1x128xf32> to vector<128x128xf32>
    %178 = arith.mulf %40, %177 : vector<128x128xf32>
    %cst_55 = arith.constant -1.000000e+30 : f32
    %179 = vector.broadcast %cst_55 : f32 to vector<128x128xf32>
    %180 = arith.select %33, %178, %179 : vector<128x128xi1>, vector<128x128xf32>
    %cst_56 = arith.constant dense<0xFF800000> : vector<128xf32>
    %181 = vector.multi_reduction <maximumf>, %180, %cst_56 [1] : vector<128x128xf32> to vector<128xf32>
    %182 = vector.shape_cast %181 : vector<128xf32> to vector<128x1xf32>
    %183 = vector.extract_strided_slice %5 {offsets = [19, 0], sizes = [1, 128], strides = [1, 1]} : vector<32x128xf32> to vector<1x128xf32>
    %184 = vector.broadcast %183 : vector<1x128xf32> to vector<128x128xf32>
    %185 = arith.mulf %40, %184 : vector<128x128xf32>
    %cst_57 = arith.constant -1.000000e+30 : f32
    %186 = vector.broadcast %cst_57 : f32 to vector<128x128xf32>
    %187 = arith.select %33, %185, %186 : vector<128x128xi1>, vector<128x128xf32>
    %cst_58 = arith.constant dense<0xFF800000> : vector<128xf32>
    %188 = vector.multi_reduction <maximumf>, %187, %cst_58 [1] : vector<128x128xf32> to vector<128xf32>
    %189 = vector.shape_cast %188 : vector<128xf32> to vector<128x1xf32>
    %190 = vector.extract_strided_slice %5 {offsets = [20, 0], sizes = [1, 128], strides = [1, 1]} : vector<32x128xf32> to vector<1x128xf32>
    %191 = vector.broadcast %190 : vector<1x128xf32> to vector<128x128xf32>
    %192 = arith.mulf %40, %191 : vector<128x128xf32>
    %cst_59 = arith.constant -1.000000e+30 : f32
    %193 = vector.broadcast %cst_59 : f32 to vector<128x128xf32>
    %194 = arith.select %33, %192, %193 : vector<128x128xi1>, vector<128x128xf32>
    %cst_60 = arith.constant dense<0xFF800000> : vector<128xf32>
    %195 = vector.multi_reduction <maximumf>, %194, %cst_60 [1] : vector<128x128xf32> to vector<128xf32>
    %196 = vector.shape_cast %195 : vector<128xf32> to vector<128x1xf32>
    %197 = vector.extract_strided_slice %5 {offsets = [21, 0], sizes = [1, 128], strides = [1, 1]} : vector<32x128xf32> to vector<1x128xf32>
    %198 = vector.broadcast %197 : vector<1x128xf32> to vector<128x128xf32>
    %199 = arith.mulf %40, %198 : vector<128x128xf32>
    %cst_61 = arith.constant -1.000000e+30 : f32
    %200 = vector.broadcast %cst_61 : f32 to vector<128x128xf32>
    %201 = arith.select %33, %199, %200 : vector<128x128xi1>, vector<128x128xf32>
    %cst_62 = arith.constant dense<0xFF800000> : vector<128xf32>
    %202 = vector.multi_reduction <maximumf>, %201, %cst_62 [1] : vector<128x128xf32> to vector<128xf32>
    %203 = vector.shape_cast %202 : vector<128xf32> to vector<128x1xf32>
    %204 = vector.extract_strided_slice %5 {offsets = [22, 0], sizes = [1, 128], strides = [1, 1]} : vector<32x128xf32> to vector<1x128xf32>
    %205 = vector.broadcast %204 : vector<1x128xf32> to vector<128x128xf32>
    %206 = arith.mulf %40, %205 : vector<128x128xf32>
    %cst_63 = arith.constant -1.000000e+30 : f32
    %207 = vector.broadcast %cst_63 : f32 to vector<128x128xf32>
    %208 = arith.select %33, %206, %207 : vector<128x128xi1>, vector<128x128xf32>
    %cst_64 = arith.constant dense<0xFF800000> : vector<128xf32>
    %209 = vector.multi_reduction <maximumf>, %208, %cst_64 [1] : vector<128x128xf32> to vector<128xf32>
    %210 = vector.shape_cast %209 : vector<128xf32> to vector<128x1xf32>
    %211 = vector.extract_strided_slice %5 {offsets = [23, 0], sizes = [1, 128], strides = [1, 1]} : vector<32x128xf32> to vector<1x128xf32>
    %212 = vector.broadcast %211 : vector<1x128xf32> to vector<128x128xf32>
    %213 = arith.mulf %40, %212 : vector<128x128xf32>
    %cst_65 = arith.constant -1.000000e+30 : f32
    %214 = vector.broadcast %cst_65 : f32 to vector<128x128xf32>
    %215 = arith.select %33, %213, %214 : vector<128x128xi1>, vector<128x128xf32>
    %cst_66 = arith.constant dense<0xFF800000> : vector<128xf32>
    %216 = vector.multi_reduction <maximumf>, %215, %cst_66 [1] : vector<128x128xf32> to vector<128xf32>
    %217 = vector.shape_cast %216 : vector<128xf32> to vector<128x1xf32>
    %218 = vector.extract_strided_slice %5 {offsets = [24, 0], sizes = [1, 128], strides = [1, 1]} : vector<32x128xf32> to vector<1x128xf32>
    %219 = vector.broadcast %218 : vector<1x128xf32> to vector<128x128xf32>
    %220 = arith.mulf %40, %219 : vector<128x128xf32>
    %cst_67 = arith.constant -1.000000e+30 : f32
    %221 = vector.broadcast %cst_67 : f32 to vector<128x128xf32>
    %222 = arith.select %33, %220, %221 : vector<128x128xi1>, vector<128x128xf32>
    %cst_68 = arith.constant dense<0xFF800000> : vector<128xf32>
    %223 = vector.multi_reduction <maximumf>, %222, %cst_68 [1] : vector<128x128xf32> to vector<128xf32>
    %224 = vector.shape_cast %223 : vector<128xf32> to vector<128x1xf32>
    %225 = vector.extract_strided_slice %5 {offsets = [25, 0], sizes = [1, 128], strides = [1, 1]} : vector<32x128xf32> to vector<1x128xf32>
    %226 = vector.broadcast %225 : vector<1x128xf32> to vector<128x128xf32>
    %227 = arith.mulf %40, %226 : vector<128x128xf32>
    %cst_69 = arith.constant -1.000000e+30 : f32
    %228 = vector.broadcast %cst_69 : f32 to vector<128x128xf32>
    %229 = arith.select %33, %227, %228 : vector<128x128xi1>, vector<128x128xf32>
    %cst_70 = arith.constant dense<0xFF800000> : vector<128xf32>
    %230 = vector.multi_reduction <maximumf>, %229, %cst_70 [1] : vector<128x128xf32> to vector<128xf32>
    %231 = vector.shape_cast %230 : vector<128xf32> to vector<128x1xf32>
    %232 = vector.extract_strided_slice %5 {offsets = [26, 0], sizes = [1, 128], strides = [1, 1]} : vector<32x128xf32> to vector<1x128xf32>
    %233 = vector.broadcast %232 : vector<1x128xf32> to vector<128x128xf32>
    %234 = arith.mulf %40, %233 : vector<128x128xf32>
    %cst_71 = arith.constant -1.000000e+30 : f32
    %235 = vector.broadcast %cst_71 : f32 to vector<128x128xf32>
    %236 = arith.select %33, %234, %235 : vector<128x128xi1>, vector<128x128xf32>
    %cst_72 = arith.constant dense<0xFF800000> : vector<128xf32>
    %237 = vector.multi_reduction <maximumf>, %236, %cst_72 [1] : vector<128x128xf32> to vector<128xf32>
    %238 = vector.shape_cast %237 : vector<128xf32> to vector<128x1xf32>
    %239 = vector.extract_strided_slice %5 {offsets = [27, 0], sizes = [1, 128], strides = [1, 1]} : vector<32x128xf32> to vector<1x128xf32>
    %240 = vector.broadcast %239 : vector<1x128xf32> to vector<128x128xf32>
    %241 = arith.mulf %40, %240 : vector<128x128xf32>
    %cst_73 = arith.constant -1.000000e+30 : f32
    %242 = vector.broadcast %cst_73 : f32 to vector<128x128xf32>
    %243 = arith.select %33, %241, %242 : vector<128x128xi1>, vector<128x128xf32>
    %cst_74 = arith.constant dense<0xFF800000> : vector<128xf32>
    %244 = vector.multi_reduction <maximumf>, %243, %cst_74 [1] : vector<128x128xf32> to vector<128xf32>
    %245 = vector.shape_cast %244 : vector<128xf32> to vector<128x1xf32>
    %246 = vector.extract_strided_slice %5 {offsets = [28, 0], sizes = [1, 128], strides = [1, 1]} : vector<32x128xf32> to vector<1x128xf32>
    %247 = vector.broadcast %246 : vector<1x128xf32> to vector<128x128xf32>
    %248 = arith.mulf %40, %247 : vector<128x128xf32>
    %cst_75 = arith.constant -1.000000e+30 : f32
    %249 = vector.broadcast %cst_75 : f32 to vector<128x128xf32>
    %250 = arith.select %33, %248, %249 : vector<128x128xi1>, vector<128x128xf32>
    %cst_76 = arith.constant dense<0xFF800000> : vector<128xf32>
    %251 = vector.multi_reduction <maximumf>, %250, %cst_76 [1] : vector<128x128xf32> to vector<128xf32>
    %252 = vector.shape_cast %251 : vector<128xf32> to vector<128x1xf32>
    %253 = vector.extract_strided_slice %5 {offsets = [29, 0], sizes = [1, 128], strides = [1, 1]} : vector<32x128xf32> to vector<1x128xf32>
    %254 = vector.broadcast %253 : vector<1x128xf32> to vector<128x128xf32>
    %255 = arith.mulf %40, %254 : vector<128x128xf32>
    %cst_77 = arith.constant -1.000000e+30 : f32
    %256 = vector.broadcast %cst_77 : f32 to vector<128x128xf32>
    %257 = arith.select %33, %255, %256 : vector<128x128xi1>, vector<128x128xf32>
    %cst_78 = arith.constant dense<0xFF800000> : vector<128xf32>
    %258 = vector.multi_reduction <maximumf>, %257, %cst_78 [1] : vector<128x128xf32> to vector<128xf32>
    %259 = vector.shape_cast %258 : vector<128xf32> to vector<128x1xf32>
    %260 = vector.extract_strided_slice %5 {offsets = [30, 0], sizes = [1, 128], strides = [1, 1]} : vector<32x128xf32> to vector<1x128xf32>
    %261 = vector.broadcast %260 : vector<1x128xf32> to vector<128x128xf32>
    %262 = arith.mulf %40, %261 : vector<128x128xf32>
    %cst_79 = arith.constant -1.000000e+30 : f32
    %263 = vector.broadcast %cst_79 : f32 to vector<128x128xf32>
    %264 = arith.select %33, %262, %263 : vector<128x128xi1>, vector<128x128xf32>
    %cst_80 = arith.constant dense<0xFF800000> : vector<128xf32>
    %265 = vector.multi_reduction <maximumf>, %264, %cst_80 [1] : vector<128x128xf32> to vector<128xf32>
    %266 = vector.shape_cast %265 : vector<128xf32> to vector<128x1xf32>
    %267 = vector.extract_strided_slice %5 {offsets = [31, 0], sizes = [1, 128], strides = [1, 1]} : vector<32x128xf32> to vector<1x128xf32>
    %268 = vector.broadcast %267 : vector<1x128xf32> to vector<128x128xf32>
    %269 = arith.mulf %40, %268 : vector<128x128xf32>
    %cst_81 = arith.constant -1.000000e+30 : f32
    %270 = vector.broadcast %cst_81 : f32 to vector<128x128xf32>
    %271 = arith.select %33, %269, %270 : vector<128x128xi1>, vector<128x128xf32>
    %cst_82 = arith.constant dense<0xFF800000> : vector<128xf32>
    %272 = vector.multi_reduction <maximumf>, %271, %cst_82 [1] : vector<128x128xf32> to vector<128xf32>
    %273 = vector.shape_cast %272 : vector<128xf32> to vector<128x1xf32>
    %c0_83 = arith.constant 0 : index
    %c0_84 = arith.constant 0 : index
    %274 = vector.load %arg34[%c0_83, %c0_84] : memref<128x32xf32, #tpu.memory_space<vmem>>, vector<128x32xf32>
    %275 = tpu.concatenate %56, %63, %70, %77, %84, %91, %98, %105, %112, %119, %126, %133, %140, %147, %154, %161 in 1 : vector<128x1xf32>, vector<128x1xf32>, vector<128x1xf32>, vector<128x1xf32>, vector<128x1xf32>, vector<128x1xf32>, vector<128x1xf32>, vector<128x1xf32>, vector<128x1xf32>, vector<128x1xf32>, vector<128x1xf32>, vector<128x1xf32>, vector<128x1xf32>, vector<128x1xf32>, vector<128x1xf32>, vector<128x1xf32> -> vector<128x16xf32>
    %276 = tpu.concatenate %168, %175, %182, %189, %196, %203, %210, %217, %224, %231, %238, %245, %252, %259, %266, %273 in 1 : vector<128x1xf32>, vector<128x1xf32>, vector<128x1xf32>, vector<128x1xf32>, vector<128x1xf32>, vector<128x1xf32>, vector<128x1xf32>, vector<128x1xf32>, vector<128x1xf32>, vector<128x1xf32>, vector<128x1xf32>, vector<128x1xf32>, vector<128x1xf32>, vector<128x1xf32>, vector<128x1xf32>, vector<128x1xf32> -> vector<128x16xf32>
    %277 = tpu.concatenate %275, %276 in 1 : vector<128x16xf32>, vector<128x16xf32> -> vector<128x32xf32>
    %278 = arith.maximumf %274, %277 : vector<128x32xf32>
    %c0_85 = arith.constant 0 : index
    %c0_86 = arith.constant 0 : index
    %279 = vector.load %arg34[%c0_85, %c0_86] : memref<128x32xf32, #tpu.memory_space<vmem>>, vector<128x32xf32>
    tpu.vector_store %arg34[%c0_85, %c0_86], %278 {strides = array<i32>} : memref<128x32xf32, #tpu.memory_space<vmem>>, vector<128x32xf32>,
    %280 = arith.fptosi %35 : vector<128x128xf32> to vector<128x128xi8>
    %c0_87 = arith.constant 0 : index
    %c0_88 = arith.constant 0 : index
    %281 = vector.load %arg31[%c0_87, %c0_88] : memref<128x128xi8, #tpu.memory_space<vmem>>, vector<128x128xi8>
    tpu.vector_store %arg31[%c0_87, %c0_88], %280 {strides = array<i32>} : memref<128x128xi8, #tpu.memory_space<vmem>>, vector<128x128xi8>,
    %c1_i32 = arith.constant 1 : i32
    %282 = arith.cmpi eq, %arg1, %c1_i32 : i32
    %283 = arith.extui %282 : i1 to i32
    %c0_i32_89 = arith.constant 0 : i32
    %284 = arith.cmpi ne, %283, %c0_i32_89 : i32
    scf.if %284 {
      %c0_90 = arith.constant 0 : index
      %c0_91 = arith.constant 0 : index
      %285 = vector.load %arg2[%c0_90, %c0_91] : memref<128x12xf32, #tpu.memory_space<vmem>>, vector<128x12xf32>
      %c0_92 = arith.constant 0 : index
      %c0_93 = arith.constant 0 : index
      %286 = vector.load %arg35[%c0_92, %c0_93] : memref<128x1xf32, #tpu.memory_space<vmem>>, vector<128x1xf32>
      %c0_94 = arith.constant 0 : index
      %c0_95 = arith.constant 0 : index
      %287 = vector.load %arg33[%c0_94, %c0_95] : memref<128x32xf32, #tpu.memory_space<vmem>>, vector<128x32xf32>
      %cst_96 = arith.constant 1.000000e+00 : f32
      %288 = vector.broadcast %cst_96 : f32 to vector<128x1xf32>
      %289 = arith.maximumf %286, %288 : vector<128x1xf32>
      %290 = vector.broadcast %289 : vector<128x1xf32> to vector<128x32xf32>
      %291 = arith.divf %287, %290 : vector<128x32xf32>
      %cst_97 = arith.constant 0.000000e+00 : f32
      %292 = vector.broadcast %cst_97 : f32 to vector<128x1xf32>
      %293 = arith.cmpf ogt, %286, %292 : vector<128x1xf32>
      %c0_98 = arith.constant 0 : index
      %c0_99 = arith.constant 0 : index
      %294 = vector.load %arg34[%c0_98, %c0_99] : memref<128x32xf32, #tpu.memory_space<vmem>>, vector<128x32xf32>
      %cst_100 = arith.constant 0.000000e+00 : f32
      %295 = vector.shape_cast %293 : vector<128x1xi1> to vector<128x1xi1>
      %296 = vector.broadcast %295 : vector<128x1xi1> to vector<128x32xi1>
      %297 = vector.broadcast %cst_100 : f32 to vector<128x32xf32>
      %298 = arith.select %296, %294, %297 : vector<128x32xi1>, vector<128x32xf32>
      %c0_101 = arith.constant 0 : index
      %c0_102 = arith.constant 0 : index
      %299 = vector.load %arg6[%c0_101, %c0_102] : memref<32x256xf32, #tpu.memory_space<vmem>>, vector<32x256xf32>
      %cst_103 = arith.constant dense<0.000000e+00> : vector<128x256xf32>
      %300 = tpu.matmul %291, %299, %cst_103 {dimension_numbers = #tpu.dot_dimension_numbers<[1], [0], [0], [1], [0, 0, 1, 1], [], []>} : vector<128x32xf32>, vector<32x256xf32>, vector<128x256xf32> -> vector<128x256xf32>
      %c0_104 = arith.constant 0 : index
      %c0_105 = arith.constant 0 : index
      %301 = vector.load %arg7[%c0_104, %c0_105] : memref<32x256xf32, #tpu.memory_space<vmem>>, vector<32x256xf32>
      %cst_106 = arith.constant dense<0.000000e+00> : vector<128x256xf32>
      %302 = tpu.matmul %298, %301, %cst_106 {dimension_numbers = #tpu.dot_dimension_numbers<[1], [0], [0], [1], [0, 0, 1, 1], [], []>} : vector<128x32xf32>, vector<32x256xf32>, vector<128x256xf32> -> vector<128x256xf32>
      %303 = arith.addf %300, %302 : vector<128x256xf32>
      %c0_107 = arith.constant 0 : index
      %c0_108 = arith.constant 0 : index
      %304 = vector.load %arg8[%c0_107, %c0_108] : memref<12x256xf32, #tpu.memory_space<vmem>>, vector<12x256xf32>
      %cst_109 = arith.constant dense<0.000000e+00> : vector<128x256xf32>
      %305 = tpu.matmul %285, %304, %cst_109 {dimension_numbers = #tpu.dot_dimension_numbers<[1], [0], [0], [1], [0, 0, 1, 1], [], []>} : vector<128x12xf32>, vector<12x256xf32>, vector<128x256xf32> -> vector<128x256xf32>
      %306 = arith.addf %303, %305 : vector<128x256xf32>
      %c0_110 = arith.constant 0 : index
      %c0_111 = arith.constant 0 : index
      %307 = vector.load %arg9[%c0_110, %c0_111] : memref<1x256xf32, #tpu.memory_space<vmem>>, vector<1x256xf32>
      %308 = vector.broadcast %307 : vector<1x256xf32> to vector<128x256xf32>
      %309 = arith.addf %306, %308 : vector<128x256xf32>
      %cst_112 = arith.constant 0.000000e+00 : f32
      %310 = vector.broadcast %cst_112 : f32 to vector<128x256xf32>
      %311 = arith.cmpf ogt, %309, %310 : vector<128x256xf32>
      %cst_113 = arith.constant 0.00999999977 : f32
      %312 = vector.broadcast %cst_113 : f32 to vector<128x256xf32>
      %313 = arith.mulf %312, %309 : vector<128x256xf32>
      %314 = arith.select %311, %309, %313 : vector<128x256xi1>, vector<128x256xf32>
      %c0_114 = arith.constant 0 : index
      %c0_115 = arith.constant 0 : index
      %315 = vector.load %arg10[%c0_114, %c0_115] : memref<12x32xf32, #tpu.memory_space<vmem>>, vector<12x32xf32>
      %cst_116 = arith.constant dense<0.000000e+00> : vector<128x32xf32>
      %316 = tpu.matmul %285, %315, %cst_116 {dimension_numbers = #tpu.dot_dimension_numbers<[1], [0], [0], [1], [0, 0, 1, 1], [], []>} : vector<128x12xf32>, vector<12x32xf32>, vector<128x32xf32> -> vector<128x32xf32>
      %c0_117 = arith.constant 0 : index
      %c0_118 = arith.constant 0 : index
      %317 = vector.load %arg11[%c0_117, %c0_118] : memref<256x32xf32, #tpu.memory_space<vmem>>, vector<256x32xf32>
      %cst_119 = arith.constant dense<0.000000e+00> : vector<128x32xf32>
      %318 = tpu.matmul %314, %317, %cst_119 {dimension_numbers = #tpu.dot_dimension_numbers<[1], [0], [0], [1], [0, 0, 1, 1], [], []>} : vector<128x256xf32>, vector<256x32xf32>, vector<128x32xf32> -> vector<128x32xf32>
      %319 = arith.addf %316, %318 : vector<128x32xf32>
      %c0_120 = arith.constant 0 : index
      %c0_121 = arith.constant 0 : index
      %320 = vector.load %arg12[%c0_120, %c0_121] : memref<1x32xf32, #tpu.memory_space<vmem>>, vector<1x32xf32>
      %321 = vector.broadcast %320 : vector<1x32xf32> to vector<128x32xf32>
      %322 = arith.addf %319, %321 : vector<128x32xf32>
      %cst_122 = arith.constant 0.000000e+00 : f32
      %323 = vector.broadcast %cst_122 : f32 to vector<128x32xf32>
      %324 = arith.cmpf ogt, %322, %323 : vector<128x32xf32>
      %cst_123 = arith.constant 0.00999999977 : f32
      %325 = vector.broadcast %cst_123 : f32 to vector<128x32xf32>
      %326 = arith.mulf %325, %322 : vector<128x32xf32>
      %327 = arith.select %324, %322, %326 : vector<128x32xi1>, vector<128x32xf32>
      %c0_124 = arith.constant 0 : index
      %c0_125 = arith.constant 0 : index
      %328 = vector.load %arg13[%c0_124, %c0_125] : memref<32x32xf32, #tpu.memory_space<vmem>>, vector<32x32xf32>
      %cst_126 = arith.constant dense<0.000000e+00> : vector<128x32xf32>
      %329 = tpu.matmul %327, %328, %cst_126 {dimension_numbers = #tpu.dot_dimension_numbers<[1], [0], [0], [1], [0, 0, 1, 1], [], []>} : vector<128x32xf32>, vector<32x32xf32>, vector<128x32xf32> -> vector<128x32xf32>
      %c0_127 = arith.constant 0 : index
      %c0_128 = arith.constant 0 : index
      %330 = vector.load %arg14[%c0_127, %c0_128] : memref<1x32xf32, #tpu.memory_space<vmem>>, vector<1x32xf32>
      %331 = vector.broadcast %330 : vector<1x32xf32> to vector<128x32xf32>
      %332 = arith.addf %329, %331 : vector<128x32xf32>
      %cst_129 = arith.constant 0.000000e+00 : f32
      %333 = vector.broadcast %cst_129 : f32 to vector<128x32xf32>
      %334 = arith.cmpf ogt, %332, %333 : vector<128x32xf32>
      %cst_130 = arith.constant 0.00999999977 : f32
      %335 = vector.broadcast %cst_130 : f32 to vector<128x32xf32>
      %336 = arith.mulf %335, %332 : vector<128x32xf32>
      %337 = arith.select %334, %332, %336 : vector<128x32xi1>, vector<128x32xf32>
      %c0_131 = arith.constant 0 : index
      %c0_132 = arith.constant 0 : index
      %338 = vector.load %arg15[%c0_131, %c0_132] : memref<32x32xf32, #tpu.memory_space<vmem>>, vector<32x32xf32>
      %cst_133 = arith.constant dense<0.000000e+00> : vector<128x32xf32>
      %339 = tpu.matmul %337, %338, %cst_133 {dimension_numbers = #tpu.dot_dimension_numbers<[1], [0], [0], [1], [0, 0, 1, 1], [], []>} : vector<128x32xf32>, vector<32x32xf32>, vector<128x32xf32> -> vector<128x32xf32>
      %c0_134 = arith.constant 0 : index
      %c0_135 = arith.constant 0 : index
      %340 = vector.load %arg16[%c0_134, %c0_135] : memref<1x32xf32, #tpu.memory_space<vmem>>, vector<1x32xf32>
      %341 = vector.broadcast %340 : vector<1x32xf32> to vector<128x32xf32>
      %342 = arith.addf %339, %341 : vector<128x32xf32>
      %cst_136 = arith.constant 0.000000e+00 : f32
      %343 = vector.broadcast %cst_136 : f32 to vector<128x32xf32>
      %344 = arith.cmpf ogt, %342, %343 : vector<128x32xf32>
      %cst_137 = arith.constant 0.00999999977 : f32
      %345 = vector.broadcast %cst_137 : f32 to vector<128x32xf32>
      %346 = arith.mulf %345, %342 : vector<128x32xf32>
      %347 = arith.select %344, %342, %346 : vector<128x32xi1>, vector<128x32xf32>
      %c0_138 = arith.constant 0 : index
      %c0_139 = arith.constant 0 : index
      %348 = vector.load %arg17[%c0_138, %c0_139] : memref<32x6xf32, #tpu.memory_space<vmem>>, vector<32x6xf32>
      %cst_140 = arith.constant dense<0.000000e+00> : vector<128x6xf32>
      %349 = tpu.matmul %347, %348, %cst_140 {dimension_numbers = #tpu.dot_dimension_numbers<[1], [0], [0], [1], [0, 0, 1, 1], [], []>} : vector<128x32xf32>, vector<32x6xf32>, vector<128x6xf32> -> vector<128x6xf32>
      %c0_141 = arith.constant 0 : index
      %c0_142 = arith.constant 0 : index
      %350 = vector.load %arg18[%c0_141, %c0_142] : memref<1x6xf32, #tpu.memory_space<vmem>>, vector<1x6xf32>
      %351 = vector.broadcast %350 : vector<1x6xf32> to vector<128x6xf32>
      %352 = arith.addf %349, %351 : vector<128x6xf32>
      %c0_143 = arith.constant 0 : index
      %c0_144 = arith.constant 0 : index
      %353 = vector.load %arg19[%c0_143, %c0_144] : memref<12x32xf32, #tpu.memory_space<vmem>>, vector<12x32xf32>
      %cst_145 = arith.constant dense<0.000000e+00> : vector<128x32xf32>
      %354 = tpu.matmul %285, %353, %cst_145 {dimension_numbers = #tpu.dot_dimension_numbers<[1], [0], [0], [1], [0, 0, 1, 1], [], []>} : vector<128x12xf32>, vector<12x32xf32>, vector<128x32xf32> -> vector<128x32xf32>
      %c0_146 = arith.constant 0 : index
      %c0_147 = arith.constant 0 : index
      %355 = vector.load %arg20[%c0_146, %c0_147] : memref<256x32xf32, #tpu.memory_space<vmem>>, vector<256x32xf32>
      %cst_148 = arith.constant dense<0.000000e+00> : vector<128x32xf32>
      %356 = tpu.matmul %314, %355, %cst_148 {dimension_numbers = #tpu.dot_dimension_numbers<[1], [0], [0], [1], [0, 0, 1, 1], [], []>} : vector<128x256xf32>, vector<256x32xf32>, vector<128x32xf32> -> vector<128x32xf32>
      %357 = arith.addf %354, %356 : vector<128x32xf32>
      %c0_149 = arith.constant 0 : index
      %c0_150 = arith.constant 0 : index
      %358 = vector.load %arg21[%c0_149, %c0_150] : memref<6x32xf32, #tpu.memory_space<vmem>>, vector<6x32xf32>
      %cst_151 = arith.constant dense<0.000000e+00> : vector<128x32xf32>
      %359 = tpu.matmul %352, %358, %cst_151 {dimension_numbers = #tpu.dot_dimension_numbers<[1], [0], [0], [1], [0, 0, 1, 1], [], []>} : vector<128x6xf32>, vector<6x32xf32>, vector<128x32xf32> -> vector<128x32xf32>
      %360 = arith.addf %357, %359 : vector<128x32xf32>
      %c0_152 = arith.constant 0 : index
      %c0_153 = arith.constant 0 : index
      %361 = vector.load %arg22[%c0_152, %c0_153] : memref<1x32xf32, #tpu.memory_space<vmem>>, vector<1x32xf32>
      %362 = vector.broadcast %361 : vector<1x32xf32> to vector<128x32xf32>
      %363 = arith.addf %360, %362 : vector<128x32xf32>
      %cst_154 = arith.constant 0.000000e+00 : f32
      %364 = vector.broadcast %cst_154 : f32 to vector<128x32xf32>
      %365 = arith.cmpf ogt, %363, %364 : vector<128x32xf32>
      %cst_155 = arith.constant 0.00999999977 : f32
      %366 = vector.broadcast %cst_155 : f32 to vector<128x32xf32>
      %367 = arith.mulf %366, %363 : vector<128x32xf32>
      %368 = arith.select %365, %363, %367 : vector<128x32xi1>, vector<128x32xf32>
      %c0_156 = arith.constant 0 : index
      %c0_157 = arith.constant 0 : index
      %369 = vector.load %arg23[%c0_156, %c0_157] : memref<32x32xf32, #tpu.memory_space<vmem>>, vector<32x32xf32>
      %cst_158 = arith.constant dense<0.000000e+00> : vector<128x32xf32>
      %370 = tpu.matmul %368, %369, %cst_158 {dimension_numbers = #tpu.dot_dimension_numbers<[1], [0], [0], [1], [0, 0, 1, 1], [], []>} : vector<128x32xf32>, vector<32x32xf32>, vector<128x32xf32> -> vector<128x32xf32>
      %c0_159 = arith.constant 0 : index
      %c0_160 = arith.constant 0 : index
      %371 = vector.load %arg24[%c0_159, %c0_160] : memref<1x32xf32, #tpu.memory_space<vmem>>, vector<1x32xf32>
      %372 = vector.broadcast %371 : vector<1x32xf32> to vector<128x32xf32>
      %373 = arith.addf %370, %372 : vector<128x32xf32>
      %cst_161 = arith.constant 0.000000e+00 : f32
      %374 = vector.broadcast %cst_161 : f32 to vector<128x32xf32>
      %375 = arith.cmpf ogt, %373, %374 : vector<128x32xf32>
      %cst_162 = arith.constant 0.00999999977 : f32
      %376 = vector.broadcast %cst_162 : f32 to vector<128x32xf32>
      %377 = arith.mulf %376, %373 : vector<128x32xf32>
      %378 = arith.select %375, %373, %377 : vector<128x32xi1>, vector<128x32xf32>
      %c0_163 = arith.constant 0 : index
      %c0_164 = arith.constant 0 : index
      %379 = vector.load %arg25[%c0_163, %c0_164] : memref<32x32xf32, #tpu.memory_space<vmem>>, vector<32x32xf32>
      %cst_165 = arith.constant dense<0.000000e+00> : vector<128x32xf32>
      %380 = tpu.matmul %378, %379, %cst_165 {dimension_numbers = #tpu.dot_dimension_numbers<[1], [0], [0], [1], [0, 0, 1, 1], [], []>} : vector<128x32xf32>, vector<32x32xf32>, vector<128x32xf32> -> vector<128x32xf32>
      %c0_166 = arith.constant 0 : index
      %c0_167 = arith.constant 0 : index
      %381 = vector.load %arg26[%c0_166, %c0_167] : memref<1x32xf32, #tpu.memory_space<vmem>>, vector<1x32xf32>
      %382 = vector.broadcast %381 : vector<1x32xf32> to vector<128x32xf32>
      %383 = arith.addf %380, %382 : vector<128x32xf32>
      %cst_168 = arith.constant 0.000000e+00 : f32
      %384 = vector.broadcast %cst_168 : f32 to vector<128x32xf32>
      %385 = arith.cmpf ogt, %383, %384 : vector<128x32xf32>
      %cst_169 = arith.constant 0.00999999977 : f32
      %386 = vector.broadcast %cst_169 : f32 to vector<128x32xf32>
      %387 = arith.mulf %386, %383 : vector<128x32xf32>
      %388 = arith.select %385, %383, %387 : vector<128x32xi1>, vector<128x32xf32>
      %c0_170 = arith.constant 0 : index
      %c0_171 = arith.constant 0 : index
      %389 = vector.load %arg27[%c0_170, %c0_171] : memref<32x128xf32, #tpu.memory_space<vmem>>, vector<32x128xf32>
      %cst_172 = arith.constant dense<0.000000e+00> : vector<128x128xf32>
      %390 = tpu.matmul %347, %389, %cst_172 {dimension_numbers = #tpu.dot_dimension_numbers<[1], [0], [0], [1], [0, 0, 1, 1], [], []>} : vector<128x32xf32>, vector<32x128xf32>, vector<128x128xf32> -> vector<128x128xf32>
      %c0_173 = arith.constant 0 : index
      %c0_174 = arith.constant 0 : index
      %391 = vector.load %arg28[%c0_173, %c0_174] : memref<32x128xf32, #tpu.memory_space<vmem>>, vector<32x128xf32>
      %cst_175 = arith.constant dense<0.000000e+00> : vector<128x128xf32>
      %392 = tpu.matmul %388, %391, %cst_175 {dimension_numbers = #tpu.dot_dimension_numbers<[1], [0], [0], [1], [0, 0, 1, 1], [], []>} : vector<128x32xf32>, vector<32x128xf32>, vector<128x128xf32> -> vector<128x128xf32>
      %393 = arith.addf %390, %392 : vector<128x128xf32>
      %c0_176 = arith.constant 0 : index
      %c0_177 = arith.constant 0 : index
      %394 = vector.load %arg29[%c0_176, %c0_177] : memref<12x128xf32, #tpu.memory_space<vmem>>, vector<12x128xf32>
      %cst_178 = arith.constant dense<0.000000e+00> : vector<128x128xf32>
      %395 = tpu.matmul %285, %394, %cst_178 {dimension_numbers = #tpu.dot_dimension_numbers<[1], [0], [0], [1], [0, 0, 1, 1], [], []>} : vector<128x12xf32>, vector<12x128xf32>, vector<128x128xf32> -> vector<128x128xf32>
      %396 = arith.addf %393, %395 : vector<128x128xf32>
      %c0_179 = arith.constant 0 : index
      %c0_180 = arith.constant 0 : index
      %397 = vector.load %arg30[%c0_179, %c0_180] : memref<1x128xf32, #tpu.memory_space<vmem>>, vector<1x128xf32>
      %398 = vector.broadcast %397 : vector<1x128xf32> to vector<128x128xf32>
      %399 = arith.addf %396, %398 : vector<128x128xf32>
      %c0_181 = arith.constant 0 : index
      %c0_182 = arith.constant 0 : index
      %400 = vector.load %arg32[%c0_181, %c0_182] : memref<128x128xf32, #tpu.memory_space<vmem>>, vector<128x128xf32>
      tpu.vector_store %arg32[%c0_181, %c0_182], %399 {strides = array<i32>} : memref<128x128xf32, #tpu.memory_space<vmem>>, vector<128x128xf32>,
    } else {
    }
    return
  }
  func.func @transform_0(%arg0: i32, %arg1: i32) -> (i32, i32) {
    %c0_i32 = arith.constant 0 : i32
    %c0_i32_0 = arith.constant 0 : i32
    return %arg0, %c0_i32 : i32, i32
  }
  func.func @transform_1(%arg0: i32, %arg1: i32) -> (i32, i32) {
    %c0_i32 = arith.constant 0 : i32
    %c0_i32_0 = arith.constant 0 : i32
    return %arg0, %c0_i32 : i32, i32
  }
  func.func @transform_2(%arg0: i32, %arg1: i32) -> (i32, i32) {
    %c0_i32 = arith.constant 0 : i32
    %c0_i32_0 = arith.constant 0 : i32
    return %c0_i32, %arg1 : i32, i32
  }
  func.func @transform_3(%arg0: i32, %arg1: i32) -> (i32, i32) {
    %c0_i32 = arith.constant 0 : i32
    %c0_i32_0 = arith.constant 0 : i32
    return %c0_i32, %arg1 : i32, i32
  }
  func.func @transform_4(%arg0: i32, %arg1: i32) -> (i32, i32) {
    %c0_i32 = arith.constant 0 : i32
    %c0_i32_0 = arith.constant 0 : i32
    %c0_i32_1 = arith.constant 0 : i32
    return %c0_i32, %c0_i32_0 : i32, i32
  }
  func.func @transform_5(%arg0: i32, %arg1: i32) -> (i32, i32) {
    %c0_i32 = arith.constant 0 : i32
    %c0_i32_0 = arith.constant 0 : i32
    %c0_i32_1 = arith.constant 0 : i32
    return %c0_i32, %c0_i32_0 : i32, i32
  }
  func.func @transform_6(%arg0: i32, %arg1: i32) -> (i32, i32) {
    %c0_i32 = arith.constant 0 : i32
    %c0_i32_0 = arith.constant 0 : i32
    %c0_i32_1 = arith.constant 0 : i32
    return %c0_i32, %c0_i32_0 : i32, i32
  }
  func.func @transform_7(%arg0: i32, %arg1: i32) -> (i32, i32) {
    %c0_i32 = arith.constant 0 : i32
    %c0_i32_0 = arith.constant 0 : i32
    %c0_i32_1 = arith.constant 0 : i32
    return %c0_i32, %c0_i32_0 : i32, i32
  }
  func.func @transform_8(%arg0: i32, %arg1: i32) -> (i32, i32) {
    %c0_i32 = arith.constant 0 : i32
    %c0_i32_0 = arith.constant 0 : i32
    %c0_i32_1 = arith.constant 0 : i32
    return %c0_i32, %c0_i32_0 : i32, i32
  }
  func.func @transform_9(%arg0: i32, %arg1: i32) -> (i32, i32) {
    %c0_i32 = arith.constant 0 : i32
    %c0_i32_0 = arith.constant 0 : i32
    %c0_i32_1 = arith.constant 0 : i32
    return %c0_i32, %c0_i32_0 : i32, i32
  }
  func.func @transform_10(%arg0: i32, %arg1: i32) -> (i32, i32) {
    %c0_i32 = arith.constant 0 : i32
    %c0_i32_0 = arith.constant 0 : i32
    %c0_i32_1 = arith.constant 0 : i32
    return %c0_i32, %c0_i32_0 : i32, i32
  }
  func.func @transform_11(%arg0: i32, %arg1: i32) -> (i32, i32) {
    %c0_i32 = arith.constant 0 : i32
    %c0_i32_0 = arith.constant 0 : i32
    %c0_i32_1 = arith.constant 0 : i32
    return %c0_i32, %c0_i32_0 : i32, i32
  }
  func.func @transform_12(%arg0: i32, %arg1: i32) -> (i32, i32) {
    %c0_i32 = arith.constant 0 : i32
    %c0_i32_0 = arith.constant 0 : i32
    %c0_i32_1 = arith.constant 0 : i32
    return %c0_i32, %c0_i32_0 : i32, i32
  }
  func.func @transform_13(%arg0: i32, %arg1: i32) -> (i32, i32) {
    %c0_i32 = arith.constant 0 : i32
    %c0_i32_0 = arith.constant 0 : i32
    %c0_i32_1 = arith.constant 0 : i32
    return %c0_i32, %c0_i32_0 : i32, i32
  }
  func.func @transform_14(%arg0: i32, %arg1: i32) -> (i32, i32) {
    %c0_i32 = arith.constant 0 : i32
    %c0_i32_0 = arith.constant 0 : i32
    %c0_i32_1 = arith.constant 0 : i32
    return %c0_i32, %c0_i32_0 : i32, i32
  }
  func.func @transform_15(%arg0: i32, %arg1: i32) -> (i32, i32) {
    %c0_i32 = arith.constant 0 : i32
    %c0_i32_0 = arith.constant 0 : i32
    %c0_i32_1 = arith.constant 0 : i32
    return %c0_i32, %c0_i32_0 : i32, i32
  }
  func.func @transform_16(%arg0: i32, %arg1: i32) -> (i32, i32) {
    %c0_i32 = arith.constant 0 : i32
    %c0_i32_0 = arith.constant 0 : i32
    %c0_i32_1 = arith.constant 0 : i32
    return %c0_i32, %c0_i32_0 : i32, i32
  }
  func.func @transform_17(%arg0: i32, %arg1: i32) -> (i32, i32) {
    %c0_i32 = arith.constant 0 : i32
    %c0_i32_0 = arith.constant 0 : i32
    %c0_i32_1 = arith.constant 0 : i32
    return %c0_i32, %c0_i32_0 : i32, i32
  }
  func.func @transform_18(%arg0: i32, %arg1: i32) -> (i32, i32) {
    %c0_i32 = arith.constant 0 : i32
    %c0_i32_0 = arith.constant 0 : i32
    %c0_i32_1 = arith.constant 0 : i32
    return %c0_i32, %c0_i32_0 : i32, i32
  }
  func.func @transform_19(%arg0: i32, %arg1: i32) -> (i32, i32) {
    %c0_i32 = arith.constant 0 : i32
    %c0_i32_0 = arith.constant 0 : i32
    %c0_i32_1 = arith.constant 0 : i32
    return %c0_i32, %c0_i32_0 : i32, i32
  }
  func.func @transform_20(%arg0: i32, %arg1: i32) -> (i32, i32) {
    %c0_i32 = arith.constant 0 : i32
    %c0_i32_0 = arith.constant 0 : i32
    %c0_i32_1 = arith.constant 0 : i32
    return %c0_i32, %c0_i32_0 : i32, i32
  }
  func.func @transform_21(%arg0: i32, %arg1: i32) -> (i32, i32) {
    %c0_i32 = arith.constant 0 : i32
    %c0_i32_0 = arith.constant 0 : i32
    %c0_i32_1 = arith.constant 0 : i32
    return %c0_i32, %c0_i32_0 : i32, i32
  }
  func.func @transform_22(%arg0: i32, %arg1: i32) -> (i32, i32) {
    %c0_i32 = arith.constant 0 : i32
    %c0_i32_0 = arith.constant 0 : i32
    %c0_i32_1 = arith.constant 0 : i32
    return %c0_i32, %c0_i32_0 : i32, i32
  }
  func.func @transform_23(%arg0: i32, %arg1: i32) -> (i32, i32) {
    %c0_i32 = arith.constant 0 : i32
    %c0_i32_0 = arith.constant 0 : i32
    %c0_i32_1 = arith.constant 0 : i32
    return %c0_i32, %c0_i32_0 : i32, i32
  }
  func.func @transform_24(%arg0: i32, %arg1: i32) -> (i32, i32) {
    %c0_i32 = arith.constant 0 : i32
    %c0_i32_0 = arith.constant 0 : i32
    %c0_i32_1 = arith.constant 0 : i32
    return %c0_i32, %c0_i32_0 : i32, i32
  }
  func.func @transform_25(%arg0: i32, %arg1: i32) -> (i32, i32) {
    %c0_i32 = arith.constant 0 : i32
    %c0_i32_0 = arith.constant 0 : i32
    %c0_i32_1 = arith.constant 0 : i32
    return %c0_i32, %c0_i32_0 : i32, i32
  }
  func.func @transform_26(%arg0: i32, %arg1: i32) -> (i32, i32) {
    %c0_i32 = arith.constant 0 : i32
    %c0_i32_0 = arith.constant 0 : i32
    %c0_i32_1 = arith.constant 0 : i32
    return %c0_i32, %c0_i32_0 : i32, i32
  }
  func.func @transform_27(%arg0: i32, %arg1: i32) -> (i32, i32) {
    %c0_i32 = arith.constant 0 : i32
    %c0_i32_0 = arith.constant 0 : i32
    %c0_i32_1 = arith.constant 0 : i32
    return %c0_i32, %c0_i32_0 : i32, i32
  }
  func.func @transform_28(%arg0: i32, %arg1: i32) -> (i32, i32) {
    %c0_i32 = arith.constant 0 : i32
    %c0_i32_0 = arith.constant 0 : i32
    %c0_i32_1 = arith.constant 0 : i32
    return %c0_i32, %c0_i32_0 : i32, i32
  }
  func.func @transform_29(%arg0: i32, %arg1: i32) -> (i32, i32) {
    %c0_i32 = arith.constant 0 : i32
    return %arg0, %arg1 : i32, i32
  }
  func.func @transform_30(%arg0: i32, %arg1: i32) -> (i32, i32) {
    %c0_i32 = arith.constant 0 : i32
    %c0_i32_0 = arith.constant 0 : i32
    return %arg0, %c0_i32 : i32, i32
  }
}

</mosaic_0001>

<llo_original>
// kernel: tpu_custom_call.1
$region0: #{tpu_custom_call.1}
  #allocation0 [shape = 'u32[]', space=smem, size = 0x4, offset = 0x4, fixed_abs, tag = 'smem constant byte address 0x4 - core index']
  #allocation1 [shape = 'u32[144,128]{1,0:T(1,128)}', space=vmem, size = 0x12000, scoped, tag = 'internal scratch']
  #allocation2 [shape = 'f32[128,32]{1,0:T(8,128)}', space=vmem, size = 0x10000, scoped, tag = 'scratch operand']
  #allocation3 [shape = 'f32[128,32]{1,0:T(8,128)}', space=vmem, size = 0x10000, scoped, tag = 'scratch operand']
  #allocation4 [shape = 'f32[128,1]{1,0:T(8,128)}', space=vmem, size = 0x10000, scoped, tag = 'scratch operand']
  %s0 = inlined_call_operand.smem [shape: u32[31], index: -1, kind: input, shape index: {}]
  %s1 = sld [smem:[%s0]]
  %s2 = scalar_lea.smem %s0, 1
  %s3 = sld [smem:[%s2]]
  %s4 = scalar_lea.smem %s0, 2
  %s5 = sld [smem:[%s4]]
  %s6 = scalar_lea.smem %s0, 3
  %s7 = sld [smem:[%s6]]
  %s8 = scalar_lea.smem %s0, 4
  %s9 = sld [smem:[%s8]]
  %s10 = scalar_lea.smem %s0, 5
  %s11 = sld [smem:[%s10]]
  %s12 = scalar_lea.smem %s0, 6
  %s13 = sld [smem:[%s12]]
  %s14 = scalar_lea.smem %s0, 7
  %s15 = sld [smem:[%s14]]
  %s16 = scalar_lea.smem %s0, 8
  %s17 = sld [smem:[%s16]]
  %s18 = scalar_lea.smem %s0, 9
  %s19 = sld [smem:[%s18]]
  %s20 = scalar_lea.smem %s0, 10
  %s21 = sld [smem:[%s20]]
  %s22 = scalar_lea.smem %s0, 11
  %s23 = sld [smem:[%s22]]
  %s24 = scalar_lea.smem %s0, 12
  %s25 = sld [smem:[%s24]]
  %s26 = scalar_lea.smem %s0, 13
  %s27 = sld [smem:[%s26]]
  %s28 = scalar_lea.smem %s0, 14
  %s29 = sld [smem:[%s28]]
  %s30 = scalar_lea.smem %s0, 15
  %s31 = sld [smem:[%s30]]
  %s32 = scalar_lea.smem %s0, 16
  %s33 = sld [smem:[%s32]]
  %s34 = scalar_lea.smem %s0, 17
  %s35 = sld [smem:[%s34]]
  %s36 = scalar_lea.smem %s0, 18
  %s37 = sld [smem:[%s36]]
  %s38 = scalar_lea.smem %s0, 19
  %s39 = sld [smem:[%s38]]
  %s40 = scalar_lea.smem %s0, 20
  %s41 = sld [smem:[%s40]]
  %s42 = scalar_lea.smem %s0, 21
  %s43 = sld [smem:[%s42]]
  %s44 = scalar_lea.smem %s0, 22
  %s45 = sld [smem:[%s44]]
  %s46 = scalar_lea.smem %s0, 23
  %s47 = sld [smem:[%s46]]
  %s48 = scalar_lea.smem %s0, 24
  %s49 = sld [smem:[%s48]]
  %s50 = scalar_lea.smem %s0, 25
  %s51 = sld [smem:[%s50]]
  %s52 = scalar_lea.smem %s0, 26
  %s53 = sld [smem:[%s52]]
  %s54 = scalar_lea.smem %s0, 27
  %s55 = sld [smem:[%s54]]
  %s56 = scalar_lea.smem %s0, 28
  %s57 = sld [smem:[%s56]]
  %s58 = scalar_lea.smem %s0, 29
  %s59 = sld [smem:[%s58]]
  %s60 = scalar_lea.smem %s0, 30
  %s61 = sld [smem:[%s60]]
  %62 = xla_tuple %s59, %s61
  %s63 = sld [smem:[#allocation0]]
  $region203: #{tpu_custom_call.1} parent=0
    _
  %s65 = ssub.s32 1, %s63
  %s66 = scalar_select 0, %s65, %s63
  $region1: #{tpu_custom_call.1} parent=0
    #allocation5 [shape = 'u8[32768]{0}', space=vmem, size = 0x8000, scoped, tag = 'input window, operand 3']
    #allocation6 [shape = 'u8[32768]{0}', space=vmem, size = 0x8000, scoped, tag = 'output window, operand 0']
    #allocation7 [shape = 's32[2]{0}', space=sflag, size = 0x8, scoped, tag = 'scoped memory for tpu_custom_call.1']
    #allocation8 [shape = 'u8[131072]{0}', space=vmem, size = 0x20000, scoped, tag = 'output window, operand 1']
    #allocation9 [shape = 's32[2]{0}', space=sflag, size = 0x8, scoped, tag = 'scoped memory for tpu_custom_call.1']
    %67 = vsyncpa [#allocation7], 0
    %s68 = scalar_lea.sflag [#allocation7], 1
    %69 = vsyncpa %s68, 0
    %70 = vsyncpa [#allocation9], 0
    %s71 = scalar_lea.sflag [#allocation9], 1
    %72 = vsyncpa %s71, 0
    loop: start=0, step=1, limit=6
    $region2: #{tpu_custom_call.1} parent=1 // loop_pre_header
      _
    $region3: #{tpu_custom_call.1} parent=1 // loop_header
      %s74 = sphi 0, %s78
      %p75 = scmp.ge.s32.totalorder %s74, 6
      %s81 = sphi 0, %s93
      %s82 = sphi 0, %s89
      %s83 = sphi 0, %s81
      %s84 = sphi 0, %s82
      %s85 = sphi 0, %s83
      %s86 = sphi 0, %s84
      %s96 = sphi 0, %s98
      %s99 = sphi 0, %s96
      %s100 = sphi 0, %s99
      %s116 = sphi 0, %s100
      %s122 = sphi 0, %s124
      %s125 = sphi 0, %s122
      %s126 = sphi 0, %s125
      %s142 = sphi 0, %s126
      %s148 = sphi 0, %s150
      %s151 = sphi 0, %s148
      %s152 = sphi 0, %s151
      %s168 = sphi 0, %s152
      %s174 = sphi 0, %s176
      %s177 = sphi 0, %s174
      %s178 = sphi 0, %s177
      %s194 = sphi 0, %s178
      %s198 = sphi 0, %s198
      %s200 = sphi 0, %s198
      %s201 = sphi 0, %s200
      %s215 = sphi 0, %s201
      %s219 = sphi 0, %s219
      %s221 = sphi 0, %s219
      %s222 = sphi 0, %s221
      %s236 = sphi 0, %s222
      %s240 = sphi 0, %s240
      %s242 = sphi 0, %s240
      %s243 = sphi 0, %s242
      %s257 = sphi 0, %s243
      %s261 = sphi 0, %s261
      %s263 = sphi 0, %s261
      %s264 = sphi 0, %s263
      %s278 = sphi 0, %s264
      %s282 = sphi 0, %s282
      %s284 = sphi 0, %s282
      %s285 = sphi 0, %s284
      %s299 = sphi 0, %s285
      %s303 = sphi 0, %s303
      %s305 = sphi 0, %s303
      %s306 = sphi 0, %s305
      %s320 = sphi 0, %s306
      %s324 = sphi 0, %s324
      %s326 = sphi 0, %s324
      %s327 = sphi 0, %s326
      %s341 = sphi 0, %s327
      %s345 = sphi 0, %s345
      %s347 = sphi 0, %s345
      %s348 = sphi 0, %s347
      %s362 = sphi 0, %s348
      %s366 = sphi 0, %s366
      %s368 = sphi 0, %s366
      %s369 = sphi 0, %s368
      %s383 = sphi 0, %s369
      %s387 = sphi 0, %s387
      %s389 = sphi 0, %s387
      %s390 = sphi 0, %s389
      %s404 = sphi 0, %s390
      %s408 = sphi 0, %s408
      %s410 = sphi 0, %s408
      %s411 = sphi 0, %s410
      %s425 = sphi 0, %s411
      %s429 = sphi 0, %s429
      %s431 = sphi 0, %s429
      %s432 = sphi 0, %s431
      %s446 = sphi 0, %s432
      %s450 = sphi 0, %s450
      %s452 = sphi 0, %s450
      %s453 = sphi 0, %s452
      %s467 = sphi 0, %s453
      %s471 = sphi 0, %s471
      %s473 = sphi 0, %s471
      %s474 = sphi 0, %s473
      %s488 = sphi 0, %s474
      %s492 = sphi 0, %s492
      %s494 = sphi 0, %s492
      %s495 = sphi 0, %s494
      %s509 = sphi 0, %s495
      %s513 = sphi 0, %s513
      %s515 = sphi 0, %s513
      %s516 = sphi 0, %s515
      %s530 = sphi 0, %s516
      %s534 = sphi 0, %s534
      %s536 = sphi 0, %s534
      %s537 = sphi 0, %s536
      %s551 = sphi 0, %s537
      %s555 = sphi 0, %s555
      %s557 = sphi 0, %s555
      %s558 = sphi 0, %s557
      %s572 = sphi 0, %s558
      %s576 = sphi 0, %s576
      %s578 = sphi 0, %s576
      %s579 = sphi 0, %s578
      %s593 = sphi 0, %s579
      %s597 = sphi 0, %s597
      %s599 = sphi 0, %s597
      %s600 = sphi 0, %s599
      %s614 = sphi 0, %s600
      %s618 = sphi 0, %s618
      %s620 = sphi 0, %s618
      %s621 = sphi 0, %s620
      %s635 = sphi 0, %s621
      %s639 = sphi 0, %s639
      %s641 = sphi 0, %s639
      %s642 = sphi 0, %s641
      %s656 = sphi 0, %s642
      %s660 = sphi 0, %s660
      %s662 = sphi 0, %s660
      %s663 = sphi 0, %s662
      %s677 = sphi 0, %s663
      %s681 = sphi 0, %s681
      %s683 = sphi 0, %s681
      %s684 = sphi 0, %s683
      %s698 = sphi 0, %s684
      %s702 = sphi 0, %s702
      %s704 = sphi 0, %s702
      %s705 = sphi 0, %s704
      %s719 = sphi 0, %s705
      %s727 = sphi 0, %s729
      %s730 = sphi 0, %s727
      %s731 = sphi 0, %s730
      %s747 = sphi 0, %s731
      %s753 = sphi 0, %s755
      %s756 = sphi 0, %s753
      %s757 = sphi 0, %s756
      %s773 = sphi 0, %s757
    $region4: #{tpu_custom_call.1} parent=1 // loop_header_branch
      %77 = sbr.rel (%p75) target = $region8
    $region5: #{tpu_custom_call.1} parent=1 // loop_body
      %s79 = ssub.s32 %s74, 1
      %s80 = ssub.s32 %s74, 2
      %s87 = sadd.s32 1, %s82
      %p88 = scmp.ge.s32.totalorder %s87, 2
      %s89 = scalar_select %p88, 0, %s87
      %s90 = sadd.s32 1, %s81
      %s91 = scalar_select %p88, %s90, %s81
      %p92 = scmp.ge.s32.totalorder %s91, 2
      %s93 = scalar_select %p92, 0, %s91
      %s94 = ssub.s32 %s81, %s93
      %p95 = scmp.eq.s32.totalorder %s94, 0
      %s97 = sadd.s32 %s96, 1
      %s98 = scalar_select %p95, %s96, %s97
      %p101 = pneg %p95
      %p102 = scmp.eq.s32.totalorder %s74, 3
      %p103 = por %p101, %p102
      %p104 = scmp.ne.s32.totalorder %s96, %s99
      %p105 = scmp.eq.s32.totalorder %s74, 0
      %p106 = por %p104, %p105
      %p107 = scmp.ne.s32.totalorder %s96, %s99
      %p108 = scmp.eq.s32.totalorder %s79, 3
      %p109 = por %p107, %p108
      %p110 = scmp.ne.s32.totalorder %s99, %s100
      %p111 = scmp.eq.s32.totalorder %s79, 0
      %p112 = por %p110, %p111
      %p113 = scmp.ne.s32.totalorder %s99, %s100
      %p114 = scmp.eq.s32.totalorder %s80, 3
      %p115 = por %p113, %p114
      %p117 = scmp.ne.s32.totalorder %s100, %s116
      %p118 = scmp.eq.s32.totalorder %s80, 0
      %p119 = por %p117, %p118
      %s120 = ssub.s32 %s81, %s93
      %p121 = scmp.eq.s32.totalorder %s120, 0
      %s123 = sadd.s32 %s122, 1
      %s124 = scalar_select %p121, %s122, %s123
      %p127 = pneg %p121
      %p128 = scmp.eq.s32.totalorder %s74, 3
      %p129 = por %p127, %p128
      %p130 = scmp.ne.s32.totalorder %s122, %s125
      %p131 = scmp.eq.s32.totalorder %s74, 0
      %p132 = por %p130, %p131
      %p133 = scmp.ne.s32.totalorder %s122, %s125
      %p134 = scmp.eq.s32.totalorder %s79, 3
      %p135 = por %p133, %p134
      %p136 = scmp.ne.s32.totalorder %s125, %s126
      %p137 = scmp.eq.s32.totalorder %s79, 0
      %p138 = por %p136, %p137
      %p139 = scmp.ne.s32.totalorder %s125, %s126
      %p140 = scmp.eq.s32.totalorder %s80, 3
      %p141 = por %p139, %p140
      %p143 = scmp.ne.s32.totalorder %s126, %s142
      %p144 = scmp.eq.s32.totalorder %s80, 0
      %p145 = por %p143, %p144
      %s146 = ssub.s32 %s82, %s89
      %p147 = scmp.eq.s32.totalorder %s146, 0
      %s149 = sadd.s32 %s148, 1
      %s150 = scalar_select %p147, %s148, %s149
      %p153 = pneg %p147
      %p154 = scmp.eq.s32.totalorder %s74, 3
      %p155 = por %p153, %p154
      %p156 = scmp.ne.s32.totalorder %s148, %s151
      %p157 = scmp.eq.s32.totalorder %s74, 0
      %p158 = por %p156, %p157
      %p159 = scmp.ne.s32.totalorder %s148, %s151
      %p160 = scmp.eq.s32.totalorder %s79, 3
      %p161 = por %p159, %p160
      %p162 = scmp.ne.s32.totalorder %s151, %s152
      %p163 = scmp.eq.s32.totalorder %s79, 0
      %p164 = por %p162, %p163
      %p165 = scmp.ne.s32.totalorder %s151, %s152
      %p166 = scmp.eq.s32.totalorder %s80, 3
      %p167 = por %p165, %p166
      %p169 = scmp.ne.s32.totalorder %s152, %s168
      %p170 = scmp.eq.s32.totalorder %s80, 0
      %p171 = por %p169, %p170
      %s172 = ssub.s32 %s82, %s89
      %p173 = scmp.eq.s32.totalorder %s172, 0
      %s175 = sadd.s32 %s174, 1
      %s176 = scalar_select %p173, %s174, %s175
      %p179 = pneg %p173
      %p180 = scmp.eq.s32.totalorder %s74, 3
      %p181 = por %p179, %p180
      %p182 = scmp.ne.s32.totalorder %s174, %s177
      %p183 = scmp.eq.s32.totalorder %s74, 0
      %p184 = por %p182, %p183
      %p185 = scmp.ne.s32.totalorder %s174, %s177
      %p186 = scmp.eq.s32.totalorder %s79, 3
      %p187 = por %p185, %p186
      %p188 = scmp.ne.s32.totalorder %s177, %s178
      %p189 = scmp.eq.s32.totalorder %s79, 0
      %p190 = por %p188, %p189
      %p191 = scmp.ne.s32.totalorder %s177, %s178
      %p192 = scmp.eq.s32.totalorder %s80, 3
      %p193 = por %p191, %p192
      %p195 = scmp.ne.s32.totalorder %s178, %s194
      %p196 = scmp.eq.s32.totalorder %s80, 0
      %p197 = por %p195, %p196
      %s199 = sadd.s32 %s198, 1
      %p202 = scmp.eq.s32.totalorder %s74, 3
      %p203 = scmp.ne.s32.totalorder %s198, %s200
      %p204 = scmp.eq.s32.totalorder %s74, 0
      %p205 = por %p203, %p204
      %p206 = scmp.ne.s32.totalorder %s198, %s200
      %p207 = scmp.eq.s32.totalorder %s79, 3
      %p208 = por %p206, %p207
      %p209 = scmp.ne.s32.totalorder %s200, %s201
      %p210 = scmp.eq.s32.totalorder %s79, 0
      %p211 = por %p209, %p210
      %p212 = scmp.ne.s32.totalorder %s200, %s201
      %p213 = scmp.eq.s32.totalorder %s80, 3
      %p214 = por %p212, %p213
      %p216 = scmp.ne.s32.totalorder %s201, %s215
      %p217 = scmp.eq.s32.totalorder %s80, 0
      %p218 = por %p216, %p217
      %s220 = sadd.s32 %s219, 1
      %p223 = scmp.eq.s32.totalorder %s74, 3
      %p224 = scmp.ne.s32.totalorder %s219, %s221
      %p225 = scmp.eq.s32.totalorder %s74, 0
      %p226 = por %p224, %p225
      %p227 = scmp.ne.s32.totalorder %s219, %s221
      %p228 = scmp.eq.s32.totalorder %s79, 3
      %p229 = por %p227, %p228
      %p230 = scmp.ne.s32.totalorder %s221, %s222
      %p231 = scmp.eq.s32.totalorder %s79, 0
      %p232 = por %p230, %p231
      %p233 = scmp.ne.s32.totalorder %s221, %s222
      %p234 = scmp.eq.s32.totalorder %s80, 3
      %p235 = por %p233, %p234
      %p237 = scmp.ne.s32.totalorder %s222, %s236
      %p238 = scmp.eq.s32.totalorder %s80, 0
      %p239 = por %p237, %p238
      %s241 = sadd.s32 %s240, 1
      %p244 = scmp.eq.s32.totalorder %s74, 3
      %p245 = scmp.ne.s32.totalorder %s240, %s242
      %p246 = scmp.eq.s32.totalorder %s74, 0
      %p247 = por %p245, %p246
      %p248 = scmp.ne.s32.totalorder %s240, %s242
      %p249 = scmp.eq.s32.totalorder %s79, 3
      %p250 = por %p248, %p249
      %p251 = scmp.ne.s32.totalorder %s242, %s243
      %p252 = scmp.eq.s32.totalorder %s79, 0
      %p253 = por %p251, %p252
      %p254 = scmp.ne.s32.totalorder %s242, %s243
      %p255 = scmp.eq.s32.totalorder %s80, 3
      %p256 = por %p254, %p255
      %p258 = scmp.ne.s32.totalorder %s243, %s257
      %p259 = scmp.eq.s32.totalorder %s80, 0
      %p260 = por %p258, %p259
      %s262 = sadd.s32 %s261, 1
      %p265 = scmp.eq.s32.totalorder %s74, 3
      %p266 = scmp.ne.s32.totalorder %s261, %s263
      %p267 = scmp.eq.s32.totalorder %s74, 0
      %p268 = por %p266, %p267
      %p269 = scmp.ne.s32.totalorder %s261, %s263
      %p270 = scmp.eq.s32.totalorder %s79, 3
      %p271 = por %p269, %p270
      %p272 = scmp.ne.s32.totalorder %s263, %s264
      %p273 = scmp.eq.s32.totalorder %s79, 0
      %p274 = por %p272, %p273
      %p275 = scmp.ne.s32.totalorder %s263, %s264
      %p276 = scmp.eq.s32.totalorder %s80, 3
      %p277 = por %p275, %p276
      %p279 = scmp.ne.s32.totalorder %s264, %s278
      %p280 = scmp.eq.s32.totalorder %s80, 0
      %p281 = por %p279, %p280
      %s283 = sadd.s32 %s282, 1
      %p286 = scmp.eq.s32.totalorder %s74, 3
      %p287 = scmp.ne.s32.totalorder %s282, %s284
      %p288 = scmp.eq.s32.totalorder %s74, 0
      %p289 = por %p287, %p288
      %p290 = scmp.ne.s32.totalorder %s282, %s284
      %p291 = scmp.eq.s32.totalorder %s79, 3
      %p292 = por %p290, %p291
      %p293 = scmp.ne.s32.totalorder %s284, %s285
      %p294 = scmp.eq.s32.totalorder %s79, 0
      %p295 = por %p293, %p294
      %p296 = scmp.ne.s32.totalorder %s284, %s285
      %p297 = scmp.eq.s32.totalorder %s80, 3
      %p298 = por %p296, %p297
      %p300 = scmp.ne.s32.totalorder %s285, %s299
      %p301 = scmp.eq.s32.totalorder %s80, 0
      %p302 = por %p300, %p301
      %s304 = sadd.s32 %s303, 1
      %p307 = scmp.eq.s32.totalorder %s74, 3
      %p308 = scmp.ne.s32.totalorder %s303, %s305
      %p309 = scmp.eq.s32.totalorder %s74, 0
      %p310 = por %p308, %p309
      %p311 = scmp.ne.s32.totalorder %s303, %s305
      %p312 = scmp.eq.s32.totalorder %s79, 3
      %p313 = por %p311, %p312
      %p314 = scmp.ne.s32.totalorder %s305, %s306
      %p315 = scmp.eq.s32.totalorder %s79, 0
      %p316 = por %p314, %p315
      %p317 = scmp.ne.s32.totalorder %s305, %s306
      %p318 = scmp.eq.s32.totalorder %s80, 3
      %p319 = por %p317, %p318
      %p321 = scmp.ne.s32.totalorder %s306, %s320
      %p322 = scmp.eq.s32.totalorder %s80, 0
      %p323 = por %p321, %p322
      %s325 = sadd.s32 %s324, 1
      %p328 = scmp.eq.s32.totalorder %s74, 3
      %p329 = scmp.ne.s32.totalorder %s324, %s326
      %p330 = scmp.eq.s32.totalorder %s74, 0
      %p331 = por %p329, %p330
      %p332 = scmp.ne.s32.totalorder %s324, %s326
      %p333 = scmp.eq.s32.totalorder %s79, 3
      %p334 = por %p332, %p333
      %p335 = scmp.ne.s32.totalorder %s326, %s327
      %p336 = scmp.eq.s32.totalorder %s79, 0
      %p337 = por %p335, %p336
      %p338 = scmp.ne.s32.totalorder %s326, %s327
      %p339 = scmp.eq.s32.totalorder %s80, 3
      %p340 = por %p338, %p339
      %p342 = scmp.ne.s32.totalorder %s327, %s341
      %p343 = scmp.eq.s32.totalorder %s80, 0
      %p344 = por %p342, %p343
      %s346 = sadd.s32 %s345, 1
      %p349 = scmp.eq.s32.totalorder %s74, 3
      %p350 = scmp.ne.s32.totalorder %s345, %s347
      %p351 = scmp.eq.s32.totalorder %s74, 0
      %p352 = por %p350, %p351
      %p353 = scmp.ne.s32.totalorder %s345, %s347
      %p354 = scmp.eq.s32.totalorder %s79, 3
      %p355 = por %p353, %p354
      %p356 = scmp.ne.s32.totalorder %s347, %s348
      %p357 = scmp.eq.s32.totalorder %s79, 0
      %p358 = por %p356, %p357
      %p359 = scmp.ne.s32.totalorder %s347, %s348
      %p360 = scmp.eq.s32.totalorder %s80, 3
      %p361 = por %p359, %p360
      %p363 = scmp.ne.s32.totalorder %s348, %s362
      %p364 = scmp.eq.s32.totalorder %s80, 0
      %p365 = por %p363, %p364
      %s367 = sadd.s32 %s366, 1
      %p370 = scmp.eq.s32.totalorder %s74, 3
      %p371 = scmp.ne.s32.totalorder %s366, %s368
      %p372 = scmp.eq.s32.totalorder %s74, 0
      %p373 = por %p371, %p372
      %p374 = scmp.ne.s32.totalorder %s366, %s368
      %p375 = scmp.eq.s32.totalorder %s79, 3
      %p376 = por %p374, %p375
      %p377 = scmp.ne.s32.totalorder %s368, %s369
      %p378 = scmp.eq.s32.totalorder %s79, 0
      %p379 = por %p377, %p378
      %p380 = scmp.ne.s32.totalorder %s368, %s369
      %p381 = scmp.eq.s32.totalorder %s80, 3
      %p382 = por %p380, %p381
      %p384 = scmp.ne.s32.totalorder %s369, %s383
      %p385 = scmp.eq.s32.totalorder %s80, 0
      %p386 = por %p384, %p385
      %s388 = sadd.s32 %s387, 1
      %p391 = scmp.eq.s32.totalorder %s74, 3
      %p392 = scmp.ne.s32.totalorder %s387, %s389
      %p393 = scmp.eq.s32.totalorder %s74, 0
      %p394 = por %p392, %p393
      %p395 = scmp.ne.s32.totalorder %s387, %s389
      %p396 = scmp.eq.s32.totalorder %s79, 3
      %p397 = por %p395, %p396
      %p398 = scmp.ne.s32.totalorder %s389, %s390
      %p399 = scmp.eq.s32.totalorder %s79, 0
      %p400 = por %p398, %p399
      %p401 = scmp.ne.s32.totalorder %s389, %s390
      %p402 = scmp.eq.s32.totalorder %s80, 3
      %p403 = por %p401, %p402
      %p405 = scmp.ne.s32.totalorder %s390, %s404
      %p406 = scmp.eq.s32.totalorder %s80, 0
      %p407 = por %p405, %p406
      %s409 = sadd.s32 %s408, 1
      %p412 = scmp.eq.s32.totalorder %s74, 3
      %p413 = scmp.ne.s32.totalorder %s408, %s410
      %p414 = scmp.eq.s32.totalorder %s74, 0
      %p415 = por %p413, %p414
      %p416 = scmp.ne.s32.totalorder %s408, %s410
      %p417 = scmp.eq.s32.totalorder %s79, 3
      %p418 = por %p416, %p417
      %p419 = scmp.ne.s32.totalorder %s410, %s411
      %p420 = scmp.eq.s32.totalorder %s79, 0
      %p421 = por %p419, %p420
      %p422 = scmp.ne.s32.totalorder %s410, %s411
      %p423 = scmp.eq.s32.totalorder %s80, 3
      %p424 = por %p422, %p423
      %p426 = scmp.ne.s32.totalorder %s411, %s425
      %p427 = scmp.eq.s32.totalorder %s80, 0
      %p428 = por %p426, %p427
      %s430 = sadd.s32 %s429, 1
      %p433 = scmp.eq.s32.totalorder %s74, 3
      %p434 = scmp.ne.s32.totalorder %s429, %s431
      %p435 = scmp.eq.s32.totalorder %s74, 0
      %p436 = por %p434, %p435
      %p437 = scmp.ne.s32.totalorder %s429, %s431
      %p438 = scmp.eq.s32.totalorder %s79, 3
      %p439 = por %p437, %p438
      %p440 = scmp.ne.s32.totalorder %s431, %s432
      %p441 = scmp.eq.s32.totalorder %s79, 0
      %p442 = por %p440, %p441
      %p443 = scmp.ne.s32.totalorder %s431, %s432
      %p444 = scmp.eq.s32.totalorder %s80, 3
      %p445 = por %p443, %p444
      %p447 = scmp.ne.s32.totalorder %s432, %s446
      %p448 = scmp.eq.s32.totalorder %s80, 0
      %p449 = por %p447, %p448
      %s451 = sadd.s32 %s450, 1
      %p454 = scmp.eq.s32.totalorder %s74, 3
      %p455 = scmp.ne.s32.totalorder %s450, %s452
      %p456 = scmp.eq.s32.totalorder %s74, 0
      %p457 = por %p455, %p456
      %p458 = scmp.ne.s32.totalorder %s450, %s452
      %p459 = scmp.eq.s32.totalorder %s79, 3
      %p460 = por %p458, %p459
      %p461 = scmp.ne.s32.totalorder %s452, %s453
      %p462 = scmp.eq.s32.totalorder %s79, 0
      %p463 = por %p461, %p462
      %p464 = scmp.ne.s32.totalorder %s452, %s453
      %p465 = scmp.eq.s32.totalorder %s80, 3
      %p466 = por %p464, %p465
      %p468 = scmp.ne.s32.totalorder %s453, %s467
      %p469 = scmp.eq.s32.totalorder %s80, 0
      %p470 = por %p468, %p469
      %s472 = sadd.s32 %s471, 1
      %p475 = scmp.eq.s32.totalorder %s74, 3
      %p476 = scmp.ne.s32.totalorder %s471, %s473
      %p477 = scmp.eq.s32.totalorder %s74, 0
      %p478 = por %p476, %p477
      %p479 = scmp.ne.s32.totalorder %s471, %s473
      %p480 = scmp.eq.s32.totalorder %s79, 3
      %p481 = por %p479, %p480
      %p482 = scmp.ne.s32.totalorder %s473, %s474
      %p483 = scmp.eq.s32.totalorder %s79, 0
      %p484 = por %p482, %p483
      %p485 = scmp.ne.s32.totalorder %s473, %s474
      %p486 = scmp.eq.s32.totalorder %s80, 3
      %p487 = por %p485, %p486
      %p489 = scmp.ne.s32.totalorder %s474, %s488
      %p490 = scmp.eq.s32.totalorder %s80, 0
      %p491 = por %p489, %p490
      %s493 = sadd.s32 %s492, 1
      %p496 = scmp.eq.s32.totalorder %s74, 3
      %p497 = scmp.ne.s32.totalorder %s492, %s494
      %p498 = scmp.eq.s32.totalorder %s74, 0
      %p499 = por %p497, %p498
      %p500 = scmp.ne.s32.totalorder %s492, %s494
      %p501 = scmp.eq.s32.totalorder %s79, 3
      %p502 = por %p500, %p501
      %p503 = scmp.ne.s32.totalorder %s494, %s495
      %p504 = scmp.eq.s32.totalorder %s79, 0
      %p505 = por %p503, %p504
      %p506 = scmp.ne.s32.totalorder %s494, %s495
      %p507 = scmp.eq.s32.totalorder %s80, 3
      %p508 = por %p506, %p507
      %p510 = scmp.ne.s32.totalorder %s495, %s509
      %p511 = scmp.eq.s32.totalorder %s80, 0
      %p512 = por %p510, %p511
      %s514 = sadd.s32 %s513, 1
      %p517 = scmp.eq.s32.totalorder %s74, 3
      %p518 = scmp.ne.s32.totalorder %s513, %s515
      %p519 = scmp.eq.s32.totalorder %s74, 0
      %p520 = por %p518, %p519
      %p521 = scmp.ne.s32.totalorder %s513, %s515
      %p522 = scmp.eq.s32.totalorder %s79, 3
      %p523 = por %p521, %p522
      %p524 = scmp.ne.s32.totalorder %s515, %s516
      %p525 = scmp.eq.s32.totalorder %s79, 0
      %p526 = por %p524, %p525
      %p527 = scmp.ne.s32.totalorder %s515, %s516
      %p528 = scmp.eq.s32.totalorder %s80, 3
      %p529 = por %p527, %p528
      %p531 = scmp.ne.s32.totalorder %s516, %s530
      %p532 = scmp.eq.s32.totalorder %s80, 0
      %p533 = por %p531, %p532
      %s535 = sadd.s32 %s534, 1
      %p538 = scmp.eq.s32.totalorder %s74, 3
      %p539 = scmp.ne.s32.totalorder %s534, %s536
      %p540 = scmp.eq.s32.totalorder %s74, 0
      %p541 = por %p539, %p540
      %p542 = scmp.ne.s32.totalorder %s534, %s536
      %p543 = scmp.eq.s32.totalorder %s79, 3
      %p544 = por %p542, %p543
      %p545 = scmp.ne.s32.totalorder %s536, %s537
      %p546 = scmp.eq.s32.totalorder %s79, 0
      %p547 = por %p545, %p546
      %p548 = scmp.ne.s32.totalorder %s536, %s537
      %p549 = scmp.eq.s32.totalorder %s80, 3
      %p550 = por %p548, %p549
      %p552 = scmp.ne.s32.totalorder %s537, %s551
      %p553 = scmp.eq.s32.totalorder %s80, 0
      %p554 = por %p552, %p553
      %s556 = sadd.s32 %s555, 1
      %p559 = scmp.eq.s32.totalorder %s74, 3
      %p560 = scmp.ne.s32.totalorder %s555, %s557
      %p561 = scmp.eq.s32.totalorder %s74, 0
      %p562 = por %p560, %p561
      %p563 = scmp.ne.s32.totalorder %s555, %s557
      %p564 = scmp.eq.s32.totalorder %s79, 3
      %p565 = por %p563, %p564
      %p566 = scmp.ne.s32.totalorder %s557, %s558
      %p567 = scmp.eq.s32.totalorder %s79, 0
      %p568 = por %p566, %p567
      %p569 = scmp.ne.s32.totalorder %s557, %s558
      %p570 = scmp.eq.s32.totalorder %s80, 3
      %p571 = por %p569, %p570
      %p573 = scmp.ne.s32.totalorder %s558, %s572
      %p574 = scmp.eq.s32.totalorder %s80, 0
      %p575 = por %p573, %p574
      %s577 = sadd.s32 %s576, 1
      %p580 = scmp.eq.s32.totalorder %s74, 3
      %p581 = scmp.ne.s32.totalorder %s576, %s578
      %p582 = scmp.eq.s32.totalorder %s74, 0
      %p583 = por %p581, %p582
      %p584 = scmp.ne.s32.totalorder %s576, %s578
      %p585 = scmp.eq.s32.totalorder %s79, 3
      %p586 = por %p584, %p585
      %p587 = scmp.ne.s32.totalorder %s578, %s579
      %p588 = scmp.eq.s32.totalorder %s79, 0
      %p589 = por %p587, %p588
      %p590 = scmp.ne.s32.totalorder %s578, %s579
      %p591 = scmp.eq.s32.totalorder %s80, 3
      %p592 = por %p590, %p591
      %p594 = scmp.ne.s32.totalorder %s579, %s593
      %p595 = scmp.eq.s32.totalorder %s80, 0
      %p596 = por %p594, %p595
      %s598 = sadd.s32 %s597, 1
      %p601 = scmp.eq.s32.totalorder %s74, 3
      %p602 = scmp.ne.s32.totalorder %s597, %s599
      %p603 = scmp.eq.s32.totalorder %s74, 0
      %p604 = por %p602, %p603
      %p605 = scmp.ne.s32.totalorder %s597, %s599
      %p606 = scmp.eq.s32.totalorder %s79, 3
      %p607 = por %p605, %p606
      %p608 = scmp.ne.s32.totalorder %s599, %s600
      %p609 = scmp.eq.s32.totalorder %s79, 0
      %p610 = por %p608, %p609
      %p611 = scmp.ne.s32.totalorder %s599, %s600
      %p612 = scmp.eq.s32.totalorder %s80, 3
      %p613 = por %p611, %p612
      %p615 = scmp.ne.s32.totalorder %s600, %s614
      %p616 = scmp.eq.s32.totalorder %s80, 0
      %p617 = por %p615, %p616
      %s619 = sadd.s32 %s618, 1
      %p622 = scmp.eq.s32.totalorder %s74, 3
      %p623 = scmp.ne.s32.totalorder %s618, %s620
      %p624 = scmp.eq.s32.totalorder %s74, 0
      %p625 = por %p623, %p624
      %p626 = scmp.ne.s32.totalorder %s618, %s620
      %p627 = scmp.eq.s32.totalorder %s79, 3
      %p628 = por %p626, %p627
      %p629 = scmp.ne.s32.totalorder %s620, %s621
      %p630 = scmp.eq.s32.totalorder %s79, 0
      %p631 = por %p629, %p630
      %p632 = scmp.ne.s32.totalorder %s620, %s621
      %p633 = scmp.eq.s32.totalorder %s80, 3
      %p634 = por %p632, %p633
      %p636 = scmp.ne.s32.totalorder %s621, %s635
      %p637 = scmp.eq.s32.totalorder %s80, 0
      %p638 = por %p636, %p637
      %s640 = sadd.s32 %s639, 1
      %p643 = scmp.eq.s32.totalorder %s74, 3
      %p644 = scmp.ne.s32.totalorder %s639, %s641
      %p645 = scmp.eq.s32.totalorder %s74, 0
      %p646 = por %p644, %p645
      %p647 = scmp.ne.s32.totalorder %s639, %s641
      %p648 = scmp.eq.s32.totalorder %s79, 3
      %p649 = por %p647, %p648
      %p650 = scmp.ne.s32.totalorder %s641, %s642
      %p651 = scmp.eq.s32.totalorder %s79, 0
      %p652 = por %p650, %p651
      %p653 = scmp.ne.s32.totalorder %s641, %s642
      %p654 = scmp.eq.s32.totalorder %s80, 3
      %p655 = por %p653, %p654
      %p657 = scmp.ne.s32.totalorder %s642, %s656
      %p658 = scmp.eq.s32.totalorder %s80, 0
      %p659 = por %p657, %p658
      %s661 = sadd.s32 %s660, 1
      %p664 = scmp.eq.s32.totalorder %s74, 3
      %p665 = scmp.ne.s32.totalorder %s660, %s662
      %p666 = scmp.eq.s32.totalorder %s74, 0
      %p667 = por %p665, %p666
      %p668 = scmp.ne.s32.totalorder %s660, %s662
      %p669 = scmp.eq.s32.totalorder %s79, 3
      %p670 = por %p668, %p669
      %p671 = scmp.ne.s32.totalorder %s662, %s663
      %p672 = scmp.eq.s32.totalorder %s79, 0
      %p673 = por %p671, %p672
      %p674 = scmp.ne.s32.totalorder %s662, %s663
      %p675 = scmp.eq.s32.totalorder %s80, 3
      %p676 = por %p674, %p675
      %p678 = scmp.ne.s32.totalorder %s663, %s677
      %p679 = scmp.eq.s32.totalorder %s80, 0
      %p680 = por %p678, %p679
      %s682 = sadd.s32 %s681, 1
      %p685 = scmp.eq.s32.totalorder %s74, 3
      %p686 = scmp.ne.s32.totalorder %s681, %s683
      %p687 = scmp.eq.s32.totalorder %s74, 0
      %p688 = por %p686, %p687
      %p689 = scmp.ne.s32.totalorder %s681, %s683
      %p690 = scmp.eq.s32.totalorder %s79, 3
      %p691 = por %p689, %p690
      %p692 = scmp.ne.s32.totalorder %s683, %s684
      %p693 = scmp.eq.s32.totalorder %s79, 0
      %p694 = por %p692, %p693
      %p695 = scmp.ne.s32.totalorder %s683, %s684
      %p696 = scmp.eq.s32.totalorder %s80, 3
      %p697 = por %p695, %p696
      %p699 = scmp.ne.s32.totalorder %s684, %s698
      %p700 = scmp.eq.s32.totalorder %s80, 0
      %p701 = por %p699, %p700
      %s703 = sadd.s32 %s702, 1
      %p706 = scmp.eq.s32.totalorder %s74, 3
      %p707 = scmp.ne.s32.totalorder %s702, %s704
      %p708 = scmp.eq.s32.totalorder %s74, 0
      %p709 = por %p707, %p708
      %p710 = scmp.ne.s32.totalorder %s702, %s704
      %p711 = scmp.eq.s32.totalorder %s79, 3
      %p712 = por %p710, %p711
      %p713 = scmp.ne.s32.totalorder %s704, %s705
      %p714 = scmp.eq.s32.totalorder %s79, 0
      %p715 = por %p713, %p714
      %p716 = scmp.ne.s32.totalorder %s704, %s705
      %p717 = scmp.eq.s32.totalorder %s80, 3
      %p718 = por %p716, %p717
      %p720 = scmp.ne.s32.totalorder %s705, %s719
      %p721 = scmp.eq.s32.totalorder %s80, 0
      %p722 = por %p720, %p721
      %s723 = ssub.s32 %s81, %s93
      %s724 = ssub.s32 %s82, %s89
      %s725 = sor.u32 %s723, %s724
      %p726 = scmp.eq.s32.totalorder %s725, 0
      %s728 = sadd.s32 %s727, 1
      %s729 = scalar_select %p726, %s727, %s728
      %p732 = pneg %p726
      %p733 = scmp.eq.s32.totalorder %s74, 3
      %p734 = por %p732, %p733
      %p735 = scmp.ne.s32.totalorder %s727, %s730
      %p736 = scmp.eq.s32.totalorder %s74, 0
      %p737 = por %p735, %p736
      %p738 = scmp.ne.s32.totalorder %s727, %s730
      %p739 = scmp.eq.s32.totalorder %s79, 3
      %p740 = por %p738, %p739
      %p741 = scmp.ne.s32.totalorder %s730, %s731
      %p742 = scmp.eq.s32.totalorder %s79, 0
      %p743 = por %p741, %p742
      %p744 = scmp.ne.s32.totalorder %s730, %s731
      %p745 = scmp.eq.s32.totalorder %s80, 3
      %p746 = por %p744, %p745
      %p748 = scmp.ne.s32.totalorder %s731, %s747
      %p749 = scmp.eq.s32.totalorder %s80, 0
      %p750 = por %p748, %p749
      %s751 = ssub.s32 %s81, %s93
      %p752 = scmp.eq.s32.totalorder %s751, 0
      %s754 = sadd.s32 %s753, 1
      %s755 = scalar_select %p752, %s753, %s754
      %p758 = pneg %p752
      %p759 = scmp.eq.s32.totalorder %s74, 3
      %p760 = por %p758, %p759
      %p761 = scmp.ne.s32.totalorder %s753, %s756
      %p762 = scmp.eq.s32.totalorder %s74, 0
      %p763 = por %p761, %p762
      %p764 = scmp.ne.s32.totalorder %s753, %s756
      %p765 = scmp.eq.s32.totalorder %s79, 3
      %p766 = por %p764, %p765
      %p767 = scmp.ne.s32.totalorder %s756, %s757
      %p768 = scmp.eq.s32.totalorder %s79, 0
      %p769 = por %p767, %p768
      %p770 = scmp.ne.s32.totalorder %s756, %s757
      %p771 = scmp.eq.s32.totalorder %s80, 3
      %p772 = por %p770, %p771
      %p774 = scmp.ne.s32.totalorder %s757, %s773
      %p775 = scmp.eq.s32.totalorder %s80, 0
      %p776 = por %p774, %p775
      %p777 = scmp.le.s32.totalorder 1, %s74
      %p778 = scmp.lt.s32.totalorder %s74, 5
      %p779 = pnand %p777, %p778
      %p780 = pneg %p779
      // Predicated region
      $region9: #{tpu_custom_call.1} parent=5 // pred_check
        _
      $region10: #{tpu_custom_call.1} parent=5 // pred_check_branch
        %782 = sbr.rel (%p779) target = $region12
      $region11: #{tpu_custom_call.1} parent=5 // pred_region
        %s783 = ssub.s32 %s74, 1
        // Predicated region
        $region13: #{tpu_custom_call.1} parent=11 // pred_check
          %p784 = pneg %p211
        $region14: #{tpu_custom_call.1} parent=11 // pred_check_branch
          %786 = sbr.rel (%p784) target = $region16
        $region15: #{tpu_custom_call.1} parent=11 // pred_region
          _
        $region16: #{tpu_custom_call.1} parent=11 // pred_fallthru
          _
        // Predicated region
        $region17: #{tpu_custom_call.1} parent=11 // pred_check
          %p787 = pneg %p232
        $region18: #{tpu_custom_call.1} parent=11 // pred_check_branch
          %789 = sbr.rel (%p787) target = $region20
        $region19: #{tpu_custom_call.1} parent=11 // pred_region
          _
        $region20: #{tpu_custom_call.1} parent=11 // pred_fallthru
          _
        // Predicated region
        $region21: #{tpu_custom_call.1} parent=11 // pred_check
          %p790 = pneg %p253
        $region22: #{tpu_custom_call.1} parent=11 // pred_check_branch
          %792 = sbr.rel (%p790) target = $region24
        $region23: #{tpu_custom_call.1} parent=11 // pred_region
          _
        $region24: #{tpu_custom_call.1} parent=11 // pred_fallthru
          _
        // Predicated region
        $region25: #{tpu_custom_call.1} parent=11 // pred_check
          %p793 = pneg %p274
        $region26: #{tpu_custom_call.1} parent=11 // pred_check_branch
          %795 = sbr.rel (%p793) target = $region28
        $region27: #{tpu_custom_call.1} parent=11 // pred_region
          _
        $region28: #{tpu_custom_call.1} parent=11 // pred_fallthru
          _
        // Predicated region
        $region29: #{tpu_custom_call.1} parent=11 // pred_check
          %p796 = pneg %p295
        $region30: #{tpu_custom_call.1} parent=11 // pred_check_branch
          %798 = sbr.rel (%p796) target = $region32
        $region31: #{tpu_custom_call.1} parent=11 // pred_region
          _
        $region32: #{tpu_custom_call.1} parent=11 // pred_fallthru
          _
        // Predicated region
        $region33: #{tpu_custom_call.1} parent=11 // pred_check
          %p799 = pneg %p316
        $region34: #{tpu_custom_call.1} parent=11 // pred_check_branch
          %801 = sbr.rel (%p799) target = $region36
        $region35: #{tpu_custom_call.1} parent=11 // pred_region
          _
        $region36: #{tpu_custom_call.1} parent=11 // pred_fallthru
          _
        // Predicated region
        $region37: #{tpu_custom_call.1} parent=11 // pred_check
          %p802 = pneg %p337
        $region38: #{tpu_custom_call.1} parent=11 // pred_check_branch
          %804 = sbr.rel (%p802) target = $region40
        $region39: #{tpu_custom_call.1} parent=11 // pred_region
          _
        $region40: #{tpu_custom_call.1} parent=11 // pred_fallthru
          _
        // Predicated region
        $region41: #{tpu_custom_call.1} parent=11 // pred_check
          %p805 = pneg %p358
        $region42: #{tpu_custom_call.1} parent=11 // pred_check_branch
          %807 = sbr.rel (%p805) target = $region44
        $region43: #{tpu_custom_call.1} parent=11 // pred_region
          _
        $region44: #{tpu_custom_call.1} parent=11 // pred_fallthru
          _
        // Predicated region
        $region45: #{tpu_custom_call.1} parent=11 // pred_check
          %p808 = pneg %p379
        $region46: #{tpu_custom_call.1} parent=11 // pred_check_branch
          %810 = sbr.rel (%p808) target = $region48
        $region47: #{tpu_custom_call.1} parent=11 // pred_region
          _
        $region48: #{tpu_custom_call.1} parent=11 // pred_fallthru
          _
        // Predicated region
        $region49: #{tpu_custom_call.1} parent=11 // pred_check
          %p811 = pneg %p400
        $region50: #{tpu_custom_call.1} parent=11 // pred_check_branch
          %813 = sbr.rel (%p811) target = $region52
        $region51: #{tpu_custom_call.1} parent=11 // pred_region
          _
        $region52: #{tpu_custom_call.1} parent=11 // pred_fallthru
          _
        // Predicated region
        $region53: #{tpu_custom_call.1} parent=11 // pred_check
          %p814 = pneg %p421
        $region54: #{tpu_custom_call.1} parent=11 // pred_check_branch
          %816 = sbr.rel (%p814) target = $region56
        $region55: #{tpu_custom_call.1} parent=11 // pred_region
          _
        $region56: #{tpu_custom_call.1} parent=11 // pred_fallthru
          _
        // Predicated region
        $region57: #{tpu_custom_call.1} parent=11 // pred_check
          %p817 = pneg %p442
        $region58: #{tpu_custom_call.1} parent=11 // pred_check_branch
          %819 = sbr.rel (%p817) target = $region60
        $region59: #{tpu_custom_call.1} parent=11 // pred_region
          _
        $region60: #{tpu_custom_call.1} parent=11 // pred_fallthru
          _
        // Predicated region
        $region61: #{tpu_custom_call.1} parent=11 // pred_check
          %p820 = pneg %p463
        $region62: #{tpu_custom_call.1} parent=11 // pred_check_branch
          %822 = sbr.rel (%p820) target = $region64
        $region63: #{tpu_custom_call.1} parent=11 // pred_region
          _
        $region64: #{tpu_custom_call.1} parent=11 // pred_fallthru
          _
        // Predicated region
        $region65: #{tpu_custom_call.1} parent=11 // pred_check
          %p823 = pneg %p484
        $region66: #{tpu_custom_call.1} parent=11 // pred_check_branch
          %825 = sbr.rel (%p823) target = $region68
        $region67: #{tpu_custom_call.1} parent=11 // pred_region
          _
        $region68: #{tpu_custom_call.1} parent=11 // pred_fallthru
          _
        // Predicated region
        $region69: #{tpu_custom_call.1} parent=11 // pred_check
          %p826 = pneg %p505
        $region70: #{tpu_custom_call.1} parent=11 // pred_check_branch
          %828 = sbr.rel (%p826) target = $region72
        $region71: #{tpu_custom_call.1} parent=11 // pred_region
          _
        $region72: #{tpu_custom_call.1} parent=11 // pred_fallthru
          _
        // Predicated region
        $region73: #{tpu_custom_call.1} parent=11 // pred_check
          %p829 = pneg %p526
        $region74: #{tpu_custom_call.1} parent=11 // pred_check_branch
          %831 = sbr.rel (%p829) target = $region76
        $region75: #{tpu_custom_call.1} parent=11 // pred_region
          _
        $region76: #{tpu_custom_call.1} parent=11 // pred_fallthru
          _
        // Predicated region
        $region77: #{tpu_custom_call.1} parent=11 // pred_check
          %p832 = pneg %p547
        $region78: #{tpu_custom_call.1} parent=11 // pred_check_branch
          %834 = sbr.rel (%p832) target = $region80
        $region79: #{tpu_custom_call.1} parent=11 // pred_region
          _
        $region80: #{tpu_custom_call.1} parent=11 // pred_fallthru
          _
        // Predicated region
        $region81: #{tpu_custom_call.1} parent=11 // pred_check
          %p835 = pneg %p568
        $region82: #{tpu_custom_call.1} parent=11 // pred_check_branch
          %837 = sbr.rel (%p835) target = $region84
        $region83: #{tpu_custom_call.1} parent=11 // pred_region
          _
        $region84: #{tpu_custom_call.1} parent=11 // pred_fallthru
          _
        // Predicated region
        $region85: #{tpu_custom_call.1} parent=11 // pred_check
          %p838 = pneg %p589
        $region86: #{tpu_custom_call.1} parent=11 // pred_check_branch
          %840 = sbr.rel (%p838) target = $region88
        $region87: #{tpu_custom_call.1} parent=11 // pred_region
          _
        $region88: #{tpu_custom_call.1} parent=11 // pred_fallthru
          _
        // Predicated region
        $region89: #{tpu_custom_call.1} parent=11 // pred_check
          %p841 = pneg %p610
        $region90: #{tpu_custom_call.1} parent=11 // pred_check_branch
          %843 = sbr.rel (%p841) target = $region92
        $region91: #{tpu_custom_call.1} parent=11 // pred_region
          _
        $region92: #{tpu_custom_call.1} parent=11 // pred_fallthru
          _
        // Predicated region
        $region93: #{tpu_custom_call.1} parent=11 // pred_check
          %p844 = pneg %p631
        $region94: #{tpu_custom_call.1} parent=11 // pred_check_branch
          %846 = sbr.rel (%p844) target = $region96
        $region95: #{tpu_custom_call.1} parent=11 // pred_region
          _
        $region96: #{tpu_custom_call.1} parent=11 // pred_fallthru
          _
        // Predicated region
        $region97: #{tpu_custom_call.1} parent=11 // pred_check
          %p847 = pneg %p652
        $region98: #{tpu_custom_call.1} parent=11 // pred_check_branch
          %849 = sbr.rel (%p847) target = $region100
        $region99: #{tpu_custom_call.1} parent=11 // pred_region
          _
        $region100: #{tpu_custom_call.1} parent=11 // pred_fallthru
          _
        // Predicated region
        $region101: #{tpu_custom_call.1} parent=11 // pred_check
          %p850 = pneg %p673
        $region102: #{tpu_custom_call.1} parent=11 // pred_check_branch
          %852 = sbr.rel (%p850) target = $region104
        $region103: #{tpu_custom_call.1} parent=11 // pred_region
          _
        $region104: #{tpu_custom_call.1} parent=11 // pred_fallthru
          _
        // Predicated region
        $region105: #{tpu_custom_call.1} parent=11 // pred_check
          %p853 = pneg %p694
        $region106: #{tpu_custom_call.1} parent=11 // pred_check_branch
          %855 = sbr.rel (%p853) target = $region108
        $region107: #{tpu_custom_call.1} parent=11 // pred_region
          _
        $region108: #{tpu_custom_call.1} parent=11 // pred_fallthru
          _
        // Predicated region
        $region109: #{tpu_custom_call.1} parent=11 // pred_check
          %p856 = pneg %p715
        $region110: #{tpu_custom_call.1} parent=11 // pred_check_branch
          %858 = sbr.rel (%p856) target = $region112
        $region111: #{tpu_custom_call.1} parent=11 // pred_region
          _
        $region112: #{tpu_custom_call.1} parent=11 // pred_fallthru
          _
      $region12: #{tpu_custom_call.1} parent=5 // pred_fallthru
        _
      %p859 = scmp.lt.s32.totalorder %s74, 4
      // Predicated region
      $region113: #{tpu_custom_call.1} parent=5 // pred_check
        %p860 = pneg %p859
      $region114: #{tpu_custom_call.1} parent=5 // pred_check_branch
        %862 = sbr.rel (%p860) target = $region116
      $region115: #{tpu_custom_call.1} parent=5 // pred_region
        // Predicated region
        $region117: #{tpu_custom_call.1} parent=115 // pred_check
          %p863 = pneg %p106
        $region118: #{tpu_custom_call.1} parent=115 // pred_check_branch
          %865 = sbr.rel (%p863) target = $region120
        $region119: #{tpu_custom_call.1} parent=115 // pred_region
          %s866 = smul.u32 16, %s81
          %p867 = scmp.lt.s32.totalorder %s866, 31
          %s868 = scalar_select %p867, %s866, 31
          %s869 = smul.addr %s868, 8
          %s870 = scalar_lea.vmem %s1, %s869
          %s871 = smul.u32 16, %s81
        $region120: #{tpu_custom_call.1} parent=115 // pred_fallthru
          _
        // Predicated region
        $region121: #{tpu_custom_call.1} parent=115 // pred_check
          %p872 = pneg %p132
        $region122: #{tpu_custom_call.1} parent=115 // pred_check_branch
          %874 = sbr.rel (%p872) target = $region124
        $region123: #{tpu_custom_call.1} parent=115 // pred_region
          %s875 = smul.u32 16, %s81
          %p876 = scmp.lt.s32.totalorder %s875, 31
          %s877 = scalar_select %p876, %s875, 31
          %s878 = smul.addr %s877, 8
          %s879 = scalar_lea.vmem %s3, %s878
          %s880 = smul.u32 16, %s81
        $region124: #{tpu_custom_call.1} parent=115 // pred_fallthru
          _
        // Predicated region
        $region125: #{tpu_custom_call.1} parent=115 // pred_check
          %p881 = pneg %p158
        $region126: #{tpu_custom_call.1} parent=115 // pred_check_branch
          %883 = sbr.rel (%p881) target = $region128
        $region127: #{tpu_custom_call.1} parent=115 // pred_region
          %p884 = scmp.lt.s32.totalorder %s82, 1
          %s885 = scalar_select %p884, %s82, 1
          %s886 = smul.addr %s885, 2
          %s887 = scalar_lea.vmem %s5, %s886
        $region128: #{tpu_custom_call.1} parent=115 // pred_fallthru
          _
        // Predicated region
        $region129: #{tpu_custom_call.1} parent=115 // pred_check
          %p888 = pneg %p184
        $region130: #{tpu_custom_call.1} parent=115 // pred_check_branch
          %890 = sbr.rel (%p888) target = $region132
        $region131: #{tpu_custom_call.1} parent=115 // pred_region
          %s891 = sand.u32 %s174, 1
          %s892 = sand.u32 %s174, 1
          %s893 = smul.addr %s892, 32
          %s894 = scalar_lea.vmem [#allocation5], %s893
          %s895 = smul.addr %s82, 8
          %s896 = scalar_lea.vmem %s7, %s895
          // Predicated region
          $region133: #{tpu_custom_call.1} parent=131 // pred_check
            _
          $region134: #{tpu_custom_call.1} parent=131 // pred_check_branch
            %898 = sbr.rel (0) target = $region136
          $region135: #{tpu_custom_call.1} parent=131 // pred_region
            // Predicated region
            $region137: #{tpu_custom_call.1} parent=135 // pred_check
              _
            $region138: #{tpu_custom_call.1} parent=135 // pred_check_branch
              %900 = sbr.rel (0) target = $region140
            $region139: #{tpu_custom_call.1} parent=135 // pred_region
              // Predicated region
              $region152: #{tpu_custom_call.1} parent=139 // pred_check
                _
              $region153: #{tpu_custom_call.1} parent=139 // pred_check_branch
                %921 = sbr.rel (0) target = $region155
              $region154: #{tpu_custom_call.1} parent=139 // pred_region
                loop: start=0, step=1, limit=1
                $region156: #{tpu_custom_call.1} parent=154 // loop_pre_header
                  _
                $region157: #{tpu_custom_call.1} parent=154 // loop_header
                  %s923 = sphi 0, %s927
                  %p924 = scmp.ge.s32.totalorder %s923, 1
                  %s928 = sphi %s896, %s896
                  %s929 = sphi %s894, %s894
                $region158: #{tpu_custom_call.1} parent=154 // loop_header_branch
                  %926 = sbr.rel (%p924) target = $region162
                $region159: #{tpu_custom_call.1} parent=154 // loop_body
                  %v930 = vld [vmem:[%s928] sm:$0xff]
                  %931 = vst [vmem:[%s929] sm:$0xff] %v930
                  %v932 = vld [vmem:[%s928 + $0x10] sm:$0xff]
                  %933 = vst [vmem:[%s929 + $0x8] sm:$0xff] %v932
                  %v934 = vld [vmem:[%s928 + $0x20] sm:$0xff]
                  %935 = vst [vmem:[%s929 + $0x10] sm:$0xff] %v934
                  %v936 = vld [vmem:[%s928 + $0x30] sm:$0xff]
                  %937 = vst [vmem:[%s929 + $0x18] sm:$0xff] %v936
                $region160: #{tpu_custom_call.1} parent=154 // loop_footer
                  %s927 = sadd.s32 1, %s923
                $region161: #{tpu_custom_call.1} parent=154 // loop_footer_branch
                  %922 = sbr.rel target = $region157
                $region162: #{tpu_custom_call.1} parent=154 // loop_exit
                  _
              $region155: #{tpu_custom_call.1} parent=139 // pred_fallthru
                _
              // Predicated region
              $region163: #{tpu_custom_call.1} parent=139 // pred_check
                _
              $region164: #{tpu_custom_call.1} parent=139 // pred_check_branch
                %939 = sbr.rel target = $region166
              $region165: #{tpu_custom_call.1} parent=139 // pred_region
                _
              $region166: #{tpu_custom_call.1} parent=139 // pred_fallthru
                _
            $region140: #{tpu_custom_call.1} parent=135 // pred_fallthru
              _
            // Predicated region
            $region141: #{tpu_custom_call.1} parent=135 // pred_check
              _
            $region142: #{tpu_custom_call.1} parent=135 // pred_check_branch
              %902 = sbr.rel target = $region144
            $region143: #{tpu_custom_call.1} parent=135 // pred_region
              loop: start=0, step=1, limit=1
              $region145: #{tpu_custom_call.1} parent=143 // loop_pre_header
                _
              $region146: #{tpu_custom_call.1} parent=143 // loop_header
                %s905 = sphi 0, %s909
                %p906 = scmp.ge.s32.totalorder %s905, 1
                %s910 = sphi %s896, %s896
                %s911 = sphi %s894, %s894
              $region147: #{tpu_custom_call.1} parent=143 // loop_header_branch
                %908 = sbr.rel (%p906) target = $region151
              $region148: #{tpu_custom_call.1} parent=143 // loop_body
                %v912 = vld [vmem:[%s910] sm:$0xff]
                %913 = vst [vmem:[%s911] sm:$0xff] %v912
                %v914 = vld [vmem:[%s910 + $0x10] sm:$0xff]
                %915 = vst [vmem:[%s911 + $0x8] sm:$0xff] %v914
                %v916 = vld [vmem:[%s910 + $0x20] sm:$0xff]
                %917 = vst [vmem:[%s911 + $0x10] sm:$0xff] %v916
                %v918 = vld [vmem:[%s910 + $0x30] sm:$0xff]
                %919 = vst [vmem:[%s911 + $0x18] sm:$0xff] %v918
              $region149: #{tpu_custom_call.1} parent=143 // loop_footer
                %s909 = sadd.s32 1, %s905
              $region150: #{tpu_custom_call.1} parent=143 // loop_footer_branch
                %904 = sbr.rel target = $region146
              $region151: #{tpu_custom_call.1} parent=143 // loop_exit
                _
            $region144: #{tpu_custom_call.1} parent=135 // pred_fallthru
              _
          $region136: #{tpu_custom_call.1} parent=131 // pred_fallthru
            _
          %940 = vnop
        $region132: #{tpu_custom_call.1} parent=115 // pred_fallthru
          _
      $region116: #{tpu_custom_call.1} parent=5 // pred_fallthru
        _
      %p941 = scmp.le.s32.totalorder 1, %s74
      %p942 = scmp.lt.s32.totalorder %s74, 5
      %p943 = pnand %p941, %p942
      %p944 = pneg %p943
      // Predicated region
      $region167: #{tpu_custom_call.1} parent=5 // pred_check
        _
      $region168: #{tpu_custom_call.1} parent=5 // pred_check_branch
        %946 = sbr.rel (%p943) target = $region170
      $region169: #{tpu_custom_call.1} parent=5 // pred_region
        %s947 = ssub.s32 %s74, 1
        %s948 = sand.u32 %s177, 1
        %s949 = sand.u32 %s177, 1
        %s950 = smul.addr %s949, 32
        %s951 = scalar_lea.vmem [#allocation5], %s950
        // Predicated region
        $region171: #{tpu_custom_call.1} parent=169 // pred_check
          %p952 = pneg %p190
        $region172: #{tpu_custom_call.1} parent=169 // pred_check_branch
          %954 = sbr.rel (%p952) target = $region174
        $region173: #{tpu_custom_call.1} parent=169 // pred_region
          _
        $region174: #{tpu_custom_call.1} parent=169 // pred_fallthru
          _
        %s955 = smul.u32 16, %s83
        %p956 = scmp.lt.s32.totalorder %s955, 31
        %s957 = scalar_select %p956, %s955, 31
        %s958 = smul.addr %s957, 8
        %s959 = scalar_lea.vmem %s1, %s958
        %p960 = pneg %p112
        %p961 = pneg %p109
        %s962 = smul.u32 16, %s83
        %p963 = scmp.lt.s32.totalorder %s962, 31
        %s964 = scalar_select %p963, %s962, 31
        %s965 = smul.addr %s964, 8
        %s966 = scalar_lea.vmem %s3, %s965
        %p967 = pneg %p138
        %p968 = pneg %p135
        %p969 = scmp.lt.s32.totalorder %s84, 1
        %s970 = scalar_select %p969, %s84, 1
        %s971 = smul.addr %s970, 2
        %s972 = scalar_lea.vmem %s5, %s971
        %p973 = pneg %p164
        %p974 = pneg %p161
        %s975 = sand.u32 %s177, 1
        %s976 = sand.u32 %s177, 1
        %s977 = smul.addr %s976, 32
        %s978 = scalar_lea.vmem [#allocation5], %s977
        %p979 = pneg %p190
        %p980 = pneg %p187
        %p981 = pneg %p211
        %p982 = pneg %p208
        %p983 = pneg %p232
        %p984 = pneg %p229
        %p985 = pneg %p253
        %p986 = pneg %p250
        %p987 = pneg %p274
        %p988 = pneg %p271
        %p989 = pneg %p295
        %p990 = pneg %p292
        %p991 = pneg %p316
        %p992 = pneg %p313
        %p993 = pneg %p337
        %p994 = pneg %p334
        %p995 = pneg %p358
        %p996 = pneg %p355
        %p997 = pneg %p379
        %p998 = pneg %p376
        %p999 = pneg %p400
        %p1000 = pneg %p397
        %p1001 = pneg %p421
        %p1002 = pneg %p418
        %p1003 = pneg %p442
        %p1004 = pneg %p439
        %p1005 = pneg %p463
        %p1006 = pneg %p460
        %p1007 = pneg %p484
        %p1008 = pneg %p481
        %p1009 = pneg %p505
        %p1010 = pneg %p502
        %p1011 = pneg %p526
        %p1012 = pneg %p523
        %p1013 = pneg %p547
        %p1014 = pneg %p544
        %p1015 = pneg %p568
        %p1016 = pneg %p565
        %p1017 = pneg %p589
        %p1018 = pneg %p586
        %p1019 = pneg %p610
        %p1020 = pneg %p607
        %p1021 = pneg %p631
        %p1022 = pneg %p628
        %p1023 = pneg %p652
        %p1024 = pneg %p649
        %p1025 = pneg %p673
        %p1026 = pneg %p670
        %p1027 = pneg %p694
        %p1028 = pneg %p691
        %p1029 = pneg %p715
        %p1030 = pneg %p712
        %p1031 = pneg %p743
        %p1032 = pneg %p740
        %s1033 = sand.u32 %s730, 1
        %s1034 = scalar_lea.sflag [#allocation7], %s1033
        %s1035 = sand.u32 %s730, 1
        %s1036 = smul.addr %s1035, 32
        %s1037 = scalar_lea.vmem [#allocation6], %s1036
        %p1038 = pneg %p769
        %p1039 = pneg %p766
        %s1040 = sand.u32 %s756, 1
        %s1041 = scalar_lea.sflag [#allocation9], %s1040
        %s1042 = sand.u32 %s756, 1
        %s1043 = smul.addr %s1042, 128
        %s1044 = scalar_lea.vmem [#allocation8], %s1043
        %s1045 = smul.u32 16, %s83
        %p1046 = scmp.lt.s32.totalorder %s1045, 31
        %s1047 = scalar_select %p1046, %s1045, 31
        %s1048 = smul.addr %s1047, 8
        %s1049 = scalar_lea.vmem %s1, %s1048
        %s1050 = smul.u32 16, %s83
        %s1051 = smul.u32 16, %s83
        %p1052 = scmp.lt.s32.totalorder %s1051, 31
        %s1053 = scalar_select %p1052, %s1051, 31
        %s1054 = smul.addr %s1053, 8
        %s1055 = scalar_lea.vmem %s3, %s1054
        %s1056 = smul.u32 16, %s83
        %p1057 = scmp.lt.s32.totalorder %s84, 1
        %s1058 = scalar_select %p1057, %s84, 1
        %s1059 = smul.addr %s1058, 2
        %s1060 = scalar_lea.vmem %s5, %s1059
        %s1061 = smul.u32 4, %s83
        %s1062 = smul.u32 16, %s83
        %p1063 = scmp.eq.s32.totalorder %s84, 0
        // Predicated region
        $region175: #{tpu_custom_call.1} parent=169 // pred_check
          %p1064 = pneg %p1063
        $region176: #{tpu_custom_call.1} parent=169 // pred_check_branch
          %1066 = sbr.rel (%p1064) target = $region178
        $region177: #{tpu_custom_call.1} parent=169 // pred_region
          %vm1067 = vcmask 261120
          %1068 = vst.msk [vmem:[#allocation2] sm:$0xff] %vm1067, 0.0
          %1069 = vst.msk [vmem:[#allocation2 + $0x8] sm:$0xff] %vm1067, 0.0
          %1070 = vst.msk [vmem:[#allocation2 + $0x10] sm:$0xff] %vm1067, 0.0
          %1071 = vst.msk [vmem:[#allocation2 + $0x18] sm:$0xff] %vm1067, 0.0
          %1072 = vst.msk [vmem:[#allocation2 + $0x20] sm:$0xff] %vm1067, 0.0
          %1073 = vst.msk [vmem:[#allocation2 + $0x28] sm:$0xff] %vm1067, 0.0
          %1074 = vst.msk [vmem:[#allocation2 + $0x30] sm:$0xff] %vm1067, 0.0
          %1075 = vst.msk [vmem:[#allocation2 + $0x38] sm:$0xff] %vm1067, 0.0
          %1076 = vst.msk [vmem:[#allocation2 + $0x40] sm:$0xff] %vm1067, 0.0
          %1077 = vst.msk [vmem:[#allocation2 + $0x48] sm:$0xff] %vm1067, 0.0
          %1078 = vst.msk [vmem:[#allocation2 + $0x50] sm:$0xff] %vm1067, 0.0
          %1079 = vst.msk [vmem:[#allocation2 + $0x58] sm:$0xff] %vm1067, 0.0
          %1080 = vst.msk [vmem:[#allocation2 + $0x60] sm:$0xff] %vm1067, 0.0
          %1081 = vst.msk [vmem:[#allocation2 + $0x68] sm:$0xff] %vm1067, 0.0
          %1082 = vst.msk [vmem:[#allocation2 + $0x70] sm:$0xff] %vm1067, 0.0
          %1083 = vst.msk [vmem:[#allocation2 + $0x78] sm:$0xff] %vm1067, 0.0
          %vm1084 = vcmask 7168
          %1085 = vst.msk [vmem:[#allocation4] sm:$0xff] %vm1084, 0.0
          %1086 = vst.msk [vmem:[#allocation4 + $0x8] sm:$0xff] %vm1084, 0.0
          %1087 = vst.msk [vmem:[#allocation4 + $0x10] sm:$0xff] %vm1084, 0.0
          %1088 = vst.msk [vmem:[#allocation4 + $0x18] sm:$0xff] %vm1084, 0.0
          %1089 = vst.msk [vmem:[#allocation4 + $0x20] sm:$0xff] %vm1084, 0.0
          %1090 = vst.msk [vmem:[#allocation4 + $0x28] sm:$0xff] %vm1084, 0.0
          %1091 = vst.msk [vmem:[#allocation4 + $0x30] sm:$0xff] %vm1084, 0.0
          %1092 = vst.msk [vmem:[#allocation4 + $0x38] sm:$0xff] %vm1084, 0.0
          %1093 = vst.msk [vmem:[#allocation4 + $0x40] sm:$0xff] %vm1084, 0.0
          %1094 = vst.msk [vmem:[#allocation4 + $0x48] sm:$0xff] %vm1084, 0.0
          %1095 = vst.msk [vmem:[#allocation4 + $0x50] sm:$0xff] %vm1084, 0.0
          %1096 = vst.msk [vmem:[#allocation4 + $0x58] sm:$0xff] %vm1084, 0.0
          %1097 = vst.msk [vmem:[#allocation4 + $0x60] sm:$0xff] %vm1084, 0.0
          %1098 = vst.msk [vmem:[#allocation4 + $0x68] sm:$0xff] %vm1084, 0.0
          %1099 = vst.msk [vmem:[#allocation4 + $0x70] sm:$0xff] %vm1084, 0.0
          %1100 = vst.msk [vmem:[#allocation4 + $0x78] sm:$0xff] %vm1084, 0.0
          %1101 = vst.msk [vmem:[#allocation3] sm:$0xff] %vm1067, -1e+30
          %1102 = vst.msk [vmem:[#allocation3 + $0x8] sm:$0xff] %vm1067, -1e+30
          %1103 = vst.msk [vmem:[#allocation3 + $0x10] sm:$0xff] %vm1067, -1e+30
          %1104 = vst.msk [vmem:[#allocation3 + $0x18] sm:$0xff] %vm1067, -1e+30
          %1105 = vst.msk [vmem:[#allocation3 + $0x20] sm:$0xff] %vm1067, -1e+30
          %1106 = vst.msk [vmem:[#allocation3 + $0x28] sm:$0xff] %vm1067, -1e+30
          %1107 = vst.msk [vmem:[#allocation3 + $0x30] sm:$0xff] %vm1067, -1e+30
          %1108 = vst.msk [vmem:[#allocation3 + $0x38] sm:$0xff] %vm1067, -1e+30
          %1109 = vst.msk [vmem:[#allocation3 + $0x40] sm:$0xff] %vm1067, -1e+30
          %1110 = vst.msk [vmem:[#allocation3 + $0x48] sm:$0xff] %vm1067, -1e+30
          %1111 = vst.msk [vmem:[#allocation3 + $0x50] sm:$0xff] %vm1067, -1e+30
          %1112 = vst.msk [vmem:[#allocation3 + $0x58] sm:$0xff] %vm1067, -1e+30
          %1113 = vst.msk [vmem:[#allocation3 + $0x60] sm:$0xff] %vm1067, -1e+30
          %1114 = vst.msk [vmem:[#allocation3 + $0x68] sm:$0xff] %vm1067, -1e+30
          %1115 = vst.msk [vmem:[#allocation3 + $0x70] sm:$0xff] %vm1067, -1e+30
          %1116 = vst.msk [vmem:[#allocation3 + $0x78] sm:$0xff] %vm1067, -1e+30
        $region178: #{tpu_custom_call.1} parent=169 // pred_fallthru
          _
        %v1117 = vld [vmem:[%s1055] sm:$0xff]
        %v1118 = vld [vmem:[%s1055 + $0x8] sm:$0xff]
        %v1119 = vld [vmem:[%s1055 + $0x10] sm:$0xff]
        %v1120 = vld [vmem:[%s1055 + $0x18] sm:$0xff]
        %v1121 = vld [vmem:[%s1055 + $0x20] sm:$0xff]
        %v1122 = vld [vmem:[%s1055 + $0x28] sm:$0xff]
        %v1123 = vld [vmem:[%s1055 + $0x30] sm:$0xff]
        %v1124 = vld [vmem:[%s1055 + $0x38] sm:$0xff]
        %v1125 = vld [vmem:[%s1055 + $0x40] sm:$0xff]
        %v1126 = vld [vmem:[%s1055 + $0x48] sm:$0xff]
        %v1127 = vld [vmem:[%s1055 + $0x50] sm:$0xff]
        %v1128 = vld [vmem:[%s1055 + $0x58] sm:$0xff]
        %v1129 = vld [vmem:[%s1055 + $0x60] sm:$0xff]
        %v1130 = vld [vmem:[%s1055 + $0x68] sm:$0xff]
        %v1131 = vld [vmem:[%s1055 + $0x70] sm:$0xff]
        %v1132 = vld [vmem:[%s1055 + $0x78] sm:$0xff]
        %v1133 = vld [vmem:[%s1060] sm:$0x3]
        %v1134 = vld [vmem:[%s951] sm:$0xff]
        %v1135 = vld [vmem:[%s951 + $0x8] sm:$0xff]
        %v1136 = vld [vmem:[%s951 + $0x10] sm:$0xff]
        %v1137 = vld [vmem:[%s951 + $0x18] sm:$0xff]
        %1139 = vset.pattern.permute.xlu0 0
        %1140 = vperm.xlu0 %1139, %v1117
        %v1141 = vpop.permute.xlu0 %1140
        %1144 = vset.pattern.permute.xlu0 0
        %1145 = vperm.xlu0 %1144, %v1118
        %v1146 = vpop.permute.xlu0 %1145
        %1149 = vset.pattern.permute.xlu0 0
        %1150 = vperm.xlu0 %1149, %v1119
        %v1151 = vpop.permute.xlu0 %1150
        %1154 = vset.pattern.permute.xlu0 0
        %1155 = vperm.xlu0 %1154, %v1120
        %v1156 = vpop.permute.xlu0 %1155
        %1159 = vset.pattern.permute.xlu0 0
        %1160 = vperm.xlu0 %1159, %v1121
        %v1161 = vpop.permute.xlu0 %1160
        %1164 = vset.pattern.permute.xlu0 0
        %1165 = vperm.xlu0 %1164, %v1122
        %v1166 = vpop.permute.xlu0 %1165
        %1169 = vset.pattern.permute.xlu0 0
        %1170 = vperm.xlu0 %1169, %v1123
        %v1171 = vpop.permute.xlu0 %1170
        %1174 = vset.pattern.permute.xlu0 0
        %1175 = vperm.xlu0 %1174, %v1124
        %v1176 = vpop.permute.xlu0 %1175
        %1179 = vset.pattern.permute.xlu0 0
        %1180 = vperm.xlu0 %1179, %v1125
        %v1181 = vpop.permute.xlu0 %1180
        %1184 = vset.pattern.permute.xlu0 0
        %1185 = vperm.xlu0 %1184, %v1126
        %v1186 = vpop.permute.xlu0 %1185
        %1189 = vset.pattern.permute.xlu0 0
        %1190 = vperm.xlu0 %1189, %v1127
        %v1191 = vpop.permute.xlu0 %1190
        %1194 = vset.pattern.permute.xlu0 0
        %1195 = vperm.xlu0 %1194, %v1128
        %v1196 = vpop.permute.xlu0 %1195
        %1199 = vset.pattern.permute.xlu0 0
        %1200 = vperm.xlu0 %1199, %v1129
        %v1201 = vpop.permute.xlu0 %1200
        %1204 = vset.pattern.permute.xlu0 0
        %1205 = vperm.xlu0 %1204, %v1130
        %v1206 = vpop.permute.xlu0 %1205
        %1209 = vset.pattern.permute.xlu0 0
        %1210 = vperm.xlu0 %1209, %v1131
        %v1211 = vpop.permute.xlu0 %1210
        %1214 = vset.pattern.permute.xlu0 0
        %1215 = vperm.xlu0 %1214, %v1132
        %v1216 = vpop.permute.xlu0 %1215
        %v1218 = vlaneseq
        %v1219 = vshrl.u32 %v1218, 7
        %v1220 = vsub.s32 0, %v1219
        %v1221 = vrot.slane %v1133, %v1220
        %v1222 = vsub.f32 %v1141, %v1221
        %v1223 = vsub.f32 %v1146, %v1221
        %v1224 = vsub.f32 %v1151, %v1221
        %v1225 = vsub.f32 %v1156, %v1221
        %v1226 = vsub.f32 %v1161, %v1221
        %v1227 = vsub.f32 %v1166, %v1221
        %v1228 = vsub.f32 %v1171, %v1221
        %v1229 = vsub.f32 %v1176, %v1221
        %v1230 = vsub.f32 %v1181, %v1221
        %v1231 = vsub.f32 %v1186, %v1221
        %v1232 = vsub.f32 %v1191, %v1221
        %v1233 = vsub.f32 %v1196, %v1221
        %v1234 = vsub.f32 %v1201, %v1221
        %v1235 = vsub.f32 %v1206, %v1221
        %v1236 = vsub.f32 %v1211, %v1221
        %v1237 = vsub.f32 %v1216, %v1221
        %1238 = vset.pattern.permute.xlu0 1
        %1239 = vperm.xlu0 %1238, %v1117
        %v1240 = vpop.permute.xlu0 %1239
        %1242 = vset.pattern.permute.xlu0 1
        %1243 = vperm.xlu0 %1242, %v1118
        %v1244 = vpop.permute.xlu0 %1243
        %1246 = vset.pattern.permute.xlu0 1
        %1247 = vperm.xlu0 %1246, %v1119
        %v1248 = vpop.permute.xlu0 %1247
        %1250 = vset.pattern.permute.xlu0 1
        %1251 = vperm.xlu0 %1250, %v1120
        %v1252 = vpop.permute.xlu0 %1251
        %1254 = vset.pattern.permute.xlu0 1
        %1255 = vperm.xlu0 %1254, %v1121
        %v1256 = vpop.permute.xlu0 %1255
        %1258 = vset.pattern.permute.xlu0 1
        %1259 = vperm.xlu0 %1258, %v1122
        %v1260 = vpop.permute.xlu0 %1259
        %1262 = vset.pattern.permute.xlu0 1
        %1263 = vperm.xlu0 %1262, %v1123
        %v1264 = vpop.permute.xlu0 %1263
        %1266 = vset.pattern.permute.xlu0 1
        %1267 = vperm.xlu0 %1266, %v1124
        %v1268 = vpop.permute.xlu0 %1267
        %1270 = vset.pattern.permute.xlu0 1
        %1271 = vperm.xlu0 %1270, %v1125
        %v1272 = vpop.permute.xlu0 %1271
        %1274 = vset.pattern.permute.xlu0 1
        %1275 = vperm.xlu0 %1274, %v1126
        %v1276 = vpop.permute.xlu0 %1275
        %1278 = vset.pattern.permute.xlu0 1
        %1279 = vperm.xlu0 %1278, %v1127
        %v1280 = vpop.permute.xlu0 %1279
        %1282 = vset.pattern.permute.xlu0 1
        %1283 = vperm.xlu0 %1282, %v1128
        %v1284 = vpop.permute.xlu0 %1283
        %1286 = vset.pattern.permute.xlu0 1
        %1287 = vperm.xlu0 %1286, %v1129
        %v1288 = vpop.permute.xlu0 %1287
        %1290 = vset.pattern.permute.xlu0 1
        %1291 = vperm.xlu0 %1290, %v1130
        %v1292 = vpop.permute.xlu0 %1291
        %1294 = vset.pattern.permute.xlu0 1
        %1295 = vperm.xlu0 %1294, %v1131
        %v1296 = vpop.permute.xlu0 %1295
        %1298 = vset.pattern.permute.xlu0 1
        %1299 = vperm.xlu0 %1298, %v1132
        %v1300 = vpop.permute.xlu0 %1299
        %v1302 = vlaneseq
        %v1303 = vshrl.u32 %v1302, 7
        %v1304 = vsub.s32 1, %v1303
        %v1305 = vrot.slane %v1133, %v1304
        %v1306 = vsub.f32 %v1240, %v1305
        %v1307 = vsub.f32 %v1244, %v1305
        %v1308 = vsub.f32 %v1248, %v1305
        %v1309 = vsub.f32 %v1252, %v1305
        %v1310 = vsub.f32 %v1256, %v1305
        %v1311 = vsub.f32 %v1260, %v1305
        %v1312 = vsub.f32 %v1264, %v1305
        %v1313 = vsub.f32 %v1268, %v1305
        %v1314 = vsub.f32 %v1272, %v1305
        %v1315 = vsub.f32 %v1276, %v1305
        %v1316 = vsub.f32 %v1280, %v1305
        %v1317 = vsub.f32 %v1284, %v1305
        %v1318 = vsub.f32 %v1288, %v1305
        %v1319 = vsub.f32 %v1292, %v1305
        %v1320 = vsub.f32 %v1296, %v1305
        %v1321 = vsub.f32 %v1300, %v1305
        %v1322 = vmul.f32 %v1222, %v1222
        %v1323 = vmul.f32 %v1223, %v1223
        %v1324 = vmul.f32 %v1224, %v1224
        %v1325 = vmul.f32 %v1225, %v1225
        %v1326 = vmul.f32 %v1226, %v1226
        %v1327 = vmul.f32 %v1227, %v1227
        %v1328 = vmul.f32 %v1228, %v1228
        %v1329 = vmul.f32 %v1229, %v1229
        %v1330 = vmul.f32 %v1230, %v1230
        %v1331 = vmul.f32 %v1231, %v1231
        %v1332 = vmul.f32 %v1232, %v1232
        %v1333 = vmul.f32 %v1233, %v1233
        %v1334 = vmul.f32 %v1234, %v1234
        %v1335 = vmul.f32 %v1235, %v1235
        %v1336 = vmul.f32 %v1236, %v1236
        %v1337 = vmul.f32 %v1237, %v1237
        %v1338 = vmul.f32 %v1306, %v1306
        %v1339 = vmul.f32 %v1307, %v1307
        %v1340 = vmul.f32 %v1308, %v1308
        %v1341 = vmul.f32 %v1309, %v1309
        %v1342 = vmul.f32 %v1310, %v1310
        %v1343 = vmul.f32 %v1311, %v1311
        %v1344 = vmul.f32 %v1312, %v1312
        %v1345 = vmul.f32 %v1313, %v1313
        %v1346 = vmul.f32 %v1314, %v1314
        %v1347 = vmul.f32 %v1315, %v1315
        %v1348 = vmul.f32 %v1316, %v1316
        %v1349 = vmul.f32 %v1317, %v1317
        %v1350 = vmul.f32 %v1318, %v1318
        %v1351 = vmul.f32 %v1319, %v1319
        %v1352 = vmul.f32 %v1320, %v1320
        %v1353 = vmul.f32 %v1321, %v1321
        %v1354 = vadd.f32 %v1322, %v1338
        %v1355 = vadd.f32 %v1323, %v1339
        %v1356 = vadd.f32 %v1324, %v1340
        %v1357 = vadd.f32 %v1325, %v1341
        %v1358 = vadd.f32 %v1326, %v1342
        %v1359 = vadd.f32 %v1327, %v1343
        %v1360 = vadd.f32 %v1328, %v1344
        %v1361 = vadd.f32 %v1329, %v1345
        %v1362 = vadd.f32 %v1330, %v1346
        %v1363 = vadd.f32 %v1331, %v1347
        %v1364 = vadd.f32 %v1332, %v1348
        %v1365 = vadd.f32 %v1333, %v1349
        %v1366 = vadd.f32 %v1334, %v1350
        %v1367 = vadd.f32 %v1335, %v1351
        %v1368 = vadd.f32 %v1336, %v1352
        %v1369 = vadd.f32 %v1337, %v1353
        %v1370 = vlaneseq
        %v1371 = vshrl.u32 %v1370, 7
        %v1372 = vadd.s32 %v1371, 8
        %v1373 = vadd.s32 %v1371, 16
        %v1374 = vadd.s32 %v1371, 24
        %v1375 = vadd.s32 %v1371, 32
        %v1376 = vadd.s32 %v1371, 40
        %v1377 = vadd.s32 %v1371, 48
        %v1378 = vadd.s32 %v1371, 56
        %v1379 = vadd.s32 %v1371, 64
        %v1380 = vadd.s32 %v1371, 72
        %v1381 = vadd.s32 %v1371, 80
        %v1382 = vadd.s32 %v1371, 88
        %v1383 = vadd.s32 %v1371, 96
        %v1384 = vadd.s32 %v1371, 104
        %v1385 = vadd.s32 %v1371, 112
        %v1386 = vadd.s32 %v1371, 120
        %s1387 = smul.u32 %s83, 128
        %v1388 = vstv %s1387
        %v1389 = vadd.s32 %v1371, %v1388
        %v1390 = vadd.s32 %v1372, %v1388
        %v1391 = vadd.s32 %v1373, %v1388
        %v1392 = vadd.s32 %v1374, %v1388
        %v1393 = vadd.s32 %v1375, %v1388
        %v1394 = vadd.s32 %v1376, %v1388
        %v1395 = vadd.s32 %v1377, %v1388
        %v1396 = vadd.s32 %v1378, %v1388
        %v1397 = vadd.s32 %v1379, %v1388
        %v1398 = vadd.s32 %v1380, %v1388
        %v1399 = vadd.s32 %v1381, %v1388
        %v1400 = vadd.s32 %v1382, %v1388
        %v1401 = vadd.s32 %v1383, %v1388
        %v1402 = vadd.s32 %v1384, %v1388
        %v1403 = vadd.s32 %v1385, %v1388
        %v1404 = vadd.s32 %v1386, %v1388
        %v1405 = vlaneseq
        %v1406 = vand.u32 %v1405, 127
        %s1407 = smul.u32 %s84, 128
        %v1408 = vstv %s1407
        %v1409 = vadd.s32 %v1406, %v1408
        %vm1410 = vcmp.lt.f32.partialorder %v1354, 0.25
        %vm1411 = vcmp.lt.f32.partialorder %v1355, 0.25
        %vm1412 = vcmp.lt.f32.partialorder %v1356, 0.25
        %vm1413 = vcmp.lt.f32.partialorder %v1357, 0.25
        %vm1414 = vcmp.lt.f32.partialorder %v1358, 0.25
        %vm1415 = vcmp.lt.f32.partialorder %v1359, 0.25
        %vm1416 = vcmp.lt.f32.partialorder %v1360, 0.25
        %vm1417 = vcmp.lt.f32.partialorder %v1361, 0.25
        %vm1418 = vcmp.lt.f32.partialorder %v1362, 0.25
        %vm1419 = vcmp.lt.f32.partialorder %v1363, 0.25
        %vm1420 = vcmp.lt.f32.partialorder %v1364, 0.25
        %vm1421 = vcmp.lt.f32.partialorder %v1365, 0.25
        %vm1422 = vcmp.lt.f32.partialorder %v1366, 0.25
        %vm1423 = vcmp.lt.f32.partialorder %v1367, 0.25
        %vm1424 = vcmp.lt.f32.partialorder %v1368, 0.25
        %vm1425 = vcmp.lt.f32.partialorder %v1369, 0.25
        %vm1426 = vcmp.ne.s32.totalorder %v1389, %v1409
        %vm1427 = vcmp.ne.s32.totalorder %v1390, %v1409
        %vm1428 = vcmp.ne.s32.totalorder %v1391, %v1409
        %vm1429 = vcmp.ne.s32.totalorder %v1392, %v1409
        %vm1430 = vcmp.ne.s32.totalorder %v1393, %v1409
        %vm1431 = vcmp.ne.s32.totalorder %v1394, %v1409
        %vm1432 = vcmp.ne.s32.totalorder %v1395, %v1409
        %vm1433 = vcmp.ne.s32.totalorder %v1396, %v1409
        %vm1434 = vcmp.ne.s32.totalorder %v1397, %v1409
        %vm1435 = vcmp.ne.s32.totalorder %v1398, %v1409
        %vm1436 = vcmp.ne.s32.totalorder %v1399, %v1409
        %vm1437 = vcmp.ne.s32.totalorder %v1400, %v1409
        %vm1438 = vcmp.ne.s32.totalorder %v1401, %v1409
        %vm1439 = vcmp.ne.s32.totalorder %v1402, %v1409
        %vm1440 = vcmp.ne.s32.totalorder %v1403, %v1409
        %vm1441 = vcmp.ne.s32.totalorder %v1404, %v1409
        %vm1442 = vmand %vm1410, %vm1426
        %vm1443 = vmand %vm1411, %vm1427
        %vm1444 = vmand %vm1412, %vm1428
        %vm1445 = vmand %vm1413, %vm1429
        %vm1446 = vmand %vm1414, %vm1430
        %vm1447 = vmand %vm1415, %vm1431
        %vm1448 = vmand %vm1416, %vm1432
        %vm1449 = vmand %vm1417, %vm1433
        %vm1450 = vmand %vm1418, %vm1434
        %vm1451 = vmand %vm1419, %vm1435
        %vm1452 = vmand %vm1420, %vm1436
        %vm1453 = vmand %vm1421, %vm1437
        %vm1454 = vmand %vm1422, %vm1438
        %vm1455 = vmand %vm1423, %vm1439
        %vm1456 = vmand %vm1424, %vm1440
        %vm1457 = vmand %vm1425, %vm1441
        %vm1458 = vcmp.lt.s32.totalorder %v1409, 200
        %vm1459 = vmand %vm1442, %vm1458
        %vm1460 = vmand %vm1443, %vm1458
        %vm1461 = vmand %vm1444, %vm1458
        %vm1462 = vmand %vm1445, %vm1458
        %vm1463 = vmand %vm1446, %vm1458
        %vm1464 = vmand %vm1447, %vm1458
        %vm1465 = vmand %vm1448, %vm1458
        %vm1466 = vmand %vm1449, %vm1458
        %vm1467 = vmand %vm1450, %vm1458
        %vm1468 = vmand %vm1451, %vm1458
        %vm1469 = vmand %vm1452, %vm1458
        %vm1470 = vmand %vm1453, %vm1458
        %vm1471 = vmand %vm1454, %vm1458
        %vm1472 = vmand %vm1455, %vm1458
        %vm1473 = vmand %vm1456, %vm1458
        %vm1474 = vmand %vm1457, %vm1458
        %v1475 = vsel %vm1459, 1, 0
        %v1476 = vsel %vm1460, 1, 0
        %v1477 = vsel %vm1461, 1, 0
        %v1478 = vsel %vm1462, 1, 0
        %v1479 = vsel %vm1463, 1, 0
        %v1480 = vsel %vm1464, 1, 0
        %v1481 = vsel %vm1465, 1, 0
        %v1482 = vsel %vm1466, 1, 0
        %v1483 = vsel %vm1467, 1, 0
        %v1484 = vsel %vm1468, 1, 0
        %v1485 = vsel %vm1469, 1, 0
        %v1486 = vsel %vm1470, 1, 0
        %v1487 = vsel %vm1471, 1, 0
        %v1488 = vsel %vm1472, 1, 0
        %v1489 = vsel %vm1473, 1, 0
        %v1490 = vsel %vm1474, 1, 0
        %v1491 = vcvt.s32.f32 %v1475
        %v1492 = vcvt.s32.f32 %v1476
        %v1493 = vcvt.s32.f32 %v1477
        %v1494 = vcvt.s32.f32 %v1478
        %v1495 = vcvt.s32.f32 %v1479
        %v1496 = vcvt.s32.f32 %v1480
        %v1497 = vcvt.s32.f32 %v1481
        %v1498 = vcvt.s32.f32 %v1482
        %v1499 = vcvt.s32.f32 %v1483
        %v1500 = vcvt.s32.f32 %v1484
        %v1501 = vcvt.s32.f32 %v1485
        %v1502 = vcvt.s32.f32 %v1486
        %v1503 = vcvt.s32.f32 %v1487
        %v1504 = vcvt.s32.f32 %v1488
        %v1505 = vcvt.s32.f32 %v1489
        %v1506 = vcvt.s32.f32 %v1490
        %v1507 = vmul.f32 %v1354, -10.0
        %v1508 = vmul.f32 %v1355, -10.0
        %v1509 = vmul.f32 %v1356, -10.0
        %v1510 = vmul.f32 %v1357, -10.0
        %v1511 = vmul.f32 %v1358, -10.0
        %v1512 = vmul.f32 %v1359, -10.0
        %v1513 = vmul.f32 %v1360, -10.0
        %v1514 = vmul.f32 %v1361, -10.0
        %v1515 = vmul.f32 %v1362, -10.0
        %v1516 = vmul.f32 %v1363, -10.0
        %v1517 = vmul.f32 %v1364, -10.0
        %v1518 = vmul.f32 %v1365, -10.0
        %v1519 = vmul.f32 %v1366, -10.0
        %v1520 = vmul.f32 %v1367, -10.0
        %v1521 = vmul.f32 %v1368, -10.0
        %v1522 = vmul.f32 %v1369, -10.0
        %v1523 = vmul.f32 %v1507, 1.442695
        %v1524 = vpow.pop %v1523
        %v1525 = vmul.f32 %v1508, 1.442695
        %v1526 = vpow.pop %v1525
        %v1527 = vmul.f32 %v1509, 1.442695
        %v1528 = vpow.pop %v1527
        %v1529 = vmul.f32 %v1510, 1.442695
        %v1530 = vpow.pop %v1529
        %v1531 = vmul.f32 %v1511, 1.442695
        %v1532 = vpow.pop %v1531
        %v1533 = vmul.f32 %v1512, 1.442695
        %v1534 = vpow.pop %v1533
        %v1535 = vmul.f32 %v1513, 1.442695
        %v1536 = vpow.pop %v1535
        %v1537 = vmul.f32 %v1514, 1.442695
        %v1538 = vpow.pop %v1537
        %v1539 = vmul.f32 %v1515, 1.442695
        %v1540 = vpow.pop %v1539
        %v1541 = vmul.f32 %v1516, 1.442695
        %v1542 = vpow.pop %v1541
        %v1543 = vmul.f32 %v1517, 1.442695
        %v1544 = vpow.pop %v1543
        %v1545 = vmul.f32 %v1518, 1.442695
        %v1546 = vpow.pop %v1545
        %v1547 = vmul.f32 %v1519, 1.442695
        %v1548 = vpow.pop %v1547
        %v1549 = vmul.f32 %v1520, 1.442695
        %v1550 = vpow.pop %v1549
        %v1551 = vmul.f32 %v1521, 1.442695
        %v1552 = vpow.pop %v1551
        %v1553 = vmul.f32 %v1522, 1.442695
        %v1554 = vpow.pop %v1553
        %v1555 = vsel %vm1459, %v1524, 0.0
        %v1556 = vsel %vm1460, %v1526, 0.0
        %v1557 = vsel %vm1461, %v1528, 0.0
        %v1558 = vsel %vm1462, %v1530, 0.0
        %v1559 = vsel %vm1463, %v1532, 0.0
        %v1560 = vsel %vm1464, %v1534, 0.0
        %v1561 = vsel %vm1465, %v1536, 0.0
        %v1562 = vsel %vm1466, %v1538, 0.0
        %v1563 = vsel %vm1467, %v1540, 0.0
        %v1564 = vsel %vm1468, %v1542, 0.0
        %v1565 = vsel %vm1469, %v1544, 0.0
        %v1566 = vsel %vm1470, %v1546, 0.0
        %v1567 = vsel %vm1471, %v1548, 0.0
        %v1568 = vsel %vm1472, %v1550, 0.0
        %v1569 = vsel %vm1473, %v1552, 0.0
        %v1570 = vsel %vm1474, %v1554, 0.0
        %v1571 = vld [vmem:[#allocation4] sm:$0xff]
        %v1572 = vld [vmem:[#allocation4 + $0x8] sm:$0xff]
        %v1573 = vld [vmem:[#allocation4 + $0x10] sm:$0xff]
        %v1574 = vld [vmem:[#allocation4 + $0x18] sm:$0xff]
        %v1575 = vld [vmem:[#allocation4 + $0x20] sm:$0xff]
        %v1576 = vld [vmem:[#allocation4 + $0x28] sm:$0xff]
        %v1577 = vld [vmem:[#allocation4 + $0x30] sm:$0xff]
        %v1578 = vld [vmem:[#allocation4 + $0x38] sm:$0xff]
        %v1579 = vld [vmem:[#allocation4 + $0x40] sm:$0xff]
        %v1580 = vld [vmem:[#allocation4 + $0x48] sm:$0xff]
        %v1581 = vld [vmem:[#allocation4 + $0x50] sm:$0xff]
        %v1582 = vld [vmem:[#allocation4 + $0x58] sm:$0xff]
        %v1583 = vld [vmem:[#allocation4 + $0x60] sm:$0xff]
        %v1584 = vld [vmem:[#allocation4 + $0x68] sm:$0xff]
        %v1585 = vld [vmem:[#allocation4 + $0x70] sm:$0xff]
        %v1586 = vld [vmem:[#allocation4 + $0x78] sm:$0xff]
        %1587 = vadd.xlane.f32.xlu0 %v1491
        %v1588 = vpop.xlane.xlu0 %1587
        %1589 = vadd.xlane.f32.xlu0 %v1492
        %v1590 = vpop.xlane.xlu0 %1589
        %1591 = vadd.xlane.f32.xlu0 %v1493
        %v1592 = vpop.xlane.xlu0 %1591
        %1593 = vadd.xlane.f32.xlu0 %v1494
        %v1594 = vpop.xlane.xlu0 %1593
        %1595 = vadd.xlane.f32.xlu0 %v1495
        %v1596 = vpop.xlane.xlu0 %1595
        %1597 = vadd.xlane.f32.xlu0 %v1496
        %v1598 = vpop.xlane.xlu0 %1597
        %1599 = vadd.xlane.f32.xlu0 %v1497
        %v1600 = vpop.xlane.xlu0 %1599
        %1601 = vadd.xlane.f32.xlu0 %v1498
        %v1602 = vpop.xlane.xlu0 %1601
        %1603 = vadd.xlane.f32.xlu0 %v1499
        %v1604 = vpop.xlane.xlu0 %1603
        %1605 = vadd.xlane.f32.xlu0 %v1500
        %v1606 = vpop.xlane.xlu0 %1605
        %1607 = vadd.xlane.f32.xlu0 %v1501
        %v1608 = vpop.xlane.xlu0 %1607
        %1609 = vadd.xlane.f32.xlu0 %v1502
        %v1610 = vpop.xlane.xlu0 %1609
        %1611 = vadd.xlane.f32.xlu0 %v1503
        %v1612 = vpop.xlane.xlu0 %1611
        %1613 = vadd.xlane.f32.xlu0 %v1504
        %v1614 = vpop.xlane.xlu0 %1613
        %1615 = vadd.xlane.f32.xlu0 %v1505
        %v1616 = vpop.xlane.xlu0 %1615
        %1617 = vadd.xlane.f32.xlu0 %v1506
        %v1618 = vpop.xlane.xlu0 %1617
        %v1619 = vadd.f32 %v1571, %v1588
        %v1620 = vadd.f32 %v1572, %v1590
        %v1621 = vadd.f32 %v1573, %v1592
        %v1622 = vadd.f32 %v1574, %v1594
        %v1623 = vadd.f32 %v1575, %v1596
        %v1624 = vadd.f32 %v1576, %v1598
        %v1625 = vadd.f32 %v1577, %v1600
        %v1626 = vadd.f32 %v1578, %v1602
        %v1627 = vadd.f32 %v1579, %v1604
        %v1628 = vadd.f32 %v1580, %v1606
        %v1629 = vadd.f32 %v1581, %v1608
        %v1630 = vadd.f32 %v1582, %v1610
        %v1631 = vadd.f32 %v1583, %v1612
        %v1632 = vadd.f32 %v1584, %v1614
        %v1633 = vadd.f32 %v1585, %v1616
        %v1634 = vadd.f32 %v1586, %v1618
        %vm1635 = vcmask 7168
        %1636 = vst.msk [vmem:[#allocation4] sm:$0xff] %vm1635, %v1619
        %1637 = vst.msk [vmem:[#allocation4 + $0x8] sm:$0xff] %vm1635, %v1620
        %1638 = vst.msk [vmem:[#allocation4 + $0x10] sm:$0xff] %vm1635, %v1621
        %1639 = vst.msk [vmem:[#allocation4 + $0x18] sm:$0xff] %vm1635, %v1622
        %1640 = vst.msk [vmem:[#allocation4 + $0x20] sm:$0xff] %vm1635, %v1623
        %1641 = vst.msk [vmem:[#allocation4 + $0x28] sm:$0xff] %vm1635, %v1624
        %1642 = vst.msk [vmem:[#allocation4 + $0x30] sm:$0xff] %vm1635, %v1625
        %1643 = vst.msk [vmem:[#allocation4 + $0x38] sm:$0xff] %vm1635, %v1626
        %1644 = vst.msk [vmem:[#allocation4 + $0x40] sm:$0xff] %vm1635, %v1627
        %1645 = vst.msk [vmem:[#allocation4 + $0x48] sm:$0xff] %vm1635, %v1628
        %1646 = vst.msk [vmem:[#allocation4 + $0x50] sm:$0xff] %vm1635, %v1629
        %1647 = vst.msk [vmem:[#allocation4 + $0x58] sm:$0xff] %vm1635, %v1630
        %1648 = vst.msk [vmem:[#allocation4 + $0x60] sm:$0xff] %vm1635, %v1631
        %1649 = vst.msk [vmem:[#allocation4 + $0x68] sm:$0xff] %vm1635, %v1632
        %1650 = vst.msk [vmem:[#allocation4 + $0x70] sm:$0xff] %vm1635, %v1633
        %1651 = vst.msk [vmem:[#allocation4 + $0x78] sm:$0xff] %vm1635, %v1634
        %v1652 = vld [vmem:[#allocation2] sm:$0xff]
        %v1653 = vld [vmem:[#allocation2 + $0x8] sm:$0xff]
        %v1654 = vld [vmem:[#allocation2 + $0x10] sm:$0xff]
        %v1655 = vld [vmem:[#allocation2 + $0x18] sm:$0xff]
        %v1656 = vld [vmem:[#allocation2 + $0x20] sm:$0xff]
        %v1657 = vld [vmem:[#allocation2 + $0x28] sm:$0xff]
        %v1658 = vld [vmem:[#allocation2 + $0x30] sm:$0xff]
        %v1659 = vld [vmem:[#allocation2 + $0x38] sm:$0xff]
        %v1660 = vld [vmem:[#allocation2 + $0x40] sm:$0xff]
        %v1661 = vld [vmem:[#allocation2 + $0x48] sm:$0xff]
        %v1662 = vld [vmem:[#allocation2 + $0x50] sm:$0xff]
        %v1663 = vld [vmem:[#allocation2 + $0x58] sm:$0xff]
        %v1664 = vld [vmem:[#allocation2 + $0x60] sm:$0xff]
        %v1665 = vld [vmem:[#allocation2 + $0x68] sm:$0xff]
        %v1666 = vld [vmem:[#allocation2 + $0x70] sm:$0xff]
        %v1667 = vld [vmem:[#allocation2 + $0x78] sm:$0xff]
        %1668 = vmatprep.subr.mxu0 0.0
        %1669 = vmatpush1.xpose.msra.mxu0 %v1134
        %1670 = vmatprep.subr.mxu0 0.0
        %1671 = vmatpush1.xpose.msra.mxu0 %v1135
        %1672 = vmatprep.subr.mxu0 0.0
        %1673 = vmatpush1.xpose.msra.mxu0 %v1136
        %1674 = vmatprep.subr.mxu0 0.0
        %1675 = vmatpush1.xpose.msra.mxu0 %v1137
        %1676 = vmatprep.subr.mxu0 0.0
        %1677 = vmatpush1.xpose.msra.mxu0 0.0
        %1678 = vmatprep.subr.mxu0 0.0
        %1679 = vmatpush1.xpose.msra.mxu0 0.0
        %1680 = vmatprep.subr.mxu0 0.0
        %1681 = vmatpush1.xpose.msra.mxu0 0.0
        %1682 = vmatprep.subr.mxu0 0.0
        %1683 = vmatpush1.xpose.msra.mxu0 0.0
        %1684 = vmatprep.subr.mxu0 0.0
        %1685 = vmatpush1.xpose.msra.mxu0 0.0
        %1686 = vmatprep.subr.mxu0 0.0
        %1687 = vmatpush1.xpose.msra.mxu0 0.0
        %1688 = vmatprep.subr.mxu0 0.0
        %1689 = vmatpush1.xpose.msra.mxu0 0.0
        %1690 = vmatprep.subr.mxu0 0.0
        %1691 = vmatpush1.xpose.msra.mxu0 0.0
        %1692 = vmatprep.subr.mxu0 0.0
        %1693 = vmatpush1.xpose.msra.mxu0 0.0
        %1694 = vmatprep.subr.mxu0 0.0
        %1695 = vmatpush1.xpose.msra.mxu0 0.0
        %1696 = vmatprep.subr.mxu0 0.0
        %1697 = vmatpush1.xpose.msra.mxu0 0.0
        %1698 = vmatprep.subr.mxu0 0.0
        %1699 = vmatpush1.xpose.msra.mxu0 0.0
        %1700 = vmatprep.subr.mxu0 0.0
        %1701 = vmatpush1.xpose.msra.mxu0 0.0
        %1702 = vmatprep.subr.mxu0 0.0
        %1703 = vmatpush1.xpose.msra.mxu0 0.0
        %1704 = vmatprep.subr.mxu0 0.0
        %1705 = vmatpush1.xpose.msra.mxu0 0.0
        %1706 = vmatprep.subr.mxu0 0.0
        %1707 = vmatpush1.xpose.msra.mxu0 0.0
        %1708 = vmatprep.subr.mxu0 0.0
        %1709 = vmatpush1.xpose.msra.mxu0 0.0
        %1710 = vmatprep.subr.mxu0 0.0
        %1711 = vmatpush1.xpose.msra.mxu0 0.0
        %1712 = vmatprep.subr.mxu0 0.0
        %1713 = vmatpush1.xpose.msra.mxu0 0.0
        %1714 = vmatprep.subr.mxu0 0.0
        %1715 = vmatpush1.xpose.msra.mxu0 0.0
        %1716 = vmatprep.subr.mxu0 0.0
        %1717 = vmatpush1.xpose.msra.mxu0 0.0
        %1718 = vmatprep.subr.mxu0 0.0
        %1719 = vmatpush1.xpose.msra.mxu0 0.0
        %1720 = vmatprep.subr.mxu0 0.0
        %1721 = vmatpush1.xpose.msra.mxu0 0.0
        %1722 = vmatprep.subr.mxu0 0.0
        %1723 = vmatpush1.xpose.msra.mxu0 0.0
        %1724 = vmatprep.subr.mxu0 0.0
        %1725 = vmatpush1.xpose.msra.mxu0 0.0
        %1726 = vmatprep.subr.mxu0 0.0
        %1727 = vmatpush1.xpose.msra.mxu0 0.0
        %1728 = vmatprep.subr.mxu0 0.0
        %1729 = vmatpush1.xpose.msra.mxu0 0.0
        %1730 = vmatprep.subr.mxu0 0.0
        %1731 = vmatpush1.xpose.msra.mxu0 0.0
        %1732 = vmatprep.mubr.f32.mxu0 0.0
        %1733 = vmatmul.mubr.f32.gmra.mrb[0].mxu0 %v1555
        %v1734 = vpop.f32.mrb[0].mxu0
        %v1735 = vadd.f32 0.0, %v1734
        %v1736 = vpop.f32.mrb[0].mxu0
        %1737 = vmatprep.mubr.f32.mxu0 0.0
        %1738 = vmatmul.mubr.f32.gmra.mrb[0].mxu0 %v1556
        %v1739 = vpop.f32.mrb[0].mxu0
        %v1740 = vadd.f32 0.0, %v1739
        %v1741 = vpop.f32.mrb[0].mxu0
        %1742 = vmatprep.mubr.f32.mxu0 0.0
        %1743 = vmatmul.mubr.f32.gmra.mrb[0].mxu0 %v1557
        %v1744 = vpop.f32.mrb[0].mxu0
        %v1745 = vadd.f32 0.0, %v1744
        %v1746 = vpop.f32.mrb[0].mxu0
        %1747 = vmatprep.mubr.f32.mxu0 0.0
        %1748 = vmatmul.mubr.f32.gmra.mrb[0].mxu0 %v1558
        %v1749 = vpop.f32.mrb[0].mxu0
        %v1750 = vadd.f32 0.0, %v1749
        %v1751 = vpop.f32.mrb[0].mxu0
        %1752 = vmatprep.mubr.f32.mxu0 0.0
        %1753 = vmatmul.mubr.f32.gmra.mrb[0].mxu0 %v1559
        %v1754 = vpop.f32.mrb[0].mxu0
        %v1755 = vadd.f32 0.0, %v1754
        %v1756 = vpop.f32.mrb[0].mxu0
        %1757 = vmatprep.mubr.f32.mxu0 0.0
        %1758 = vmatmul.mubr.f32.gmra.mrb[0].mxu0 %v1560
        %v1759 = vpop.f32.mrb[0].mxu0
        %v1760 = vadd.f32 0.0, %v1759
        %v1761 = vpop.f32.mrb[0].mxu0
        %1762 = vmatprep.mubr.f32.mxu0 0.0
        %1763 = vmatmul.mubr.f32.gmra.mrb[0].mxu0 %v1561
        %v1764 = vpop.f32.mrb[0].mxu0
        %v1765 = vadd.f32 0.0, %v1764
        %v1766 = vpop.f32.mrb[0].mxu0
        %1767 = vmatprep.mubr.f32.mxu0 0.0
        %1768 = vmatmul.mubr.f32.gmra.mrb[0].mxu0 %v1562
        %v1769 = vpop.f32.mrb[0].mxu0
        %v1770 = vadd.f32 0.0, %v1769
        %v1771 = vpop.f32.mrb[0].mxu0
        %1772 = vmatprep.mubr.f32.mxu0 0.0
        %1773 = vmatmul.mubr.f32.gmra.mrb[0].mxu0 %v1563
        %v1774 = vpop.f32.mrb[0].mxu0
        %v1775 = vadd.f32 0.0, %v1774
        %v1776 = vpop.f32.mrb[0].mxu0
        %1777 = vmatprep.mubr.f32.mxu0 0.0
        %1778 = vmatmul.mubr.f32.gmra.mrb[0].mxu0 %v1564
        %v1779 = vpop.f32.mrb[0].mxu0
        %v1780 = vadd.f32 0.0, %v1779
        %v1781 = vpop.f32.mrb[0].mxu0
        %1782 = vmatprep.mubr.f32.mxu0 0.0
        %1783 = vmatmul.mubr.f32.gmra.mrb[0].mxu0 %v1565
        %v1784 = vpop.f32.mrb[0].mxu0
        %v1785 = vadd.f32 0.0, %v1784
        %v1786 = vpop.f32.mrb[0].mxu0
        %1787 = vmatprep.mubr.f32.mxu0 0.0
        %1788 = vmatmul.mubr.f32.gmra.mrb[0].mxu0 %v1566
        %v1789 = vpop.f32.mrb[0].mxu0
        %v1790 = vadd.f32 0.0, %v1789
        %v1791 = vpop.f32.mrb[0].mxu0
        %1792 = vmatprep.mubr.f32.mxu0 0.0
        %1793 = vmatmul.mubr.f32.gmra.mrb[0].mxu0 %v1567
        %v1794 = vpop.f32.mrb[0].mxu0
        %v1795 = vadd.f32 0.0, %v1794
        %v1796 = vpop.f32.mrb[0].mxu0
        %1797 = vmatprep.mubr.f32.mxu0 0.0
        %1798 = vmatmul.mubr.f32.gmra.mrb[0].mxu0 %v1568
        %v1799 = vpop.f32.mrb[0].mxu0
        %v1800 = vadd.f32 0.0, %v1799
        %v1801 = vpop.f32.mrb[0].mxu0
        %1802 = vmatprep.mubr.f32.mxu0 0.0
        %1803 = vmatmul.mubr.f32.gmra.mrb[0].mxu0 %v1569
        %v1804 = vpop.f32.mrb[0].mxu0
        %v1805 = vadd.f32 0.0, %v1804
        %v1806 = vpop.f32.mrb[0].mxu0
        %1807 = vmatprep.mubr.f32.mxu0 0.0
        %1808 = vmatmul.mubr.f32.gmra.mrb[0].mxu0 %v1570
        %v1809 = vpop.f32.mrb[0].mxu0
        %v1810 = vadd.f32 0.0, %v1809
        %v1811 = vpop.f32.mrb[0].mxu0
        %1812 = vdwg.mxu0
        %v1813 = vadd.f32 %v1652, %v1735
        %v1814 = vadd.f32 %v1653, %v1740
        %v1815 = vadd.f32 %v1654, %v1745
        %v1816 = vadd.f32 %v1655, %v1750
        %v1817 = vadd.f32 %v1656, %v1755
        %v1818 = vadd.f32 %v1657, %v1760
        %v1819 = vadd.f32 %v1658, %v1765
        %v1820 = vadd.f32 %v1659, %v1770
        %v1821 = vadd.f32 %v1660, %v1775
        %v1822 = vadd.f32 %v1661, %v1780
        %v1823 = vadd.f32 %v1662, %v1785
        %v1824 = vadd.f32 %v1663, %v1790
        %v1825 = vadd.f32 %v1664, %v1795
        %v1826 = vadd.f32 %v1665, %v1800
        %v1827 = vadd.f32 %v1666, %v1805
        %v1828 = vadd.f32 %v1667, %v1810
        %vm1829 = vcmask 261120
        %1830 = vst.msk [vmem:[#allocation2] sm:$0xff] %vm1829, %v1813
        %1831 = vst.msk [vmem:[#allocation2 + $0x8] sm:$0xff] %vm1829, %v1814
        %1832 = vst.msk [vmem:[#allocation2 + $0x10] sm:$0xff] %vm1829, %v1815
        %1833 = vst.msk [vmem:[#allocation2 + $0x18] sm:$0xff] %vm1829, %v1816
        %1834 = vst.msk [vmem:[#allocation2 + $0x20] sm:$0xff] %vm1829, %v1817
        %1835 = vst.msk [vmem:[#allocation2 + $0x28] sm:$0xff] %vm1829, %v1818
        %1836 = vst.msk [vmem:[#allocation2 + $0x30] sm:$0xff] %vm1829, %v1819
        %1837 = vst.msk [vmem:[#allocation2 + $0x38] sm:$0xff] %vm1829, %v1820
        %1838 = vst.msk [vmem:[#allocation2 + $0x40] sm:$0xff] %vm1829, %v1821
        %1839 = vst.msk [vmem:[#allocation2 + $0x48] sm:$0xff] %vm1829, %v1822
        %1840 = vst.msk [vmem:[#allocation2 + $0x50] sm:$0xff] %vm1829, %v1823
        %1841 = vst.msk [vmem:[#allocation2 + $0x58] sm:$0xff] %vm1829, %v1824
        %1842 = vst.msk [vmem:[#allocation2 + $0x60] sm:$0xff] %vm1829, %v1825
        %1843 = vst.msk [vmem:[#allocation2 + $0x68] sm:$0xff] %vm1829, %v1826
        %1844 = vst.msk [vmem:[#allocation2 + $0x70] sm:$0xff] %vm1829, %v1827
        %1845 = vst.msk [vmem:[#allocation2 + $0x78] sm:$0xff] %vm1829, %v1828
        %v1846 = vlaneseq
        %v1847 = vshrl.u32 %v1846, 7
        %v1848 = vsub.s32 0, %v1847
        %v1849 = vrot.slane %v1134, %v1848
        %v1850 = vmul.f32 %v1555, %v1849
        %v1851 = vmul.f32 %v1556, %v1849
        %v1852 = vmul.f32 %v1557, %v1849
        %v1853 = vmul.f32 %v1558, %v1849
        %v1854 = vmul.f32 %v1559, %v1849
        %v1855 = vmul.f32 %v1560, %v1849
        %v1856 = vmul.f32 %v1561, %v1849
        %v1857 = vmul.f32 %v1562, %v1849
        %v1858 = vmul.f32 %v1563, %v1849
        %v1859 = vmul.f32 %v1564, %v1849
        %v1860 = vmul.f32 %v1565, %v1849
        %v1861 = vmul.f32 %v1566, %v1849
        %v1862 = vmul.f32 %v1567, %v1849
        %v1863 = vmul.f32 %v1568, %v1849
        %v1864 = vmul.f32 %v1569, %v1849
        %v1865 = vmul.f32 %v1570, %v1849
        %v1866 = vsel %vm1459, %v1850, -1e+30
        %v1867 = vsel %vm1460, %v1851, -1e+30
        %v1868 = vsel %vm1461, %v1852, -1e+30
        %v1869 = vsel %vm1462, %v1853, -1e+30
        %v1870 = vsel %vm1463, %v1854, -1e+30
        %v1871 = vsel %vm1464, %v1855, -1e+30
        %v1872 = vsel %vm1465, %v1856, -1e+30
        %v1873 = vsel %vm1466, %v1857, -1e+30
        %v1874 = vsel %vm1467, %v1858, -1e+30
        %v1875 = vsel %vm1468, %v1859, -1e+30
        %v1876 = vsel %vm1469, %v1860, -1e+30
        %v1877 = vsel %vm1470, %v1861, -1e+30
        %v1878 = vsel %vm1471, %v1862, -1e+30
        %v1879 = vsel %vm1472, %v1863, -1e+30
        %v1880 = vsel %vm1473, %v1864, -1e+30
        %v1881 = vsel %vm1474, %v1865, -1e+30
        %1882 = vmax.xlane.f32.xlu0 %v1866
        %v1883 = vpop.xlane.xlu0 %1882
        %1884 = vmax.xlane.f32.xlu0 %v1867
        %v1885 = vpop.xlane.xlu0 %1884
        %1886 = vmax.xlane.f32.xlu0 %v1868
        %v1887 = vpop.xlane.xlu0 %1886
        %1888 = vmax.xlane.f32.xlu0 %v1869
        %v1889 = vpop.xlane.xlu0 %1888
        %1890 = vmax.xlane.f32.xlu0 %v1870
        %v1891 = vpop.xlane.xlu0 %1890
        %1892 = vmax.xlane.f32.xlu0 %v1871
        %v1893 = vpop.xlane.xlu0 %1892
        %1894 = vmax.xlane.f32.xlu0 %v1872
        %v1895 = vpop.xlane.xlu0 %1894
        %1896 = vmax.xlane.f32.xlu0 %v1873
        %v1897 = vpop.xlane.xlu0 %1896
        %1898 = vmax.xlane.f32.xlu0 %v1874
        %v1899 = vpop.xlane.xlu0 %1898
        %1900 = vmax.xlane.f32.xlu0 %v1875
        %v1901 = vpop.xlane.xlu0 %1900
        %1902 = vmax.xlane.f32.xlu0 %v1876
        %v1903 = vpop.xlane.xlu0 %1902
        %1904 = vmax.xlane.f32.xlu0 %v1877
        %v1905 = vpop.xlane.xlu0 %1904
        %1906 = vmax.xlane.f32.xlu0 %v1878
        %v1907 = vpop.xlane.xlu0 %1906
        %1908 = vmax.xlane.f32.xlu0 %v1879
        %v1909 = vpop.xlane.xlu0 %1908
        %1910 = vmax.xlane.f32.xlu0 %v1880
        %v1911 = vpop.xlane.xlu0 %1910
        %1912 = vmax.xlane.f32.xlu0 %v1881
        %v1913 = vpop.xlane.xlu0 %1912
        %v1914 = vlaneseq
        %v1915 = vshrl.u32 %v1914, 7
        %v1916 = vsub.s32 1, %v1915
        %v1917 = vrot.slane %v1134, %v1916
        %v1918 = vmul.f32 %v1555, %v1917
        %v1919 = vmul.f32 %v1556, %v1917
        %v1920 = vmul.f32 %v1557, %v1917
        %v1921 = vmul.f32 %v1558, %v1917
        %v1922 = vmul.f32 %v1559, %v1917
        %v1923 = vmul.f32 %v1560, %v1917
        %v1924 = vmul.f32 %v1561, %v1917
        %v1925 = vmul.f32 %v1562, %v1917
        %v1926 = vmul.f32 %v1563, %v1917
        %v1927 = vmul.f32 %v1564, %v1917
        %v1928 = vmul.f32 %v1565, %v1917
        %v1929 = vmul.f32 %v1566, %v1917
        %v1930 = vmul.f32 %v1567, %v1917
        %v1931 = vmul.f32 %v1568, %v1917
        %v1932 = vmul.f32 %v1569, %v1917
        %v1933 = vmul.f32 %v1570, %v1917
        %v1934 = vsel %vm1459, %v1918, -1e+30
        %v1935 = vsel %vm1460, %v1919, -1e+30
        %v1936 = vsel %vm1461, %v1920, -1e+30
        %v1937 = vsel %vm1462, %v1921, -1e+30
        %v1938 = vsel %vm1463, %v1922, -1e+30
        %v1939 = vsel %vm1464, %v1923, -1e+30
        %v1940 = vsel %vm1465, %v1924, -1e+30
        %v1941 = vsel %vm1466, %v1925, -1e+30
        %v1942 = vsel %vm1467, %v1926, -1e+30
        %v1943 = vsel %vm1468, %v1927, -1e+30
        %v1944 = vsel %vm1469, %v1928, -1e+30
        %v1945 = vsel %vm1470, %v1929, -1e+30
        %v1946 = vsel %vm1471, %v1930, -1e+30
        %v1947 = vsel %vm1472, %v1931, -1e+30
        %v1948 = vsel %vm1473, %v1932, -1e+30
        %v1949 = vsel %vm1474, %v1933, -1e+30
        %1950 = vmax.xlane.f32.xlu0 %v1934
        %v1951 = vpop.xlane.xlu0 %1950
        %1952 = vmax.xlane.f32.xlu0 %v1935
        %v1953 = vpop.xlane.xlu0 %1952
        %1954 = vmax.xlane.f32.xlu0 %v1936
        %v1955 = vpop.xlane.xlu0 %1954
        %1956 = vmax.xlane.f32.xlu0 %v1937
        %v1957 = vpop.xlane.xlu0 %1956
        %1958 = vmax.xlane.f32.xlu0 %v1938
        %v1959 = vpop.xlane.xlu0 %1958
        %1960 = vmax.xlane.f32.xlu0 %v1939
        %v1961 = vpop.xlane.xlu0 %1960
        %1962 = vmax.xlane.f32.xlu0 %v1940
        %v1963 = vpop.xlane.xlu0 %1962
        %1964 = vmax.xlane.f32.xlu0 %v1941
        %v1965 = vpop.xlane.xlu0 %1964
        %1966 = vmax.xlane.f32.xlu0 %v1942
        %v1967 = vpop.xlane.xlu0 %1966
        %1968 = vmax.xlane.f32.xlu0 %v1943
        %v1969 = vpop.xlane.xlu0 %1968
        %1970 = vmax.xlane.f32.xlu0 %v1944
        %v1971 = vpop.xlane.xlu0 %1970
        %1972 = vmax.xlane.f32.xlu0 %v1945
        %v1973 = vpop.xlane.xlu0 %1972
        %1974 = vmax.xlane.f32.xlu0 %v1946
        %v1975 = vpop.xlane.xlu0 %1974
        %1976 = vmax.xlane.f32.xlu0 %v1947
        %v1977 = vpop.xlane.xlu0 %1976
        %1978 = vmax.xlane.f32.xlu0 %v1948
        %v1979 = vpop.xlane.xlu0 %1978
        %1980 = vmax.xlane.f32.xlu0 %v1949
        %v1981 = vpop.xlane.xlu0 %1980
        %v1982 = vlaneseq
        %v1983 = vshrl.u32 %v1982, 7
        %v1984 = vsub.s32 2, %v1983
        %v1985 = vrot.slane %v1134, %v1984
        %v1986 = vmul.f32 %v1555, %v1985
        %v1987 = vmul.f32 %v1556, %v1985
        %v1988 = vmul.f32 %v1557, %v1985
        %v1989 = vmul.f32 %v1558, %v1985
        %v1990 = vmul.f32 %v1559, %v1985
        %v1991 = vmul.f32 %v1560, %v1985
        %v1992 = vmul.f32 %v1561, %v1985
        %v1993 = vmul.f32 %v1562, %v1985
        %v1994 = vmul.f32 %v1563, %v1985
        %v1995 = vmul.f32 %v1564, %v1985
        %v1996 = vmul.f32 %v1565, %v1985
        %v1997 = vmul.f32 %v1566, %v1985
        %v1998 = vmul.f32 %v1567, %v1985
        %v1999 = vmul.f32 %v1568, %v1985
        %v2000 = vmul.f32 %v1569, %v1985
        %v2001 = vmul.f32 %v1570, %v1985
        %v2002 = vsel %vm1459, %v1986, -1e+30
        %v2003 = vsel %vm1460, %v1987, -1e+30
        %v2004 = vsel %vm1461, %v1988, -1e+30
        %v2005 = vsel %vm1462, %v1989, -1e+30
        %v2006 = vsel %vm1463, %v1990, -1e+30
        %v2007 = vsel %vm1464, %v1991, -1e+30
        %v2008 = vsel %vm1465, %v1992, -1e+30
        %v2009 = vsel %vm1466, %v1993, -1e+30
        %v2010 = vsel %vm1467, %v1994, -1e+30
        %v2011 = vsel %vm1468, %v1995, -1e+30
        %v2012 = vsel %vm1469, %v1996, -1e+30
        %v2013 = vsel %vm1470, %v1997, -1e+30
        %v2014 = vsel %vm1471, %v1998, -1e+30
        %v2015 = vsel %vm1472, %v1999, -1e+30
        %v2016 = vsel %vm1473, %v2000, -1e+30
        %v2017 = vsel %vm1474, %v2001, -1e+30
        %2018 = vmax.xlane.f32.xlu0 %v2002
        %v2019 = vpop.xlane.xlu0 %2018
        %2020 = vmax.xlane.f32.xlu0 %v2003
        %v2021 = vpop.xlane.xlu0 %2020
        %2022 = vmax.xlane.f32.xlu0 %v2004
        %v2023 = vpop.xlane.xlu0 %2022
        %2024 = vmax.xlane.f32.xlu0 %v2005
        %v2025 = vpop.xlane.xlu0 %2024
        %2026 = vmax.xlane.f32.xlu0 %v2006
        %v2027 = vpop.xlane.xlu0 %2026
        %2028 = vmax.xlane.f32.xlu0 %v2007
        %v2029 = vpop.xlane.xlu0 %2028
        %2030 = vmax.xlane.f32.xlu0 %v2008
        %v2031 = vpop.xlane.xlu0 %2030
        %2032 = vmax.xlane.f32.xlu0 %v2009
        %v2033 = vpop.xlane.xlu0 %2032
        %2034 = vmax.xlane.f32.xlu0 %v2010
        %v2035 = vpop.xlane.xlu0 %2034
        %2036 = vmax.xlane.f32.xlu0 %v2011
        %v2037 = vpop.xlane.xlu0 %2036
        %2038 = vmax.xlane.f32.xlu0 %v2012
        %v2039 = vpop.xlane.xlu0 %2038
        %2040 = vmax.xlane.f32.xlu0 %v2013
        %v2041 = vpop.xlane.xlu0 %2040
        %2042 = vmax.xlane.f32.xlu0 %v2014
        %v2043 = vpop.xlane.xlu0 %2042
        %2044 = vmax.xlane.f32.xlu0 %v2015
        %v2045 = vpop.xlane.xlu0 %2044
        %2046 = vmax.xlane.f32.xlu0 %v2016
        %v2047 = vpop.xlane.xlu0 %2046
        %2048 = vmax.xlane.f32.xlu0 %v2017
        %v2049 = vpop.xlane.xlu0 %2048
        %v2050 = vlaneseq
        %v2051 = vshrl.u32 %v2050, 7
        %v2052 = vsub.s32 3, %v2051
        %v2053 = vrot.slane %v1134, %v2052
        %v2054 = vmul.f32 %v1555, %v2053
        %v2055 = vmul.f32 %v1556, %v2053
        %v2056 = vmul.f32 %v1557, %v2053
        %v2057 = vmul.f32 %v1558, %v2053
        %v2058 = vmul.f32 %v1559, %v2053
        %v2059 = vmul.f32 %v1560, %v2053
        %v2060 = vmul.f32 %v1561, %v2053
        %v2061 = vmul.f32 %v1562, %v2053
        %v2062 = vmul.f32 %v1563, %v2053
        %v2063 = vmul.f32 %v1564, %v2053
        %v2064 = vmul.f32 %v1565, %v2053
        %v2065 = vmul.f32 %v1566, %v2053
        %v2066 = vmul.f32 %v1567, %v2053
        %v2067 = vmul.f32 %v1568, %v2053
        %v2068 = vmul.f32 %v1569, %v2053
        %v2069 = vmul.f32 %v1570, %v2053
        %v2070 = vsel %vm1459, %v2054, -1e+30
        %v2071 = vsel %vm1460, %v2055, -1e+30
        %v2072 = vsel %vm1461, %v2056, -1e+30
        %v2073 = vsel %vm1462, %v2057, -1e+30
        %v2074 = vsel %vm1463, %v2058, -1e+30
        %v2075 = vsel %vm1464, %v2059, -1e+30
        %v2076 = vsel %vm1465, %v2060, -1e+30
        %v2077 = vsel %vm1466, %v2061, -1e+30
        %v2078 = vsel %vm1467, %v2062, -1e+30
        %v2079 = vsel %vm1468, %v2063, -1e+30
        %v2080 = vsel %vm1469, %v2064, -1e+30
        %v2081 = vsel %vm1470, %v2065, -1e+30
        %v2082 = vsel %vm1471, %v2066, -1e+30
        %v2083 = vsel %vm1472, %v2067, -1e+30
        %v2084 = vsel %vm1473, %v2068, -1e+30
        %v2085 = vsel %vm1474, %v2069, -1e+30
        %2086 = vmax.xlane.f32.xlu0 %v2070
        %v2087 = vpop.xlane.xlu0 %2086
        %2088 = vmax.xlane.f32.xlu0 %v2071
        %v2089 = vpop.xlane.xlu0 %2088
        %2090 = vmax.xlane.f32.xlu0 %v2072
        %v2091 = vpop.xlane.xlu0 %2090
        %2092 = vmax.xlane.f32.xlu0 %v2073
        %v2093 = vpop.xlane.xlu0 %2092
        %2094 = vmax.xlane.f32.xlu0 %v2074
        %v2095 = vpop.xlane.xlu0 %2094
        %2096 = vmax.xlane.f32.xlu0 %v2075
        %v2097 = vpop.xlane.xlu0 %2096
        %2098 = vmax.xlane.f32.xlu0 %v2076
        %v2099 = vpop.xlane.xlu0 %2098
        %2100 = vmax.xlane.f32.xlu0 %v2077
        %v2101 = vpop.xlane.xlu0 %2100
        %2102 = vmax.xlane.f32.xlu0 %v2078
        %v2103 = vpop.xlane.xlu0 %2102
        %2104 = vmax.xlane.f32.xlu0 %v2079
        %v2105 = vpop.xlane.xlu0 %2104
        %2106 = vmax.xlane.f32.xlu0 %v2080
        %v2107 = vpop.xlane.xlu0 %2106
        %2108 = vmax.xlane.f32.xlu0 %v2081
        %v2109 = vpop.xlane.xlu0 %2108
        %2110 = vmax.xlane.f32.xlu0 %v2082
        %v2111 = vpop.xlane.xlu0 %2110
        %2112 = vmax.xlane.f32.xlu0 %v2083
        %v2113 = vpop.xlane.xlu0 %2112
        %2114 = vmax.xlane.f32.xlu0 %v2084
        %v2115 = vpop.xlane.xlu0 %2114
        %2116 = vmax.xlane.f32.xlu0 %v2085
        %v2117 = vpop.xlane.xlu0 %2116
        %v2118 = vlaneseq
        %v2119 = vshrl.u32 %v2118, 7
        %v2120 = vsub.s32 4, %v2119
        %v2121 = vrot.slane %v1134, %v2120
        %v2122 = vmul.f32 %v1555, %v2121
        %v2123 = vmul.f32 %v1556, %v2121
        %v2124 = vmul.f32 %v1557, %v2121
        %v2125 = vmul.f32 %v1558, %v2121
        %v2126 = vmul.f32 %v1559, %v2121
        %v2127 = vmul.f32 %v1560, %v2121
        %v2128 = vmul.f32 %v1561, %v2121
        %v2129 = vmul.f32 %v1562, %v2121
        %v2130 = vmul.f32 %v1563, %v2121
        %v2131 = vmul.f32 %v1564, %v2121
        %v2132 = vmul.f32 %v1565, %v2121
        %v2133 = vmul.f32 %v1566, %v2121
        %v2134 = vmul.f32 %v1567, %v2121
        %v2135 = vmul.f32 %v1568, %v2121
        %v2136 = vmul.f32 %v1569, %v2121
        %v2137 = vmul.f32 %v1570, %v2121
        %v2138 = vsel %vm1459, %v2122, -1e+30
        %v2139 = vsel %vm1460, %v2123, -1e+30
        %v2140 = vsel %vm1461, %v2124, -1e+30
        %v2141 = vsel %vm1462, %v2125, -1e+30
        %v2142 = vsel %vm1463, %v2126, -1e+30
        %v2143 = vsel %vm1464, %v2127, -1e+30
        %v2144 = vsel %vm1465, %v2128, -1e+30
        %v2145 = vsel %vm1466, %v2129, -1e+30
        %v2146 = vsel %vm1467, %v2130, -1e+30
        %v2147 = vsel %vm1468, %v2131, -1e+30
        %v2148 = vsel %vm1469, %v2132, -1e+30
        %v2149 = vsel %vm1470, %v2133, -1e+30
        %v2150 = vsel %vm1471, %v2134, -1e+30
        %v2151 = vsel %vm1472, %v2135, -1e+30
        %v2152 = vsel %vm1473, %v2136, -1e+30
        %v2153 = vsel %vm1474, %v2137, -1e+30
        %2154 = vmax.xlane.f32.xlu0 %v2138
        %v2155 = vpop.xlane.xlu0 %2154
        %2156 = vmax.xlane.f32.xlu0 %v2139
        %v2157 = vpop.xlane.xlu0 %2156
        %2158 = vmax.xlane.f32.xlu0 %v2140
        %v2159 = vpop.xlane.xlu0 %2158
        %2160 = vmax.xlane.f32.xlu0 %v2141
        %v2161 = vpop.xlane.xlu0 %2160
        %2162 = vmax.xlane.f32.xlu0 %v2142
        %v2163 = vpop.xlane.xlu0 %2162
        %2164 = vmax.xlane.f32.xlu0 %v2143
        %v2165 = vpop.xlane.xlu0 %2164
        %2166 = vmax.xlane.f32.xlu0 %v2144
        %v2167 = vpop.xlane.xlu0 %2166
        %2168 = vmax.xlane.f32.xlu0 %v2145
        %v2169 = vpop.xlane.xlu0 %2168
        %2170 = vmax.xlane.f32.xlu0 %v2146
        %v2171 = vpop.xlane.xlu0 %2170
        %2172 = vmax.xlane.f32.xlu0 %v2147
        %v2173 = vpop.xlane.xlu0 %2172
        %2174 = vmax.xlane.f32.xlu0 %v2148
        %v2175 = vpop.xlane.xlu0 %2174
        %2176 = vmax.xlane.f32.xlu0 %v2149
        %v2177 = vpop.xlane.xlu0 %2176
        %2178 = vmax.xlane.f32.xlu0 %v2150
        %v2179 = vpop.xlane.xlu0 %2178
        %2180 = vmax.xlane.f32.xlu0 %v2151
        %v2181 = vpop.xlane.xlu0 %2180
        %2182 = vmax.xlane.f32.xlu0 %v2152
        %v2183 = vpop.xlane.xlu0 %2182
        %2184 = vmax.xlane.f32.xlu0 %v2153
        %v2185 = vpop.xlane.xlu0 %2184
        %v2186 = vlaneseq
        %v2187 = vshrl.u32 %v2186, 7
        %v2188 = vsub.s32 5, %v2187
        %v2189 = vrot.slane %v1134, %v2188
        %v2190 = vmul.f32 %v1555, %v2189
        %v2191 = vmul.f32 %v1556, %v2189
        %v2192 = vmul.f32 %v1557, %v2189
        %v2193 = vmul.f32 %v1558, %v2189
        %v2194 = vmul.f32 %v1559, %v2189
        %v2195 = vmul.f32 %v1560, %v2189
        %v2196 = vmul.f32 %v1561, %v2189
        %v2197 = vmul.f32 %v1562, %v2189
        %v2198 = vmul.f32 %v1563, %v2189
        %v2199 = vmul.f32 %v1564, %v2189
        %v2200 = vmul.f32 %v1565, %v2189
        %v2201 = vmul.f32 %v1566, %v2189
        %v2202 = vmul.f32 %v1567, %v2189
        %v2203 = vmul.f32 %v1568, %v2189
        %v2204 = vmul.f32 %v1569, %v2189
        %v2205 = vmul.f32 %v1570, %v2189
        %v2206 = vsel %vm1459, %v2190, -1e+30
        %v2207 = vsel %vm1460, %v2191, -1e+30
        %v2208 = vsel %vm1461, %v2192, -1e+30
        %v2209 = vsel %vm1462, %v2193, -1e+30
        %v2210 = vsel %vm1463, %v2194, -1e+30
        %v2211 = vsel %vm1464, %v2195, -1e+30
        %v2212 = vsel %vm1465, %v2196, -1e+30
        %v2213 = vsel %vm1466, %v2197, -1e+30
        %v2214 = vsel %vm1467, %v2198, -1e+30
        %v2215 = vsel %vm1468, %v2199, -1e+30
        %v2216 = vsel %vm1469, %v2200, -1e+30
        %v2217 = vsel %vm1470, %v2201, -1e+30
        %v2218 = vsel %vm1471, %v2202, -1e+30
        %v2219 = vsel %vm1472, %v2203, -1e+30
        %v2220 = vsel %vm1473, %v2204, -1e+30
        %v2221 = vsel %vm1474, %v2205, -1e+30
        %2222 = vmax.xlane.f32.xlu0 %v2206
        %v2223 = vpop.xlane.xlu0 %2222
        %2224 = vmax.xlane.f32.xlu0 %v2207
        %v2225 = vpop.xlane.xlu0 %2224
        %2226 = vmax.xlane.f32.xlu0 %v2208
        %v2227 = vpop.xlane.xlu0 %2226
        %2228 = vmax.xlane.f32.xlu0 %v2209
        %v2229 = vpop.xlane.xlu0 %2228
        %2230 = vmax.xlane.f32.xlu0 %v2210
        %v2231 = vpop.xlane.xlu0 %2230
        %2232 = vmax.xlane.f32.xlu0 %v2211
        %v2233 = vpop.xlane.xlu0 %2232
        %2234 = vmax.xlane.f32.xlu0 %v2212
        %v2235 = vpop.xlane.xlu0 %2234
        %2236 = vmax.xlane.f32.xlu0 %v2213
        %v2237 = vpop.xlane.xlu0 %2236
        %2238 = vmax.xlane.f32.xlu0 %v2214
        %v2239 = vpop.xlane.xlu0 %2238
        %2240 = vmax.xlane.f32.xlu0 %v2215
        %v2241 = vpop.xlane.xlu0 %2240
        %2242 = vmax.xlane.f32.xlu0 %v2216
        %v2243 = vpop.xlane.xlu0 %2242
        %2244 = vmax.xlane.f32.xlu0 %v2217
        %v2245 = vpop.xlane.xlu0 %2244
        %2246 = vmax.xlane.f32.xlu0 %v2218
        %v2247 = vpop.xlane.xlu0 %2246
        %2248 = vmax.xlane.f32.xlu0 %v2219
        %v2249 = vpop.xlane.xlu0 %2248
        %2250 = vmax.xlane.f32.xlu0 %v2220
        %v2251 = vpop.xlane.xlu0 %2250
        %2252 = vmax.xlane.f32.xlu0 %v2221
        %v2253 = vpop.xlane.xlu0 %2252
        %v2254 = vlaneseq
        %v2255 = vshrl.u32 %v2254, 7
        %v2256 = vsub.s32 6, %v2255
        %v2257 = vrot.slane %v1134, %v2256
        %v2258 = vmul.f32 %v1555, %v2257
        %v2259 = vmul.f32 %v1556, %v2257
        %v2260 = vmul.f32 %v1557, %v2257
        %v2261 = vmul.f32 %v1558, %v2257
        %v2262 = vmul.f32 %v1559, %v2257
        %v2263 = vmul.f32 %v1560, %v2257
        %v2264 = vmul.f32 %v1561, %v2257
        %v2265 = vmul.f32 %v1562, %v2257
        %v2266 = vmul.f32 %v1563, %v2257
        %v2267 = vmul.f32 %v1564, %v2257
        %v2268 = vmul.f32 %v1565, %v2257
        %v2269 = vmul.f32 %v1566, %v2257
        %v2270 = vmul.f32 %v1567, %v2257
        %v2271 = vmul.f32 %v1568, %v2257
        %v2272 = vmul.f32 %v1569, %v2257
        %v2273 = vmul.f32 %v1570, %v2257
        %v2274 = vsel %vm1459, %v2258, -1e+30
        %v2275 = vsel %vm1460, %v2259, -1e+30
        %v2276 = vsel %vm1461, %v2260, -1e+30
        %v2277 = vsel %vm1462, %v2261, -1e+30
        %v2278 = vsel %vm1463, %v2262, -1e+30
        %v2279 = vsel %vm1464, %v2263, -1e+30
        %v2280 = vsel %vm1465, %v2264, -1e+30
        %v2281 = vsel %vm1466, %v2265, -1e+30
        %v2282 = vsel %vm1467, %v2266, -1e+30
        %v2283 = vsel %vm1468, %v2267, -1e+30
        %v2284 = vsel %vm1469, %v2268, -1e+30
        %v2285 = vsel %vm1470, %v2269, -1e+30
        %v2286 = vsel %vm1471, %v2270, -1e+30
        %v2287 = vsel %vm1472, %v2271, -1e+30
        %v2288 = vsel %vm1473, %v2272, -1e+30
        %v2289 = vsel %vm1474, %v2273, -1e+30
        %2290 = vmax.xlane.f32.xlu0 %v2274
        %v2291 = vpop.xlane.xlu0 %2290
        %2292 = vmax.xlane.f32.xlu0 %v2275
        %v2293 = vpop.xlane.xlu0 %2292
        %2294 = vmax.xlane.f32.xlu0 %v2276
        %v2295 = vpop.xlane.xlu0 %2294
        %2296 = vmax.xlane.f32.xlu0 %v2277
        %v2297 = vpop.xlane.xlu0 %2296
        %2298 = vmax.xlane.f32.xlu0 %v2278
        %v2299 = vpop.xlane.xlu0 %2298
        %2300 = vmax.xlane.f32.xlu0 %v2279
        %v2301 = vpop.xlane.xlu0 %2300
        %2302 = vmax.xlane.f32.xlu0 %v2280
        %v2303 = vpop.xlane.xlu0 %2302
        %2304 = vmax.xlane.f32.xlu0 %v2281
        %v2305 = vpop.xlane.xlu0 %2304
        %2306 = vmax.xlane.f32.xlu0 %v2282
        %v2307 = vpop.xlane.xlu0 %2306
        %2308 = vmax.xlane.f32.xlu0 %v2283
        %v2309 = vpop.xlane.xlu0 %2308
        %2310 = vmax.xlane.f32.xlu0 %v2284
        %v2311 = vpop.xlane.xlu0 %2310
        %2312 = vmax.xlane.f32.xlu0 %v2285
        %v2313 = vpop.xlane.xlu0 %2312
        %2314 = vmax.xlane.f32.xlu0 %v2286
        %v2315 = vpop.xlane.xlu0 %2314
        %2316 = vmax.xlane.f32.xlu0 %v2287
        %v2317 = vpop.xlane.xlu0 %2316
        %2318 = vmax.xlane.f32.xlu0 %v2288
        %v2319 = vpop.xlane.xlu0 %2318
        %2320 = vmax.xlane.f32.xlu0 %v2289
        %v2321 = vpop.xlane.xlu0 %2320
        %v2322 = vlaneseq
        %v2323 = vshrl.u32 %v2322, 7
        %v2324 = vsub.s32 7, %v2323
        %v2325 = vrot.slane %v1134, %v2324
        %v2326 = vmul.f32 %v1555, %v2325
        %v2327 = vmul.f32 %v1556, %v2325
        %v2328 = vmul.f32 %v1557, %v2325
        %v2329 = vmul.f32 %v1558, %v2325
        %v2330 = vmul.f32 %v1559, %v2325
        %v2331 = vmul.f32 %v1560, %v2325
        %v2332 = vmul.f32 %v1561, %v2325
        %v2333 = vmul.f32 %v1562, %v2325
        %v2334 = vmul.f32 %v1563, %v2325
        %v2335 = vmul.f32 %v1564, %v2325
        %v2336 = vmul.f32 %v1565, %v2325
        %v2337 = vmul.f32 %v1566, %v2325
        %v2338 = vmul.f32 %v1567, %v2325
        %v2339 = vmul.f32 %v1568, %v2325
        %v2340 = vmul.f32 %v1569, %v2325
        %v2341 = vmul.f32 %v1570, %v2325
        %v2342 = vsel %vm1459, %v2326, -1e+30
        %v2343 = vsel %vm1460, %v2327, -1e+30
        %v2344 = vsel %vm1461, %v2328, -1e+30
        %v2345 = vsel %vm1462, %v2329, -1e+30
        %v2346 = vsel %vm1463, %v2330, -1e+30
        %v2347 = vsel %vm1464, %v2331, -1e+30
        %v2348 = vsel %vm1465, %v2332, -1e+30
        %v2349 = vsel %vm1466, %v2333, -1e+30
        %v2350 = vsel %vm1467, %v2334, -1e+30
        %v2351 = vsel %vm1468, %v2335, -1e+30
        %v2352 = vsel %vm1469, %v2336, -1e+30
        %v2353 = vsel %vm1470, %v2337, -1e+30
        %v2354 = vsel %vm1471, %v2338, -1e+30
        %v2355 = vsel %vm1472, %v2339, -1e+30
        %v2356 = vsel %vm1473, %v2340, -1e+30
        %v2357 = vsel %vm1474, %v2341, -1e+30
        %2358 = vmax.xlane.f32.xlu0 %v2342
        %v2359 = vpop.xlane.xlu0 %2358
        %2360 = vmax.xlane.f32.xlu0 %v2343
        %v2361 = vpop.xlane.xlu0 %2360
        %2362 = vmax.xlane.f32.xlu0 %v2344
        %v2363 = vpop.xlane.xlu0 %2362
        %2364 = vmax.xlane.f32.xlu0 %v2345
        %v2365 = vpop.xlane.xlu0 %2364
        %2366 = vmax.xlane.f32.xlu0 %v2346
        %v2367 = vpop.xlane.xlu0 %2366
        %2368 = vmax.xlane.f32.xlu0 %v2347
        %v2369 = vpop.xlane.xlu0 %2368
        %2370 = vmax.xlane.f32.xlu0 %v2348
        %v2371 = vpop.xlane.xlu0 %2370
        %2372 = vmax.xlane.f32.xlu0 %v2349
        %v2373 = vpop.xlane.xlu0 %2372
        %2374 = vmax.xlane.f32.xlu0 %v2350
        %v2375 = vpop.xlane.xlu0 %2374
        %2376 = vmax.xlane.f32.xlu0 %v2351
        %v2377 = vpop.xlane.xlu0 %2376
        %2378 = vmax.xlane.f32.xlu0 %v2352
        %v2379 = vpop.xlane.xlu0 %2378
        %2380 = vmax.xlane.f32.xlu0 %v2353
        %v2381 = vpop.xlane.xlu0 %2380
        %2382 = vmax.xlane.f32.xlu0 %v2354
        %v2383 = vpop.xlane.xlu0 %2382
        %2384 = vmax.xlane.f32.xlu0 %v2355
        %v2385 = vpop.xlane.xlu0 %2384
        %2386 = vmax.xlane.f32.xlu0 %v2356
        %v2387 = vpop.xlane.xlu0 %2386
        %2388 = vmax.xlane.f32.xlu0 %v2357
        %v2389 = vpop.xlane.xlu0 %2388
        %v2390 = vlaneseq
        %v2391 = vshrl.u32 %v2390, 7
        %v2392 = vsub.s32 0, %v2391
        %v2393 = vrot.slane %v1135, %v2392
        %v2394 = vmul.f32 %v1555, %v2393
        %v2395 = vmul.f32 %v1556, %v2393
        %v2396 = vmul.f32 %v1557, %v2393
        %v2397 = vmul.f32 %v1558, %v2393
        %v2398 = vmul.f32 %v1559, %v2393
        %v2399 = vmul.f32 %v1560, %v2393
        %v2400 = vmul.f32 %v1561, %v2393
        %v2401 = vmul.f32 %v1562, %v2393
        %v2402 = vmul.f32 %v1563, %v2393
        %v2403 = vmul.f32 %v1564, %v2393
        %v2404 = vmul.f32 %v1565, %v2393
        %v2405 = vmul.f32 %v1566, %v2393
        %v2406 = vmul.f32 %v1567, %v2393
        %v2407 = vmul.f32 %v1568, %v2393
        %v2408 = vmul.f32 %v1569, %v2393
        %v2409 = vmul.f32 %v1570, %v2393
        %v2410 = vsel %vm1459, %v2394, -1e+30
        %v2411 = vsel %vm1460, %v2395, -1e+30
        %v2412 = vsel %vm1461, %v2396, -1e+30
        %v2413 = vsel %vm1462, %v2397, -1e+30
        %v2414 = vsel %vm1463, %v2398, -1e+30
        %v2415 = vsel %vm1464, %v2399, -1e+30
        %v2416 = vsel %vm1465, %v2400, -1e+30
        %v2417 = vsel %vm1466, %v2401, -1e+30
        %v2418 = vsel %vm1467, %v2402, -1e+30
        %v2419 = vsel %vm1468, %v2403, -1e+30
        %v2420 = vsel %vm1469, %v2404, -1e+30
        %v2421 = vsel %vm1470, %v2405, -1e+30
        %v2422 = vsel %vm1471, %v2406, -1e+30
        %v2423 = vsel %vm1472, %v2407, -1e+30
        %v2424 = vsel %vm1473, %v2408, -1e+30
        %v2425 = vsel %vm1474, %v2409, -1e+30
        %2426 = vmax.xlane.f32.xlu0 %v2410
        %v2427 = vpop.xlane.xlu0 %2426
        %2428 = vmax.xlane.f32.xlu0 %v2411
        %v2429 = vpop.xlane.xlu0 %2428
        %2430 = vmax.xlane.f32.xlu0 %v2412
        %v2431 = vpop.xlane.xlu0 %2430
        %2432 = vmax.xlane.f32.xlu0 %v2413
        %v2433 = vpop.xlane.xlu0 %2432
        %2434 = vmax.xlane.f32.xlu0 %v2414
        %v2435 = vpop.xlane.xlu0 %2434
        %2436 = vmax.xlane.f32.xlu0 %v2415
        %v2437 = vpop.xlane.xlu0 %2436
        %2438 = vmax.xlane.f32.xlu0 %v2416
        %v2439 = vpop.xlane.xlu0 %2438
        %2440 = vmax.xlane.f32.xlu0 %v2417
        %v2441 = vpop.xlane.xlu0 %2440
        %2442 = vmax.xlane.f32.xlu0 %v2418
        %v2443 = vpop.xlane.xlu0 %2442
        %2444 = vmax.xlane.f32.xlu0 %v2419
        %v2445 = vpop.xlane.xlu0 %2444
        %2446 = vmax.xlane.f32.xlu0 %v2420
        %v2447 = vpop.xlane.xlu0 %2446
        %2448 = vmax.xlane.f32.xlu0 %v2421
        %v2449 = vpop.xlane.xlu0 %2448
        %2450 = vmax.xlane.f32.xlu0 %v2422
        %v2451 = vpop.xlane.xlu0 %2450
        %2452 = vmax.xlane.f32.xlu0 %v2423
        %v2453 = vpop.xlane.xlu0 %2452
        %2454 = vmax.xlane.f32.xlu0 %v2424
        %v2455 = vpop.xlane.xlu0 %2454
        %2456 = vmax.xlane.f32.xlu0 %v2425
        %v2457 = vpop.xlane.xlu0 %2456
        %v2458 = vlaneseq
        %v2459 = vshrl.u32 %v2458, 7
        %v2460 = vsub.s32 1, %v2459
        %v2461 = vrot.slane %v1135, %v2460
        %v2462 = vmul.f32 %v1555, %v2461
        %v2463 = vmul.f32 %v1556, %v2461
        %v2464 = vmul.f32 %v1557, %v2461
        %v2465 = vmul.f32 %v1558, %v2461
        %v2466 = vmul.f32 %v1559, %v2461
        %v2467 = vmul.f32 %v1560, %v2461
        %v2468 = vmul.f32 %v1561, %v2461
        %v2469 = vmul.f32 %v1562, %v2461
        %v2470 = vmul.f32 %v1563, %v2461
        %v2471 = vmul.f32 %v1564, %v2461
        %v2472 = vmul.f32 %v1565, %v2461
        %v2473 = vmul.f32 %v1566, %v2461
        %v2474 = vmul.f32 %v1567, %v2461
        %v2475 = vmul.f32 %v1568, %v2461
        %v2476 = vmul.f32 %v1569, %v2461
        %v2477 = vmul.f32 %v1570, %v2461
        %v2478 = vsel %vm1459, %v2462, -1e+30
        %v2479 = vsel %vm1460, %v2463, -1e+30
        %v2480 = vsel %vm1461, %v2464, -1e+30
        %v2481 = vsel %vm1462, %v2465, -1e+30
        %v2482 = vsel %vm1463, %v2466, -1e+30
        %v2483 = vsel %vm1464, %v2467, -1e+30
        %v2484 = vsel %vm1465, %v2468, -1e+30
        %v2485 = vsel %vm1466, %v2469, -1e+30
        %v2486 = vsel %vm1467, %v2470, -1e+30
        %v2487 = vsel %vm1468, %v2471, -1e+30
        %v2488 = vsel %vm1469, %v2472, -1e+30
        %v2489 = vsel %vm1470, %v2473, -1e+30
        %v2490 = vsel %vm1471, %v2474, -1e+30
        %v2491 = vsel %vm1472, %v2475, -1e+30
        %v2492 = vsel %vm1473, %v2476, -1e+30
        %v2493 = vsel %vm1474, %v2477, -1e+30
        %2494 = vmax.xlane.f32.xlu0 %v2478
        %v2495 = vpop.xlane.xlu0 %2494
        %2496 = vmax.xlane.f32.xlu0 %v2479
        %v2497 = vpop.xlane.xlu0 %2496
        %2498 = vmax.xlane.f32.xlu0 %v2480
        %v2499 = vpop.xlane.xlu0 %2498
        %2500 = vmax.xlane.f32.xlu0 %v2481
        %v2501 = vpop.xlane.xlu0 %2500
        %2502 = vmax.xlane.f32.xlu0 %v2482
        %v2503 = vpop.xlane.xlu0 %2502
        %2504 = vmax.xlane.f32.xlu0 %v2483
        %v2505 = vpop.xlane.xlu0 %2504
        %2506 = vmax.xlane.f32.xlu0 %v2484
        %v2507 = vpop.xlane.xlu0 %2506
        %2508 = vmax.xlane.f32.xlu0 %v2485
        %v2509 = vpop.xlane.xlu0 %2508
        %2510 = vmax.xlane.f32.xlu0 %v2486
        %v2511 = vpop.xlane.xlu0 %2510
        %2512 = vmax.xlane.f32.xlu0 %v2487
        %v2513 = vpop.xlane.xlu0 %2512
        %2514 = vmax.xlane.f32.xlu0 %v2488
        %v2515 = vpop.xlane.xlu0 %2514
        %2516 = vmax.xlane.f32.xlu0 %v2489
        %v2517 = vpop.xlane.xlu0 %2516
        %2518 = vmax.xlane.f32.xlu0 %v2490
        %v2519 = vpop.xlane.xlu0 %2518
        %2520 = vmax.xlane.f32.xlu0 %v2491
        %v2521 = vpop.xlane.xlu0 %2520
        %2522 = vmax.xlane.f32.xlu0 %v2492
        %v2523 = vpop.xlane.xlu0 %2522
        %2524 = vmax.xlane.f32.xlu0 %v2493
        %v2525 = vpop.xlane.xlu0 %2524
        %v2526 = vlaneseq
        %v2527 = vshrl.u32 %v2526, 7
        %v2528 = vsub.s32 2, %v2527
        %v2529 = vrot.slane %v1135, %v2528
        %v2530 = vmul.f32 %v1555, %v2529
        %v2531 = vmul.f32 %v1556, %v2529
        %v2532 = vmul.f32 %v1557, %v2529
        %v2533 = vmul.f32 %v1558, %v2529
        %v2534 = vmul.f32 %v1559, %v2529
        %v2535 = vmul.f32 %v1560, %v2529
        %v2536 = vmul.f32 %v1561, %v2529
        %v2537 = vmul.f32 %v1562, %v2529
        %v2538 = vmul.f32 %v1563, %v2529
        %v2539 = vmul.f32 %v1564, %v2529
        %v2540 = vmul.f32 %v1565, %v2529
        %v2541 = vmul.f32 %v1566, %v2529
        %v2542 = vmul.f32 %v1567, %v2529
        %v2543 = vmul.f32 %v1568, %v2529
        %v2544 = vmul.f32 %v1569, %v2529
        %v2545 = vmul.f32 %v1570, %v2529
        %v2546 = vsel %vm1459, %v2530, -1e+30
        %v2547 = vsel %vm1460, %v2531, -1e+30
        %v2548 = vsel %vm1461, %v2532, -1e+30
        %v2549 = vsel %vm1462, %v2533, -1e+30
        %v2550 = vsel %vm1463, %v2534, -1e+30
        %v2551 = vsel %vm1464, %v2535, -1e+30
        %v2552 = vsel %vm1465, %v2536, -1e+30
        %v2553 = vsel %vm1466, %v2537, -1e+30
        %v2554 = vsel %vm1467, %v2538, -1e+30
        %v2555 = vsel %vm1468, %v2539, -1e+30
        %v2556 = vsel %vm1469, %v2540, -1e+30
        %v2557 = vsel %vm1470, %v2541, -1e+30
        %v2558 = vsel %vm1471, %v2542, -1e+30
        %v2559 = vsel %vm1472, %v2543, -1e+30
        %v2560 = vsel %vm1473, %v2544, -1e+30
        %v2561 = vsel %vm1474, %v2545, -1e+30
        %2562 = vmax.xlane.f32.xlu0 %v2546
        %v2563 = vpop.xlane.xlu0 %2562
        %2564 = vmax.xlane.f32.xlu0 %v2547
        %v2565 = vpop.xlane.xlu0 %2564
        %2566 = vmax.xlane.f32.xlu0 %v2548
        %v2567 = vpop.xlane.xlu0 %2566
        %2568 = vmax.xlane.f32.xlu0 %v2549
        %v2569 = vpop.xlane.xlu0 %2568
        %2570 = vmax.xlane.f32.xlu0 %v2550
        %v2571 = vpop.xlane.xlu0 %2570
        %2572 = vmax.xlane.f32.xlu0 %v2551
        %v2573 = vpop.xlane.xlu0 %2572
        %2574 = vmax.xlane.f32.xlu0 %v2552
        %v2575 = vpop.xlane.xlu0 %2574
        %2576 = vmax.xlane.f32.xlu0 %v2553
        %v2577 = vpop.xlane.xlu0 %2576
        %2578 = vmax.xlane.f32.xlu0 %v2554
        %v2579 = vpop.xlane.xlu0 %2578
        %2580 = vmax.xlane.f32.xlu0 %v2555
        %v2581 = vpop.xlane.xlu0 %2580
        %2582 = vmax.xlane.f32.xlu0 %v2556
        %v2583 = vpop.xlane.xlu0 %2582
        %2584 = vmax.xlane.f32.xlu0 %v2557
        %v2585 = vpop.xlane.xlu0 %2584
        %2586 = vmax.xlane.f32.xlu0 %v2558
        %v2587 = vpop.xlane.xlu0 %2586
        %2588 = vmax.xlane.f32.xlu0 %v2559
        %v2589 = vpop.xlane.xlu0 %2588
        %2590 = vmax.xlane.f32.xlu0 %v2560
        %v2591 = vpop.xlane.xlu0 %2590
        %2592 = vmax.xlane.f32.xlu0 %v2561
        %v2593 = vpop.xlane.xlu0 %2592
        %v2594 = vlaneseq
        %v2595 = vshrl.u32 %v2594, 7
        %v2596 = vsub.s32 3, %v2595
        %v2597 = vrot.slane %v1135, %v2596
        %v2598 = vmul.f32 %v1555, %v2597
        %v2599 = vmul.f32 %v1556, %v2597
        %v2600 = vmul.f32 %v1557, %v2597
        %v2601 = vmul.f32 %v1558, %v2597
        %v2602 = vmul.f32 %v1559, %v2597
        %v2603 = vmul.f32 %v1560, %v2597
        %v2604 = vmul.f32 %v1561, %v2597
        %v2605 = vmul.f32 %v1562, %v2597
        %v2606 = vmul.f32 %v1563, %v2597
        %v2607 = vmul.f32 %v1564, %v2597
        %v2608 = vmul.f32 %v1565, %v2597
        %v2609 = vmul.f32 %v1566, %v2597
        %v2610 = vmul.f32 %v1567, %v2597
        %v2611 = vmul.f32 %v1568, %v2597
        %v2612 = vmul.f32 %v1569, %v2597
        %v2613 = vmul.f32 %v1570, %v2597
        %v2614 = vsel %vm1459, %v2598, -1e+30
        %v2615 = vsel %vm1460, %v2599, -1e+30
        %v2616 = vsel %vm1461, %v2600, -1e+30
        %v2617 = vsel %vm1462, %v2601, -1e+30
        %v2618 = vsel %vm1463, %v2602, -1e+30
        %v2619 = vsel %vm1464, %v2603, -1e+30
        %v2620 = vsel %vm1465, %v2604, -1e+30
        %v2621 = vsel %vm1466, %v2605, -1e+30
        %v2622 = vsel %vm1467, %v2606, -1e+30
        %v2623 = vsel %vm1468, %v2607, -1e+30
        %v2624 = vsel %vm1469, %v2608, -1e+30
        %v2625 = vsel %vm1470, %v2609, -1e+30
        %v2626 = vsel %vm1471, %v2610, -1e+30
        %v2627 = vsel %vm1472, %v2611, -1e+30
        %v2628 = vsel %vm1473, %v2612, -1e+30
        %v2629 = vsel %vm1474, %v2613, -1e+30
        %2630 = vmax.xlane.f32.xlu0 %v2614
        %v2631 = vpop.xlane.xlu0 %2630
        %2632 = vmax.xlane.f32.xlu0 %v2615
        %v2633 = vpop.xlane.xlu0 %2632
        %2634 = vmax.xlane.f32.xlu0 %v2616
        %v2635 = vpop.xlane.xlu0 %2634
        %2636 = vmax.xlane.f32.xlu0 %v2617
        %v2637 = vpop.xlane.xlu0 %2636
        %2638 = vmax.xlane.f32.xlu0 %v2618
        %v2639 = vpop.xlane.xlu0 %2638
        %2640 = vmax.xlane.f32.xlu0 %v2619
        %v2641 = vpop.xlane.xlu0 %2640
        %2642 = vmax.xlane.f32.xlu0 %v2620
        %v2643 = vpop.xlane.xlu0 %2642
        %2644 = vmax.xlane.f32.xlu0 %v2621
        %v2645 = vpop.xlane.xlu0 %2644
        %2646 = vmax.xlane.f32.xlu0 %v2622
        %v2647 = vpop.xlane.xlu0 %2646
        %2648 = vmax.xlane.f32.xlu0 %v2623
        %v2649 = vpop.xlane.xlu0 %2648
        %2650 = vmax.xlane.f32.xlu0 %v2624
        %v2651 = vpop.xlane.xlu0 %2650
        %2652 = vmax.xlane.f32.xlu0 %v2625
        %v2653 = vpop.xlane.xlu0 %2652
        %2654 = vmax.xlane.f32.xlu0 %v2626
        %v2655 = vpop.xlane.xlu0 %2654
        %2656 = vmax.xlane.f32.xlu0 %v2627
        %v2657 = vpop.xlane.xlu0 %2656
        %2658 = vmax.xlane.f32.xlu0 %v2628
        %v2659 = vpop.xlane.xlu0 %2658
        %2660 = vmax.xlane.f32.xlu0 %v2629
        %v2661 = vpop.xlane.xlu0 %2660
        %v2662 = vlaneseq
        %v2663 = vshrl.u32 %v2662, 7
        %v2664 = vsub.s32 4, %v2663
        %v2665 = vrot.slane %v1135, %v2664
        %v2666 = vmul.f32 %v1555, %v2665
        %v2667 = vmul.f32 %v1556, %v2665
        %v2668 = vmul.f32 %v1557, %v2665
        %v2669 = vmul.f32 %v1558, %v2665
        %v2670 = vmul.f32 %v1559, %v2665
        %v2671 = vmul.f32 %v1560, %v2665
        %v2672 = vmul.f32 %v1561, %v2665
        %v2673 = vmul.f32 %v1562, %v2665
        %v2674 = vmul.f32 %v1563, %v2665
        %v2675 = vmul.f32 %v1564, %v2665
        %v2676 = vmul.f32 %v1565, %v2665
        %v2677 = vmul.f32 %v1566, %v2665
        %v2678 = vmul.f32 %v1567, %v2665
        %v2679 = vmul.f32 %v1568, %v2665
        %v2680 = vmul.f32 %v1569, %v2665
        %v2681 = vmul.f32 %v1570, %v2665
        %v2682 = vsel %vm1459, %v2666, -1e+30
        %v2683 = vsel %vm1460, %v2667, -1e+30
        %v2684 = vsel %vm1461, %v2668, -1e+30
        %v2685 = vsel %vm1462, %v2669, -1e+30
        %v2686 = vsel %vm1463, %v2670, -1e+30
        %v2687 = vsel %vm1464, %v2671, -1e+30
        %v2688 = vsel %vm1465, %v2672, -1e+30
        %v2689 = vsel %vm1466, %v2673, -1e+30
        %v2690 = vsel %vm1467, %v2674, -1e+30
        %v2691 = vsel %vm1468, %v2675, -1e+30
        %v2692 = vsel %vm1469, %v2676, -1e+30
        %v2693 = vsel %vm1470, %v2677, -1e+30
        %v2694 = vsel %vm1471, %v2678, -1e+30
        %v2695 = vsel %vm1472, %v2679, -1e+30
        %v2696 = vsel %vm1473, %v2680, -1e+30
        %v2697 = vsel %vm1474, %v2681, -1e+30
        %2698 = vmax.xlane.f32.xlu0 %v2682
        %v2699 = vpop.xlane.xlu0 %2698
        %2700 = vmax.xlane.f32.xlu0 %v2683
        %v2701 = vpop.xlane.xlu0 %2700
        %2702 = vmax.xlane.f32.xlu0 %v2684
        %v2703 = vpop.xlane.xlu0 %2702
        %2704 = vmax.xlane.f32.xlu0 %v2685
        %v2705 = vpop.xlane.xlu0 %2704
        %2706 = vmax.xlane.f32.xlu0 %v2686
        %v2707 = vpop.xlane.xlu0 %2706
        %2708 = vmax.xlane.f32.xlu0 %v2687
        %v2709 = vpop.xlane.xlu0 %2708
        %2710 = vmax.xlane.f32.xlu0 %v2688
        %v2711 = vpop.xlane.xlu0 %2710
        %2712 = vmax.xlane.f32.xlu0 %v2689
        %v2713 = vpop.xlane.xlu0 %2712
        %2714 = vmax.xlane.f32.xlu0 %v2690
        %v2715 = vpop.xlane.xlu0 %2714
        %2716 = vmax.xlane.f32.xlu0 %v2691
        %v2717 = vpop.xlane.xlu0 %2716
        %2718 = vmax.xlane.f32.xlu0 %v2692
        %v2719 = vpop.xlane.xlu0 %2718
        %2720 = vmax.xlane.f32.xlu0 %v2693
        %v2721 = vpop.xlane.xlu0 %2720
        %2722 = vmax.xlane.f32.xlu0 %v2694
        %v2723 = vpop.xlane.xlu0 %2722
        %2724 = vmax.xlane.f32.xlu0 %v2695
        %v2725 = vpop.xlane.xlu0 %2724
        %2726 = vmax.xlane.f32.xlu0 %v2696
        %v2727 = vpop.xlane.xlu0 %2726
        %2728 = vmax.xlane.f32.xlu0 %v2697
        %v2729 = vpop.xlane.xlu0 %2728
        %v2730 = vlaneseq
        %v2731 = vshrl.u32 %v2730, 7
        %v2732 = vsub.s32 5, %v2731
        %v2733 = vrot.slane %v1135, %v2732
        %v2734 = vmul.f32 %v1555, %v2733
        %v2735 = vmul.f32 %v1556, %v2733
        %v2736 = vmul.f32 %v1557, %v2733
        %v2737 = vmul.f32 %v1558, %v2733
        %v2738 = vmul.f32 %v1559, %v2733
        %v2739 = vmul.f32 %v1560, %v2733
        %v2740 = vmul.f32 %v1561, %v2733
        %v2741 = vmul.f32 %v1562, %v2733
        %v2742 = vmul.f32 %v1563, %v2733
        %v2743 = vmul.f32 %v1564, %v2733
        %v2744 = vmul.f32 %v1565, %v2733
        %v2745 = vmul.f32 %v1566, %v2733
        %v2746 = vmul.f32 %v1567, %v2733
        %v2747 = vmul.f32 %v1568, %v2733
        %v2748 = vmul.f32 %v1569, %v2733
        %v2749 = vmul.f32 %v1570, %v2733
        %v2750 = vsel %vm1459, %v2734, -1e+30
        %v2751 = vsel %vm1460, %v2735, -1e+30
        %v2752 = vsel %vm1461, %v2736, -1e+30
        %v2753 = vsel %vm1462, %v2737, -1e+30
        %v2754 = vsel %vm1463, %v2738, -1e+30
        %v2755 = vsel %vm1464, %v2739, -1e+30
        %v2756 = vsel %vm1465, %v2740, -1e+30
        %v2757 = vsel %vm1466, %v2741, -1e+30
        %v2758 = vsel %vm1467, %v2742, -1e+30
        %v2759 = vsel %vm1468, %v2743, -1e+30
        %v2760 = vsel %vm1469, %v2744, -1e+30
        %v2761 = vsel %vm1470, %v2745, -1e+30
        %v2762 = vsel %vm1471, %v2746, -1e+30
        %v2763 = vsel %vm1472, %v2747, -1e+30
        %v2764 = vsel %vm1473, %v2748, -1e+30
        %v2765 = vsel %vm1474, %v2749, -1e+30
        %2766 = vmax.xlane.f32.xlu0 %v2750
        %v2767 = vpop.xlane.xlu0 %2766
        %2768 = vmax.xlane.f32.xlu0 %v2751
        %v2769 = vpop.xlane.xlu0 %2768
        %2770 = vmax.xlane.f32.xlu0 %v2752
        %v2771 = vpop.xlane.xlu0 %2770
        %2772 = vmax.xlane.f32.xlu0 %v2753
        %v2773 = vpop.xlane.xlu0 %2772
        %2774 = vmax.xlane.f32.xlu0 %v2754
        %v2775 = vpop.xlane.xlu0 %2774
        %2776 = vmax.xlane.f32.xlu0 %v2755
        %v2777 = vpop.xlane.xlu0 %2776
        %2778 = vmax.xlane.f32.xlu0 %v2756
        %v2779 = vpop.xlane.xlu0 %2778
        %2780 = vmax.xlane.f32.xlu0 %v2757
        %v2781 = vpop.xlane.xlu0 %2780
        %2782 = vmax.xlane.f32.xlu0 %v2758
        %v2783 = vpop.xlane.xlu0 %2782
        %2784 = vmax.xlane.f32.xlu0 %v2759
        %v2785 = vpop.xlane.xlu0 %2784
        %2786 = vmax.xlane.f32.xlu0 %v2760
        %v2787 = vpop.xlane.xlu0 %2786
        %2788 = vmax.xlane.f32.xlu0 %v2761
        %v2789 = vpop.xlane.xlu0 %2788
        %2790 = vmax.xlane.f32.xlu0 %v2762
        %v2791 = vpop.xlane.xlu0 %2790
        %2792 = vmax.xlane.f32.xlu0 %v2763
        %v2793 = vpop.xlane.xlu0 %2792
        %2794 = vmax.xlane.f32.xlu0 %v2764
        %v2795 = vpop.xlane.xlu0 %2794
        %2796 = vmax.xlane.f32.xlu0 %v2765
        %v2797 = vpop.xlane.xlu0 %2796
        %v2798 = vlaneseq
        %v2799 = vshrl.u32 %v2798, 7
        %v2800 = vsub.s32 6, %v2799
        %v2801 = vrot.slane %v1135, %v2800
        %v2802 = vmul.f32 %v1555, %v2801
        %v2803 = vmul.f32 %v1556, %v2801
        %v2804 = vmul.f32 %v1557, %v2801
        %v2805 = vmul.f32 %v1558, %v2801
        %v2806 = vmul.f32 %v1559, %v2801
        %v2807 = vmul.f32 %v1560, %v2801
        %v2808 = vmul.f32 %v1561, %v2801
        %v2809 = vmul.f32 %v1562, %v2801
        %v2810 = vmul.f32 %v1563, %v2801
        %v2811 = vmul.f32 %v1564, %v2801
        %v2812 = vmul.f32 %v1565, %v2801
        %v2813 = vmul.f32 %v1566, %v2801
        %v2814 = vmul.f32 %v1567, %v2801
        %v2815 = vmul.f32 %v1568, %v2801
        %v2816 = vmul.f32 %v1569, %v2801
        %v2817 = vmul.f32 %v1570, %v2801
        %v2818 = vsel %vm1459, %v2802, -1e+30
        %v2819 = vsel %vm1460, %v2803, -1e+30
        %v2820 = vsel %vm1461, %v2804, -1e+30
        %v2821 = vsel %vm1462, %v2805, -1e+30
        %v2822 = vsel %vm1463, %v2806, -1e+30
        %v2823 = vsel %vm1464, %v2807, -1e+30
        %v2824 = vsel %vm1465, %v2808, -1e+30
        %v2825 = vsel %vm1466, %v2809, -1e+30
        %v2826 = vsel %vm1467, %v2810, -1e+30
        %v2827 = vsel %vm1468, %v2811, -1e+30
        %v2828 = vsel %vm1469, %v2812, -1e+30
        %v2829 = vsel %vm1470, %v2813, -1e+30
        %v2830 = vsel %vm1471, %v2814, -1e+30
        %v2831 = vsel %vm1472, %v2815, -1e+30
        %v2832 = vsel %vm1473, %v2816, -1e+30
        %v2833 = vsel %vm1474, %v2817, -1e+30
        %2834 = vmax.xlane.f32.xlu0 %v2818
        %v2835 = vpop.xlane.xlu0 %2834
        %2836 = vmax.xlane.f32.xlu0 %v2819
        %v2837 = vpop.xlane.xlu0 %2836
        %2838 = vmax.xlane.f32.xlu0 %v2820
        %v2839 = vpop.xlane.xlu0 %2838
        %2840 = vmax.xlane.f32.xlu0 %v2821
        %v2841 = vpop.xlane.xlu0 %2840
        %2842 = vmax.xlane.f32.xlu0 %v2822
        %v2843 = vpop.xlane.xlu0 %2842
        %2844 = vmax.xlane.f32.xlu0 %v2823
        %v2845 = vpop.xlane.xlu0 %2844
        %2846 = vmax.xlane.f32.xlu0 %v2824
        %v2847 = vpop.xlane.xlu0 %2846
        %2848 = vmax.xlane.f32.xlu0 %v2825
        %v2849 = vpop.xlane.xlu0 %2848
        %2850 = vmax.xlane.f32.xlu0 %v2826
        %v2851 = vpop.xlane.xlu0 %2850
        %2852 = vmax.xlane.f32.xlu0 %v2827
        %v2853 = vpop.xlane.xlu0 %2852
        %2854 = vmax.xlane.f32.xlu0 %v2828
        %v2855 = vpop.xlane.xlu0 %2854
        %2856 = vmax.xlane.f32.xlu0 %v2829
        %v2857 = vpop.xlane.xlu0 %2856
        %2858 = vmax.xlane.f32.xlu0 %v2830
        %v2859 = vpop.xlane.xlu0 %2858
        %2860 = vmax.xlane.f32.xlu0 %v2831
        %v2861 = vpop.xlane.xlu0 %2860
        %2862 = vmax.xlane.f32.xlu0 %v2832
        %v2863 = vpop.xlane.xlu0 %2862
        %2864 = vmax.xlane.f32.xlu0 %v2833
        %v2865 = vpop.xlane.xlu0 %2864
        %v2866 = vlaneseq
        %v2867 = vshrl.u32 %v2866, 7
        %v2868 = vsub.s32 7, %v2867
        %v2869 = vrot.slane %v1135, %v2868
        %v2870 = vmul.f32 %v1555, %v2869
        %v2871 = vmul.f32 %v1556, %v2869
        %v2872 = vmul.f32 %v1557, %v2869
        %v2873 = vmul.f32 %v1558, %v2869
        %v2874 = vmul.f32 %v1559, %v2869
        %v2875 = vmul.f32 %v1560, %v2869
        %v2876 = vmul.f32 %v1561, %v2869
        %v2877 = vmul.f32 %v1562, %v2869
        %v2878 = vmul.f32 %v1563, %v2869
        %v2879 = vmul.f32 %v1564, %v2869
        %v2880 = vmul.f32 %v1565, %v2869
        %v2881 = vmul.f32 %v1566, %v2869
        %v2882 = vmul.f32 %v1567, %v2869
        %v2883 = vmul.f32 %v1568, %v2869
        %v2884 = vmul.f32 %v1569, %v2869
        %v2885 = vmul.f32 %v1570, %v2869
        %v2886 = vsel %vm1459, %v2870, -1e+30
        %v2887 = vsel %vm1460, %v2871, -1e+30
        %v2888 = vsel %vm1461, %v2872, -1e+30
        %v2889 = vsel %vm1462, %v2873, -1e+30
        %v2890 = vsel %vm1463, %v2874, -1e+30
        %v2891 = vsel %vm1464, %v2875, -1e+30
        %v2892 = vsel %vm1465, %v2876, -1e+30
        %v2893 = vsel %vm1466, %v2877, -1e+30
        %v2894 = vsel %vm1467, %v2878, -1e+30
        %v2895 = vsel %vm1468, %v2879, -1e+30
        %v2896 = vsel %vm1469, %v2880, -1e+30
        %v2897 = vsel %vm1470, %v2881, -1e+30
        %v2898 = vsel %vm1471, %v2882, -1e+30
        %v2899 = vsel %vm1472, %v2883, -1e+30
        %v2900 = vsel %vm1473, %v2884, -1e+30
        %v2901 = vsel %vm1474, %v2885, -1e+30
        %2902 = vmax.xlane.f32.xlu0 %v2886
        %v2903 = vpop.xlane.xlu0 %2902
        %2904 = vmax.xlane.f32.xlu0 %v2887
        %v2905 = vpop.xlane.xlu0 %2904
        %2906 = vmax.xlane.f32.xlu0 %v2888
        %v2907 = vpop.xlane.xlu0 %2906
        %2908 = vmax.xlane.f32.xlu0 %v2889
        %v2909 = vpop.xlane.xlu0 %2908
        %2910 = vmax.xlane.f32.xlu0 %v2890
        %v2911 = vpop.xlane.xlu0 %2910
        %2912 = vmax.xlane.f32.xlu0 %v2891
        %v2913 = vpop.xlane.xlu0 %2912
        %2914 = vmax.xlane.f32.xlu0 %v2892
        %v2915 = vpop.xlane.xlu0 %2914
        %2916 = vmax.xlane.f32.xlu0 %v2893
        %v2917 = vpop.xlane.xlu0 %2916
        %2918 = vmax.xlane.f32.xlu0 %v2894
        %v2919 = vpop.xlane.xlu0 %2918
        %2920 = vmax.xlane.f32.xlu0 %v2895
        %v2921 = vpop.xlane.xlu0 %2920
        %2922 = vmax.xlane.f32.xlu0 %v2896
        %v2923 = vpop.xlane.xlu0 %2922
        %2924 = vmax.xlane.f32.xlu0 %v2897
        %v2925 = vpop.xlane.xlu0 %2924
        %2926 = vmax.xlane.f32.xlu0 %v2898
        %v2927 = vpop.xlane.xlu0 %2926
        %2928 = vmax.xlane.f32.xlu0 %v2899
        %v2929 = vpop.xlane.xlu0 %2928
        %2930 = vmax.xlane.f32.xlu0 %v2900
        %v2931 = vpop.xlane.xlu0 %2930
        %2932 = vmax.xlane.f32.xlu0 %v2901
        %v2933 = vpop.xlane.xlu0 %2932
        %v2934 = vlaneseq
        %v2935 = vshrl.u32 %v2934, 7
        %v2936 = vsub.s32 0, %v2935
        %v2937 = vrot.slane %v1136, %v2936
        %v2938 = vmul.f32 %v1555, %v2937
        %v2939 = vmul.f32 %v1556, %v2937
        %v2940 = vmul.f32 %v1557, %v2937
        %v2941 = vmul.f32 %v1558, %v2937
        %v2942 = vmul.f32 %v1559, %v2937
        %v2943 = vmul.f32 %v1560, %v2937
        %v2944 = vmul.f32 %v1561, %v2937
        %v2945 = vmul.f32 %v1562, %v2937
        %v2946 = vmul.f32 %v1563, %v2937
        %v2947 = vmul.f32 %v1564, %v2937
        %v2948 = vmul.f32 %v1565, %v2937
        %v2949 = vmul.f32 %v1566, %v2937
        %v2950 = vmul.f32 %v1567, %v2937
        %v2951 = vmul.f32 %v1568, %v2937
        %v2952 = vmul.f32 %v1569, %v2937
        %v2953 = vmul.f32 %v1570, %v2937
        %v2954 = vsel %vm1459, %v2938, -1e+30
        %v2955 = vsel %vm1460, %v2939, -1e+30
        %v2956 = vsel %vm1461, %v2940, -1e+30
        %v2957 = vsel %vm1462, %v2941, -1e+30
        %v2958 = vsel %vm1463, %v2942, -1e+30
        %v2959 = vsel %vm1464, %v2943, -1e+30
        %v2960 = vsel %vm1465, %v2944, -1e+30
        %v2961 = vsel %vm1466, %v2945, -1e+30
        %v2962 = vsel %vm1467, %v2946, -1e+30
        %v2963 = vsel %vm1468, %v2947, -1e+30
        %v2964 = vsel %vm1469, %v2948, -1e+30
        %v2965 = vsel %vm1470, %v2949, -1e+30
        %v2966 = vsel %vm1471, %v2950, -1e+30
        %v2967 = vsel %vm1472, %v2951, -1e+30
        %v2968 = vsel %vm1473, %v2952, -1e+30
        %v2969 = vsel %vm1474, %v2953, -1e+30
        %2970 = vmax.xlane.f32.xlu0 %v2954
        %v2971 = vpop.xlane.xlu0 %2970
        %2972 = vmax.xlane.f32.xlu0 %v2955
        %v2973 = vpop.xlane.xlu0 %2972
        %2974 = vmax.xlane.f32.xlu0 %v2956
        %v2975 = vpop.xlane.xlu0 %2974
        %2976 = vmax.xlane.f32.xlu0 %v2957
        %v2977 = vpop.xlane.xlu0 %2976
        %2978 = vmax.xlane.f32.xlu0 %v2958
        %v2979 = vpop.xlane.xlu0 %2978
        %2980 = vmax.xlane.f32.xlu0 %v2959
        %v2981 = vpop.xlane.xlu0 %2980
        %2982 = vmax.xlane.f32.xlu0 %v2960
        %v2983 = vpop.xlane.xlu0 %2982
        %2984 = vmax.xlane.f32.xlu0 %v2961
        %v2985 = vpop.xlane.xlu0 %2984
        %2986 = vmax.xlane.f32.xlu0 %v2962
        %v2987 = vpop.xlane.xlu0 %2986
        %2988 = vmax.xlane.f32.xlu0 %v2963
        %v2989 = vpop.xlane.xlu0 %2988
        %2990 = vmax.xlane.f32.xlu0 %v2964
        %v2991 = vpop.xlane.xlu0 %2990
        %2992 = vmax.xlane.f32.xlu0 %v2965
        %v2993 = vpop.xlane.xlu0 %2992
        %2994 = vmax.xlane.f32.xlu0 %v2966
        %v2995 = vpop.xlane.xlu0 %2994
        %2996 = vmax.xlane.f32.xlu0 %v2967
        %v2997 = vpop.xlane.xlu0 %2996
        %2998 = vmax.xlane.f32.xlu0 %v2968
        %v2999 = vpop.xlane.xlu0 %2998
        %3000 = vmax.xlane.f32.xlu0 %v2969
        %v3001 = vpop.xlane.xlu0 %3000
        %v3002 = vlaneseq
        %v3003 = vshrl.u32 %v3002, 7
        %v3004 = vsub.s32 1, %v3003
        %v3005 = vrot.slane %v1136, %v3004
        %v3006 = vmul.f32 %v1555, %v3005
        %v3007 = vmul.f32 %v1556, %v3005
        %v3008 = vmul.f32 %v1557, %v3005
        %v3009 = vmul.f32 %v1558, %v3005
        %v3010 = vmul.f32 %v1559, %v3005
        %v3011 = vmul.f32 %v1560, %v3005
        %v3012 = vmul.f32 %v1561, %v3005
        %v3013 = vmul.f32 %v1562, %v3005
        %v3014 = vmul.f32 %v1563, %v3005
        %v3015 = vmul.f32 %v1564, %v3005
        %v3016 = vmul.f32 %v1565, %v3005
        %v3017 = vmul.f32 %v1566, %v3005
        %v3018 = vmul.f32 %v1567, %v3005
        %v3019 = vmul.f32 %v1568, %v3005
        %v3020 = vmul.f32 %v1569, %v3005
        %v3021 = vmul.f32 %v1570, %v3005
        %v3022 = vsel %vm1459, %v3006, -1e+30
        %v3023 = vsel %vm1460, %v3007, -1e+30
        %v3024 = vsel %vm1461, %v3008, -1e+30
        %v3025 = vsel %vm1462, %v3009, -1e+30
        %v3026 = vsel %vm1463, %v3010, -1e+30
        %v3027 = vsel %vm1464, %v3011, -1e+30
        %v3028 = vsel %vm1465, %v3012, -1e+30
        %v3029 = vsel %vm1466, %v3013, -1e+30
        %v3030 = vsel %vm1467, %v3014, -1e+30
        %v3031 = vsel %vm1468, %v3015, -1e+30
        %v3032 = vsel %vm1469, %v3016, -1e+30
        %v3033 = vsel %vm1470, %v3017, -1e+30
        %v3034 = vsel %vm1471, %v3018, -1e+30
        %v3035 = vsel %vm1472, %v3019, -1e+30
        %v3036 = vsel %vm1473, %v3020, -1e+30
        %v3037 = vsel %vm1474, %v3021, -1e+30
        %3038 = vmax.xlane.f32.xlu0 %v3022
        %v3039 = vpop.xlane.xlu0 %3038
        %3040 = vmax.xlane.f32.xlu0 %v3023
        %v3041 = vpop.xlane.xlu0 %3040
        %3042 = vmax.xlane.f32.xlu0 %v3024
        %v3043 = vpop.xlane.xlu0 %3042
        %3044 = vmax.xlane.f32.xlu0 %v3025
        %v3045 = vpop.xlane.xlu0 %3044
        %3046 = vmax.xlane.f32.xlu0 %v3026
        %v3047 = vpop.xlane.xlu0 %3046
        %3048 = vmax.xlane.f32.xlu0 %v3027
        %v3049 = vpop.xlane.xlu0 %3048
        %3050 = vmax.xlane.f32.xlu0 %v3028
        %v3051 = vpop.xlane.xlu0 %3050
        %3052 = vmax.xlane.f32.xlu0 %v3029
        %v3053 = vpop.xlane.xlu0 %3052
        %3054 = vmax.xlane.f32.xlu0 %v3030
        %v3055 = vpop.xlane.xlu0 %3054
        %3056 = vmax.xlane.f32.xlu0 %v3031
        %v3057 = vpop.xlane.xlu0 %3056
        %3058 = vmax.xlane.f32.xlu0 %v3032
        %v3059 = vpop.xlane.xlu0 %3058
        %3060 = vmax.xlane.f32.xlu0 %v3033
        %v3061 = vpop.xlane.xlu0 %3060
        %3062 = vmax.xlane.f32.xlu0 %v3034
        %v3063 = vpop.xlane.xlu0 %3062
        %3064 = vmax.xlane.f32.xlu0 %v3035
        %v3065 = vpop.xlane.xlu0 %3064
        %3066 = vmax.xlane.f32.xlu0 %v3036
        %v3067 = vpop.xlane.xlu0 %3066
        %3068 = vmax.xlane.f32.xlu0 %v3037
        %v3069 = vpop.xlane.xlu0 %3068
        %v3070 = vlaneseq
        %v3071 = vshrl.u32 %v3070, 7
        %v3072 = vsub.s32 2, %v3071
        %v3073 = vrot.slane %v1136, %v3072
        %v3074 = vmul.f32 %v1555, %v3073
        %v3075 = vmul.f32 %v1556, %v3073
        %v3076 = vmul.f32 %v1557, %v3073
        %v3077 = vmul.f32 %v1558, %v3073
        %v3078 = vmul.f32 %v1559, %v3073
        %v3079 = vmul.f32 %v1560, %v3073
        %v3080 = vmul.f32 %v1561, %v3073
        %v3081 = vmul.f32 %v1562, %v3073
        %v3082 = vmul.f32 %v1563, %v3073
        %v3083 = vmul.f32 %v1564, %v3073
        %v3084 = vmul.f32 %v1565, %v3073
        %v3085 = vmul.f32 %v1566, %v3073
        %v3086 = vmul.f32 %v1567, %v3073
        %v3087 = vmul.f32 %v1568, %v3073
        %v3088 = vmul.f32 %v1569, %v3073
        %v3089 = vmul.f32 %v1570, %v3073
        %v3090 = vsel %vm1459, %v3074, -1e+30
        %v3091 = vsel %vm1460, %v3075, -1e+30
        %v3092 = vsel %vm1461, %v3076, -1e+30
        %v3093 = vsel %vm1462, %v3077, -1e+30
        %v3094 = vsel %vm1463, %v3078, -1e+30
        %v3095 = vsel %vm1464, %v3079, -1e+30
        %v3096 = vsel %vm1465, %v3080, -1e+30
        %v3097 = vsel %vm1466, %v3081, -1e+30
        %v3098 = vsel %vm1467, %v3082, -1e+30
        %v3099 = vsel %vm1468, %v3083, -1e+30
        %v3100 = vsel %vm1469, %v3084, -1e+30
        %v3101 = vsel %vm1470, %v3085, -1e+30
        %v3102 = vsel %vm1471, %v3086, -1e+30
        %v3103 = vsel %vm1472, %v3087, -1e+30
        %v3104 = vsel %vm1473, %v3088, -1e+30
        %v3105 = vsel %vm1474, %v3089, -1e+30
        %3106 = vmax.xlane.f32.xlu0 %v3090
        %v3107 = vpop.xlane.xlu0 %3106
        %3108 = vmax.xlane.f32.xlu0 %v3091
        %v3109 = vpop.xlane.xlu0 %3108
        %3110 = vmax.xlane.f32.xlu0 %v3092
        %v3111 = vpop.xlane.xlu0 %3110
        %3112 = vmax.xlane.f32.xlu0 %v3093
        %v3113 = vpop.xlane.xlu0 %3112
        %3114 = vmax.xlane.f32.xlu0 %v3094
        %v3115 = vpop.xlane.xlu0 %3114
        %3116 = vmax.xlane.f32.xlu0 %v3095
        %v3117 = vpop.xlane.xlu0 %3116
        %3118 = vmax.xlane.f32.xlu0 %v3096
        %v3119 = vpop.xlane.xlu0 %3118
        %3120 = vmax.xlane.f32.xlu0 %v3097
        %v3121 = vpop.xlane.xlu0 %3120
        %3122 = vmax.xlane.f32.xlu0 %v3098
        %v3123 = vpop.xlane.xlu0 %3122
        %3124 = vmax.xlane.f32.xlu0 %v3099
        %v3125 = vpop.xlane.xlu0 %3124
        %3126 = vmax.xlane.f32.xlu0 %v3100
        %v3127 = vpop.xlane.xlu0 %3126
        %3128 = vmax.xlane.f32.xlu0 %v3101
        %v3129 = vpop.xlane.xlu0 %3128
        %3130 = vmax.xlane.f32.xlu0 %v3102
        %v3131 = vpop.xlane.xlu0 %3130
        %3132 = vmax.xlane.f32.xlu0 %v3103
        %v3133 = vpop.xlane.xlu0 %3132
        %3134 = vmax.xlane.f32.xlu0 %v3104
        %v3135 = vpop.xlane.xlu0 %3134
        %3136 = vmax.xlane.f32.xlu0 %v3105
        %v3137 = vpop.xlane.xlu0 %3136
        %v3138 = vlaneseq
        %v3139 = vshrl.u32 %v3138, 7
        %v3140 = vsub.s32 3, %v3139
        %v3141 = vrot.slane %v1136, %v3140
        %v3142 = vmul.f32 %v1555, %v3141
        %v3143 = vmul.f32 %v1556, %v3141
        %v3144 = vmul.f32 %v1557, %v3141
        %v3145 = vmul.f32 %v1558, %v3141
        %v3146 = vmul.f32 %v1559, %v3141
        %v3147 = vmul.f32 %v1560, %v3141
        %v3148 = vmul.f32 %v1561, %v3141
        %v3149 = vmul.f32 %v1562, %v3141
        %v3150 = vmul.f32 %v1563, %v3141
        %v3151 = vmul.f32 %v1564, %v3141
        %v3152 = vmul.f32 %v1565, %v3141
        %v3153 = vmul.f32 %v1566, %v3141
        %v3154 = vmul.f32 %v1567, %v3141
        %v3155 = vmul.f32 %v1568, %v3141
        %v3156 = vmul.f32 %v1569, %v3141
        %v3157 = vmul.f32 %v1570, %v3141
        %v3158 = vsel %vm1459, %v3142, -1e+30
        %v3159 = vsel %vm1460, %v3143, -1e+30
        %v3160 = vsel %vm1461, %v3144, -1e+30
        %v3161 = vsel %vm1462, %v3145, -1e+30
        %v3162 = vsel %vm1463, %v3146, -1e+30
        %v3163 = vsel %vm1464, %v3147, -1e+30
        %v3164 = vsel %vm1465, %v3148, -1e+30
        %v3165 = vsel %vm1466, %v3149, -1e+30
        %v3166 = vsel %vm1467, %v3150, -1e+30
        %v3167 = vsel %vm1468, %v3151, -1e+30
        %v3168 = vsel %vm1469, %v3152, -1e+30
        %v3169 = vsel %vm1470, %v3153, -1e+30
        %v3170 = vsel %vm1471, %v3154, -1e+30
        %v3171 = vsel %vm1472, %v3155, -1e+30
        %v3172 = vsel %vm1473, %v3156, -1e+30
        %v3173 = vsel %vm1474, %v3157, -1e+30
        %3174 = vmax.xlane.f32.xlu0 %v3158
        %v3175 = vpop.xlane.xlu0 %3174
        %3176 = vmax.xlane.f32.xlu0 %v3159
        %v3177 = vpop.xlane.xlu0 %3176
        %3178 = vmax.xlane.f32.xlu0 %v3160
        %v3179 = vpop.xlane.xlu0 %3178
        %3180 = vmax.xlane.f32.xlu0 %v3161
        %v3181 = vpop.xlane.xlu0 %3180
        %3182 = vmax.xlane.f32.xlu0 %v3162
        %v3183 = vpop.xlane.xlu0 %3182
        %3184 = vmax.xlane.f32.xlu0 %v3163
        %v3185 = vpop.xlane.xlu0 %3184
        %3186 = vmax.xlane.f32.xlu0 %v3164
        %v3187 = vpop.xlane.xlu0 %3186
        %3188 = vmax.xlane.f32.xlu0 %v3165
        %v3189 = vpop.xlane.xlu0 %3188
        %3190 = vmax.xlane.f32.xlu0 %v3166
        %v3191 = vpop.xlane.xlu0 %3190
        %3192 = vmax.xlane.f32.xlu0 %v3167
        %v3193 = vpop.xlane.xlu0 %3192
        %3194 = vmax.xlane.f32.xlu0 %v3168
        %v3195 = vpop.xlane.xlu0 %3194
        %3196 = vmax.xlane.f32.xlu0 %v3169
        %v3197 = vpop.xlane.xlu0 %3196
        %3198 = vmax.xlane.f32.xlu0 %v3170
        %v3199 = vpop.xlane.xlu0 %3198
        %3200 = vmax.xlane.f32.xlu0 %v3171
        %v3201 = vpop.xlane.xlu0 %3200
        %3202 = vmax.xlane.f32.xlu0 %v3172
        %v3203 = vpop.xlane.xlu0 %3202
        %3204 = vmax.xlane.f32.xlu0 %v3173
        %v3205 = vpop.xlane.xlu0 %3204
        %v3206 = vlaneseq
        %v3207 = vshrl.u32 %v3206, 7
        %v3208 = vsub.s32 4, %v3207
        %v3209 = vrot.slane %v1136, %v3208
        %v3210 = vmul.f32 %v1555, %v3209
        %v3211 = vmul.f32 %v1556, %v3209
        %v3212 = vmul.f32 %v1557, %v3209
        %v3213 = vmul.f32 %v1558, %v3209
        %v3214 = vmul.f32 %v1559, %v3209
        %v3215 = vmul.f32 %v1560, %v3209
        %v3216 = vmul.f32 %v1561, %v3209
        %v3217 = vmul.f32 %v1562, %v3209
        %v3218 = vmul.f32 %v1563, %v3209
        %v3219 = vmul.f32 %v1564, %v3209
        %v3220 = vmul.f32 %v1565, %v3209
        %v3221 = vmul.f32 %v1566, %v3209
        %v3222 = vmul.f32 %v1567, %v3209
        %v3223 = vmul.f32 %v1568, %v3209
        %v3224 = vmul.f32 %v1569, %v3209
        %v3225 = vmul.f32 %v1570, %v3209
        %v3226 = vsel %vm1459, %v3210, -1e+30
        %v3227 = vsel %vm1460, %v3211, -1e+30
        %v3228 = vsel %vm1461, %v3212, -1e+30
        %v3229 = vsel %vm1462, %v3213, -1e+30
        %v3230 = vsel %vm1463, %v3214, -1e+30
        %v3231 = vsel %vm1464, %v3215, -1e+30
        %v3232 = vsel %vm1465, %v3216, -1e+30
        %v3233 = vsel %vm1466, %v3217, -1e+30
        %v3234 = vsel %vm1467, %v3218, -1e+30
        %v3235 = vsel %vm1468, %v3219, -1e+30
        %v3236 = vsel %vm1469, %v3220, -1e+30
        %v3237 = vsel %vm1470, %v3221, -1e+30
        %v3238 = vsel %vm1471, %v3222, -1e+30
        %v3239 = vsel %vm1472, %v3223, -1e+30
        %v3240 = vsel %vm1473, %v3224, -1e+30
        %v3241 = vsel %vm1474, %v3225, -1e+30
        %3242 = vmax.xlane.f32.xlu0 %v3226
        %v3243 = vpop.xlane.xlu0 %3242
        %3244 = vmax.xlane.f32.xlu0 %v3227
        %v3245 = vpop.xlane.xlu0 %3244
        %3246 = vmax.xlane.f32.xlu0 %v3228
        %v3247 = vpop.xlane.xlu0 %3246
        %3248 = vmax.xlane.f32.xlu0 %v3229
        %v3249 = vpop.xlane.xlu0 %3248
        %3250 = vmax.xlane.f32.xlu0 %v3230
        %v3251 = vpop.xlane.xlu0 %3250
        %3252 = vmax.xlane.f32.xlu0 %v3231
        %v3253 = vpop.xlane.xlu0 %3252
        %3254 = vmax.xlane.f32.xlu0 %v3232
        %v3255 = vpop.xlane.xlu0 %3254
        %3256 = vmax.xlane.f32.xlu0 %v3233
        %v3257 = vpop.xlane.xlu0 %3256
        %3258 = vmax.xlane.f32.xlu0 %v3234
        %v3259 = vpop.xlane.xlu0 %3258
        %3260 = vmax.xlane.f32.xlu0 %v3235
        %v3261 = vpop.xlane.xlu0 %3260
        %3262 = vmax.xlane.f32.xlu0 %v3236
        %v3263 = vpop.xlane.xlu0 %3262
        %3264 = vmax.xlane.f32.xlu0 %v3237
        %v3265 = vpop.xlane.xlu0 %3264
        %3266 = vmax.xlane.f32.xlu0 %v3238
        %v3267 = vpop.xlane.xlu0 %3266
        %3268 = vmax.xlane.f32.xlu0 %v3239
        %v3269 = vpop.xlane.xlu0 %3268
        %3270 = vmax.xlane.f32.xlu0 %v3240
        %v3271 = vpop.xlane.xlu0 %3270
        %3272 = vmax.xlane.f32.xlu0 %v3241
        %v3273 = vpop.xlane.xlu0 %3272
        %v3274 = vlaneseq
        %v3275 = vshrl.u32 %v3274, 7
        %v3276 = vsub.s32 5, %v3275
        %v3277 = vrot.slane %v1136, %v3276
        %v3278 = vmul.f32 %v1555, %v3277
        %v3279 = vmul.f32 %v1556, %v3277
        %v3280 = vmul.f32 %v1557, %v3277
        %v3281 = vmul.f32 %v1558, %v3277
        %v3282 = vmul.f32 %v1559, %v3277
        %v3283 = vmul.f32 %v1560, %v3277
        %v3284 = vmul.f32 %v1561, %v3277
        %v3285 = vmul.f32 %v1562, %v3277
        %v3286 = vmul.f32 %v1563, %v3277
        %v3287 = vmul.f32 %v1564, %v3277
        %v3288 = vmul.f32 %v1565, %v3277
        %v3289 = vmul.f32 %v1566, %v3277
        %v3290 = vmul.f32 %v1567, %v3277
        %v3291 = vmul.f32 %v1568, %v3277
        %v3292 = vmul.f32 %v1569, %v3277
        %v3293 = vmul.f32 %v1570, %v3277
        %v3294 = vsel %vm1459, %v3278, -1e+30
        %v3295 = vsel %vm1460, %v3279, -1e+30
        %v3296 = vsel %vm1461, %v3280, -1e+30
        %v3297 = vsel %vm1462, %v3281, -1e+30
        %v3298 = vsel %vm1463, %v3282, -1e+30
        %v3299 = vsel %vm1464, %v3283, -1e+30
        %v3300 = vsel %vm1465, %v3284, -1e+30
        %v3301 = vsel %vm1466, %v3285, -1e+30
        %v3302 = vsel %vm1467, %v3286, -1e+30
        %v3303 = vsel %vm1468, %v3287, -1e+30
        %v3304 = vsel %vm1469, %v3288, -1e+30
        %v3305 = vsel %vm1470, %v3289, -1e+30
        %v3306 = vsel %vm1471, %v3290, -1e+30
        %v3307 = vsel %vm1472, %v3291, -1e+30
        %v3308 = vsel %vm1473, %v3292, -1e+30
        %v3309 = vsel %vm1474, %v3293, -1e+30
        %3310 = vmax.xlane.f32.xlu0 %v3294
        %v3311 = vpop.xlane.xlu0 %3310
        %3312 = vmax.xlane.f32.xlu0 %v3295
        %v3313 = vpop.xlane.xlu0 %3312
        %3314 = vmax.xlane.f32.xlu0 %v3296
        %v3315 = vpop.xlane.xlu0 %3314
        %3316 = vmax.xlane.f32.xlu0 %v3297
        %v3317 = vpop.xlane.xlu0 %3316
        %3318 = vmax.xlane.f32.xlu0 %v3298
        %v3319 = vpop.xlane.xlu0 %3318
        %3320 = vmax.xlane.f32.xlu0 %v3299
        %v3321 = vpop.xlane.xlu0 %3320
        %3322 = vmax.xlane.f32.xlu0 %v3300
        %v3323 = vpop.xlane.xlu0 %3322
        %3324 = vmax.xlane.f32.xlu0 %v3301
        %v3325 = vpop.xlane.xlu0 %3324
        %3326 = vmax.xlane.f32.xlu0 %v3302
        %v3327 = vpop.xlane.xlu0 %3326
        %3328 = vmax.xlane.f32.xlu0 %v3303
        %v3329 = vpop.xlane.xlu0 %3328
        %3330 = vmax.xlane.f32.xlu0 %v3304
        %v3331 = vpop.xlane.xlu0 %3330
        %3332 = vmax.xlane.f32.xlu0 %v3305
        %v3333 = vpop.xlane.xlu0 %3332
        %3334 = vmax.xlane.f32.xlu0 %v3306
        %v3335 = vpop.xlane.xlu0 %3334
        %3336 = vmax.xlane.f32.xlu0 %v3307
        %v3337 = vpop.xlane.xlu0 %3336
        %3338 = vmax.xlane.f32.xlu0 %v3308
        %v3339 = vpop.xlane.xlu0 %3338
        %3340 = vmax.xlane.f32.xlu0 %v3309
        %v3341 = vpop.xlane.xlu0 %3340
        %v3342 = vlaneseq
        %v3343 = vshrl.u32 %v3342, 7
        %v3344 = vsub.s32 6, %v3343
        %v3345 = vrot.slane %v1136, %v3344
        %v3346 = vmul.f32 %v1555, %v3345
        %v3347 = vmul.f32 %v1556, %v3345
        %v3348 = vmul.f32 %v1557, %v3345
        %v3349 = vmul.f32 %v1558, %v3345
        %v3350 = vmul.f32 %v1559, %v3345
        %v3351 = vmul.f32 %v1560, %v3345
        %v3352 = vmul.f32 %v1561, %v3345
        %v3353 = vmul.f32 %v1562, %v3345
        %v3354 = vmul.f32 %v1563, %v3345
        %v3355 = vmul.f32 %v1564, %v3345
        %v3356 = vmul.f32 %v1565, %v3345
        %v3357 = vmul.f32 %v1566, %v3345
        %v3358 = vmul.f32 %v1567, %v3345
        %v3359 = vmul.f32 %v1568, %v3345
        %v3360 = vmul.f32 %v1569, %v3345
        %v3361 = vmul.f32 %v1570, %v3345
        %v3362 = vsel %vm1459, %v3346, -1e+30
        %v3363 = vsel %vm1460, %v3347, -1e+30
        %v3364 = vsel %vm1461, %v3348, -1e+30
        %v3365 = vsel %vm1462, %v3349, -1e+30
        %v3366 = vsel %vm1463, %v3350, -1e+30
        %v3367 = vsel %vm1464, %v3351, -1e+30
        %v3368 = vsel %vm1465, %v3352, -1e+30
        %v3369 = vsel %vm1466, %v3353, -1e+30
        %v3370 = vsel %vm1467, %v3354, -1e+30
        %v3371 = vsel %vm1468, %v3355, -1e+30
        %v3372 = vsel %vm1469, %v3356, -1e+30
        %v3373 = vsel %vm1470, %v3357, -1e+30
        %v3374 = vsel %vm1471, %v3358, -1e+30
        %v3375 = vsel %vm1472, %v3359, -1e+30
        %v3376 = vsel %vm1473, %v3360, -1e+30
        %v3377 = vsel %vm1474, %v3361, -1e+30
        %3378 = vmax.xlane.f32.xlu0 %v3362
        %v3379 = vpop.xlane.xlu0 %3378
        %3380 = vmax.xlane.f32.xlu0 %v3363
        %v3381 = vpop.xlane.xlu0 %3380
        %3382 = vmax.xlane.f32.xlu0 %v3364
        %v3383 = vpop.xlane.xlu0 %3382
        %3384 = vmax.xlane.f32.xlu0 %v3365
        %v3385 = vpop.xlane.xlu0 %3384
        %3386 = vmax.xlane.f32.xlu0 %v3366
        %v3387 = vpop.xlane.xlu0 %3386
        %3388 = vmax.xlane.f32.xlu0 %v3367
        %v3389 = vpop.xlane.xlu0 %3388
        %3390 = vmax.xlane.f32.xlu0 %v3368
        %v3391 = vpop.xlane.xlu0 %3390
        %3392 = vmax.xlane.f32.xlu0 %v3369
        %v3393 = vpop.xlane.xlu0 %3392
        %3394 = vmax.xlane.f32.xlu0 %v3370
        %v3395 = vpop.xlane.xlu0 %3394
        %3396 = vmax.xlane.f32.xlu0 %v3371
        %v3397 = vpop.xlane.xlu0 %3396
        %3398 = vmax.xlane.f32.xlu0 %v3372
        %v3399 = vpop.xlane.xlu0 %3398
        %3400 = vmax.xlane.f32.xlu0 %v3373
        %v3401 = vpop.xlane.xlu0 %3400
        %3402 = vmax.xlane.f32.xlu0 %v3374
        %v3403 = vpop.xlane.xlu0 %3402
        %3404 = vmax.xlane.f32.xlu0 %v3375
        %v3405 = vpop.xlane.xlu0 %3404
        %3406 = vmax.xlane.f32.xlu0 %v3376
        %v3407 = vpop.xlane.xlu0 %3406
        %3408 = vmax.xlane.f32.xlu0 %v3377
        %v3409 = vpop.xlane.xlu0 %3408
        %v3410 = vlaneseq
        %v3411 = vshrl.u32 %v3410, 7
        %v3412 = vsub.s32 7, %v3411
        %v3413 = vrot.slane %v1136, %v3412
        %v3414 = vmul.f32 %v1555, %v3413
        %v3415 = vmul.f32 %v1556, %v3413
        %v3416 = vmul.f32 %v1557, %v3413
        %v3417 = vmul.f32 %v1558, %v3413
        %v3418 = vmul.f32 %v1559, %v3413
        %v3419 = vmul.f32 %v1560, %v3413
        %v3420 = vmul.f32 %v1561, %v3413
        %v3421 = vmul.f32 %v1562, %v3413
        %v3422 = vmul.f32 %v1563, %v3413
        %v3423 = vmul.f32 %v1564, %v3413
        %v3424 = vmul.f32 %v1565, %v3413
        %v3425 = vmul.f32 %v1566, %v3413
        %v3426 = vmul.f32 %v1567, %v3413
        %v3427 = vmul.f32 %v1568, %v3413
        %v3428 = vmul.f32 %v1569, %v3413
        %v3429 = vmul.f32 %v1570, %v3413
        %v3430 = vsel %vm1459, %v3414, -1e+30
        %v3431 = vsel %vm1460, %v3415, -1e+30
        %v3432 = vsel %vm1461, %v3416, -1e+30
        %v3433 = vsel %vm1462, %v3417, -1e+30
        %v3434 = vsel %vm1463, %v3418, -1e+30
        %v3435 = vsel %vm1464, %v3419, -1e+30
        %v3436 = vsel %vm1465, %v3420, -1e+30
        %v3437 = vsel %vm1466, %v3421, -1e+30
        %v3438 = vsel %vm1467, %v3422, -1e+30
        %v3439 = vsel %vm1468, %v3423, -1e+30
        %v3440 = vsel %vm1469, %v3424, -1e+30
        %v3441 = vsel %vm1470, %v3425, -1e+30
        %v3442 = vsel %vm1471, %v3426, -1e+30
        %v3443 = vsel %vm1472, %v3427, -1e+30
        %v3444 = vsel %vm1473, %v3428, -1e+30
        %v3445 = vsel %vm1474, %v3429, -1e+30
        %3446 = vmax.xlane.f32.xlu0 %v3430
        %v3447 = vpop.xlane.xlu0 %3446
        %3448 = vmax.xlane.f32.xlu0 %v3431
        %v3449 = vpop.xlane.xlu0 %3448
        %3450 = vmax.xlane.f32.xlu0 %v3432
        %v3451 = vpop.xlane.xlu0 %3450
        %3452 = vmax.xlane.f32.xlu0 %v3433
        %v3453 = vpop.xlane.xlu0 %3452
        %3454 = vmax.xlane.f32.xlu0 %v3434
        %v3455 = vpop.xlane.xlu0 %3454
        %3456 = vmax.xlane.f32.xlu0 %v3435
        %v3457 = vpop.xlane.xlu0 %3456
        %3458 = vmax.xlane.f32.xlu0 %v3436
        %v3459 = vpop.xlane.xlu0 %3458
        %3460 = vmax.xlane.f32.xlu0 %v3437
        %v3461 = vpop.xlane.xlu0 %3460
        %3462 = vmax.xlane.f32.xlu0 %v3438
        %v3463 = vpop.xlane.xlu0 %3462
        %3464 = vmax.xlane.f32.xlu0 %v3439
        %v3465 = vpop.xlane.xlu0 %3464
        %3466 = vmax.xlane.f32.xlu0 %v3440
        %v3467 = vpop.xlane.xlu0 %3466
        %3468 = vmax.xlane.f32.xlu0 %v3441
        %v3469 = vpop.xlane.xlu0 %3468
        %3470 = vmax.xlane.f32.xlu0 %v3442
        %v3471 = vpop.xlane.xlu0 %3470
        %3472 = vmax.xlane.f32.xlu0 %v3443
        %v3473 = vpop.xlane.xlu0 %3472
        %3474 = vmax.xlane.f32.xlu0 %v3444
        %v3475 = vpop.xlane.xlu0 %3474
        %3476 = vmax.xlane.f32.xlu0 %v3445
        %v3477 = vpop.xlane.xlu0 %3476
        %v3478 = vlaneseq
        %v3479 = vshrl.u32 %v3478, 7
        %v3480 = vsub.s32 0, %v3479
        %v3481 = vrot.slane %v1137, %v3480
        %v3482 = vmul.f32 %v1555, %v3481
        %v3483 = vmul.f32 %v1556, %v3481
        %v3484 = vmul.f32 %v1557, %v3481
        %v3485 = vmul.f32 %v1558, %v3481
        %v3486 = vmul.f32 %v1559, %v3481
        %v3487 = vmul.f32 %v1560, %v3481
        %v3488 = vmul.f32 %v1561, %v3481
        %v3489 = vmul.f32 %v1562, %v3481
        %v3490 = vmul.f32 %v1563, %v3481
        %v3491 = vmul.f32 %v1564, %v3481
        %v3492 = vmul.f32 %v1565, %v3481
        %v3493 = vmul.f32 %v1566, %v3481
        %v3494 = vmul.f32 %v1567, %v3481
        %v3495 = vmul.f32 %v1568, %v3481
        %v3496 = vmul.f32 %v1569, %v3481
        %v3497 = vmul.f32 %v1570, %v3481
        %v3498 = vsel %vm1459, %v3482, -1e+30
        %v3499 = vsel %vm1460, %v3483, -1e+30
        %v3500 = vsel %vm1461, %v3484, -1e+30
        %v3501 = vsel %vm1462, %v3485, -1e+30
        %v3502 = vsel %vm1463, %v3486, -1e+30
        %v3503 = vsel %vm1464, %v3487, -1e+30
        %v3504 = vsel %vm1465, %v3488, -1e+30
        %v3505 = vsel %vm1466, %v3489, -1e+30
        %v3506 = vsel %vm1467, %v3490, -1e+30
        %v3507 = vsel %vm1468, %v3491, -1e+30
        %v3508 = vsel %vm1469, %v3492, -1e+30
        %v3509 = vsel %vm1470, %v3493, -1e+30
        %v3510 = vsel %vm1471, %v3494, -1e+30
        %v3511 = vsel %vm1472, %v3495, -1e+30
        %v3512 = vsel %vm1473, %v3496, -1e+30
        %v3513 = vsel %vm1474, %v3497, -1e+30
        %3514 = vmax.xlane.f32.xlu0 %v3498
        %v3515 = vpop.xlane.xlu0 %3514
        %3516 = vmax.xlane.f32.xlu0 %v3499
        %v3517 = vpop.xlane.xlu0 %3516
        %3518 = vmax.xlane.f32.xlu0 %v3500
        %v3519 = vpop.xlane.xlu0 %3518
        %3520 = vmax.xlane.f32.xlu0 %v3501
        %v3521 = vpop.xlane.xlu0 %3520
        %3522 = vmax.xlane.f32.xlu0 %v3502
        %v3523 = vpop.xlane.xlu0 %3522
        %3524 = vmax.xlane.f32.xlu0 %v3503
        %v3525 = vpop.xlane.xlu0 %3524
        %3526 = vmax.xlane.f32.xlu0 %v3504
        %v3527 = vpop.xlane.xlu0 %3526
        %3528 = vmax.xlane.f32.xlu0 %v3505
        %v3529 = vpop.xlane.xlu0 %3528
        %3530 = vmax.xlane.f32.xlu0 %v3506
        %v3531 = vpop.xlane.xlu0 %3530
        %3532 = vmax.xlane.f32.xlu0 %v3507
        %v3533 = vpop.xlane.xlu0 %3532
        %3534 = vmax.xlane.f32.xlu0 %v3508
        %v3535 = vpop.xlane.xlu0 %3534
        %3536 = vmax.xlane.f32.xlu0 %v3509
        %v3537 = vpop.xlane.xlu0 %3536
        %3538 = vmax.xlane.f32.xlu0 %v3510
        %v3539 = vpop.xlane.xlu0 %3538
        %3540 = vmax.xlane.f32.xlu0 %v3511
        %v3541 = vpop.xlane.xlu0 %3540
        %3542 = vmax.xlane.f32.xlu0 %v3512
        %v3543 = vpop.xlane.xlu0 %3542
        %3544 = vmax.xlane.f32.xlu0 %v3513
        %v3545 = vpop.xlane.xlu0 %3544
        %v3546 = vlaneseq
        %v3547 = vshrl.u32 %v3546, 7
        %v3548 = vsub.s32 1, %v3547
        %v3549 = vrot.slane %v1137, %v3548
        %v3550 = vmul.f32 %v1555, %v3549
        %v3551 = vmul.f32 %v1556, %v3549
        %v3552 = vmul.f32 %v1557, %v3549
        %v3553 = vmul.f32 %v1558, %v3549
        %v3554 = vmul.f32 %v1559, %v3549
        %v3555 = vmul.f32 %v1560, %v3549
        %v3556 = vmul.f32 %v1561, %v3549
        %v3557 = vmul.f32 %v1562, %v3549
        %v3558 = vmul.f32 %v1563, %v3549
        %v3559 = vmul.f32 %v1564, %v3549
        %v3560 = vmul.f32 %v1565, %v3549
        %v3561 = vmul.f32 %v1566, %v3549
        %v3562 = vmul.f32 %v1567, %v3549
        %v3563 = vmul.f32 %v1568, %v3549
        %v3564 = vmul.f32 %v1569, %v3549
        %v3565 = vmul.f32 %v1570, %v3549
        %v3566 = vsel %vm1459, %v3550, -1e+30
        %v3567 = vsel %vm1460, %v3551, -1e+30
        %v3568 = vsel %vm1461, %v3552, -1e+30
        %v3569 = vsel %vm1462, %v3553, -1e+30
        %v3570 = vsel %vm1463, %v3554, -1e+30
        %v3571 = vsel %vm1464, %v3555, -1e+30
        %v3572 = vsel %vm1465, %v3556, -1e+30
        %v3573 = vsel %vm1466, %v3557, -1e+30
        %v3574 = vsel %vm1467, %v3558, -1e+30
        %v3575 = vsel %vm1468, %v3559, -1e+30
        %v3576 = vsel %vm1469, %v3560, -1e+30
        %v3577 = vsel %vm1470, %v3561, -1e+30
        %v3578 = vsel %vm1471, %v3562, -1e+30
        %v3579 = vsel %vm1472, %v3563, -1e+30
        %v3580 = vsel %vm1473, %v3564, -1e+30
        %v3581 = vsel %vm1474, %v3565, -1e+30
        %3582 = vmax.xlane.f32.xlu0 %v3566
        %v3583 = vpop.xlane.xlu0 %3582
        %3584 = vmax.xlane.f32.xlu0 %v3567
        %v3585 = vpop.xlane.xlu0 %3584
        %3586 = vmax.xlane.f32.xlu0 %v3568
        %v3587 = vpop.xlane.xlu0 %3586
        %3588 = vmax.xlane.f32.xlu0 %v3569
        %v3589 = vpop.xlane.xlu0 %3588
        %3590 = vmax.xlane.f32.xlu0 %v3570
        %v3591 = vpop.xlane.xlu0 %3590
        %3592 = vmax.xlane.f32.xlu0 %v3571
        %v3593 = vpop.xlane.xlu0 %3592
        %3594 = vmax.xlane.f32.xlu0 %v3572
        %v3595 = vpop.xlane.xlu0 %3594
        %3596 = vmax.xlane.f32.xlu0 %v3573
        %v3597 = vpop.xlane.xlu0 %3596
        %3598 = vmax.xlane.f32.xlu0 %v3574
        %v3599 = vpop.xlane.xlu0 %3598
        %3600 = vmax.xlane.f32.xlu0 %v3575
        %v3601 = vpop.xlane.xlu0 %3600
        %3602 = vmax.xlane.f32.xlu0 %v3576
        %v3603 = vpop.xlane.xlu0 %3602
        %3604 = vmax.xlane.f32.xlu0 %v3577
        %v3605 = vpop.xlane.xlu0 %3604
        %3606 = vmax.xlane.f32.xlu0 %v3578
        %v3607 = vpop.xlane.xlu0 %3606
        %3608 = vmax.xlane.f32.xlu0 %v3579
        %v3609 = vpop.xlane.xlu0 %3608
        %3610 = vmax.xlane.f32.xlu0 %v3580
        %v3611 = vpop.xlane.xlu0 %3610
        %3612 = vmax.xlane.f32.xlu0 %v3581
        %v3613 = vpop.xlane.xlu0 %3612
        %v3614 = vlaneseq
        %v3615 = vshrl.u32 %v3614, 7
        %v3616 = vsub.s32 2, %v3615
        %v3617 = vrot.slane %v1137, %v3616
        %v3618 = vmul.f32 %v1555, %v3617
        %v3619 = vmul.f32 %v1556, %v3617
        %v3620 = vmul.f32 %v1557, %v3617
        %v3621 = vmul.f32 %v1558, %v3617
        %v3622 = vmul.f32 %v1559, %v3617
        %v3623 = vmul.f32 %v1560, %v3617
        %v3624 = vmul.f32 %v1561, %v3617
        %v3625 = vmul.f32 %v1562, %v3617
        %v3626 = vmul.f32 %v1563, %v3617
        %v3627 = vmul.f32 %v1564, %v3617
        %v3628 = vmul.f32 %v1565, %v3617
        %v3629 = vmul.f32 %v1566, %v3617
        %v3630 = vmul.f32 %v1567, %v3617
        %v3631 = vmul.f32 %v1568, %v3617
        %v3632 = vmul.f32 %v1569, %v3617
        %v3633 = vmul.f32 %v1570, %v3617
        %v3634 = vsel %vm1459, %v3618, -1e+30
        %v3635 = vsel %vm1460, %v3619, -1e+30
        %v3636 = vsel %vm1461, %v3620, -1e+30
        %v3637 = vsel %vm1462, %v3621, -1e+30
        %v3638 = vsel %vm1463, %v3622, -1e+30
        %v3639 = vsel %vm1464, %v3623, -1e+30
        %v3640 = vsel %vm1465, %v3624, -1e+30
        %v3641 = vsel %vm1466, %v3625, -1e+30
        %v3642 = vsel %vm1467, %v3626, -1e+30
        %v3643 = vsel %vm1468, %v3627, -1e+30
        %v3644 = vsel %vm1469, %v3628, -1e+30
        %v3645 = vsel %vm1470, %v3629, -1e+30
        %v3646 = vsel %vm1471, %v3630, -1e+30
        %v3647 = vsel %vm1472, %v3631, -1e+30
        %v3648 = vsel %vm1473, %v3632, -1e+30
        %v3649 = vsel %vm1474, %v3633, -1e+30
        %3650 = vmax.xlane.f32.xlu0 %v3634
        %v3651 = vpop.xlane.xlu0 %3650
        %3652 = vmax.xlane.f32.xlu0 %v3635
        %v3653 = vpop.xlane.xlu0 %3652
        %3654 = vmax.xlane.f32.xlu0 %v3636
        %v3655 = vpop.xlane.xlu0 %3654
        %3656 = vmax.xlane.f32.xlu0 %v3637
        %v3657 = vpop.xlane.xlu0 %3656
        %3658 = vmax.xlane.f32.xlu0 %v3638
        %v3659 = vpop.xlane.xlu0 %3658
        %3660 = vmax.xlane.f32.xlu0 %v3639
        %v3661 = vpop.xlane.xlu0 %3660
        %3662 = vmax.xlane.f32.xlu0 %v3640
        %v3663 = vpop.xlane.xlu0 %3662
        %3664 = vmax.xlane.f32.xlu0 %v3641
        %v3665 = vpop.xlane.xlu0 %3664
        %3666 = vmax.xlane.f32.xlu0 %v3642
        %v3667 = vpop.xlane.xlu0 %3666
        %3668 = vmax.xlane.f32.xlu0 %v3643
        %v3669 = vpop.xlane.xlu0 %3668
        %3670 = vmax.xlane.f32.xlu0 %v3644
        %v3671 = vpop.xlane.xlu0 %3670
        %3672 = vmax.xlane.f32.xlu0 %v3645
        %v3673 = vpop.xlane.xlu0 %3672
        %3674 = vmax.xlane.f32.xlu0 %v3646
        %v3675 = vpop.xlane.xlu0 %3674
        %3676 = vmax.xlane.f32.xlu0 %v3647
        %v3677 = vpop.xlane.xlu0 %3676
        %3678 = vmax.xlane.f32.xlu0 %v3648
        %v3679 = vpop.xlane.xlu0 %3678
        %3680 = vmax.xlane.f32.xlu0 %v3649
        %v3681 = vpop.xlane.xlu0 %3680
        %v3682 = vlaneseq
        %v3683 = vshrl.u32 %v3682, 7
        %v3684 = vsub.s32 3, %v3683
        %v3685 = vrot.slane %v1137, %v3684
        %v3686 = vmul.f32 %v1555, %v3685
        %v3687 = vmul.f32 %v1556, %v3685
        %v3688 = vmul.f32 %v1557, %v3685
        %v3689 = vmul.f32 %v1558, %v3685
        %v3690 = vmul.f32 %v1559, %v3685
        %v3691 = vmul.f32 %v1560, %v3685
        %v3692 = vmul.f32 %v1561, %v3685
        %v3693 = vmul.f32 %v1562, %v3685
        %v3694 = vmul.f32 %v1563, %v3685
        %v3695 = vmul.f32 %v1564, %v3685
        %v3696 = vmul.f32 %v1565, %v3685
        %v3697 = vmul.f32 %v1566, %v3685
        %v3698 = vmul.f32 %v1567, %v3685
        %v3699 = vmul.f32 %v1568, %v3685
        %v3700 = vmul.f32 %v1569, %v3685
        %v3701 = vmul.f32 %v1570, %v3685
        %v3702 = vsel %vm1459, %v3686, -1e+30
        %v3703 = vsel %vm1460, %v3687, -1e+30
        %v3704 = vsel %vm1461, %v3688, -1e+30
        %v3705 = vsel %vm1462, %v3689, -1e+30
        %v3706 = vsel %vm1463, %v3690, -1e+30
        %v3707 = vsel %vm1464, %v3691, -1e+30
        %v3708 = vsel %vm1465, %v3692, -1e+30
        %v3709 = vsel %vm1466, %v3693, -1e+30
        %v3710 = vsel %vm1467, %v3694, -1e+30
        %v3711 = vsel %vm1468, %v3695, -1e+30
        %v3712 = vsel %vm1469, %v3696, -1e+30
        %v3713 = vsel %vm1470, %v3697, -1e+30
        %v3714 = vsel %vm1471, %v3698, -1e+30
        %v3715 = vsel %vm1472, %v3699, -1e+30
        %v3716 = vsel %vm1473, %v3700, -1e+30
        %v3717 = vsel %vm1474, %v3701, -1e+30
        %3718 = vmax.xlane.f32.xlu0 %v3702
        %v3719 = vpop.xlane.xlu0 %3718
        %3720 = vmax.xlane.f32.xlu0 %v3703
        %v3721 = vpop.xlane.xlu0 %3720
        %3722 = vmax.xlane.f32.xlu0 %v3704
        %v3723 = vpop.xlane.xlu0 %3722
        %3724 = vmax.xlane.f32.xlu0 %v3705
        %v3725 = vpop.xlane.xlu0 %3724
        %3726 = vmax.xlane.f32.xlu0 %v3706
        %v3727 = vpop.xlane.xlu0 %3726
        %3728 = vmax.xlane.f32.xlu0 %v3707
        %v3729 = vpop.xlane.xlu0 %3728
        %3730 = vmax.xlane.f32.xlu0 %v3708
        %v3731 = vpop.xlane.xlu0 %3730
        %3732 = vmax.xlane.f32.xlu0 %v3709
        %v3733 = vpop.xlane.xlu0 %3732
        %3734 = vmax.xlane.f32.xlu0 %v3710
        %v3735 = vpop.xlane.xlu0 %3734
        %3736 = vmax.xlane.f32.xlu0 %v3711
        %v3737 = vpop.xlane.xlu0 %3736
        %3738 = vmax.xlane.f32.xlu0 %v3712
        %v3739 = vpop.xlane.xlu0 %3738
        %3740 = vmax.xlane.f32.xlu0 %v3713
        %v3741 = vpop.xlane.xlu0 %3740
        %3742 = vmax.xlane.f32.xlu0 %v3714
        %v3743 = vpop.xlane.xlu0 %3742
        %3744 = vmax.xlane.f32.xlu0 %v3715
        %v3745 = vpop.xlane.xlu0 %3744
        %3746 = vmax.xlane.f32.xlu0 %v3716
        %v3747 = vpop.xlane.xlu0 %3746
        %3748 = vmax.xlane.f32.xlu0 %v3717
        %v3749 = vpop.xlane.xlu0 %3748
        %v3750 = vlaneseq
        %v3751 = vshrl.u32 %v3750, 7
        %v3752 = vsub.s32 4, %v3751
        %v3753 = vrot.slane %v1137, %v3752
        %v3754 = vmul.f32 %v1555, %v3753
        %v3755 = vmul.f32 %v1556, %v3753
        %v3756 = vmul.f32 %v1557, %v3753
        %v3757 = vmul.f32 %v1558, %v3753
        %v3758 = vmul.f32 %v1559, %v3753
        %v3759 = vmul.f32 %v1560, %v3753
        %v3760 = vmul.f32 %v1561, %v3753
        %v3761 = vmul.f32 %v1562, %v3753
        %v3762 = vmul.f32 %v1563, %v3753
        %v3763 = vmul.f32 %v1564, %v3753
        %v3764 = vmul.f32 %v1565, %v3753
        %v3765 = vmul.f32 %v1566, %v3753
        %v3766 = vmul.f32 %v1567, %v3753
        %v3767 = vmul.f32 %v1568, %v3753
        %v3768 = vmul.f32 %v1569, %v3753
        %v3769 = vmul.f32 %v1570, %v3753
        %v3770 = vsel %vm1459, %v3754, -1e+30
        %v3771 = vsel %vm1460, %v3755, -1e+30
        %v3772 = vsel %vm1461, %v3756, -1e+30
        %v3773 = vsel %vm1462, %v3757, -1e+30
        %v3774 = vsel %vm1463, %v3758, -1e+30
        %v3775 = vsel %vm1464, %v3759, -1e+30
        %v3776 = vsel %vm1465, %v3760, -1e+30
        %v3777 = vsel %vm1466, %v3761, -1e+30
        %v3778 = vsel %vm1467, %v3762, -1e+30
        %v3779 = vsel %vm1468, %v3763, -1e+30
        %v3780 = vsel %vm1469, %v3764, -1e+30
        %v3781 = vsel %vm1470, %v3765, -1e+30
        %v3782 = vsel %vm1471, %v3766, -1e+30
        %v3783 = vsel %vm1472, %v3767, -1e+30
        %v3784 = vsel %vm1473, %v3768, -1e+30
        %v3785 = vsel %vm1474, %v3769, -1e+30
        %3786 = vmax.xlane.f32.xlu0 %v3770
        %v3787 = vpop.xlane.xlu0 %3786
        %3788 = vmax.xlane.f32.xlu0 %v3771
        %v3789 = vpop.xlane.xlu0 %3788
        %3790 = vmax.xlane.f32.xlu0 %v3772
        %v3791 = vpop.xlane.xlu0 %3790
        %3792 = vmax.xlane.f32.xlu0 %v3773
        %v3793 = vpop.xlane.xlu0 %3792
        %3794 = vmax.xlane.f32.xlu0 %v3774
        %v3795 = vpop.xlane.xlu0 %3794
        %3796 = vmax.xlane.f32.xlu0 %v3775
        %v3797 = vpop.xlane.xlu0 %3796
        %3798 = vmax.xlane.f32.xlu0 %v3776
        %v3799 = vpop.xlane.xlu0 %3798
        %3800 = vmax.xlane.f32.xlu0 %v3777
        %v3801 = vpop.xlane.xlu0 %3800
        %3802 = vmax.xlane.f32.xlu0 %v3778
        %v3803 = vpop.xlane.xlu0 %3802
        %3804 = vmax.xlane.f32.xlu0 %v3779
        %v3805 = vpop.xlane.xlu0 %3804
        %3806 = vmax.xlane.f32.xlu0 %v3780
        %v3807 = vpop.xlane.xlu0 %3806
        %3808 = vmax.xlane.f32.xlu0 %v3781
        %v3809 = vpop.xlane.xlu0 %3808
        %3810 = vmax.xlane.f32.xlu0 %v3782
        %v3811 = vpop.xlane.xlu0 %3810
        %3812 = vmax.xlane.f32.xlu0 %v3783
        %v3813 = vpop.xlane.xlu0 %3812
        %3814 = vmax.xlane.f32.xlu0 %v3784
        %v3815 = vpop.xlane.xlu0 %3814
        %3816 = vmax.xlane.f32.xlu0 %v3785
        %v3817 = vpop.xlane.xlu0 %3816
        %v3818 = vlaneseq
        %v3819 = vshrl.u32 %v3818, 7
        %v3820 = vsub.s32 5, %v3819
        %v3821 = vrot.slane %v1137, %v3820
        %v3822 = vmul.f32 %v1555, %v3821
        %v3823 = vmul.f32 %v1556, %v3821
        %v3824 = vmul.f32 %v1557, %v3821
        %v3825 = vmul.f32 %v1558, %v3821
        %v3826 = vmul.f32 %v1559, %v3821
        %v3827 = vmul.f32 %v1560, %v3821
        %v3828 = vmul.f32 %v1561, %v3821
        %v3829 = vmul.f32 %v1562, %v3821
        %v3830 = vmul.f32 %v1563, %v3821
        %v3831 = vmul.f32 %v1564, %v3821
        %v3832 = vmul.f32 %v1565, %v3821
        %v3833 = vmul.f32 %v1566, %v3821
        %v3834 = vmul.f32 %v1567, %v3821
        %v3835 = vmul.f32 %v1568, %v3821
        %v3836 = vmul.f32 %v1569, %v3821
        %v3837 = vmul.f32 %v1570, %v3821
        %v3838 = vsel %vm1459, %v3822, -1e+30
        %v3839 = vsel %vm1460, %v3823, -1e+30
        %v3840 = vsel %vm1461, %v3824, -1e+30
        %v3841 = vsel %vm1462, %v3825, -1e+30
        %v3842 = vsel %vm1463, %v3826, -1e+30
        %v3843 = vsel %vm1464, %v3827, -1e+30
        %v3844 = vsel %vm1465, %v3828, -1e+30
        %v3845 = vsel %vm1466, %v3829, -1e+30
        %v3846 = vsel %vm1467, %v3830, -1e+30
        %v3847 = vsel %vm1468, %v3831, -1e+30
        %v3848 = vsel %vm1469, %v3832, -1e+30
        %v3849 = vsel %vm1470, %v3833, -1e+30
        %v3850 = vsel %vm1471, %v3834, -1e+30
        %v3851 = vsel %vm1472, %v3835, -1e+30
        %v3852 = vsel %vm1473, %v3836, -1e+30
        %v3853 = vsel %vm1474, %v3837, -1e+30
        %3854 = vmax.xlane.f32.xlu0 %v3838
        %v3855 = vpop.xlane.xlu0 %3854
        %3856 = vmax.xlane.f32.xlu0 %v3839
        %v3857 = vpop.xlane.xlu0 %3856
        %3858 = vmax.xlane.f32.xlu0 %v3840
        %v3859 = vpop.xlane.xlu0 %3858
        %3860 = vmax.xlane.f32.xlu0 %v3841
        %v3861 = vpop.xlane.xlu0 %3860
        %3862 = vmax.xlane.f32.xlu0 %v3842
        %v3863 = vpop.xlane.xlu0 %3862
        %3864 = vmax.xlane.f32.xlu0 %v3843
        %v3865 = vpop.xlane.xlu0 %3864
        %3866 = vmax.xlane.f32.xlu0 %v3844
        %v3867 = vpop.xlane.xlu0 %3866
        %3868 = vmax.xlane.f32.xlu0 %v3845
        %v3869 = vpop.xlane.xlu0 %3868
        %3870 = vmax.xlane.f32.xlu0 %v3846
        %v3871 = vpop.xlane.xlu0 %3870
        %3872 = vmax.xlane.f32.xlu0 %v3847
        %v3873 = vpop.xlane.xlu0 %3872
        %3874 = vmax.xlane.f32.xlu0 %v3848
        %v3875 = vpop.xlane.xlu0 %3874
        %3876 = vmax.xlane.f32.xlu0 %v3849
        %v3877 = vpop.xlane.xlu0 %3876
        %3878 = vmax.xlane.f32.xlu0 %v3850
        %v3879 = vpop.xlane.xlu0 %3878
        %3880 = vmax.xlane.f32.xlu0 %v3851
        %v3881 = vpop.xlane.xlu0 %3880
        %3882 = vmax.xlane.f32.xlu0 %v3852
        %v3883 = vpop.xlane.xlu0 %3882
        %3884 = vmax.xlane.f32.xlu0 %v3853
        %v3885 = vpop.xlane.xlu0 %3884
        %v3886 = vlaneseq
        %v3887 = vshrl.u32 %v3886, 7
        %v3888 = vsub.s32 6, %v3887
        %v3889 = vrot.slane %v1137, %v3888
        %v3890 = vmul.f32 %v1555, %v3889
        %v3891 = vmul.f32 %v1556, %v3889
        %v3892 = vmul.f32 %v1557, %v3889
        %v3893 = vmul.f32 %v1558, %v3889
        %v3894 = vmul.f32 %v1559, %v3889
        %v3895 = vmul.f32 %v1560, %v3889
        %v3896 = vmul.f32 %v1561, %v3889
        %v3897 = vmul.f32 %v1562, %v3889
        %v3898 = vmul.f32 %v1563, %v3889
        %v3899 = vmul.f32 %v1564, %v3889
        %v3900 = vmul.f32 %v1565, %v3889
        %v3901 = vmul.f32 %v1566, %v3889
        %v3902 = vmul.f32 %v1567, %v3889
        %v3903 = vmul.f32 %v1568, %v3889
        %v3904 = vmul.f32 %v1569, %v3889
        %v3905 = vmul.f32 %v1570, %v3889
        %v3906 = vsel %vm1459, %v3890, -1e+30
        %v3907 = vsel %vm1460, %v3891, -1e+30
        %v3908 = vsel %vm1461, %v3892, -1e+30
        %v3909 = vsel %vm1462, %v3893, -1e+30
        %v3910 = vsel %vm1463, %v3894, -1e+30
        %v3911 = vsel %vm1464, %v3895, -1e+30
        %v3912 = vsel %vm1465, %v3896, -1e+30
        %v3913 = vsel %vm1466, %v3897, -1e+30
        %v3914 = vsel %vm1467, %v3898, -1e+30
        %v3915 = vsel %vm1468, %v3899, -1e+30
        %v3916 = vsel %vm1469, %v3900, -1e+30
        %v3917 = vsel %vm1470, %v3901, -1e+30
        %v3918 = vsel %vm1471, %v3902, -1e+30
        %v3919 = vsel %vm1472, %v3903, -1e+30
        %v3920 = vsel %vm1473, %v3904, -1e+30
        %v3921 = vsel %vm1474, %v3905, -1e+30
        %3922 = vmax.xlane.f32.xlu0 %v3906
        %v3923 = vpop.xlane.xlu0 %3922
        %3924 = vmax.xlane.f32.xlu0 %v3907
        %v3925 = vpop.xlane.xlu0 %3924
        %3926 = vmax.xlane.f32.xlu0 %v3908
        %v3927 = vpop.xlane.xlu0 %3926
        %3928 = vmax.xlane.f32.xlu0 %v3909
        %v3929 = vpop.xlane.xlu0 %3928
        %3930 = vmax.xlane.f32.xlu0 %v3910
        %v3931 = vpop.xlane.xlu0 %3930
        %3932 = vmax.xlane.f32.xlu0 %v3911
        %v3933 = vpop.xlane.xlu0 %3932
        %3934 = vmax.xlane.f32.xlu0 %v3912
        %v3935 = vpop.xlane.xlu0 %3934
        %3936 = vmax.xlane.f32.xlu0 %v3913
        %v3937 = vpop.xlane.xlu0 %3936
        %3938 = vmax.xlane.f32.xlu0 %v3914
        %v3939 = vpop.xlane.xlu0 %3938
        %3940 = vmax.xlane.f32.xlu0 %v3915
        %v3941 = vpop.xlane.xlu0 %3940
        %3942 = vmax.xlane.f32.xlu0 %v3916
        %v3943 = vpop.xlane.xlu0 %3942
        %3944 = vmax.xlane.f32.xlu0 %v3917
        %v3945 = vpop.xlane.xlu0 %3944
        %3946 = vmax.xlane.f32.xlu0 %v3918
        %v3947 = vpop.xlane.xlu0 %3946
        %3948 = vmax.xlane.f32.xlu0 %v3919
        %v3949 = vpop.xlane.xlu0 %3948
        %3950 = vmax.xlane.f32.xlu0 %v3920
        %v3951 = vpop.xlane.xlu0 %3950
        %3952 = vmax.xlane.f32.xlu0 %v3921
        %v3953 = vpop.xlane.xlu0 %3952
        %v3954 = vlaneseq
        %v3955 = vshrl.u32 %v3954, 7
        %v3956 = vsub.s32 7, %v3955
        %v3957 = vrot.slane %v1137, %v3956
        %v3958 = vmul.f32 %v1555, %v3957
        %v3959 = vmul.f32 %v1556, %v3957
        %v3960 = vmul.f32 %v1557, %v3957
        %v3961 = vmul.f32 %v1558, %v3957
        %v3962 = vmul.f32 %v1559, %v3957
        %v3963 = vmul.f32 %v1560, %v3957
        %v3964 = vmul.f32 %v1561, %v3957
        %v3965 = vmul.f32 %v1562, %v3957
        %v3966 = vmul.f32 %v1563, %v3957
        %v3967 = vmul.f32 %v1564, %v3957
        %v3968 = vmul.f32 %v1565, %v3957
        %v3969 = vmul.f32 %v1566, %v3957
        %v3970 = vmul.f32 %v1567, %v3957
        %v3971 = vmul.f32 %v1568, %v3957
        %v3972 = vmul.f32 %v1569, %v3957
        %v3973 = vmul.f32 %v1570, %v3957
        %v3974 = vsel %vm1459, %v3958, -1e+30
        %v3975 = vsel %vm1460, %v3959, -1e+30
        %v3976 = vsel %vm1461, %v3960, -1e+30
        %v3977 = vsel %vm1462, %v3961, -1e+30
        %v3978 = vsel %vm1463, %v3962, -1e+30
        %v3979 = vsel %vm1464, %v3963, -1e+30
        %v3980 = vsel %vm1465, %v3964, -1e+30
        %v3981 = vsel %vm1466, %v3965, -1e+30
        %v3982 = vsel %vm1467, %v3966, -1e+30
        %v3983 = vsel %vm1468, %v3967, -1e+30
        %v3984 = vsel %vm1469, %v3968, -1e+30
        %v3985 = vsel %vm1470, %v3969, -1e+30
        %v3986 = vsel %vm1471, %v3970, -1e+30
        %v3987 = vsel %vm1472, %v3971, -1e+30
        %v3988 = vsel %vm1473, %v3972, -1e+30
        %v3989 = vsel %vm1474, %v3973, -1e+30
        %3990 = vmax.xlane.f32.xlu0 %v3974
        %v3991 = vpop.xlane.xlu0 %3990
        %3992 = vmax.xlane.f32.xlu0 %v3975
        %v3993 = vpop.xlane.xlu0 %3992
        %3994 = vmax.xlane.f32.xlu0 %v3976
        %v3995 = vpop.xlane.xlu0 %3994
        %3996 = vmax.xlane.f32.xlu0 %v3977
        %v3997 = vpop.xlane.xlu0 %3996
        %3998 = vmax.xlane.f32.xlu0 %v3978
        %v3999 = vpop.xlane.xlu0 %3998
        %4000 = vmax.xlane.f32.xlu0 %v3979
        %v4001 = vpop.xlane.xlu0 %4000
        %4002 = vmax.xlane.f32.xlu0 %v3980
        %v4003 = vpop.xlane.xlu0 %4002
        %4004 = vmax.xlane.f32.xlu0 %v3981
        %v4005 = vpop.xlane.xlu0 %4004
        %4006 = vmax.xlane.f32.xlu0 %v3982
        %v4007 = vpop.xlane.xlu0 %4006
        %4008 = vmax.xlane.f32.xlu0 %v3983
        %v4009 = vpop.xlane.xlu0 %4008
        %4010 = vmax.xlane.f32.xlu0 %v3984
        %v4011 = vpop.xlane.xlu0 %4010
        %4012 = vmax.xlane.f32.xlu0 %v3985
        %v4013 = vpop.xlane.xlu0 %4012
        %4014 = vmax.xlane.f32.xlu0 %v3986
        %v4015 = vpop.xlane.xlu0 %4014
        %4016 = vmax.xlane.f32.xlu0 %v3987
        %v4017 = vpop.xlane.xlu0 %4016
        %4018 = vmax.xlane.f32.xlu0 %v3988
        %v4019 = vpop.xlane.xlu0 %4018
        %4020 = vmax.xlane.f32.xlu0 %v3989
        %v4021 = vpop.xlane.xlu0 %4020
        %v4022 = vld [vmem:[#allocation3] sm:$0xff]
        %v4023 = vld [vmem:[#allocation3 + $0x8] sm:$0xff]
        %v4024 = vld [vmem:[#allocation3 + $0x10] sm:$0xff]
        %v4025 = vld [vmem:[#allocation3 + $0x18] sm:$0xff]
        %v4026 = vld [vmem:[#allocation3 + $0x20] sm:$0xff]
        %v4027 = vld [vmem:[#allocation3 + $0x28] sm:$0xff]
        %v4028 = vld [vmem:[#allocation3 + $0x30] sm:$0xff]
        %v4029 = vld [vmem:[#allocation3 + $0x38] sm:$0xff]
        %v4030 = vld [vmem:[#allocation3 + $0x40] sm:$0xff]
        %v4031 = vld [vmem:[#allocation3 + $0x48] sm:$0xff]
        %v4032 = vld [vmem:[#allocation3 + $0x50] sm:$0xff]
        %v4033 = vld [vmem:[#allocation3 + $0x58] sm:$0xff]
        %v4034 = vld [vmem:[#allocation3 + $0x60] sm:$0xff]
        %v4035 = vld [vmem:[#allocation3 + $0x68] sm:$0xff]
        %v4036 = vld [vmem:[#allocation3 + $0x70] sm:$0xff]
        %v4037 = vld [vmem:[#allocation3 + $0x78] sm:$0xff]
        %v4038 = vsel %vm1635, %v1883, %v1951
        %v4039 = vsel %vm1635, %v1885, %v1953
        %v4040 = vsel %vm1635, %v1887, %v1955
        %v4041 = vsel %vm1635, %v1889, %v1957
        %v4042 = vsel %vm1635, %v1891, %v1959
        %v4043 = vsel %vm1635, %v1893, %v1961
        %v4044 = vsel %vm1635, %v1895, %v1963
        %v4045 = vsel %vm1635, %v1897, %v1965
        %v4046 = vsel %vm1635, %v1899, %v1967
        %v4047 = vsel %vm1635, %v1901, %v1969
        %v4048 = vsel %vm1635, %v1903, %v1971
        %v4049 = vsel %vm1635, %v1905, %v1973
        %v4050 = vsel %vm1635, %v1907, %v1975
        %v4051 = vsel %vm1635, %v1909, %v1977
        %v4052 = vsel %vm1635, %v1911, %v1979
        %v4053 = vsel %vm1635, %v1913, %v1981
        %vm4054 = vcmask 15360
        %v4055 = vsel %vm4054, %v4038, %v2019
        %v4056 = vsel %vm4054, %v4039, %v2021
        %v4057 = vsel %vm4054, %v4040, %v2023
        %v4058 = vsel %vm4054, %v4041, %v2025
        %v4059 = vsel %vm4054, %v4042, %v2027
        %v4060 = vsel %vm4054, %v4043, %v2029
        %v4061 = vsel %vm4054, %v4044, %v2031
        %v4062 = vsel %vm4054, %v4045, %v2033
        %v4063 = vsel %vm4054, %v4046, %v2035
        %v4064 = vsel %vm4054, %v4047, %v2037
        %v4065 = vsel %vm4054, %v4048, %v2039
        %v4066 = vsel %vm4054, %v4049, %v2041
        %v4067 = vsel %vm4054, %v4050, %v2043
        %v4068 = vsel %vm4054, %v4051, %v2045
        %v4069 = vsel %vm4054, %v4052, %v2047
        %v4070 = vsel %vm4054, %v4053, %v2049
        %vm4071 = vcmask 23552
        %v4072 = vsel %vm4071, %v4055, %v2087
        %v4073 = vsel %vm4071, %v4056, %v2089
        %v4074 = vsel %vm4071, %v4057, %v2091
        %v4075 = vsel %vm4071, %v4058, %v2093
        %v4076 = vsel %vm4071, %v4059, %v2095
        %v4077 = vsel %vm4071, %v4060, %v2097
        %v4078 = vsel %vm4071, %v4061, %v2099
        %v4079 = vsel %vm4071, %v4062, %v2101
        %v4080 = vsel %vm4071, %v4063, %v2103
        %v4081 = vsel %vm4071, %v4064, %v2105
        %v4082 = vsel %vm4071, %v4065, %v2107
        %v4083 = vsel %vm4071, %v4066, %v2109
        %v4084 = vsel %vm4071, %v4067, %v2111
        %v4085 = vsel %vm4071, %v4068, %v2113
        %v4086 = vsel %vm4071, %v4069, %v2115
        %v4087 = vsel %vm4071, %v4070, %v2117
        %vm4088 = vcmask 31744
        %v4089 = vsel %vm4088, %v4072, %v2155
        %v4090 = vsel %vm4088, %v4073, %v2157
        %v4091 = vsel %vm4088, %v4074, %v2159
        %v4092 = vsel %vm4088, %v4075, %v2161
        %v4093 = vsel %vm4088, %v4076, %v2163
        %v4094 = vsel %vm4088, %v4077, %v2165
        %v4095 = vsel %vm4088, %v4078, %v2167
        %v4096 = vsel %vm4088, %v4079, %v2169
        %v4097 = vsel %vm4088, %v4080, %v2171
        %v4098 = vsel %vm4088, %v4081, %v2173
        %v4099 = vsel %vm4088, %v4082, %v2175
        %v4100 = vsel %vm4088, %v4083, %v2177
        %v4101 = vsel %vm4088, %v4084, %v2179
        %v4102 = vsel %vm4088, %v4085, %v2181
        %v4103 = vsel %vm4088, %v4086, %v2183
        %v4104 = vsel %vm4088, %v4087, %v2185
        %vm4105 = vcmask 39936
        %v4106 = vsel %vm4105, %v4089, %v2223
        %v4107 = vsel %vm4105, %v4090, %v2225
        %v4108 = vsel %vm4105, %v4091, %v2227
        %v4109 = vsel %vm4105, %v4092, %v2229
        %v4110 = vsel %vm4105, %v4093, %v2231
        %v4111 = vsel %vm4105, %v4094, %v2233
        %v4112 = vsel %vm4105, %v4095, %v2235
        %v4113 = vsel %vm4105, %v4096, %v2237
        %v4114 = vsel %vm4105, %v4097, %v2239
        %v4115 = vsel %vm4105, %v4098, %v2241
        %v4116 = vsel %vm4105, %v4099, %v2243
        %v4117 = vsel %vm4105, %v4100, %v2245
        %v4118 = vsel %vm4105, %v4101, %v2247
        %v4119 = vsel %vm4105, %v4102, %v2249
        %v4120 = vsel %vm4105, %v4103, %v2251
        %v4121 = vsel %vm4105, %v4104, %v2253
        %vm4122 = vcmask 48128
        %v4123 = vsel %vm4122, %v4106, %v2291
        %v4124 = vsel %vm4122, %v4107, %v2293
        %v4125 = vsel %vm4122, %v4108, %v2295
        %v4126 = vsel %vm4122, %v4109, %v2297
        %v4127 = vsel %vm4122, %v4110, %v2299
        %v4128 = vsel %vm4122, %v4111, %v2301
        %v4129 = vsel %vm4122, %v4112, %v2303
        %v4130 = vsel %vm4122, %v4113, %v2305
        %v4131 = vsel %vm4122, %v4114, %v2307
        %v4132 = vsel %vm4122, %v4115, %v2309
        %v4133 = vsel %vm4122, %v4116, %v2311
        %v4134 = vsel %vm4122, %v4117, %v2313
        %v4135 = vsel %vm4122, %v4118, %v2315
        %v4136 = vsel %vm4122, %v4119, %v2317
        %v4137 = vsel %vm4122, %v4120, %v2319
        %v4138 = vsel %vm4122, %v4121, %v2321
        %vm4139 = vcmask 56320
        %v4140 = vsel %vm4139, %v4123, %v2359
        %v4141 = vsel %vm4139, %v4124, %v2361
        %v4142 = vsel %vm4139, %v4125, %v2363
        %v4143 = vsel %vm4139, %v4126, %v2365
        %v4144 = vsel %vm4139, %v4127, %v2367
        %v4145 = vsel %vm4139, %v4128, %v2369
        %v4146 = vsel %vm4139, %v4129, %v2371
        %v4147 = vsel %vm4139, %v4130, %v2373
        %v4148 = vsel %vm4139, %v4131, %v2375
        %v4149 = vsel %vm4139, %v4132, %v2377
        %v4150 = vsel %vm4139, %v4133, %v2379
        %v4151 = vsel %vm4139, %v4134, %v2381
        %v4152 = vsel %vm4139, %v4135, %v2383
        %v4153 = vsel %vm4139, %v4136, %v2385
        %v4154 = vsel %vm4139, %v4137, %v2387
        %v4155 = vsel %vm4139, %v4138, %v2389
        %vm4156 = vcmask 64512
        %v4157 = vsel %vm4156, %v4140, %v2427
        %v4158 = vsel %vm4156, %v4141, %v2429
        %v4159 = vsel %vm4156, %v4142, %v2431
        %v4160 = vsel %vm4156, %v4143, %v2433
        %v4161 = vsel %vm4156, %v4144, %v2435
        %v4162 = vsel %vm4156, %v4145, %v2437
        %v4163 = vsel %vm4156, %v4146, %v2439
        %v4164 = vsel %vm4156, %v4147, %v2441
        %v4165 = vsel %vm4156, %v4148, %v2443
        %v4166 = vsel %vm4156, %v4149, %v2445
        %v4167 = vsel %vm4156, %v4150, %v2447
        %v4168 = vsel %vm4156, %v4151, %v2449
        %v4169 = vsel %vm4156, %v4152, %v2451
        %v4170 = vsel %vm4156, %v4153, %v2453
        %v4171 = vsel %vm4156, %v4154, %v2455
        %v4172 = vsel %vm4156, %v4155, %v2457
        %vm4173 = vcmask 72704
        %v4174 = vsel %vm4173, %v4157, %v2495
        %v4175 = vsel %vm4173, %v4158, %v2497
        %v4176 = vsel %vm4173, %v4159, %v2499
        %v4177 = vsel %vm4173, %v4160, %v2501
        %v4178 = vsel %vm4173, %v4161, %v2503
        %v4179 = vsel %vm4173, %v4162, %v2505
        %v4180 = vsel %vm4173, %v4163, %v2507
        %v4181 = vsel %vm4173, %v4164, %v2509
        %v4182 = vsel %vm4173, %v4165, %v2511
        %v4183 = vsel %vm4173, %v4166, %v2513
        %v4184 = vsel %vm4173, %v4167, %v2515
        %v4185 = vsel %vm4173, %v4168, %v2517
        %v4186 = vsel %vm4173, %v4169, %v2519
        %v4187 = vsel %vm4173, %v4170, %v2521
        %v4188 = vsel %vm4173, %v4171, %v2523
        %v4189 = vsel %vm4173, %v4172, %v2525
        %vm4190 = vcmask 80896
        %v4191 = vsel %vm4190, %v4174, %v2563
        %v4192 = vsel %vm4190, %v4175, %v2565
        %v4193 = vsel %vm4190, %v4176, %v2567
        %v4194 = vsel %vm4190, %v4177, %v2569
        %v4195 = vsel %vm4190, %v4178, %v2571
        %v4196 = vsel %vm4190, %v4179, %v2573
        %v4197 = vsel %vm4190, %v4180, %v2575
        %v4198 = vsel %vm4190, %v4181, %v2577
        %v4199 = vsel %vm4190, %v4182, %v2579
        %v4200 = vsel %vm4190, %v4183, %v2581
        %v4201 = vsel %vm4190, %v4184, %v2583
        %v4202 = vsel %vm4190, %v4185, %v2585
        %v4203 = vsel %vm4190, %v4186, %v2587
        %v4204 = vsel %vm4190, %v4187, %v2589
        %v4205 = vsel %vm4190, %v4188, %v2591
        %v4206 = vsel %vm4190, %v4189, %v2593
        %vm4207 = vcmask 89088
        %v4208 = vsel %vm4207, %v4191, %v2631
        %v4209 = vsel %vm4207, %v4192, %v2633
        %v4210 = vsel %vm4207, %v4193, %v2635
        %v4211 = vsel %vm4207, %v4194, %v2637
        %v4212 = vsel %vm4207, %v4195, %v2639
        %v4213 = vsel %vm4207, %v4196, %v2641
        %v4214 = vsel %vm4207, %v4197, %v2643
        %v4215 = vsel %vm4207, %v4198, %v2645
        %v4216 = vsel %vm4207, %v4199, %v2647
        %v4217 = vsel %vm4207, %v4200, %v2649
        %v4218 = vsel %vm4207, %v4201, %v2651
        %v4219 = vsel %vm4207, %v4202, %v2653
        %v4220 = vsel %vm4207, %v4203, %v2655
        %v4221 = vsel %vm4207, %v4204, %v2657
        %v4222 = vsel %vm4207, %v4205, %v2659
        %v4223 = vsel %vm4207, %v4206, %v2661
        %vm4224 = vcmask 97280
        %v4225 = vsel %vm4224, %v4208, %v2699
        %v4226 = vsel %vm4224, %v4209, %v2701
        %v4227 = vsel %vm4224, %v4210, %v2703
        %v4228 = vsel %vm4224, %v4211, %v2705
        %v4229 = vsel %vm4224, %v4212, %v2707
        %v4230 = vsel %vm4224, %v4213, %v2709
        %v4231 = vsel %vm4224, %v4214, %v2711
        %v4232 = vsel %vm4224, %v4215, %v2713
        %v4233 = vsel %vm4224, %v4216, %v2715
        %v4234 = vsel %vm4224, %v4217, %v2717
        %v4235 = vsel %vm4224, %v4218, %v2719
        %v4236 = vsel %vm4224, %v4219, %v2721
        %v4237 = vsel %vm4224, %v4220, %v2723
        %v4238 = vsel %vm4224, %v4221, %v2725
        %v4239 = vsel %vm4224, %v4222, %v2727
        %v4240 = vsel %vm4224, %v4223, %v2729
        %vm4241 = vcmask 105472
        %v4242 = vsel %vm4241, %v4225, %v2767
        %v4243 = vsel %vm4241, %v4226, %v2769
        %v4244 = vsel %vm4241, %v4227, %v2771
        %v4245 = vsel %vm4241, %v4228, %v2773
        %v4246 = vsel %vm4241, %v4229, %v2775
        %v4247 = vsel %vm4241, %v4230, %v2777
        %v4248 = vsel %vm4241, %v4231, %v2779
        %v4249 = vsel %vm4241, %v4232, %v2781
        %v4250 = vsel %vm4241, %v4233, %v2783
        %v4251 = vsel %vm4241, %v4234, %v2785
        %v4252 = vsel %vm4241, %v4235, %v2787
        %v4253 = vsel %vm4241, %v4236, %v2789
        %v4254 = vsel %vm4241, %v4237, %v2791
        %v4255 = vsel %vm4241, %v4238, %v2793
        %v4256 = vsel %vm4241, %v4239, %v2795
        %v4257 = vsel %vm4241, %v4240, %v2797
        %vm4258 = vcmask 113664
        %v4259 = vsel %vm4258, %v4242, %v2835
        %v4260 = vsel %vm4258, %v4243, %v2837
        %v4261 = vsel %vm4258, %v4244, %v2839
        %v4262 = vsel %vm4258, %v4245, %v2841
        %v4263 = vsel %vm4258, %v4246, %v2843
        %v4264 = vsel %vm4258, %v4247, %v2845
        %v4265 = vsel %vm4258, %v4248, %v2847
        %v4266 = vsel %vm4258, %v4249, %v2849
        %v4267 = vsel %vm4258, %v4250, %v2851
        %v4268 = vsel %vm4258, %v4251, %v2853
        %v4269 = vsel %vm4258, %v4252, %v2855
        %v4270 = vsel %vm4258, %v4253, %v2857
        %v4271 = vsel %vm4258, %v4254, %v2859
        %v4272 = vsel %vm4258, %v4255, %v2861
        %v4273 = vsel %vm4258, %v4256, %v2863
        %v4274 = vsel %vm4258, %v4257, %v2865
        %vm4275 = vcmask 121856
        %v4276 = vsel %vm4275, %v4259, %v2903
        %v4277 = vsel %vm4275, %v4260, %v2905
        %v4278 = vsel %vm4275, %v4261, %v2907
        %v4279 = vsel %vm4275, %v4262, %v2909
        %v4280 = vsel %vm4275, %v4263, %v2911
        %v4281 = vsel %vm4275, %v4264, %v2913
        %v4282 = vsel %vm4275, %v4265, %v2915
        %v4283 = vsel %vm4275, %v4266, %v2917
        %v4284 = vsel %vm4275, %v4267, %v2919
        %v4285 = vsel %vm4275, %v4268, %v2921
        %v4286 = vsel %vm4275, %v4269, %v2923
        %v4287 = vsel %vm4275, %v4270, %v2925
        %v4288 = vsel %vm4275, %v4271, %v2927
        %v4289 = vsel %vm4275, %v4272, %v2929
        %v4290 = vsel %vm4275, %v4273, %v2931
        %v4291 = vsel %vm4275, %v4274, %v2933
        %v4292 = vsel %vm1635, %v2971, %v3039
        %v4293 = vsel %vm1635, %v2973, %v3041
        %v4294 = vsel %vm1635, %v2975, %v3043
        %v4295 = vsel %vm1635, %v2977, %v3045
        %v4296 = vsel %vm1635, %v2979, %v3047
        %v4297 = vsel %vm1635, %v2981, %v3049
        %v4298 = vsel %vm1635, %v2983, %v3051
        %v4299 = vsel %vm1635, %v2985, %v3053
        %v4300 = vsel %vm1635, %v2987, %v3055
        %v4301 = vsel %vm1635, %v2989, %v3057
        %v4302 = vsel %vm1635, %v2991, %v3059
        %v4303 = vsel %vm1635, %v2993, %v3061
        %v4304 = vsel %vm1635, %v2995, %v3063
        %v4305 = vsel %vm1635, %v2997, %v3065
        %v4306 = vsel %vm1635, %v2999, %v3067
        %v4307 = vsel %vm1635, %v3001, %v3069
        %v4308 = vsel %vm4054, %v4292, %v3107
        %v4309 = vsel %vm4054, %v4293, %v3109
        %v4310 = vsel %vm4054, %v4294, %v3111
        %v4311 = vsel %vm4054, %v4295, %v3113
        %v4312 = vsel %vm4054, %v4296, %v3115
        %v4313 = vsel %vm4054, %v4297, %v3117
        %v4314 = vsel %vm4054, %v4298, %v3119
        %v4315 = vsel %vm4054, %v4299, %v3121
        %v4316 = vsel %vm4054, %v4300, %v3123
        %v4317 = vsel %vm4054, %v4301, %v3125
        %v4318 = vsel %vm4054, %v4302, %v3127
        %v4319 = vsel %vm4054, %v4303, %v3129
        %v4320 = vsel %vm4054, %v4304, %v3131
        %v4321 = vsel %vm4054, %v4305, %v3133
        %v4322 = vsel %vm4054, %v4306, %v3135
        %v4323 = vsel %vm4054, %v4307, %v3137
        %v4324 = vsel %vm4071, %v4308, %v3175
        %v4325 = vsel %vm4071, %v4309, %v3177
        %v4326 = vsel %vm4071, %v4310, %v3179
        %v4327 = vsel %vm4071, %v4311, %v3181
        %v4328 = vsel %vm4071, %v4312, %v3183
        %v4329 = vsel %vm4071, %v4313, %v3185
        %v4330 = vsel %vm4071, %v4314, %v3187
        %v4331 = vsel %vm4071, %v4315, %v3189
        %v4332 = vsel %vm4071, %v4316, %v3191
        %v4333 = vsel %vm4071, %v4317, %v3193
        %v4334 = vsel %vm4071, %v4318, %v3195
        %v4335 = vsel %vm4071, %v4319, %v3197
        %v4336 = vsel %vm4071, %v4320, %v3199
        %v4337 = vsel %vm4071, %v4321, %v3201
        %v4338 = vsel %vm4071, %v4322, %v3203
        %v4339 = vsel %vm4071, %v4323, %v3205
        %v4340 = vsel %vm4088, %v4324, %v3243
        %v4341 = vsel %vm4088, %v4325, %v3245
        %v4342 = vsel %vm4088, %v4326, %v3247
        %v4343 = vsel %vm4088, %v4327, %v3249
        %v4344 = vsel %vm4088, %v4328, %v3251
        %v4345 = vsel %vm4088, %v4329, %v3253
        %v4346 = vsel %vm4088, %v4330, %v3255
        %v4347 = vsel %vm4088, %v4331, %v3257
        %v4348 = vsel %vm4088, %v4332, %v3259
        %v4349 = vsel %vm4088, %v4333, %v3261
        %v4350 = vsel %vm4088, %v4334, %v3263
        %v4351 = vsel %vm4088, %v4335, %v3265
        %v4352 = vsel %vm4088, %v4336, %v3267
        %v4353 = vsel %vm4088, %v4337, %v3269
        %v4354 = vsel %vm4088, %v4338, %v3271
        %v4355 = vsel %vm4088, %v4339, %v3273
        %v4356 = vsel %vm4105, %v4340, %v3311
        %v4357 = vsel %vm4105, %v4341, %v3313
        %v4358 = vsel %vm4105, %v4342, %v3315
        %v4359 = vsel %vm4105, %v4343, %v3317
        %v4360 = vsel %vm4105, %v4344, %v3319
        %v4361 = vsel %vm4105, %v4345, %v3321
        %v4362 = vsel %vm4105, %v4346, %v3323
        %v4363 = vsel %vm4105, %v4347, %v3325
        %v4364 = vsel %vm4105, %v4348, %v3327
        %v4365 = vsel %vm4105, %v4349, %v3329
        %v4366 = vsel %vm4105, %v4350, %v3331
        %v4367 = vsel %vm4105, %v4351, %v3333
        %v4368 = vsel %vm4105, %v4352, %v3335
        %v4369 = vsel %vm4105, %v4353, %v3337
        %v4370 = vsel %vm4105, %v4354, %v3339
        %v4371 = vsel %vm4105, %v4355, %v3341
        %v4372 = vsel %vm4122, %v4356, %v3379
        %v4373 = vsel %vm4122, %v4357, %v3381
        %v4374 = vsel %vm4122, %v4358, %v3383
        %v4375 = vsel %vm4122, %v4359, %v3385
        %v4376 = vsel %vm4122, %v4360, %v3387
        %v4377 = vsel %vm4122, %v4361, %v3389
        %v4378 = vsel %vm4122, %v4362, %v3391
        %v4379 = vsel %vm4122, %v4363, %v3393
        %v4380 = vsel %vm4122, %v4364, %v3395
        %v4381 = vsel %vm4122, %v4365, %v3397
        %v4382 = vsel %vm4122, %v4366, %v3399
        %v4383 = vsel %vm4122, %v4367, %v3401
        %v4384 = vsel %vm4122, %v4368, %v3403
        %v4385 = vsel %vm4122, %v4369, %v3405
        %v4386 = vsel %vm4122, %v4370, %v3407
        %v4387 = vsel %vm4122, %v4371, %v3409
        %v4388 = vsel %vm4139, %v4372, %v3447
        %v4389 = vsel %vm4139, %v4373, %v3449
        %v4390 = vsel %vm4139, %v4374, %v3451
        %v4391 = vsel %vm4139, %v4375, %v3453
        %v4392 = vsel %vm4139, %v4376, %v3455
        %v4393 = vsel %vm4139, %v4377, %v3457
        %v4394 = vsel %vm4139, %v4378, %v3459
        %v4395 = vsel %vm4139, %v4379, %v3461
        %v4396 = vsel %vm4139, %v4380, %v3463
        %v4397 = vsel %vm4139, %v4381, %v3465
        %v4398 = vsel %vm4139, %v4382, %v3467
        %v4399 = vsel %vm4139, %v4383, %v3469
        %v4400 = vsel %vm4139, %v4384, %v3471
        %v4401 = vsel %vm4139, %v4385, %v3473
        %v4402 = vsel %vm4139, %v4386, %v3475
        %v4403 = vsel %vm4139, %v4387, %v3477
        %v4404 = vsel %vm4156, %v4388, %v3515
        %v4405 = vsel %vm4156, %v4389, %v3517
        %v4406 = vsel %vm4156, %v4390, %v3519
        %v4407 = vsel %vm4156, %v4391, %v3521
        %v4408 = vsel %vm4156, %v4392, %v3523
        %v4409 = vsel %vm4156, %v4393, %v3525
        %v4410 = vsel %vm4156, %v4394, %v3527
        %v4411 = vsel %vm4156, %v4395, %v3529
        %v4412 = vsel %vm4156, %v4396, %v3531
        %v4413 = vsel %vm4156, %v4397, %v3533
        %v4414 = vsel %vm4156, %v4398, %v3535
        %v4415 = vsel %vm4156, %v4399, %v3537
        %v4416 = vsel %vm4156, %v4400, %v3539
        %v4417 = vsel %vm4156, %v4401, %v3541
        %v4418 = vsel %vm4156, %v4402, %v3543
        %v4419 = vsel %vm4156, %v4403, %v3545
        %v4420 = vsel %vm4173, %v4404, %v3583
        %v4421 = vsel %vm4173, %v4405, %v3585
        %v4422 = vsel %vm4173, %v4406, %v3587
        %v4423 = vsel %vm4173, %v4407, %v3589
        %v4424 = vsel %vm4173, %v4408, %v3591
        %v4425 = vsel %vm4173, %v4409, %v3593
        %v4426 = vsel %vm4173, %v4410, %v3595
        %v4427 = vsel %vm4173, %v4411, %v3597
        %v4428 = vsel %vm4173, %v4412, %v3599
        %v4429 = vsel %vm4173, %v4413, %v3601
        %v4430 = vsel %vm4173, %v4414, %v3603
        %v4431 = vsel %vm4173, %v4415, %v3605
        %v4432 = vsel %vm4173, %v4416, %v3607
        %v4433 = vsel %vm4173, %v4417, %v3609
        %v4434 = vsel %vm4173, %v4418, %v3611
        %v4435 = vsel %vm4173, %v4419, %v3613
        %v4436 = vsel %vm4190, %v4420, %v3651
        %v4437 = vsel %vm4190, %v4421, %v3653
        %v4438 = vsel %vm4190, %v4422, %v3655
        %v4439 = vsel %vm4190, %v4423, %v3657
        %v4440 = vsel %vm4190, %v4424, %v3659
        %v4441 = vsel %vm4190, %v4425, %v3661
        %v4442 = vsel %vm4190, %v4426, %v3663
        %v4443 = vsel %vm4190, %v4427, %v3665
        %v4444 = vsel %vm4190, %v4428, %v3667
        %v4445 = vsel %vm4190, %v4429, %v3669
        %v4446 = vsel %vm4190, %v4430, %v3671
        %v4447 = vsel %vm4190, %v4431, %v3673
        %v4448 = vsel %vm4190, %v4432, %v3675
        %v4449 = vsel %vm4190, %v4433, %v3677
        %v4450 = vsel %vm4190, %v4434, %v3679
        %v4451 = vsel %vm4190, %v4435, %v3681
        %v4452 = vsel %vm4207, %v4436, %v3719
        %v4453 = vsel %vm4207, %v4437, %v3721
        %v4454 = vsel %vm4207, %v4438, %v3723
        %v4455 = vsel %vm4207, %v4439, %v3725
        %v4456 = vsel %vm4207, %v4440, %v3727
        %v4457 = vsel %vm4207, %v4441, %v3729
        %v4458 = vsel %vm4207, %v4442, %v3731
        %v4459 = vsel %vm4207, %v4443, %v3733
        %v4460 = vsel %vm4207, %v4444, %v3735
        %v4461 = vsel %vm4207, %v4445, %v3737
        %v4462 = vsel %vm4207, %v4446, %v3739
        %v4463 = vsel %vm4207, %v4447, %v3741
        %v4464 = vsel %vm4207, %v4448, %v3743
        %v4465 = vsel %vm4207, %v4449, %v3745
        %v4466 = vsel %vm4207, %v4450, %v3747
        %v4467 = vsel %vm4207, %v4451, %v3749
        %v4468 = vsel %vm4224, %v4452, %v3787
        %v4469 = vsel %vm4224, %v4453, %v3789
        %v4470 = vsel %vm4224, %v4454, %v3791
        %v4471 = vsel %vm4224, %v4455, %v3793
        %v4472 = vsel %vm4224, %v4456, %v3795
        %v4473 = vsel %vm4224, %v4457, %v3797
        %v4474 = vsel %vm4224, %v4458, %v3799
        %v4475 = vsel %vm4224, %v4459, %v3801
        %v4476 = vsel %vm4224, %v4460, %v3803
        %v4477 = vsel %vm4224, %v4461, %v3805
        %v4478 = vsel %vm4224, %v4462, %v3807
        %v4479 = vsel %vm4224, %v4463, %v3809
        %v4480 = vsel %vm4224, %v4464, %v3811
        %v4481 = vsel %vm4224, %v4465, %v3813
        %v4482 = vsel %vm4224, %v4466, %v3815
        %v4483 = vsel %vm4224, %v4467, %v3817
        %v4484 = vsel %vm4241, %v4468, %v3855
        %v4485 = vsel %vm4241, %v4469, %v3857
        %v4486 = vsel %vm4241, %v4470, %v3859
        %v4487 = vsel %vm4241, %v4471, %v3861
        %v4488 = vsel %vm4241, %v4472, %v3863
        %v4489 = vsel %vm4241, %v4473, %v3865
        %v4490 = vsel %vm4241, %v4474, %v3867
        %v4491 = vsel %vm4241, %v4475, %v3869
        %v4492 = vsel %vm4241, %v4476, %v3871
        %v4493 = vsel %vm4241, %v4477, %v3873
        %v4494 = vsel %vm4241, %v4478, %v3875
        %v4495 = vsel %vm4241, %v4479, %v3877
        %v4496 = vsel %vm4241, %v4480, %v3879
        %v4497 = vsel %vm4241, %v4481, %v3881
        %v4498 = vsel %vm4241, %v4482, %v3883
        %v4499 = vsel %vm4241, %v4483, %v3885
        %v4500 = vsel %vm4258, %v4484, %v3923
        %v4501 = vsel %vm4258, %v4485, %v3925
        %v4502 = vsel %vm4258, %v4486, %v3927
        %v4503 = vsel %vm4258, %v4487, %v3929
        %v4504 = vsel %vm4258, %v4488, %v3931
        %v4505 = vsel %vm4258, %v4489, %v3933
        %v4506 = vsel %vm4258, %v4490, %v3935
        %v4507 = vsel %vm4258, %v4491, %v3937
        %v4508 = vsel %vm4258, %v4492, %v3939
        %v4509 = vsel %vm4258, %v4493, %v3941
        %v4510 = vsel %vm4258, %v4494, %v3943
        %v4511 = vsel %vm4258, %v4495, %v3945
        %v4512 = vsel %vm4258, %v4496, %v3947
        %v4513 = vsel %vm4258, %v4497, %v3949
        %v4514 = vsel %vm4258, %v4498, %v3951
        %v4515 = vsel %vm4258, %v4499, %v3953
        %v4516 = vsel %vm4275, %v4500, %v3991
        %v4517 = vsel %vm4275, %v4501, %v3993
        %v4518 = vsel %vm4275, %v4502, %v3995
        %v4519 = vsel %vm4275, %v4503, %v3997
        %v4520 = vsel %vm4275, %v4504, %v3999
        %v4521 = vsel %vm4275, %v4505, %v4001
        %v4522 = vsel %vm4275, %v4506, %v4003
        %v4523 = vsel %vm4275, %v4507, %v4005
        %v4524 = vsel %vm4275, %v4508, %v4007
        %v4525 = vsel %vm4275, %v4509, %v4009
        %v4526 = vsel %vm4275, %v4510, %v4011
        %v4527 = vsel %vm4275, %v4511, %v4013
        %v4528 = vsel %vm4275, %v4512, %v4015
        %v4529 = vsel %vm4275, %v4513, %v4017
        %v4530 = vsel %vm4275, %v4514, %v4019
        %v4531 = vsel %vm4275, %v4515, %v4021
        %4548 = vrot.lane.b32.xlu0 %v4516, 16
        %v4549 = vpop.permute.xlu0 %4548
        %4550 = vrot.lane.b32.xlu0 %v4517, 16
        %v4551 = vpop.permute.xlu0 %4550
        %4552 = vrot.lane.b32.xlu0 %v4518, 16
        %v4553 = vpop.permute.xlu0 %4552
        %4554 = vrot.lane.b32.xlu0 %v4519, 16
        %v4555 = vpop.permute.xlu0 %4554
        %4556 = vrot.lane.b32.xlu0 %v4520, 16
        %v4557 = vpop.permute.xlu0 %4556
        %4558 = vrot.lane.b32.xlu0 %v4521, 16
        %v4559 = vpop.permute.xlu0 %4558
        %4560 = vrot.lane.b32.xlu0 %v4522, 16
        %v4561 = vpop.permute.xlu0 %4560
        %4562 = vrot.lane.b32.xlu0 %v4523, 16
        %v4563 = vpop.permute.xlu0 %4562
        %4564 = vrot.lane.b32.xlu0 %v4524, 16
        %v4565 = vpop.permute.xlu0 %4564
        %4566 = vrot.lane.b32.xlu0 %v4525, 16
        %v4567 = vpop.permute.xlu0 %4566
        %4568 = vrot.lane.b32.xlu0 %v4526, 16
        %v4569 = vpop.permute.xlu0 %4568
        %4570 = vrot.lane.b32.xlu0 %v4527, 16
        %v4571 = vpop.permute.xlu0 %4570
        %4572 = vrot.lane.b32.xlu0 %v4528, 16
        %v4573 = vpop.permute.xlu0 %4572
        %4574 = vrot.lane.b32.xlu0 %v4529, 16
        %v4575 = vpop.permute.xlu0 %4574
        %4576 = vrot.lane.b32.xlu0 %v4530, 16
        %v4577 = vpop.permute.xlu0 %4576
        %4578 = vrot.lane.b32.xlu0 %v4531, 16
        %v4579 = vpop.permute.xlu0 %4578
        %vm4596 = vcmask 130048
        %v4597 = vsel %vm4596, %v4276, %v4549
        %v4598 = vsel %vm4596, %v4277, %v4551
        %v4599 = vsel %vm4596, %v4278, %v4553
        %v4600 = vsel %vm4596, %v4279, %v4555
        %v4601 = vsel %vm4596, %v4280, %v4557
        %v4602 = vsel %vm4596, %v4281, %v4559
        %v4603 = vsel %vm4596, %v4282, %v4561
        %v4604 = vsel %vm4596, %v4283, %v4563
        %v4605 = vsel %vm4596, %v4284, %v4565
        %v4606 = vsel %vm4596, %v4285, %v4567
        %v4607 = vsel %vm4596, %v4286, %v4569
        %v4608 = vsel %vm4596, %v4287, %v4571
        %v4609 = vsel %vm4596, %v4288, %v4573
        %v4610 = vsel %vm4596, %v4289, %v4575
        %v4611 = vsel %vm4596, %v4290, %v4577
        %v4612 = vsel %vm4596, %v4291, %v4579
        %v4613 = vmax.f32 %v4022, %v4597
        %v4614 = vmax.f32 %v4023, %v4598
        %v4615 = vmax.f32 %v4024, %v4599
        %v4616 = vmax.f32 %v4025, %v4600
        %v4617 = vmax.f32 %v4026, %v4601
        %v4618 = vmax.f32 %v4027, %v4602
        %v4619 = vmax.f32 %v4028, %v4603
        %v4620 = vmax.f32 %v4029, %v4604
        %v4621 = vmax.f32 %v4030, %v4605
        %v4622 = vmax.f32 %v4031, %v4606
        %v4623 = vmax.f32 %v4032, %v4607
        %v4624 = vmax.f32 %v4033, %v4608
        %v4625 = vmax.f32 %v4034, %v4609
        %v4626 = vmax.f32 %v4035, %v4610
        %v4627 = vmax.f32 %v4036, %v4611
        %v4628 = vmax.f32 %v4037, %v4612
        %4629 = vst.msk [vmem:[#allocation3] sm:$0xff] %vm1829, %v4613
        %4630 = vst.msk [vmem:[#allocation3 + $0x8] sm:$0xff] %vm1829, %v4614
        %4631 = vst.msk [vmem:[#allocation3 + $0x10] sm:$0xff] %vm1829, %v4615
        %4632 = vst.msk [vmem:[#allocation3 + $0x18] sm:$0xff] %vm1829, %v4616
        %4633 = vst.msk [vmem:[#allocation3 + $0x20] sm:$0xff] %vm1829, %v4617
        %4634 = vst.msk [vmem:[#allocation3 + $0x28] sm:$0xff] %vm1829, %v4618
        %4635 = vst.msk [vmem:[#allocation3 + $0x30] sm:$0xff] %vm1829, %v4619
        %4636 = vst.msk [vmem:[#allocation3 + $0x38] sm:$0xff] %vm1829, %v4620
        %4637 = vst.msk [vmem:[#allocation3 + $0x40] sm:$0xff] %vm1829, %v4621
        %4638 = vst.msk [vmem:[#allocation3 + $0x48] sm:$0xff] %vm1829, %v4622
        %4639 = vst.msk [vmem:[#allocation3 + $0x50] sm:$0xff] %vm1829, %v4623
        %4640 = vst.msk [vmem:[#allocation3 + $0x58] sm:$0xff] %vm1829, %v4624
        %4641 = vst.msk [vmem:[#allocation3 + $0x60] sm:$0xff] %vm1829, %v4625
        %4642 = vst.msk [vmem:[#allocation3 + $0x68] sm:$0xff] %vm1829, %v4626
        %4643 = vst.msk [vmem:[#allocation3 + $0x70] sm:$0xff] %vm1829, %v4627
        %4644 = vst.msk [vmem:[#allocation3 + $0x78] sm:$0xff] %vm1829, %v4628
        %v4645 = vtrunc.f32 %v1491
        %v4646 = vtrunc.f32 %v1492
        %v4647 = vtrunc.f32 %v1493
        %v4648 = vtrunc.f32 %v1494
        %v4649 = vtrunc.f32 %v1495
        %v4650 = vtrunc.f32 %v1496
        %v4651 = vtrunc.f32 %v1497
        %v4652 = vtrunc.f32 %v1498
        %v4653 = vtrunc.f32 %v1499
        %v4654 = vtrunc.f32 %v1500
        %v4655 = vtrunc.f32 %v1501
        %v4656 = vtrunc.f32 %v1502
        %v4657 = vtrunc.f32 %v1503
        %v4658 = vtrunc.f32 %v1504
        %v4659 = vtrunc.f32 %v1505
        %v4660 = vtrunc.f32 %v1506
        %v4661 = vpack.c.f32.eXmY %v4645, %v4646, 312
        %v4665 = vpack.c.f32.eXmY %v4647, %v4648, 312
        %v4669 = vpack.c.b8 %v4665, %v4661
        %v4671 = vpack.c.f32.eXmY %v4649, %v4650, 312
        %v4675 = vpack.c.f32.eXmY %v4651, %v4652, 312
        %v4679 = vpack.c.b8 %v4675, %v4671
        %v4681 = vpack.c.f32.eXmY %v4653, %v4654, 312
        %v4685 = vpack.c.f32.eXmY %v4655, %v4656, 312
        %v4689 = vpack.c.b8 %v4685, %v4681
        %v4691 = vpack.c.f32.eXmY %v4657, %v4658, 312
        %v4695 = vpack.c.f32.eXmY %v4659, %v4660, 312
        %v4699 = vpack.c.b8 %v4695, %v4691
        %4701 = vst [vmem:[%s1037] sm:$0xff] %v4669
        %4702 = vst [vmem:[%s1037 + $0x8] sm:$0xff] %v4679
        %4703 = vst [vmem:[%s1037 + $0x10] sm:$0xff] %v4689
        %4704 = vst [vmem:[%s1037 + $0x18] sm:$0xff] %v4699
        %p4705 = scmp.eq.s32.totalorder %s84, 1
        // Predicated region
        $region179: #{tpu_custom_call.1} parent=169 // pred_check
          %p4706 = pneg %p4705
        $region180: #{tpu_custom_call.1} parent=169 // pred_check_branch
          %4708 = sbr.rel (%p4706) target = $region182
        $region181: #{tpu_custom_call.1} parent=169 // pred_region
          %v4709 = vld [vmem:[%s1049] sm:$0xff]
          %v4710 = vld [vmem:[%s1049 + $0x8] sm:$0xff]
          %v4711 = vld [vmem:[%s1049 + $0x10] sm:$0xff]
          %v4712 = vld [vmem:[%s1049 + $0x18] sm:$0xff]
          %v4713 = vld [vmem:[%s1049 + $0x20] sm:$0xff]
          %v4714 = vld [vmem:[%s1049 + $0x28] sm:$0xff]
          %v4715 = vld [vmem:[%s1049 + $0x30] sm:$0xff]
          %v4716 = vld [vmem:[%s1049 + $0x38] sm:$0xff]
          %v4717 = vld [vmem:[%s1049 + $0x40] sm:$0xff]
          %v4718 = vld [vmem:[%s1049 + $0x48] sm:$0xff]
          %v4719 = vld [vmem:[%s1049 + $0x50] sm:$0xff]
          %v4720 = vld [vmem:[%s1049 + $0x58] sm:$0xff]
          %v4721 = vld [vmem:[%s1049 + $0x60] sm:$0xff]
          %v4722 = vld [vmem:[%s1049 + $0x68] sm:$0xff]
          %v4723 = vld [vmem:[%s1049 + $0x70] sm:$0xff]
          %v4724 = vld [vmem:[%s1049 + $0x78] sm:$0xff]
          %v4725 = vld [vmem:[#allocation4] sm:$0xff]
          %v4726 = vld [vmem:[#allocation4 + $0x8] sm:$0xff]
          %v4727 = vld [vmem:[#allocation4 + $0x10] sm:$0xff]
          %v4728 = vld [vmem:[#allocation4 + $0x18] sm:$0xff]
          %v4729 = vld [vmem:[#allocation4 + $0x20] sm:$0xff]
          %v4730 = vld [vmem:[#allocation4 + $0x28] sm:$0xff]
          %v4731 = vld [vmem:[#allocation4 + $0x30] sm:$0xff]
          %v4732 = vld [vmem:[#allocation4 + $0x38] sm:$0xff]
          %v4733 = vld [vmem:[#allocation4 + $0x40] sm:$0xff]
          %v4734 = vld [vmem:[#allocation4 + $0x48] sm:$0xff]
          %v4735 = vld [vmem:[#allocation4 + $0x50] sm:$0xff]
          %v4736 = vld [vmem:[#allocation4 + $0x58] sm:$0xff]
          %v4737 = vld [vmem:[#allocation4 + $0x60] sm:$0xff]
          %v4738 = vld [vmem:[#allocation4 + $0x68] sm:$0xff]
          %v4739 = vld [vmem:[#allocation4 + $0x70] sm:$0xff]
          %v4740 = vld [vmem:[#allocation4 + $0x78] sm:$0xff]
          %v4741 = vld [vmem:[#allocation2] sm:$0xff]
          %v4742 = vld [vmem:[#allocation2 + $0x8] sm:$0xff]
          %v4743 = vld [vmem:[#allocation2 + $0x10] sm:$0xff]
          %v4744 = vld [vmem:[#allocation2 + $0x18] sm:$0xff]
          %v4745 = vld [vmem:[#allocation2 + $0x20] sm:$0xff]
          %v4746 = vld [vmem:[#allocation2 + $0x28] sm:$0xff]
          %v4747 = vld [vmem:[#allocation2 + $0x30] sm:$0xff]
          %v4748 = vld [vmem:[#allocation2 + $0x38] sm:$0xff]
          %v4749 = vld [vmem:[#allocation2 + $0x40] sm:$0xff]
          %v4750 = vld [vmem:[#allocation2 + $0x48] sm:$0xff]
          %v4751 = vld [vmem:[#allocation2 + $0x50] sm:$0xff]
          %v4752 = vld [vmem:[#allocation2 + $0x58] sm:$0xff]
          %v4753 = vld [vmem:[#allocation2 + $0x60] sm:$0xff]
          %v4754 = vld [vmem:[#allocation2 + $0x68] sm:$0xff]
          %v4755 = vld [vmem:[#allocation2 + $0x70] sm:$0xff]
          %v4756 = vld [vmem:[#allocation2 + $0x78] sm:$0xff]
          %v4757 = vmax.f32 %v4725, 1.0
          %v4758 = vmax.f32 %v4726, 1.0
          %v4759 = vmax.f32 %v4727, 1.0
          %v4760 = vmax.f32 %v4728, 1.0
          %v4761 = vmax.f32 %v4729, 1.0
          %v4762 = vmax.f32 %v4730, 1.0
          %v4763 = vmax.f32 %v4731, 1.0
          %v4764 = vmax.f32 %v4732, 1.0
          %v4765 = vmax.f32 %v4733, 1.0
          %v4766 = vmax.f32 %v4734, 1.0
          %v4767 = vmax.f32 %v4735, 1.0
          %v4768 = vmax.f32 %v4736, 1.0
          %v4769 = vmax.f32 %v4737, 1.0
          %v4770 = vmax.f32 %v4738, 1.0
          %v4771 = vmax.f32 %v4739, 1.0
          %v4772 = vmax.f32 %v4740, 1.0
          %4774 = vset.pattern.permute.xlu0 0
          %4775 = vperm.xlu0 %4774, %v4757
          %v4776 = vpop.permute.xlu0 %4775
          %4779 = vset.pattern.permute.xlu0 0
          %4780 = vperm.xlu0 %4779, %v4758
          %v4781 = vpop.permute.xlu0 %4780
          %4784 = vset.pattern.permute.xlu0 0
          %4785 = vperm.xlu0 %4784, %v4759
          %v4786 = vpop.permute.xlu0 %4785
          %4789 = vset.pattern.permute.xlu0 0
          %4790 = vperm.xlu0 %4789, %v4760
          %v4791 = vpop.permute.xlu0 %4790
          %4794 = vset.pattern.permute.xlu0 0
          %4795 = vperm.xlu0 %4794, %v4761
          %v4796 = vpop.permute.xlu0 %4795
          %4799 = vset.pattern.permute.xlu0 0
          %4800 = vperm.xlu0 %4799, %v4762
          %v4801 = vpop.permute.xlu0 %4800
          %4804 = vset.pattern.permute.xlu0 0
          %4805 = vperm.xlu0 %4804, %v4763
          %v4806 = vpop.permute.xlu0 %4805
          %4809 = vset.pattern.permute.xlu0 0
          %4810 = vperm.xlu0 %4809, %v4764
          %v4811 = vpop.permute.xlu0 %4810
          %4814 = vset.pattern.permute.xlu0 0
          %4815 = vperm.xlu0 %4814, %v4765
          %v4816 = vpop.permute.xlu0 %4815
          %4819 = vset.pattern.permute.xlu0 0
          %4820 = vperm.xlu0 %4819, %v4766
          %v4821 = vpop.permute.xlu0 %4820
          %4824 = vset.pattern.permute.xlu0 0
          %4825 = vperm.xlu0 %4824, %v4767
          %v4826 = vpop.permute.xlu0 %4825
          %4829 = vset.pattern.permute.xlu0 0
          %4830 = vperm.xlu0 %4829, %v4768
          %v4831 = vpop.permute.xlu0 %4830
          %4834 = vset.pattern.permute.xlu0 0
          %4835 = vperm.xlu0 %4834, %v4769
          %v4836 = vpop.permute.xlu0 %4835
          %4839 = vset.pattern.permute.xlu0 0
          %4840 = vperm.xlu0 %4839, %v4770
          %v4841 = vpop.permute.xlu0 %4840
          %4844 = vset.pattern.permute.xlu0 0
          %4845 = vperm.xlu0 %4844, %v4771
          %v4846 = vpop.permute.xlu0 %4845
          %4849 = vset.pattern.permute.xlu0 0
          %4850 = vperm.xlu0 %4849, %v4772
          %v4851 = vpop.permute.xlu0 %4850
          %v4853 = vrcp.pop %v4776
          %v4854 = vmul.f32 %v4741, %v4853
          %v4855 = vrcp.pop %v4781
          %v4856 = vmul.f32 %v4742, %v4855
          %v4857 = vrcp.pop %v4786
          %v4858 = vmul.f32 %v4743, %v4857
          %v4859 = vrcp.pop %v4791
          %v4860 = vmul.f32 %v4744, %v4859
          %v4861 = vrcp.pop %v4796
          %v4862 = vmul.f32 %v4745, %v4861
          %v4863 = vrcp.pop %v4801
          %v4864 = vmul.f32 %v4746, %v4863
          %v4865 = vrcp.pop %v4806
          %v4866 = vmul.f32 %v4747, %v4865
          %v4867 = vrcp.pop %v4811
          %v4868 = vmul.f32 %v4748, %v4867
          %v4869 = vrcp.pop %v4816
          %v4870 = vmul.f32 %v4749, %v4869
          %v4871 = vrcp.pop %v4821
          %v4872 = vmul.f32 %v4750, %v4871
          %v4873 = vrcp.pop %v4826
          %v4874 = vmul.f32 %v4751, %v4873
          %v4875 = vrcp.pop %v4831
          %v4876 = vmul.f32 %v4752, %v4875
          %v4877 = vrcp.pop %v4836
          %v4878 = vmul.f32 %v4753, %v4877
          %v4879 = vrcp.pop %v4841
          %v4880 = vmul.f32 %v4754, %v4879
          %v4881 = vrcp.pop %v4846
          %v4882 = vmul.f32 %v4755, %v4881
          %v4883 = vrcp.pop %v4851
          %v4884 = vmul.f32 %v4756, %v4883
          %vm4885 = vcmp.gt.f32.partialorder %v4725, 0.0
          %vm4886 = vcmp.gt.f32.partialorder %v4726, 0.0
          %vm4887 = vcmp.gt.f32.partialorder %v4727, 0.0
          %vm4888 = vcmp.gt.f32.partialorder %v4728, 0.0
          %vm4889 = vcmp.gt.f32.partialorder %v4729, 0.0
          %vm4890 = vcmp.gt.f32.partialorder %v4730, 0.0
          %vm4891 = vcmp.gt.f32.partialorder %v4731, 0.0
          %vm4892 = vcmp.gt.f32.partialorder %v4732, 0.0
          %vm4893 = vcmp.gt.f32.partialorder %v4733, 0.0
          %vm4894 = vcmp.gt.f32.partialorder %v4734, 0.0
          %vm4895 = vcmp.gt.f32.partialorder %v4735, 0.0
          %vm4896 = vcmp.gt.f32.partialorder %v4736, 0.0
          %vm4897 = vcmp.gt.f32.partialorder %v4737, 0.0
          %vm4898 = vcmp.gt.f32.partialorder %v4738, 0.0
          %vm4899 = vcmp.gt.f32.partialorder %v4739, 0.0
          %vm4900 = vcmp.gt.f32.partialorder %v4740, 0.0
          %v4901 = vld [vmem:[#allocation3] sm:$0xff]
          %v4902 = vld [vmem:[#allocation3 + $0x8] sm:$0xff]
          %v4903 = vld [vmem:[#allocation3 + $0x10] sm:$0xff]
          %v4904 = vld [vmem:[#allocation3 + $0x18] sm:$0xff]
          %v4905 = vld [vmem:[#allocation3 + $0x20] sm:$0xff]
          %v4906 = vld [vmem:[#allocation3 + $0x28] sm:$0xff]
          %v4907 = vld [vmem:[#allocation3 + $0x30] sm:$0xff]
          %v4908 = vld [vmem:[#allocation3 + $0x38] sm:$0xff]
          %v4909 = vld [vmem:[#allocation3 + $0x40] sm:$0xff]
          %v4910 = vld [vmem:[#allocation3 + $0x48] sm:$0xff]
          %v4911 = vld [vmem:[#allocation3 + $0x50] sm:$0xff]
          %v4912 = vld [vmem:[#allocation3 + $0x58] sm:$0xff]
          %v4913 = vld [vmem:[#allocation3 + $0x60] sm:$0xff]
          %v4914 = vld [vmem:[#allocation3 + $0x68] sm:$0xff]
          %v4915 = vld [vmem:[#allocation3 + $0x70] sm:$0xff]
          %v4916 = vld [vmem:[#allocation3 + $0x78] sm:$0xff]
          %v4917 = vsel %vm4885, 1, 0
          %v4918 = vsel %vm4886, 1, 0
          %v4919 = vsel %vm4887, 1, 0
          %v4920 = vsel %vm4888, 1, 0
          %v4921 = vsel %vm4889, 1, 0
          %v4922 = vsel %vm4890, 1, 0
          %v4923 = vsel %vm4891, 1, 0
          %v4924 = vsel %vm4892, 1, 0
          %v4925 = vsel %vm4893, 1, 0
          %v4926 = vsel %vm4894, 1, 0
          %v4927 = vsel %vm4895, 1, 0
          %v4928 = vsel %vm4896, 1, 0
          %v4929 = vsel %vm4897, 1, 0
          %v4930 = vsel %vm4898, 1, 0
          %v4931 = vsel %vm4899, 1, 0
          %v4932 = vsel %vm4900, 1, 0
          %4933 = vset.pattern.permute.xlu0 0
          %4934 = vperm.xlu0 %4933, %v4917
          %v4935 = vpop.permute.xlu0 %4934
          %4936 = vset.pattern.permute.xlu0 0
          %4937 = vperm.xlu0 %4936, %v4918
          %v4938 = vpop.permute.xlu0 %4937
          %4939 = vset.pattern.permute.xlu0 0
          %4940 = vperm.xlu0 %4939, %v4919
          %v4941 = vpop.permute.xlu0 %4940
          %4942 = vset.pattern.permute.xlu0 0
          %4943 = vperm.xlu0 %4942, %v4920
          %v4944 = vpop.permute.xlu0 %4943
          %4945 = vset.pattern.permute.xlu0 0
          %4946 = vperm.xlu0 %4945, %v4921
          %v4947 = vpop.permute.xlu0 %4946
          %4948 = vset.pattern.permute.xlu0 0
          %4949 = vperm.xlu0 %4948, %v4922
          %v4950 = vpop.permute.xlu0 %4949
          %4951 = vset.pattern.permute.xlu0 0
          %4952 = vperm.xlu0 %4951, %v4923
          %v4953 = vpop.permute.xlu0 %4952
          %4954 = vset.pattern.permute.xlu0 0
          %4955 = vperm.xlu0 %4954, %v4924
          %v4956 = vpop.permute.xlu0 %4955
          %4957 = vset.pattern.permute.xlu0 0
          %4958 = vperm.xlu0 %4957, %v4925
          %v4959 = vpop.permute.xlu0 %4958
          %4960 = vset.pattern.permute.xlu0 0
          %4961 = vperm.xlu0 %4960, %v4926
          %v4962 = vpop.permute.xlu0 %4961
          %4963 = vset.pattern.permute.xlu0 0
          %4964 = vperm.xlu0 %4963, %v4927
          %v4965 = vpop.permute.xlu0 %4964
          %4966 = vset.pattern.permute.xlu0 0
          %4967 = vperm.xlu0 %4966, %v4928
          %v4968 = vpop.permute.xlu0 %4967
          %4969 = vset.pattern.permute.xlu0 0
          %4970 = vperm.xlu0 %4969, %v4929
          %v4971 = vpop.permute.xlu0 %4970
          %4972 = vset.pattern.permute.xlu0 0
          %4973 = vperm.xlu0 %4972, %v4930
          %v4974 = vpop.permute.xlu0 %4973
          %4975 = vset.pattern.permute.xlu0 0
          %4976 = vperm.xlu0 %4975, %v4931
          %v4977 = vpop.permute.xlu0 %4976
          %4978 = vset.pattern.permute.xlu0 0
          %4979 = vperm.xlu0 %4978, %v4932
          %v4980 = vpop.permute.xlu0 %4979
          %vm4981 = vcmp.eq.s32.totalorder %v4935, 1
          %vm4982 = vcmp.eq.s32.totalorder %v4938, 1
          %vm4983 = vcmp.eq.s32.totalorder %v4941, 1
          %vm4984 = vcmp.eq.s32.totalorder %v4944, 1
          %vm4985 = vcmp.eq.s32.totalorder %v4947, 1
          %vm4986 = vcmp.eq.s32.totalorder %v4950, 1
          %vm4987 = vcmp.eq.s32.totalorder %v4953, 1
          %vm4988 = vcmp.eq.s32.totalorder %v4956, 1
          %vm4989 = vcmp.eq.s32.totalorder %v4959, 1
          %vm4990 = vcmp.eq.s32.totalorder %v4962, 1
          %vm4991 = vcmp.eq.s32.totalorder %v4965, 1
          %vm4992 = vcmp.eq.s32.totalorder %v4968, 1
          %vm4993 = vcmp.eq.s32.totalorder %v4971, 1
          %vm4994 = vcmp.eq.s32.totalorder %v4974, 1
          %vm4995 = vcmp.eq.s32.totalorder %v4977, 1
          %vm4996 = vcmp.eq.s32.totalorder %v4980, 1
          %v4997 = vsel %vm4981, %v4901, 0.0
          %v4998 = vsel %vm4982, %v4902, 0.0
          %v4999 = vsel %vm4983, %v4903, 0.0
          %v5000 = vsel %vm4984, %v4904, 0.0
          %v5001 = vsel %vm4985, %v4905, 0.0
          %v5002 = vsel %vm4986, %v4906, 0.0
          %v5003 = vsel %vm4987, %v4907, 0.0
          %v5004 = vsel %vm4988, %v4908, 0.0
          %v5005 = vsel %vm4989, %v4909, 0.0
          %v5006 = vsel %vm4990, %v4910, 0.0
          %v5007 = vsel %vm4991, %v4911, 0.0
          %v5008 = vsel %vm4992, %v4912, 0.0
          %v5009 = vsel %vm4993, %v4913, 0.0
          %v5010 = vsel %vm4994, %v4914, 0.0
          %v5011 = vsel %vm4995, %v4915, 0.0
          %v5012 = vsel %vm4996, %v4916, 0.0
          %v5013 = vld [vmem:[%s9] sm:$0xff]
          %v5014 = vld [vmem:[%s9 + $0x8] sm:$0xff]
          %v5015 = vld [vmem:[%s9 + $0x10] sm:$0xff]
          %v5016 = vld [vmem:[%s9 + $0x18] sm:$0xff]
          %v5017 = vld [vmem:[%s9 + $0x20] sm:$0xff]
          %v5018 = vld [vmem:[%s9 + $0x28] sm:$0xff]
          %v5019 = vld [vmem:[%s9 + $0x30] sm:$0xff]
          %v5020 = vld [vmem:[%s9 + $0x38] sm:$0xff]
          %v5021 = vld [vmem:[%s11] sm:$0xff]
          %v5022 = vld [vmem:[%s11 + $0x8] sm:$0xff]
          %v5023 = vld [vmem:[%s11 + $0x10] sm:$0xff]
          %v5024 = vld [vmem:[%s11 + $0x18] sm:$0xff]
          %v5025 = vld [vmem:[%s11 + $0x20] sm:$0xff]
          %v5026 = vld [vmem:[%s11 + $0x28] sm:$0xff]
          %v5027 = vld [vmem:[%s11 + $0x30] sm:$0xff]
          %v5028 = vld [vmem:[%s11 + $0x38] sm:$0xff]
          %v5030 = vsel %vm1829, %v4997, 0
          %v5033 = vsel %vm1829, %v4998, 0
          %v5036 = vsel %vm1829, %v4999, 0
          %v5039 = vsel %vm1829, %v5000, 0
          %v5042 = vsel %vm1829, %v5001, 0
          %v5045 = vsel %vm1829, %v5002, 0
          %v5048 = vsel %vm1829, %v5003, 0
          %v5051 = vsel %vm1829, %v5004, 0
          %v5054 = vsel %vm1829, %v5005, 0
          %v5057 = vsel %vm1829, %v5006, 0
          %v5060 = vsel %vm1829, %v5007, 0
          %v5063 = vsel %vm1829, %v5008, 0
          %v5066 = vsel %vm1829, %v5009, 0
          %v5069 = vsel %vm1829, %v5010, 0
          %v5072 = vsel %vm1829, %v5011, 0
          %v5075 = vsel %vm1829, %v5012, 0
          %5077 = vmatprep.subr.mxu0 %v5022
          %5078 = vmatpush1.msra.mxu0 %v5021
          %5079 = vmatprep.subr.mxu0 %v5024
          %5080 = vmatpush1.msra.mxu0 %v5023
          %5081 = vmatprep.subr.mxu0 %v5026
          %5082 = vmatpush1.msra.mxu0 %v5025
          %5083 = vmatprep.subr.mxu0 %v5028
          %5084 = vmatpush1.msra.mxu0 %v5027
          %5085 = vmatprep.subr.mxu0 0.0
          %5086 = vmatpush1.msra.mxu0 0.0
          %5087 = vmatprep.subr.mxu0 0.0
          %5088 = vmatpush1.msra.mxu0 0.0
          %5089 = vmatprep.subr.mxu0 0.0
          %5090 = vmatpush1.msra.mxu0 0.0
          %5091 = vmatprep.subr.mxu0 0.0
          %5092 = vmatpush1.msra.mxu0 0.0
          %5093 = vmatprep.subr.mxu0 0.0
          %5094 = vmatpush1.msra.mxu0 0.0
          %5095 = vmatprep.subr.mxu0 0.0
          %5096 = vmatpush1.msra.mxu0 0.0
          %5097 = vmatprep.subr.mxu0 0.0
          %5098 = vmatpush1.msra.mxu0 0.0
          %5099 = vmatprep.subr.mxu0 0.0
          %5100 = vmatpush1.msra.mxu0 0.0
          %5101 = vmatprep.subr.mxu0 0.0
          %5102 = vmatpush1.msra.mxu0 0.0
          %5103 = vmatprep.subr.mxu0 0.0
          %5104 = vmatpush1.msra.mxu0 0.0
          %5105 = vmatprep.subr.mxu0 0.0
          %5106 = vmatpush1.msra.mxu0 0.0
          %5107 = vmatprep.subr.mxu0 0.0
          %5108 = vmatpush1.msra.mxu0 0.0
          %5109 = vmatprep.subr.mxu0 0.0
          %5110 = vmatpush1.msra.mxu0 0.0
          %5111 = vmatprep.subr.mxu0 0.0
          %5112 = vmatpush1.msra.mxu0 0.0
          %5113 = vmatprep.subr.mxu0 0.0
          %5114 = vmatpush1.msra.mxu0 0.0
          %5115 = vmatprep.subr.mxu0 0.0
          %5116 = vmatpush1.msra.mxu0 0.0
          %5117 = vmatprep.subr.mxu0 0.0
          %5118 = vmatpush1.msra.mxu0 0.0
          %5119 = vmatprep.subr.mxu0 0.0
          %5120 = vmatpush1.msra.mxu0 0.0
          %5121 = vmatprep.subr.mxu0 0.0
          %5122 = vmatpush1.msra.mxu0 0.0
          %5123 = vmatprep.subr.mxu0 0.0
          %5124 = vmatpush1.msra.mxu0 0.0
          %5125 = vmatprep.subr.mxu0 0.0
          %5126 = vmatpush1.msra.mxu0 0.0
          %5127 = vmatprep.subr.mxu0 0.0
          %5128 = vmatpush1.msra.mxu0 0.0
          %5129 = vmatprep.subr.mxu0 0.0
          %5130 = vmatpush1.msra.mxu0 0.0
          %5131 = vmatprep.subr.mxu0 0.0
          %5132 = vmatpush1.msra.mxu0 0.0
          %5133 = vmatprep.subr.mxu0 0.0
          %5134 = vmatpush1.msra.mxu0 0.0
          %5135 = vmatprep.subr.mxu0 0.0
          %5136 = vmatpush1.msra.mxu0 0.0
          %5137 = vmatprep.subr.mxu0 0.0
          %5138 = vmatpush1.msra.mxu0 0.0
          %5139 = vmatprep.subr.mxu0 0.0
          %5140 = vmatpush1.msra.mxu0 0.0
          %5141 = vmatprep.mubr.f32.mxu0 0.0
          %5142 = vmatmul.mubr.f32.gmra.mrb[0].mxu0 %v5030
          %v5143 = vpop.f32.mrb[0].mxu0
          %v5144 = vadd.f32 0.0, %v5143
          %v5145 = vpop.f32.mrb[0].mxu0
          %v5146 = vadd.f32 0.0, %v5145
          %5147 = vmatprep.mubr.f32.mxu0 0.0
          %5148 = vmatmul.mubr.f32.gmra.mrb[0].mxu0 %v5033
          %v5149 = vpop.f32.mrb[0].mxu0
          %v5150 = vadd.f32 0.0, %v5149
          %v5151 = vpop.f32.mrb[0].mxu0
          %v5152 = vadd.f32 0.0, %v5151
          %5153 = vmatprep.mubr.f32.mxu0 0.0
          %5154 = vmatmul.mubr.f32.gmra.mrb[0].mxu0 %v5036
          %v5155 = vpop.f32.mrb[0].mxu0
          %v5156 = vadd.f32 0.0, %v5155
          %v5157 = vpop.f32.mrb[0].mxu0
          %v5158 = vadd.f32 0.0, %v5157
          %5159 = vmatprep.mubr.f32.mxu0 0.0
          %5160 = vmatmul.mubr.f32.gmra.mrb[0].mxu0 %v5039
          %v5161 = vpop.f32.mrb[0].mxu0
          %v5162 = vadd.f32 0.0, %v5161
          %v5163 = vpop.f32.mrb[0].mxu0
          %v5164 = vadd.f32 0.0, %v5163
          %5165 = vmatprep.mubr.f32.mxu0 0.0
          %5166 = vmatmul.mubr.f32.gmra.mrb[0].mxu0 %v5042
          %v5167 = vpop.f32.mrb[0].mxu0
          %v5168 = vadd.f32 0.0, %v5167
          %v5169 = vpop.f32.mrb[0].mxu0
          %v5170 = vadd.f32 0.0, %v5169
          %5171 = vmatprep.mubr.f32.mxu0 0.0
          %5172 = vmatmul.mubr.f32.gmra.mrb[0].mxu0 %v5045
          %v5173 = vpop.f32.mrb[0].mxu0
          %v5174 = vadd.f32 0.0, %v5173
          %v5175 = vpop.f32.mrb[0].mxu0
          %v5176 = vadd.f32 0.0, %v5175
          %5177 = vmatprep.mubr.f32.mxu0 0.0
          %5178 = vmatmul.mubr.f32.gmra.mrb[0].mxu0 %v5048
          %v5179 = vpop.f32.mrb[0].mxu0
          %v5180 = vadd.f32 0.0, %v5179
          %v5181 = vpop.f32.mrb[0].mxu0
          %v5182 = vadd.f32 0.0, %v5181
          %5183 = vmatprep.mubr.f32.mxu0 0.0
          %5184 = vmatmul.mubr.f32.gmra.mrb[0].mxu0 %v5051
          %v5185 = vpop.f32.mrb[0].mxu0
          %v5186 = vadd.f32 0.0, %v5185
          %v5187 = vpop.f32.mrb[0].mxu0
          %v5188 = vadd.f32 0.0, %v5187
          %5189 = vmatprep.mubr.f32.mxu0 0.0
          %5190 = vmatmul.mubr.f32.gmra.mrb[0].mxu0 %v5054
          %v5191 = vpop.f32.mrb[0].mxu0
          %v5192 = vadd.f32 0.0, %v5191
          %v5193 = vpop.f32.mrb[0].mxu0
          %v5194 = vadd.f32 0.0, %v5193
          %5195 = vmatprep.mubr.f32.mxu0 0.0
          %5196 = vmatmul.mubr.f32.gmra.mrb[0].mxu0 %v5057
          %v5197 = vpop.f32.mrb[0].mxu0
          %v5198 = vadd.f32 0.0, %v5197
          %v5199 = vpop.f32.mrb[0].mxu0
          %v5200 = vadd.f32 0.0, %v5199
          %5201 = vmatprep.mubr.f32.mxu0 0.0
          %5202 = vmatmul.mubr.f32.gmra.mrb[0].mxu0 %v5060
          %v5203 = vpop.f32.mrb[0].mxu0
          %v5204 = vadd.f32 0.0, %v5203
          %v5205 = vpop.f32.mrb[0].mxu0
          %v5206 = vadd.f32 0.0, %v5205
          %5207 = vmatprep.mubr.f32.mxu0 0.0
          %5208 = vmatmul.mubr.f32.gmra.mrb[0].mxu0 %v5063
          %v5209 = vpop.f32.mrb[0].mxu0
          %v5210 = vadd.f32 0.0, %v5209
          %v5211 = vpop.f32.mrb[0].mxu0
          %v5212 = vadd.f32 0.0, %v5211
          %5213 = vmatprep.mubr.f32.mxu0 0.0
          %5214 = vmatmul.mubr.f32.gmra.mrb[0].mxu0 %v5066
          %v5215 = vpop.f32.mrb[0].mxu0
          %v5216 = vadd.f32 0.0, %v5215
          %v5217 = vpop.f32.mrb[0].mxu0
          %v5218 = vadd.f32 0.0, %v5217
          %5219 = vmatprep.mubr.f32.mxu0 0.0
          %5220 = vmatmul.mubr.f32.gmra.mrb[0].mxu0 %v5069
          %v5221 = vpop.f32.mrb[0].mxu0
          %v5222 = vadd.f32 0.0, %v5221
          %v5223 = vpop.f32.mrb[0].mxu0
          %v5224 = vadd.f32 0.0, %v5223
          %5225 = vmatprep.mubr.f32.mxu0 0.0
          %5226 = vmatmul.mubr.f32.gmra.mrb[0].mxu0 %v5072
          %v5227 = vpop.f32.mrb[0].mxu0
          %v5228 = vadd.f32 0.0, %v5227
          %v5229 = vpop.f32.mrb[0].mxu0
          %v5230 = vadd.f32 0.0, %v5229
          %5231 = vmatprep.mubr.f32.mxu0 0.0
          %5232 = vmatmul.mubr.f32.gmra.mrb[0].mxu0 %v5075
          %v5233 = vpop.f32.mrb[0].mxu0
          %v5234 = vadd.f32 0.0, %v5233
          %v5235 = vpop.f32.mrb[0].mxu0
          %v5236 = vadd.f32 0.0, %v5235
          %5237 = vdwg.mxu0
          %v5239 = vsel %vm1829, %v4854, 0
          %v5242 = vsel %vm1829, %v4856, 0
          %v5245 = vsel %vm1829, %v4858, 0
          %v5248 = vsel %vm1829, %v4860, 0
          %v5251 = vsel %vm1829, %v4862, 0
          %v5254 = vsel %vm1829, %v4864, 0
          %v5257 = vsel %vm1829, %v4866, 0
          %v5260 = vsel %vm1829, %v4868, 0
          %v5263 = vsel %vm1829, %v4870, 0
          %v5266 = vsel %vm1829, %v4872, 0
          %v5269 = vsel %vm1829, %v4874, 0
          %v5272 = vsel %vm1829, %v4876, 0
          %v5275 = vsel %vm1829, %v4878, 0
          %v5278 = vsel %vm1829, %v4880, 0
          %v5281 = vsel %vm1829, %v4882, 0
          %v5284 = vsel %vm1829, %v4884, 0
          %5286 = vmatprep.subr.mxu0 %v5014
          %5287 = vmatpush1.msra.mxu0 %v5013
          %5288 = vmatprep.subr.mxu0 %v5016
          %5289 = vmatpush1.msra.mxu0 %v5015
          %5290 = vmatprep.subr.mxu0 %v5018
          %5291 = vmatpush1.msra.mxu0 %v5017
          %5292 = vmatprep.subr.mxu0 %v5020
          %5293 = vmatpush1.msra.mxu0 %v5019
          %5294 = vmatprep.subr.mxu0 0.0
          %5295 = vmatpush1.msra.mxu0 0.0
          %5296 = vmatprep.subr.mxu0 0.0
          %5297 = vmatpush1.msra.mxu0 0.0
          %5298 = vmatprep.subr.mxu0 0.0
          %5299 = vmatpush1.msra.mxu0 0.0
          %5300 = vmatprep.subr.mxu0 0.0
          %5301 = vmatpush1.msra.mxu0 0.0
          %5302 = vmatprep.subr.mxu0 0.0
          %5303 = vmatpush1.msra.mxu0 0.0
          %5304 = vmatprep.subr.mxu0 0.0
          %5305 = vmatpush1.msra.mxu0 0.0
          %5306 = vmatprep.subr.mxu0 0.0
          %5307 = vmatpush1.msra.mxu0 0.0
          %5308 = vmatprep.subr.mxu0 0.0
          %5309 = vmatpush1.msra.mxu0 0.0
          %5310 = vmatprep.subr.mxu0 0.0
          %5311 = vmatpush1.msra.mxu0 0.0
          %5312 = vmatprep.subr.mxu0 0.0
          %5313 = vmatpush1.msra.mxu0 0.0
          %5314 = vmatprep.subr.mxu0 0.0
          %5315 = vmatpush1.msra.mxu0 0.0
          %5316 = vmatprep.subr.mxu0 0.0
          %5317 = vmatpush1.msra.mxu0 0.0
          %5318 = vmatprep.subr.mxu0 0.0
          %5319 = vmatpush1.msra.mxu0 0.0
          %5320 = vmatprep.subr.mxu0 0.0
          %5321 = vmatpush1.msra.mxu0 0.0
          %5322 = vmatprep.subr.mxu0 0.0
          %5323 = vmatpush1.msra.mxu0 0.0
          %5324 = vmatprep.subr.mxu0 0.0
          %5325 = vmatpush1.msra.mxu0 0.0
          %5326 = vmatprep.subr.mxu0 0.0
          %5327 = vmatpush1.msra.mxu0 0.0
          %5328 = vmatprep.subr.mxu0 0.0
          %5329 = vmatpush1.msra.mxu0 0.0
          %5330 = vmatprep.subr.mxu0 0.0
          %5331 = vmatpush1.msra.mxu0 0.0
          %5332 = vmatprep.subr.mxu0 0.0
          %5333 = vmatpush1.msra.mxu0 0.0
          %5334 = vmatprep.subr.mxu0 0.0
          %5335 = vmatpush1.msra.mxu0 0.0
          %5336 = vmatprep.subr.mxu0 0.0
          %5337 = vmatpush1.msra.mxu0 0.0
          %5338 = vmatprep.subr.mxu0 0.0
          %5339 = vmatpush1.msra.mxu0 0.0
          %5340 = vmatprep.subr.mxu0 0.0
          %5341 = vmatpush1.msra.mxu0 0.0
          %5342 = vmatprep.subr.mxu0 0.0
          %5343 = vmatpush1.msra.mxu0 0.0
          %5344 = vmatprep.subr.mxu0 0.0
          %5345 = vmatpush1.msra.mxu0 0.0
          %5346 = vmatprep.subr.mxu0 0.0
          %5347 = vmatpush1.msra.mxu0 0.0
          %5348 = vmatprep.subr.mxu0 0.0
          %5349 = vmatpush1.msra.mxu0 0.0
          %5350 = vmatprep.mubr.f32.mxu0 0.0
          %5351 = vmatmul.mubr.f32.gmra.mrb[0].mxu0 %v5239
          %v5352 = vpop.f32.mrb[0].mxu0
          %v5353 = vadd.f32 %v5144, %v5352
          %v5354 = vpop.f32.mrb[0].mxu0
          %v5355 = vadd.f32 %v5146, %v5354
          %5356 = vmatprep.mubr.f32.mxu0 0.0
          %5357 = vmatmul.mubr.f32.gmra.mrb[0].mxu0 %v5242
          %v5358 = vpop.f32.mrb[0].mxu0
          %v5359 = vadd.f32 %v5150, %v5358
          %v5360 = vpop.f32.mrb[0].mxu0
          %v5361 = vadd.f32 %v5152, %v5360
          %5362 = vmatprep.mubr.f32.mxu0 0.0
          %5363 = vmatmul.mubr.f32.gmra.mrb[0].mxu0 %v5245
          %v5364 = vpop.f32.mrb[0].mxu0
          %v5365 = vadd.f32 %v5156, %v5364
          %v5366 = vpop.f32.mrb[0].mxu0
          %v5367 = vadd.f32 %v5158, %v5366
          %5368 = vmatprep.mubr.f32.mxu0 0.0
          %5369 = vmatmul.mubr.f32.gmra.mrb[0].mxu0 %v5248
          %v5370 = vpop.f32.mrb[0].mxu0
          %v5371 = vadd.f32 %v5162, %v5370
          %v5372 = vpop.f32.mrb[0].mxu0
          %v5373 = vadd.f32 %v5164, %v5372
          %5374 = vmatprep.mubr.f32.mxu0 0.0
          %5375 = vmatmul.mubr.f32.gmra.mrb[0].mxu0 %v5251
          %v5376 = vpop.f32.mrb[0].mxu0
          %v5377 = vadd.f32 %v5168, %v5376
          %v5378 = vpop.f32.mrb[0].mxu0
          %v5379 = vadd.f32 %v5170, %v5378
          %5380 = vmatprep.mubr.f32.mxu0 0.0
          %5381 = vmatmul.mubr.f32.gmra.mrb[0].mxu0 %v5254
          %v5382 = vpop.f32.mrb[0].mxu0
          %v5383 = vadd.f32 %v5174, %v5382
          %v5384 = vpop.f32.mrb[0].mxu0
          %v5385 = vadd.f32 %v5176, %v5384
          %5386 = vmatprep.mubr.f32.mxu0 0.0
          %5387 = vmatmul.mubr.f32.gmra.mrb[0].mxu0 %v5257
          %v5388 = vpop.f32.mrb[0].mxu0
          %v5389 = vadd.f32 %v5180, %v5388
          %v5390 = vpop.f32.mrb[0].mxu0
          %v5391 = vadd.f32 %v5182, %v5390
          %5392 = vmatprep.mubr.f32.mxu0 0.0
          %5393 = vmatmul.mubr.f32.gmra.mrb[0].mxu0 %v5260
          %v5394 = vpop.f32.mrb[0].mxu0
          %v5395 = vadd.f32 %v5186, %v5394
          %v5396 = vpop.f32.mrb[0].mxu0
          %v5397 = vadd.f32 %v5188, %v5396
          %5398 = vmatprep.mubr.f32.mxu0 0.0
          %5399 = vmatmul.mubr.f32.gmra.mrb[0].mxu0 %v5263
          %v5400 = vpop.f32.mrb[0].mxu0
          %v5401 = vadd.f32 %v5192, %v5400
          %v5402 = vpop.f32.mrb[0].mxu0
          %v5403 = vadd.f32 %v5194, %v5402
          %5404 = vmatprep.mubr.f32.mxu0 0.0
          %5405 = vmatmul.mubr.f32.gmra.mrb[0].mxu0 %v5266
          %v5406 = vpop.f32.mrb[0].mxu0
          %v5407 = vadd.f32 %v5198, %v5406
          %v5408 = vpop.f32.mrb[0].mxu0
          %v5409 = vadd.f32 %v5200, %v5408
          %5410 = vmatprep.mubr.f32.mxu0 0.0
          %5411 = vmatmul.mubr.f32.gmra.mrb[0].mxu0 %v5269
          %v5412 = vpop.f32.mrb[0].mxu0
          %v5413 = vadd.f32 %v5204, %v5412
          %v5414 = vpop.f32.mrb[0].mxu0
          %v5415 = vadd.f32 %v5206, %v5414
          %5416 = vmatprep.mubr.f32.mxu0 0.0
          %5417 = vmatmul.mubr.f32.gmra.mrb[0].mxu0 %v5272
          %v5418 = vpop.f32.mrb[0].mxu0
          %v5419 = vadd.f32 %v5210, %v5418
          %v5420 = vpop.f32.mrb[0].mxu0
          %v5421 = vadd.f32 %v5212, %v5420
          %5422 = vmatprep.mubr.f32.mxu0 0.0
          %5423 = vmatmul.mubr.f32.gmra.mrb[0].mxu0 %v5275
          %v5424 = vpop.f32.mrb[0].mxu0
          %v5425 = vadd.f32 %v5216, %v5424
          %v5426 = vpop.f32.mrb[0].mxu0
          %v5427 = vadd.f32 %v5218, %v5426
          %5428 = vmatprep.mubr.f32.mxu0 0.0
          %5429 = vmatmul.mubr.f32.gmra.mrb[0].mxu0 %v5278
          %v5430 = vpop.f32.mrb[0].mxu0
          %v5431 = vadd.f32 %v5222, %v5430
          %v5432 = vpop.f32.mrb[0].mxu0
          %v5433 = vadd.f32 %v5224, %v5432
          %5434 = vmatprep.mubr.f32.mxu0 0.0
          %5435 = vmatmul.mubr.f32.gmra.mrb[0].mxu0 %v5281
          %v5436 = vpop.f32.mrb[0].mxu0
          %v5437 = vadd.f32 %v5228, %v5436
          %v5438 = vpop.f32.mrb[0].mxu0
          %v5439 = vadd.f32 %v5230, %v5438
          %5440 = vmatprep.mubr.f32.mxu0 0.0
          %5441 = vmatmul.mubr.f32.gmra.mrb[0].mxu0 %v5284
          %v5442 = vpop.f32.mrb[0].mxu0
          %v5443 = vadd.f32 %v5234, %v5442
          %v5444 = vpop.f32.mrb[0].mxu0
          %v5445 = vadd.f32 %v5236, %v5444
          %5446 = vdwg.mxu0
          %v5447 = vld [vmem:[%s13] sm:$0xff]
          %v5448 = vld [vmem:[%s13 + $0x8] sm:$0xff]
          %v5449 = vld [vmem:[%s13 + $0x10] sm:$0xf]
          %v5450 = vld [vmem:[%s13 + $0x18] sm:$0xf]
          %v5452 = vsel %vm4224, %v4709, 0
          %v5455 = vsel %vm4224, %v4710, 0
          %v5458 = vsel %vm4224, %v4711, 0
          %v5461 = vsel %vm4224, %v4712, 0
          %v5464 = vsel %vm4224, %v4713, 0
          %v5467 = vsel %vm4224, %v4714, 0
          %v5470 = vsel %vm4224, %v4715, 0
          %v5473 = vsel %vm4224, %v4716, 0
          %v5476 = vsel %vm4224, %v4717, 0
          %v5479 = vsel %vm4224, %v4718, 0
          %v5482 = vsel %vm4224, %v4719, 0
          %v5485 = vsel %vm4224, %v4720, 0
          %v5488 = vsel %vm4224, %v4721, 0
          %v5491 = vsel %vm4224, %v4722, 0
          %v5494 = vsel %vm4224, %v4723, 0
          %v5497 = vsel %vm4224, %v4724, 0
          %vm5499 = vcmask 1043456
          %v5501 = vsel %vm5499, %v5449, 0
          %v5504 = vsel %vm5499, %v5450, 0
          %5506 = vmatprep.subr.mxu0 %v5448
          %5507 = vmatpush1.msra.mxu0 %v5447
          %5508 = vmatprep.subr.mxu0 %v5504
          %5509 = vmatpush1.msra.mxu0 %v5501
          %5510 = vmatprep.subr.mxu0 0.0
          %5511 = vmatpush1.msra.mxu0 0.0
          %5512 = vmatprep.subr.mxu0 0.0
          %5513 = vmatpush1.msra.mxu0 0.0
          %5514 = vmatprep.subr.mxu0 0.0
          %5515 = vmatpush1.msra.mxu0 0.0
          %5516 = vmatprep.subr.mxu0 0.0
          %5517 = vmatpush1.msra.mxu0 0.0
          %5518 = vmatprep.subr.mxu0 0.0
          %5519 = vmatpush1.msra.mxu0 0.0
          %5520 = vmatprep.subr.mxu0 0.0
          %5521 = vmatpush1.msra.mxu0 0.0
          %5522 = vmatprep.subr.mxu0 0.0
          %5523 = vmatpush1.msra.mxu0 0.0
          %5524 = vmatprep.subr.mxu0 0.0
          %5525 = vmatpush1.msra.mxu0 0.0
          %5526 = vmatprep.subr.mxu0 0.0
          %5527 = vmatpush1.msra.mxu0 0.0
          %5528 = vmatprep.subr.mxu0 0.0
          %5529 = vmatpush1.msra.mxu0 0.0
          %5530 = vmatprep.subr.mxu0 0.0
          %5531 = vmatpush1.msra.mxu0 0.0
          %5532 = vmatprep.subr.mxu0 0.0
          %5533 = vmatpush1.msra.mxu0 0.0
          %5534 = vmatprep.subr.mxu0 0.0
          %5535 = vmatpush1.msra.mxu0 0.0
          %5536 = vmatprep.subr.mxu0 0.0
          %5537 = vmatpush1.msra.mxu0 0.0
          %5538 = vmatprep.subr.mxu0 0.0
          %5539 = vmatpush1.msra.mxu0 0.0
          %5540 = vmatprep.subr.mxu0 0.0
          %5541 = vmatpush1.msra.mxu0 0.0
          %5542 = vmatprep.subr.mxu0 0.0
          %5543 = vmatpush1.msra.mxu0 0.0
          %5544 = vmatprep.subr.mxu0 0.0
          %5545 = vmatpush1.msra.mxu0 0.0
          %5546 = vmatprep.subr.mxu0 0.0
          %5547 = vmatpush1.msra.mxu0 0.0
          %5548 = vmatprep.subr.mxu0 0.0
          %5549 = vmatpush1.msra.mxu0 0.0
          %5550 = vmatprep.subr.mxu0 0.0
          %5551 = vmatpush1.msra.mxu0 0.0
          %5552 = vmatprep.subr.mxu0 0.0
          %5553 = vmatpush1.msra.mxu0 0.0
          %5554 = vmatprep.subr.mxu0 0.0
          %5555 = vmatpush1.msra.mxu0 0.0
          %5556 = vmatprep.subr.mxu0 0.0
          %5557 = vmatpush1.msra.mxu0 0.0
          %5558 = vmatprep.subr.mxu0 0.0
          %5559 = vmatpush1.msra.mxu0 0.0
          %5560 = vmatprep.subr.mxu0 0.0
          %5561 = vmatpush1.msra.mxu0 0.0
          %5562 = vmatprep.subr.mxu0 0.0
          %5563 = vmatpush1.msra.mxu0 0.0
          %5564 = vmatprep.subr.mxu0 0.0
          %5565 = vmatpush1.msra.mxu0 0.0
          %5566 = vmatprep.subr.mxu0 0.0
          %5567 = vmatpush1.msra.mxu0 0.0
          %5568 = vmatprep.subr.mxu0 0.0
          %5569 = vmatpush1.msra.mxu0 0.0
          %5570 = vmatprep.mubr.f32.mxu0 0.0
          %5571 = vmatmul.mubr.f32.gmra.mrb[0].mxu0 %v5452
          %v5572 = vpop.f32.mrb[0].mxu0
          %v5573 = vadd.f32 0.0, %v5572
          %v5574 = vpop.f32.mrb[0].mxu0
          %v5575 = vadd.f32 0.0, %v5574
          %5576 = vmatprep.mubr.f32.mxu0 0.0
          %5577 = vmatmul.mubr.f32.gmra.mrb[0].mxu0 %v5455
          %v5578 = vpop.f32.mrb[0].mxu0
          %v5579 = vadd.f32 0.0, %v5578
          %v5580 = vpop.f32.mrb[0].mxu0
          %v5581 = vadd.f32 0.0, %v5580
          %5582 = vmatprep.mubr.f32.mxu0 0.0
          %5583 = vmatmul.mubr.f32.gmra.mrb[0].mxu0 %v5458
          %v5584 = vpop.f32.mrb[0].mxu0
          %v5585 = vadd.f32 0.0, %v5584
          %v5586 = vpop.f32.mrb[0].mxu0
          %v5587 = vadd.f32 0.0, %v5586
          %5588 = vmatprep.mubr.f32.mxu0 0.0
          %5589 = vmatmul.mubr.f32.gmra.mrb[0].mxu0 %v5461
          %v5590 = vpop.f32.mrb[0].mxu0
          %v5591 = vadd.f32 0.0, %v5590
          %v5592 = vpop.f32.mrb[0].mxu0
          %v5593 = vadd.f32 0.0, %v5592
          %5594 = vmatprep.mubr.f32.mxu0 0.0
          %5595 = vmatmul.mubr.f32.gmra.mrb[0].mxu0 %v5464
          %v5596 = vpop.f32.mrb[0].mxu0
          %v5597 = vadd.f32 0.0, %v5596
          %v5598 = vpop.f32.mrb[0].mxu0
          %v5599 = vadd.f32 0.0, %v5598
          %5600 = vmatprep.mubr.f32.mxu0 0.0
          %5601 = vmatmul.mubr.f32.gmra.mrb[0].mxu0 %v5467
          %v5602 = vpop.f32.mrb[0].mxu0
          %v5603 = vadd.f32 0.0, %v5602
          %v5604 = vpop.f32.mrb[0].mxu0
          %v5605 = vadd.f32 0.0, %v5604
          %5606 = vmatprep.mubr.f32.mxu0 0.0
          %5607 = vmatmul.mubr.f32.gmra.mrb[0].mxu0 %v5470
          %v5608 = vpop.f32.mrb[0].mxu0
          %v5609 = vadd.f32 0.0, %v5608
          %v5610 = vpop.f32.mrb[0].mxu0
          %v5611 = vadd.f32 0.0, %v5610
          %5612 = vmatprep.mubr.f32.mxu0 0.0
          %5613 = vmatmul.mubr.f32.gmra.mrb[0].mxu0 %v5473
          %v5614 = vpop.f32.mrb[0].mxu0
          %v5615 = vadd.f32 0.0, %v5614
          %v5616 = vpop.f32.mrb[0].mxu0
          %v5617 = vadd.f32 0.0, %v5616
          %5618 = vmatprep.mubr.f32.mxu0 0.0
          %5619 = vmatmul.mubr.f32.gmra.mrb[0].mxu0 %v5476
          %v5620 = vpop.f32.mrb[0].mxu0
          %v5621 = vadd.f32 0.0, %v5620
          %v5622 = vpop.f32.mrb[0].mxu0
          %v5623 = vadd.f32 0.0, %v5622
          %5624 = vmatprep.mubr.f32.mxu0 0.0
          %5625 = vmatmul.mubr.f32.gmra.mrb[0].mxu0 %v5479
          %v5626 = vpop.f32.mrb[0].mxu0
          %v5627 = vadd.f32 0.0, %v5626
          %v5628 = vpop.f32.mrb[0].mxu0
          %v5629 = vadd.f32 0.0, %v5628
          %5630 = vmatprep.mubr.f32.mxu0 0.0
          %5631 = vmatmul.mubr.f32.gmra.mrb[0].mxu0 %v5482
          %v5632 = vpop.f32.mrb[0].mxu0
          %v5633 = vadd.f32 0.0, %v5632
          %v5634 = vpop.f32.mrb[0].mxu0
          %v5635 = vadd.f32 0.0, %v5634
          %5636 = vmatprep.mubr.f32.mxu0 0.0
          %5637 = vmatmul.mubr.f32.gmra.mrb[0].mxu0 %v5485
          %v5638 = vpop.f32.mrb[0].mxu0
          %v5639 = vadd.f32 0.0, %v5638
          %v5640 = vpop.f32.mrb[0].mxu0
          %v5641 = vadd.f32 0.0, %v5640
          %5642 = vmatprep.mubr.f32.mxu0 0.0
          %5643 = vmatmul.mubr.f32.gmra.mrb[0].mxu0 %v5488
          %v5644 = vpop.f32.mrb[0].mxu0
          %v5645 = vadd.f32 0.0, %v5644
          %v5646 = vpop.f32.mrb[0].mxu0
          %v5647 = vadd.f32 0.0, %v5646
          %5648 = vmatprep.mubr.f32.mxu0 0.0
          %5649 = vmatmul.mubr.f32.gmra.mrb[0].mxu0 %v5491
          %v5650 = vpop.f32.mrb[0].mxu0
          %v5651 = vadd.f32 0.0, %v5650
          %v5652 = vpop.f32.mrb[0].mxu0
          %v5653 = vadd.f32 0.0, %v5652
          %5654 = vmatprep.mubr.f32.mxu0 0.0
          %5655 = vmatmul.mubr.f32.gmra.mrb[0].mxu0 %v5494
          %v5656 = vpop.f32.mrb[0].mxu0
          %v5657 = vadd.f32 0.0, %v5656
          %v5658 = vpop.f32.mrb[0].mxu0
          %v5659 = vadd.f32 0.0, %v5658
          %5660 = vmatprep.mubr.f32.mxu0 0.0
          %5661 = vmatmul.mubr.f32.gmra.mrb[0].mxu0 %v5497
          %v5662 = vpop.f32.mrb[0].mxu0
          %v5663 = vadd.f32 0.0, %v5662
          %v5664 = vpop.f32.mrb[0].mxu0
          %v5665 = vadd.f32 0.0, %v5664
          %5666 = vdwg.mxu0
          %v5667 = vadd.f32 %v5353, %v5573
          %v5668 = vadd.f32 %v5355, %v5575
          %v5669 = vadd.f32 %v5359, %v5579
          %v5670 = vadd.f32 %v5361, %v5581
          %v5671 = vadd.f32 %v5365, %v5585
          %v5672 = vadd.f32 %v5367, %v5587
          %v5673 = vadd.f32 %v5371, %v5591
          %v5674 = vadd.f32 %v5373, %v5593
          %v5675 = vadd.f32 %v5377, %v5597
          %v5676 = vadd.f32 %v5379, %v5599
          %v5677 = vadd.f32 %v5383, %v5603
          %v5678 = vadd.f32 %v5385, %v5605
          %v5679 = vadd.f32 %v5389, %v5609
          %v5680 = vadd.f32 %v5391, %v5611
          %v5681 = vadd.f32 %v5395, %v5615
          %v5682 = vadd.f32 %v5397, %v5617
          %v5683 = vadd.f32 %v5401, %v5621
          %v5684 = vadd.f32 %v5403, %v5623
          %v5685 = vadd.f32 %v5407, %v5627
          %v5686 = vadd.f32 %v5409, %v5629
          %v5687 = vadd.f32 %v5413, %v5633
          %v5688 = vadd.f32 %v5415, %v5635
          %v5689 = vadd.f32 %v5419, %v5639
          %v5690 = vadd.f32 %v5421, %v5641
          %v5691 = vadd.f32 %v5425, %v5645
          %v5692 = vadd.f32 %v5427, %v5647
          %v5693 = vadd.f32 %v5431, %v5651
          %v5694 = vadd.f32 %v5433, %v5653
          %v5695 = vadd.f32 %v5437, %v5657
          %v5696 = vadd.f32 %v5439, %v5659
          %v5697 = vadd.f32 %v5443, %v5663
          %v5698 = vadd.f32 %v5445, %v5665
          %v5699 = vld [vmem:[%s15] sm:$0x3]
          %v5701 = vlaneseq
          %v5702 = vshrl.u32 %v5701, 7
          %v5703 = vsub.s32 0, %v5702
          %v5704 = vrot.slane %v5699, %v5703
          %v5705 = vlaneseq
          %v5706 = vshrl.u32 %v5705, 7
          %v5707 = vsub.s32 1, %v5706
          %v5708 = vrot.slane %v5699, %v5707
          %v5711 = vadd.f32 %v5667, %v5704
          %v5712 = vadd.f32 %v5668, %v5708
          %v5713 = vadd.f32 %v5669, %v5704
          %v5714 = vadd.f32 %v5670, %v5708
          %v5715 = vadd.f32 %v5671, %v5704
          %v5716 = vadd.f32 %v5672, %v5708
          %v5717 = vadd.f32 %v5673, %v5704
          %v5718 = vadd.f32 %v5674, %v5708
          %v5719 = vadd.f32 %v5675, %v5704
          %v5720 = vadd.f32 %v5676, %v5708
          %v5721 = vadd.f32 %v5677, %v5704
          %v5722 = vadd.f32 %v5678, %v5708
          %v5723 = vadd.f32 %v5679, %v5704
          %v5724 = vadd.f32 %v5680, %v5708
          %v5725 = vadd.f32 %v5681, %v5704
          %v5726 = vadd.f32 %v5682, %v5708
          %v5727 = vadd.f32 %v5683, %v5704
          %v5728 = vadd.f32 %v5684, %v5708
          %v5729 = vadd.f32 %v5685, %v5704
          %v5730 = vadd.f32 %v5686, %v5708
          %v5731 = vadd.f32 %v5687, %v5704
          %v5732 = vadd.f32 %v5688, %v5708
          %v5733 = vadd.f32 %v5689, %v5704
          %v5734 = vadd.f32 %v5690, %v5708
          %v5735 = vadd.f32 %v5691, %v5704
          %v5736 = vadd.f32 %v5692, %v5708
          %v5737 = vadd.f32 %v5693, %v5704
          %v5738 = vadd.f32 %v5694, %v5708
          %v5739 = vadd.f32 %v5695, %v5704
          %v5740 = vadd.f32 %v5696, %v5708
          %v5741 = vadd.f32 %v5697, %v5704
          %v5742 = vadd.f32 %v5698, %v5708
          %vm5743 = vcmp.gt.f32.partialorder %v5711, 0.0
          %vm5744 = vcmp.gt.f32.partialorder %v5712, 0.0
          %vm5745 = vcmp.gt.f32.partialorder %v5713, 0.0
          %vm5746 = vcmp.gt.f32.partialorder %v5714, 0.0
          %vm5747 = vcmp.gt.f32.partialorder %v5715, 0.0
          %vm5748 = vcmp.gt.f32.partialorder %v5716, 0.0
          %vm5749 = vcmp.gt.f32.partialorder %v5717, 0.0
          %vm5750 = vcmp.gt.f32.partialorder %v5718, 0.0
          %vm5751 = vcmp.gt.f32.partialorder %v5719, 0.0
          %vm5752 = vcmp.gt.f32.partialorder %v5720, 0.0
          %vm5753 = vcmp.gt.f32.partialorder %v5721, 0.0
          %vm5754 = vcmp.gt.f32.partialorder %v5722, 0.0
          %vm5755 = vcmp.gt.f32.partialorder %v5723, 0.0
          %vm5756 = vcmp.gt.f32.partialorder %v5724, 0.0
          %vm5757 = vcmp.gt.f32.partialorder %v5725, 0.0
          %vm5758 = vcmp.gt.f32.partialorder %v5726, 0.0
          %vm5759 = vcmp.gt.f32.partialorder %v5727, 0.0
          %vm5760 = vcmp.gt.f32.partialorder %v5728, 0.0
          %vm5761 = vcmp.gt.f32.partialorder %v5729, 0.0
          %vm5762 = vcmp.gt.f32.partialorder %v5730, 0.0
          %vm5763 = vcmp.gt.f32.partialorder %v5731, 0.0
          %vm5764 = vcmp.gt.f32.partialorder %v5732, 0.0
          %vm5765 = vcmp.gt.f32.partialorder %v5733, 0.0
          %vm5766 = vcmp.gt.f32.partialorder %v5734, 0.0
          %vm5767 = vcmp.gt.f32.partialorder %v5735, 0.0
          %vm5768 = vcmp.gt.f32.partialorder %v5736, 0.0
          %vm5769 = vcmp.gt.f32.partialorder %v5737, 0.0
          %vm5770 = vcmp.gt.f32.partialorder %v5738, 0.0
          %vm5771 = vcmp.gt.f32.partialorder %v5739, 0.0
          %vm5772 = vcmp.gt.f32.partialorder %v5740, 0.0
          %vm5773 = vcmp.gt.f32.partialorder %v5741, 0.0
          %vm5774 = vcmp.gt.f32.partialorder %v5742, 0.0
          %v5775 = vmul.f32 %v5711, 0.01
          %v5776 = vmul.f32 %v5712, 0.01
          %v5777 = vmul.f32 %v5713, 0.01
          %v5778 = vmul.f32 %v5714, 0.01
          %v5779 = vmul.f32 %v5715, 0.01
          %v5780 = vmul.f32 %v5716, 0.01
          %v5781 = vmul.f32 %v5717, 0.01
          %v5782 = vmul.f32 %v5718, 0.01
          %v5783 = vmul.f32 %v5719, 0.01
          %v5784 = vmul.f32 %v5720, 0.01
          %v5785 = vmul.f32 %v5721, 0.01
          %v5786 = vmul.f32 %v5722, 0.01
          %v5787 = vmul.f32 %v5723, 0.01
          %v5788 = vmul.f32 %v5724, 0.01
          %v5789 = vmul.f32 %v5725, 0.01
          %v5790 = vmul.f32 %v5726, 0.01
          %v5791 = vmul.f32 %v5727, 0.01
          %v5792 = vmul.f32 %v5728, 0.01
          %v5793 = vmul.f32 %v5729, 0.01
          %v5794 = vmul.f32 %v5730, 0.01
          %v5795 = vmul.f32 %v5731, 0.01
          %v5796 = vmul.f32 %v5732, 0.01
          %v5797 = vmul.f32 %v5733, 0.01
          %v5798 = vmul.f32 %v5734, 0.01
          %v5799 = vmul.f32 %v5735, 0.01
          %v5800 = vmul.f32 %v5736, 0.01
          %v5801 = vmul.f32 %v5737, 0.01
          %v5802 = vmul.f32 %v5738, 0.01
          %v5803 = vmul.f32 %v5739, 0.01
          %v5804 = vmul.f32 %v5740, 0.01
          %v5805 = vmul.f32 %v5741, 0.01
          %v5806 = vmul.f32 %v5742, 0.01
          %v5807 = vsel %vm5743, %v5711, %v5775
          %v5808 = vsel %vm5744, %v5712, %v5776
          %v5809 = vsel %vm5745, %v5713, %v5777
          %v5810 = vsel %vm5746, %v5714, %v5778
          %v5811 = vsel %vm5747, %v5715, %v5779
          %v5812 = vsel %vm5748, %v5716, %v5780
          %v5813 = vsel %vm5749, %v5717, %v5781
          %v5814 = vsel %vm5750, %v5718, %v5782
          %v5815 = vsel %vm5751, %v5719, %v5783
          %v5816 = vsel %vm5752, %v5720, %v5784
          %v5817 = vsel %vm5753, %v5721, %v5785
          %v5818 = vsel %vm5754, %v5722, %v5786
          %v5819 = vsel %vm5755, %v5723, %v5787
          %v5820 = vsel %vm5756, %v5724, %v5788
          %v5821 = vsel %vm5757, %v5725, %v5789
          %v5822 = vsel %vm5758, %v5726, %v5790
          %v5823 = vsel %vm5759, %v5727, %v5791
          %v5824 = vsel %vm5760, %v5728, %v5792
          %v5825 = vsel %vm5761, %v5729, %v5793
          %v5826 = vsel %vm5762, %v5730, %v5794
          %v5827 = vsel %vm5763, %v5731, %v5795
          %v5828 = vsel %vm5764, %v5732, %v5796
          %v5829 = vsel %vm5765, %v5733, %v5797
          %v5830 = vsel %vm5766, %v5734, %v5798
          %v5831 = vsel %vm5767, %v5735, %v5799
          %v5832 = vsel %vm5768, %v5736, %v5800
          %v5833 = vsel %vm5769, %v5737, %v5801
          %v5834 = vsel %vm5770, %v5738, %v5802
          %v5835 = vsel %vm5771, %v5739, %v5803
          %v5836 = vsel %vm5772, %v5740, %v5804
          %v5837 = vsel %vm5773, %v5741, %v5805
          %v5838 = vsel %vm5774, %v5742, %v5806
          %v5839 = vld [vmem:[%s17] sm:$0xff]
          %v5840 = vld [vmem:[%s17 + $0x8] sm:$0xf]
          %v5841 = vld [vmem:[%s19] sm:$0xff]
          %v5842 = vld [vmem:[%s19 + $0x8] sm:$0xff]
          %v5843 = vld [vmem:[%s19 + $0x10] sm:$0xff]
          %v5844 = vld [vmem:[%s19 + $0x18] sm:$0xff]
          %v5845 = vld [vmem:[%s19 + $0x20] sm:$0xff]
          %v5846 = vld [vmem:[%s19 + $0x28] sm:$0xff]
          %v5847 = vld [vmem:[%s19 + $0x30] sm:$0xff]
          %v5848 = vld [vmem:[%s19 + $0x38] sm:$0xff]
          %v5849 = vld [vmem:[%s19 + $0x40] sm:$0xff]
          %v5850 = vld [vmem:[%s19 + $0x48] sm:$0xff]
          %v5851 = vld [vmem:[%s19 + $0x50] sm:$0xff]
          %v5852 = vld [vmem:[%s19 + $0x58] sm:$0xff]
          %v5853 = vld [vmem:[%s19 + $0x60] sm:$0xff]
          %v5854 = vld [vmem:[%s19 + $0x68] sm:$0xff]
          %v5855 = vld [vmem:[%s19 + $0x70] sm:$0xff]
          %v5856 = vld [vmem:[%s19 + $0x78] sm:$0xff]
          %v5857 = vld [vmem:[%s19 + $0x80] sm:$0xff]
          %v5858 = vld [vmem:[%s19 + $0x88] sm:$0xff]
          %v5859 = vld [vmem:[%s19 + $0x90] sm:$0xff]
          %v5860 = vld [vmem:[%s19 + $0x98] sm:$0xff]
          %v5861 = vld [vmem:[%s19 + $0xa0] sm:$0xff]
          %v5862 = vld [vmem:[%s19 + $0xa8] sm:$0xff]
          %v5863 = vld [vmem:[%s19 + $0xb0] sm:$0xff]
          %v5864 = vld [vmem:[%s19 + $0xb8] sm:$0xff]
          %v5865 = vld [vmem:[%s19 + $0xc0] sm:$0xff]
          %v5866 = vld [vmem:[%s19 + $0xc8] sm:$0xff]
          %v5867 = vld [vmem:[%s19 + $0xd0] sm:$0xff]
          %v5868 = vld [vmem:[%s19 + $0xd8] sm:$0xff]
          %v5869 = vld [vmem:[%s19 + $0xe0] sm:$0xff]
          %v5870 = vld [vmem:[%s19 + $0xe8] sm:$0xff]
          %v5871 = vld [vmem:[%s19 + $0xf0] sm:$0xff]
          %v5872 = vld [vmem:[%s19 + $0xf8] sm:$0xff]
          %5873 = vmatprep.subr.mxu0 0.0
          %5874 = vmatpush1.msra.mxu0 %v5841
          %5875 = vmatprep.subr.mxu0 0.0
          %5876 = vmatpush1.msra.mxu0 %v5842
          %5877 = vmatprep.subr.mxu0 0.0
          %5878 = vmatpush1.msra.mxu0 %v5843
          %5879 = vmatprep.subr.mxu0 0.0
          %5880 = vmatpush1.msra.mxu0 %v5844
          %5881 = vmatprep.subr.mxu0 0.0
          %5882 = vmatpush1.msra.mxu0 %v5845
          %5883 = vmatprep.subr.mxu0 0.0
          %5884 = vmatpush1.msra.mxu0 %v5846
          %5885 = vmatprep.subr.mxu0 0.0
          %5886 = vmatpush1.msra.mxu0 %v5847
          %5887 = vmatprep.subr.mxu0 0.0
          %5888 = vmatpush1.msra.mxu0 %v5848
          %5889 = vmatprep.subr.mxu0 0.0
          %5890 = vmatpush1.msra.mxu0 %v5849
          %5891 = vmatprep.subr.mxu0 0.0
          %5892 = vmatpush1.msra.mxu0 %v5850
          %5893 = vmatprep.subr.mxu0 0.0
          %5894 = vmatpush1.msra.mxu0 %v5851
          %5895 = vmatprep.subr.mxu0 0.0
          %5896 = vmatpush1.msra.mxu0 %v5852
          %5897 = vmatprep.subr.mxu0 0.0
          %5898 = vmatpush1.msra.mxu0 %v5853
          %5899 = vmatprep.subr.mxu0 0.0
          %5900 = vmatpush1.msra.mxu0 %v5854
          %5901 = vmatprep.subr.mxu0 0.0
          %5902 = vmatpush1.msra.mxu0 %v5855
          %5903 = vmatprep.subr.mxu0 0.0
          %5904 = vmatpush1.msra.mxu0 %v5856
          %5905 = vmatprep.subr.mxu0 0.0
          %5906 = vmatpush1.msra.mxu0 %v5857
          %5907 = vmatprep.subr.mxu0 0.0
          %5908 = vmatpush1.msra.mxu0 %v5858
          %5909 = vmatprep.subr.mxu0 0.0
          %5910 = vmatpush1.msra.mxu0 %v5859
          %5911 = vmatprep.subr.mxu0 0.0
          %5912 = vmatpush1.msra.mxu0 %v5860
          %5913 = vmatprep.subr.mxu0 0.0
          %5914 = vmatpush1.msra.mxu0 %v5861
          %5915 = vmatprep.subr.mxu0 0.0
          %5916 = vmatpush1.msra.mxu0 %v5862
          %5917 = vmatprep.subr.mxu0 0.0
          %5918 = vmatpush1.msra.mxu0 %v5863
          %5919 = vmatprep.subr.mxu0 0.0
          %5920 = vmatpush1.msra.mxu0 %v5864
          %5921 = vmatprep.subr.mxu0 0.0
          %5922 = vmatpush1.msra.mxu0 %v5865
          %5923 = vmatprep.subr.mxu0 0.0
          %5924 = vmatpush1.msra.mxu0 %v5866
          %5925 = vmatprep.subr.mxu0 0.0
          %5926 = vmatpush1.msra.mxu0 %v5867
          %5927 = vmatprep.subr.mxu0 0.0
          %5928 = vmatpush1.msra.mxu0 %v5868
          %5929 = vmatprep.subr.mxu0 0.0
          %5930 = vmatpush1.msra.mxu0 %v5869
          %5931 = vmatprep.subr.mxu0 0.0
          %5932 = vmatpush1.msra.mxu0 %v5870
          %5933 = vmatprep.subr.mxu0 0.0
          %5934 = vmatpush1.msra.mxu0 %v5871
          %5935 = vmatprep.subr.mxu0 0.0
          %5936 = vmatpush1.msra.mxu0 %v5872
          %5937 = vmatprep.mubr.f32.mxu0 %v5808
          %5938 = vmatmul.mubr.f32.gmra.mrb[0].mxu0 %v5807
          %v5939 = vpop.f32.mrb[0].mxu0
          %v5940 = vadd.f32 0.0, %v5939
          %v5941 = vpop.f32.mrb[0].mxu0
          %5942 = vmatprep.mubr.f32.mxu0 %v5810
          %5943 = vmatmul.mubr.f32.gmra.mrb[0].mxu0 %v5809
          %v5944 = vpop.f32.mrb[0].mxu0
          %v5945 = vadd.f32 0.0, %v5944
          %v5946 = vpop.f32.mrb[0].mxu0
          %5947 = vmatprep.mubr.f32.mxu0 %v5812
          %5948 = vmatmul.mubr.f32.gmra.mrb[0].mxu0 %v5811
          %v5949 = vpop.f32.mrb[0].mxu0
          %v5950 = vadd.f32 0.0, %v5949
          %v5951 = vpop.f32.mrb[0].mxu0
          %5952 = vmatprep.mubr.f32.mxu0 %v5814
          %5953 = vmatmul.mubr.f32.gmra.mrb[0].mxu0 %v5813
          %v5954 = vpop.f32.mrb[0].mxu0
          %v5955 = vadd.f32 0.0, %v5954
          %v5956 = vpop.f32.mrb[0].mxu0
          %5957 = vmatprep.mubr.f32.mxu0 %v5816
          %5958 = vmatmul.mubr.f32.gmra.mrb[0].mxu0 %v5815
          %v5959 = vpop.f32.mrb[0].mxu0
          %v5960 = vadd.f32 0.0, %v5959
          %v5961 = vpop.f32.mrb[0].mxu0
          %5962 = vmatprep.mubr.f32.mxu0 %v5818
          %5963 = vmatmul.mubr.f32.gmra.mrb[0].mxu0 %v5817
          %v5964 = vpop.f32.mrb[0].mxu0
          %v5965 = vadd.f32 0.0, %v5964
          %v5966 = vpop.f32.mrb[0].mxu0
          %5967 = vmatprep.mubr.f32.mxu0 %v5820
          %5968 = vmatmul.mubr.f32.gmra.mrb[0].mxu0 %v5819
          %v5969 = vpop.f32.mrb[0].mxu0
          %v5970 = vadd.f32 0.0, %v5969
          %v5971 = vpop.f32.mrb[0].mxu0
          %5972 = vmatprep.mubr.f32.mxu0 %v5822
          %5973 = vmatmul.mubr.f32.gmra.mrb[0].mxu0 %v5821
          %v5974 = vpop.f32.mrb[0].mxu0
          %v5975 = vadd.f32 0.0, %v5974
          %v5976 = vpop.f32.mrb[0].mxu0
          %5977 = vmatprep.mubr.f32.mxu0 %v5824
          %5978 = vmatmul.mubr.f32.gmra.mrb[0].mxu0 %v5823
          %v5979 = vpop.f32.mrb[0].mxu0
          %v5980 = vadd.f32 0.0, %v5979
          %v5981 = vpop.f32.mrb[0].mxu0
          %5982 = vmatprep.mubr.f32.mxu0 %v5826
          %5983 = vmatmul.mubr.f32.gmra.mrb[0].mxu0 %v5825
          %v5984 = vpop.f32.mrb[0].mxu0
          %v5985 = vadd.f32 0.0, %v5984
          %v5986 = vpop.f32.mrb[0].mxu0
          %5987 = vmatprep.mubr.f32.mxu0 %v5828
          %5988 = vmatmul.mubr.f32.gmra.mrb[0].mxu0 %v5827
          %v5989 = vpop.f32.mrb[0].mxu0
          %v5990 = vadd.f32 0.0, %v5989
          %v5991 = vpop.f32.mrb[0].mxu0
          %5992 = vmatprep.mubr.f32.mxu0 %v5830
          %5993 = vmatmul.mubr.f32.gmra.mrb[0].mxu0 %v5829
          %v5994 = vpop.f32.mrb[0].mxu0
          %v5995 = vadd.f32 0.0, %v5994
          %v5996 = vpop.f32.mrb[0].mxu0
          %5997 = vmatprep.mubr.f32.mxu0 %v5832
          %5998 = vmatmul.mubr.f32.gmra.mrb[0].mxu0 %v5831
          %v5999 = vpop.f32.mrb[0].mxu0
          %v6000 = vadd.f32 0.0, %v5999
          %v6001 = vpop.f32.mrb[0].mxu0
          %6002 = vmatprep.mubr.f32.mxu0 %v5834
          %6003 = vmatmul.mubr.f32.gmra.mrb[0].mxu0 %v5833
          %v6004 = vpop.f32.mrb[0].mxu0
          %v6005 = vadd.f32 0.0, %v6004
          %v6006 = vpop.f32.mrb[0].mxu0
          %6007 = vmatprep.mubr.f32.mxu0 %v5836
          %6008 = vmatmul.mubr.f32.gmra.mrb[0].mxu0 %v5835
          %v6009 = vpop.f32.mrb[0].mxu0
          %v6010 = vadd.f32 0.0, %v6009
          %v6011 = vpop.f32.mrb[0].mxu0
          %6012 = vmatprep.mubr.f32.mxu0 %v5838
          %6013 = vmatmul.mubr.f32.gmra.mrb[0].mxu0 %v5837
          %v6014 = vpop.f32.mrb[0].mxu0
          %v6015 = vadd.f32 0.0, %v6014
          %v6016 = vpop.f32.mrb[0].mxu0
          %6017 = vdwg.mxu0
          %v6019 = vsel %vm5499, %v5840, 0
          %6021 = vmatprep.subr.mxu0 0.0
          %6022 = vmatpush1.msra.mxu0 %v5839
          %6023 = vmatprep.subr.mxu0 0.0
          %6024 = vmatpush1.msra.mxu0 %v6019
          %6025 = vmatprep.subr.mxu0 0.0
          %6026 = vmatpush1.msra.mxu0 0.0
          %6027 = vmatprep.subr.mxu0 0.0
          %6028 = vmatpush1.msra.mxu0 0.0
          %6029 = vmatprep.subr.mxu0 0.0
          %6030 = vmatpush1.msra.mxu0 0.0
          %6031 = vmatprep.subr.mxu0 0.0
          %6032 = vmatpush1.msra.mxu0 0.0
          %6033 = vmatprep.subr.mxu0 0.0
          %6034 = vmatpush1.msra.mxu0 0.0
          %6035 = vmatprep.subr.mxu0 0.0
          %6036 = vmatpush1.msra.mxu0 0.0
          %6037 = vmatprep.subr.mxu0 0.0
          %6038 = vmatpush1.msra.mxu0 0.0
          %6039 = vmatprep.subr.mxu0 0.0
          %6040 = vmatpush1.msra.mxu0 0.0
          %6041 = vmatprep.subr.mxu0 0.0
          %6042 = vmatpush1.msra.mxu0 0.0
          %6043 = vmatprep.subr.mxu0 0.0
          %6044 = vmatpush1.msra.mxu0 0.0
          %6045 = vmatprep.subr.mxu0 0.0
          %6046 = vmatpush1.msra.mxu0 0.0
          %6047 = vmatprep.subr.mxu0 0.0
          %6048 = vmatpush1.msra.mxu0 0.0
          %6049 = vmatprep.subr.mxu0 0.0
          %6050 = vmatpush1.msra.mxu0 0.0
          %6051 = vmatprep.subr.mxu0 0.0
          %6052 = vmatpush1.msra.mxu0 0.0
          %6053 = vmatprep.subr.mxu0 0.0
          %6054 = vmatpush1.msra.mxu0 0.0
          %6055 = vmatprep.subr.mxu0 0.0
          %6056 = vmatpush1.msra.mxu0 0.0
          %6057 = vmatprep.subr.mxu0 0.0
          %6058 = vmatpush1.msra.mxu0 0.0
          %6059 = vmatprep.subr.mxu0 0.0
          %6060 = vmatpush1.msra.mxu0 0.0
          %6061 = vmatprep.subr.mxu0 0.0
          %6062 = vmatpush1.msra.mxu0 0.0
          %6063 = vmatprep.subr.mxu0 0.0
          %6064 = vmatpush1.msra.mxu0 0.0
          %6065 = vmatprep.subr.mxu0 0.0
          %6066 = vmatpush1.msra.mxu0 0.0
          %6067 = vmatprep.subr.mxu0 0.0
          %6068 = vmatpush1.msra.mxu0 0.0
          %6069 = vmatprep.subr.mxu0 0.0
          %6070 = vmatpush1.msra.mxu0 0.0
          %6071 = vmatprep.subr.mxu0 0.0
          %6072 = vmatpush1.msra.mxu0 0.0
          %6073 = vmatprep.subr.mxu0 0.0
          %6074 = vmatpush1.msra.mxu0 0.0
          %6075 = vmatprep.subr.mxu0 0.0
          %6076 = vmatpush1.msra.mxu0 0.0
          %6077 = vmatprep.subr.mxu0 0.0
          %6078 = vmatpush1.msra.mxu0 0.0
          %6079 = vmatprep.subr.mxu0 0.0
          %6080 = vmatpush1.msra.mxu0 0.0
          %6081 = vmatprep.subr.mxu0 0.0
          %6082 = vmatpush1.msra.mxu0 0.0
          %6083 = vmatprep.subr.mxu0 0.0
          %6084 = vmatpush1.msra.mxu0 0.0
          %6085 = vmatprep.mubr.f32.mxu0 0.0
          %6086 = vmatmul.mubr.f32.gmra.mrb[0].mxu0 %v5452
          %v6087 = vpop.f32.mrb[0].mxu0
          %v6088 = vadd.f32 %v5940, %v6087
          %v6089 = vpop.f32.mrb[0].mxu0
          %6090 = vmatprep.mubr.f32.mxu0 0.0
          %6091 = vmatmul.mubr.f32.gmra.mrb[0].mxu0 %v5455
          %v6092 = vpop.f32.mrb[0].mxu0
          %v6093 = vadd.f32 %v5945, %v6092
          %v6094 = vpop.f32.mrb[0].mxu0
          %6095 = vmatprep.mubr.f32.mxu0 0.0
          %6096 = vmatmul.mubr.f32.gmra.mrb[0].mxu0 %v5458
          %v6097 = vpop.f32.mrb[0].mxu0
          %v6098 = vadd.f32 %v5950, %v6097
          %v6099 = vpop.f32.mrb[0].mxu0
          %6100 = vmatprep.mubr.f32.mxu0 0.0
          %6101 = vmatmul.mubr.f32.gmra.mrb[0].mxu0 %v5461
          %v6102 = vpop.f32.mrb[0].mxu0
          %v6103 = vadd.f32 %v5955, %v6102
          %v6104 = vpop.f32.mrb[0].mxu0
          %6105 = vmatprep.mubr.f32.mxu0 0.0
          %6106 = vmatmul.mubr.f32.gmra.mrb[0].mxu0 %v5464
          %v6107 = vpop.f32.mrb[0].mxu0
          %v6108 = vadd.f32 %v5960, %v6107
          %v6109 = vpop.f32.mrb[0].mxu0
          %6110 = vmatprep.mubr.f32.mxu0 0.0
          %6111 = vmatmul.mubr.f32.gmra.mrb[0].mxu0 %v5467
          %v6112 = vpop.f32.mrb[0].mxu0
          %v6113 = vadd.f32 %v5965, %v6112
          %v6114 = vpop.f32.mrb[0].mxu0
          %6115 = vmatprep.mubr.f32.mxu0 0.0
          %6116 = vmatmul.mubr.f32.gmra.mrb[0].mxu0 %v5470
          %v6117 = vpop.f32.mrb[0].mxu0
          %v6118 = vadd.f32 %v5970, %v6117
          %v6119 = vpop.f32.mrb[0].mxu0
          %6120 = vmatprep.mubr.f32.mxu0 0.0
          %6121 = vmatmul.mubr.f32.gmra.mrb[0].mxu0 %v5473
          %v6122 = vpop.f32.mrb[0].mxu0
          %v6123 = vadd.f32 %v5975, %v6122
          %v6124 = vpop.f32.mrb[0].mxu0
          %6125 = vmatprep.mubr.f32.mxu0 0.0
          %6126 = vmatmul.mubr.f32.gmra.mrb[0].mxu0 %v5476
          %v6127 = vpop.f32.mrb[0].mxu0
          %v6128 = vadd.f32 %v5980, %v6127
          %v6129 = vpop.f32.mrb[0].mxu0
          %6130 = vmatprep.mubr.f32.mxu0 0.0
          %6131 = vmatmul.mubr.f32.gmra.mrb[0].mxu0 %v5479
          %v6132 = vpop.f32.mrb[0].mxu0
          %v6133 = vadd.f32 %v5985, %v6132
          %v6134 = vpop.f32.mrb[0].mxu0
          %6135 = vmatprep.mubr.f32.mxu0 0.0
          %6136 = vmatmul.mubr.f32.gmra.mrb[0].mxu0 %v5482
          %v6137 = vpop.f32.mrb[0].mxu0
          %v6138 = vadd.f32 %v5990, %v6137
          %v6139 = vpop.f32.mrb[0].mxu0
          %6140 = vmatprep.mubr.f32.mxu0 0.0
          %6141 = vmatmul.mubr.f32.gmra.mrb[0].mxu0 %v5485
          %v6142 = vpop.f32.mrb[0].mxu0
          %v6143 = vadd.f32 %v5995, %v6142
          %v6144 = vpop.f32.mrb[0].mxu0
          %6145 = vmatprep.mubr.f32.mxu0 0.0
          %6146 = vmatmul.mubr.f32.gmra.mrb[0].mxu0 %v5488
          %v6147 = vpop.f32.mrb[0].mxu0
          %v6148 = vadd.f32 %v6000, %v6147
          %v6149 = vpop.f32.mrb[0].mxu0
          %6150 = vmatprep.mubr.f32.mxu0 0.0
          %6151 = vmatmul.mubr.f32.gmra.mrb[0].mxu0 %v5491
          %v6152 = vpop.f32.mrb[0].mxu0
          %v6153 = vadd.f32 %v6005, %v6152
          %v6154 = vpop.f32.mrb[0].mxu0
          %6155 = vmatprep.mubr.f32.mxu0 0.0
          %6156 = vmatmul.mubr.f32.gmra.mrb[0].mxu0 %v5494
          %v6157 = vpop.f32.mrb[0].mxu0
          %v6158 = vadd.f32 %v6010, %v6157
          %v6159 = vpop.f32.mrb[0].mxu0
          %6160 = vmatprep.mubr.f32.mxu0 0.0
          %6161 = vmatmul.mubr.f32.gmra.mrb[0].mxu0 %v5497
          %v6162 = vpop.f32.mrb[0].mxu0
          %v6163 = vadd.f32 %v6015, %v6162
          %v6164 = vpop.f32.mrb[0].mxu0
          %6165 = vdwg.mxu0
          %v6166 = vld [vmem:[%s21] sm:$0x1]
          %v6168 = vlaneseq
          %v6169 = vshrl.u32 %v6168, 7
          %v6170 = vsub.s32 0, %v6169
          %v6171 = vrot.slane %v6166, %v6170
          %v6173 = vadd.f32 %v6088, %v6171
          %v6174 = vadd.f32 %v6093, %v6171
          %v6175 = vadd.f32 %v6098, %v6171
          %v6176 = vadd.f32 %v6103, %v6171
          %v6177 = vadd.f32 %v6108, %v6171
          %v6178 = vadd.f32 %v6113, %v6171
          %v6179 = vadd.f32 %v6118, %v6171
          %v6180 = vadd.f32 %v6123, %v6171
          %v6181 = vadd.f32 %v6128, %v6171
          %v6182 = vadd.f32 %v6133, %v6171
          %v6183 = vadd.f32 %v6138, %v6171
          %v6184 = vadd.f32 %v6143, %v6171
          %v6185 = vadd.f32 %v6148, %v6171
          %v6186 = vadd.f32 %v6153, %v6171
          %v6187 = vadd.f32 %v6158, %v6171
          %v6188 = vadd.f32 %v6163, %v6171
          %vm6189 = vcmp.gt.f32.partialorder %v6173, 0.0
          %vm6190 = vcmp.gt.f32.partialorder %v6174, 0.0
          %vm6191 = vcmp.gt.f32.partialorder %v6175, 0.0
          %vm6192 = vcmp.gt.f32.partialorder %v6176, 0.0
          %vm6193 = vcmp.gt.f32.partialorder %v6177, 0.0
          %vm6194 = vcmp.gt.f32.partialorder %v6178, 0.0
          %vm6195 = vcmp.gt.f32.partialorder %v6179, 0.0
          %vm6196 = vcmp.gt.f32.partialorder %v6180, 0.0
          %vm6197 = vcmp.gt.f32.partialorder %v6181, 0.0
          %vm6198 = vcmp.gt.f32.partialorder %v6182, 0.0
          %vm6199 = vcmp.gt.f32.partialorder %v6183, 0.0
          %vm6200 = vcmp.gt.f32.partialorder %v6184, 0.0
          %vm6201 = vcmp.gt.f32.partialorder %v6185, 0.0
          %vm6202 = vcmp.gt.f32.partialorder %v6186, 0.0
          %vm6203 = vcmp.gt.f32.partialorder %v6187, 0.0
          %vm6204 = vcmp.gt.f32.partialorder %v6188, 0.0
          %v6205 = vmul.f32 %v6173, 0.01
          %v6206 = vmul.f32 %v6174, 0.01
          %v6207 = vmul.f32 %v6175, 0.01
          %v6208 = vmul.f32 %v6176, 0.01
          %v6209 = vmul.f32 %v6177, 0.01
          %v6210 = vmul.f32 %v6178, 0.01
          %v6211 = vmul.f32 %v6179, 0.01
          %v6212 = vmul.f32 %v6180, 0.01
          %v6213 = vmul.f32 %v6181, 0.01
          %v6214 = vmul.f32 %v6182, 0.01
          %v6215 = vmul.f32 %v6183, 0.01
          %v6216 = vmul.f32 %v6184, 0.01
          %v6217 = vmul.f32 %v6185, 0.01
          %v6218 = vmul.f32 %v6186, 0.01
          %v6219 = vmul.f32 %v6187, 0.01
          %v6220 = vmul.f32 %v6188, 0.01
          %v6221 = vsel %vm6189, %v6173, %v6205
          %v6222 = vsel %vm6190, %v6174, %v6206
          %v6223 = vsel %vm6191, %v6175, %v6207
          %v6224 = vsel %vm6192, %v6176, %v6208
          %v6225 = vsel %vm6193, %v6177, %v6209
          %v6226 = vsel %vm6194, %v6178, %v6210
          %v6227 = vsel %vm6195, %v6179, %v6211
          %v6228 = vsel %vm6196, %v6180, %v6212
          %v6229 = vsel %vm6197, %v6181, %v6213
          %v6230 = vsel %vm6198, %v6182, %v6214
          %v6231 = vsel %vm6199, %v6183, %v6215
          %v6232 = vsel %vm6200, %v6184, %v6216
          %v6233 = vsel %vm6201, %v6185, %v6217
          %v6234 = vsel %vm6202, %v6186, %v6218
          %v6235 = vsel %vm6203, %v6187, %v6219
          %v6236 = vsel %vm6204, %v6188, %v6220
          %v6237 = vld [vmem:[%s23] sm:$0xff]
          %v6238 = vld [vmem:[%s23 + $0x8] sm:$0xff]
          %v6239 = vld [vmem:[%s23 + $0x10] sm:$0xff]
          %v6240 = vld [vmem:[%s23 + $0x18] sm:$0xff]
          %v6241 = vld [vmem:[%s25] sm:$0x1]
          %v6243 = vlaneseq
          %v6244 = vshrl.u32 %v6243, 7
          %v6245 = vsub.s32 0, %v6244
          %v6246 = vrot.slane %v6241, %v6245
          %v6249 = vsel %vm1829, %v6221, 0
          %v6252 = vsel %vm1829, %v6222, 0
          %v6255 = vsel %vm1829, %v6223, 0
          %v6258 = vsel %vm1829, %v6224, 0
          %v6261 = vsel %vm1829, %v6225, 0
          %v6264 = vsel %vm1829, %v6226, 0
          %v6267 = vsel %vm1829, %v6227, 0
          %v6270 = vsel %vm1829, %v6228, 0
          %v6273 = vsel %vm1829, %v6229, 0
          %v6276 = vsel %vm1829, %v6230, 0
          %v6279 = vsel %vm1829, %v6231, 0
          %v6282 = vsel %vm1829, %v6232, 0
          %v6285 = vsel %vm1829, %v6233, 0
          %v6288 = vsel %vm1829, %v6234, 0
          %v6291 = vsel %vm1829, %v6235, 0
          %v6294 = vsel %vm1829, %v6236, 0
          %6296 = vmatprep.subr.mxu0 0.0
          %6297 = vmatpush1.msra.mxu0 %v6237
          %6298 = vmatprep.subr.mxu0 0.0
          %6299 = vmatpush1.msra.mxu0 %v6238
          %6300 = vmatprep.subr.mxu0 0.0
          %6301 = vmatpush1.msra.mxu0 %v6239
          %6302 = vmatprep.subr.mxu0 0.0
          %6303 = vmatpush1.msra.mxu0 %v6240
          %6304 = vmatprep.subr.mxu0 0.0
          %6305 = vmatpush1.msra.mxu0 0.0
          %6306 = vmatprep.subr.mxu0 0.0
          %6307 = vmatpush1.msra.mxu0 0.0
          %6308 = vmatprep.subr.mxu0 0.0
          %6309 = vmatpush1.msra.mxu0 0.0
          %6310 = vmatprep.subr.mxu0 0.0
          %6311 = vmatpush1.msra.mxu0 0.0
          %6312 = vmatprep.subr.mxu0 0.0
          %6313 = vmatpush1.msra.mxu0 0.0
          %6314 = vmatprep.subr.mxu0 0.0
          %6315 = vmatpush1.msra.mxu0 0.0
          %6316 = vmatprep.subr.mxu0 0.0
          %6317 = vmatpush1.msra.mxu0 0.0
          %6318 = vmatprep.subr.mxu0 0.0
          %6319 = vmatpush1.msra.mxu0 0.0
          %6320 = vmatprep.subr.mxu0 0.0
          %6321 = vmatpush1.msra.mxu0 0.0
          %6322 = vmatprep.subr.mxu0 0.0
          %6323 = vmatpush1.msra.mxu0 0.0
          %6324 = vmatprep.subr.mxu0 0.0
          %6325 = vmatpush1.msra.mxu0 0.0
          %6326 = vmatprep.subr.mxu0 0.0
          %6327 = vmatpush1.msra.mxu0 0.0
          %6328 = vmatprep.subr.mxu0 0.0
          %6329 = vmatpush1.msra.mxu0 0.0
          %6330 = vmatprep.subr.mxu0 0.0
          %6331 = vmatpush1.msra.mxu0 0.0
          %6332 = vmatprep.subr.mxu0 0.0
          %6333 = vmatpush1.msra.mxu0 0.0
          %6334 = vmatprep.subr.mxu0 0.0
          %6335 = vmatpush1.msra.mxu0 0.0
          %6336 = vmatprep.subr.mxu0 0.0
          %6337 = vmatpush1.msra.mxu0 0.0
          %6338 = vmatprep.subr.mxu0 0.0
          %6339 = vmatpush1.msra.mxu0 0.0
          %6340 = vmatprep.subr.mxu0 0.0
          %6341 = vmatpush1.msra.mxu0 0.0
          %6342 = vmatprep.subr.mxu0 0.0
          %6343 = vmatpush1.msra.mxu0 0.0
          %6344 = vmatprep.subr.mxu0 0.0
          %6345 = vmatpush1.msra.mxu0 0.0
          %6346 = vmatprep.subr.mxu0 0.0
          %6347 = vmatpush1.msra.mxu0 0.0
          %6348 = vmatprep.subr.mxu0 0.0
          %6349 = vmatpush1.msra.mxu0 0.0
          %6350 = vmatprep.subr.mxu0 0.0
          %6351 = vmatpush1.msra.mxu0 0.0
          %6352 = vmatprep.subr.mxu0 0.0
          %6353 = vmatpush1.msra.mxu0 0.0
          %6354 = vmatprep.subr.mxu0 0.0
          %6355 = vmatpush1.msra.mxu0 0.0
          %6356 = vmatprep.subr.mxu0 0.0
          %6357 = vmatpush1.msra.mxu0 0.0
          %6358 = vmatprep.subr.mxu0 0.0
          %6359 = vmatpush1.msra.mxu0 0.0
          %6360 = vmatprep.mubr.f32.mxu0 0.0
          %6361 = vmatmul.mubr.f32.gmra.mrb[0].mxu0 %v6249
          %v6362 = vpop.f32.mrb[0].mxu0
          %v6363 = vadd.f32 %v6246, %v6362
          %v6364 = vpop.f32.mrb[0].mxu0
          %6365 = vmatprep.mubr.f32.mxu0 0.0
          %6366 = vmatmul.mubr.f32.gmra.mrb[0].mxu0 %v6252
          %v6367 = vpop.f32.mrb[0].mxu0
          %v6368 = vadd.f32 %v6246, %v6367
          %v6369 = vpop.f32.mrb[0].mxu0
          %6370 = vmatprep.mubr.f32.mxu0 0.0
          %6371 = vmatmul.mubr.f32.gmra.mrb[0].mxu0 %v6255
          %v6372 = vpop.f32.mrb[0].mxu0
          %v6373 = vadd.f32 %v6246, %v6372
          %v6374 = vpop.f32.mrb[0].mxu0
          %6375 = vmatprep.mubr.f32.mxu0 0.0
          %6376 = vmatmul.mubr.f32.gmra.mrb[0].mxu0 %v6258
          %v6377 = vpop.f32.mrb[0].mxu0
          %v6378 = vadd.f32 %v6246, %v6377
          %v6379 = vpop.f32.mrb[0].mxu0
          %6380 = vmatprep.mubr.f32.mxu0 0.0
          %6381 = vmatmul.mubr.f32.gmra.mrb[0].mxu0 %v6261
          %v6382 = vpop.f32.mrb[0].mxu0
          %v6383 = vadd.f32 %v6246, %v6382
          %v6384 = vpop.f32.mrb[0].mxu0
          %6385 = vmatprep.mubr.f32.mxu0 0.0
          %6386 = vmatmul.mubr.f32.gmra.mrb[0].mxu0 %v6264
          %v6387 = vpop.f32.mrb[0].mxu0
          %v6388 = vadd.f32 %v6246, %v6387
          %v6389 = vpop.f32.mrb[0].mxu0
          %6390 = vmatprep.mubr.f32.mxu0 0.0
          %6391 = vmatmul.mubr.f32.gmra.mrb[0].mxu0 %v6267
          %v6392 = vpop.f32.mrb[0].mxu0
          %v6393 = vadd.f32 %v6246, %v6392
          %v6394 = vpop.f32.mrb[0].mxu0
          %6395 = vmatprep.mubr.f32.mxu0 0.0
          %6396 = vmatmul.mubr.f32.gmra.mrb[0].mxu0 %v6270
          %v6397 = vpop.f32.mrb[0].mxu0
          %v6398 = vadd.f32 %v6246, %v6397
          %v6399 = vpop.f32.mrb[0].mxu0
          %6400 = vmatprep.mubr.f32.mxu0 0.0
          %6401 = vmatmul.mubr.f32.gmra.mrb[0].mxu0 %v6273
          %v6402 = vpop.f32.mrb[0].mxu0
          %v6403 = vadd.f32 %v6246, %v6402
          %v6404 = vpop.f32.mrb[0].mxu0
          %6405 = vmatprep.mubr.f32.mxu0 0.0
          %6406 = vmatmul.mubr.f32.gmra.mrb[0].mxu0 %v6276
          %v6407 = vpop.f32.mrb[0].mxu0
          %v6408 = vadd.f32 %v6246, %v6407
          %v6409 = vpop.f32.mrb[0].mxu0
          %6410 = vmatprep.mubr.f32.mxu0 0.0
          %6411 = vmatmul.mubr.f32.gmra.mrb[0].mxu0 %v6279
          %v6412 = vpop.f32.mrb[0].mxu0
          %v6413 = vadd.f32 %v6246, %v6412
          %v6414 = vpop.f32.mrb[0].mxu0
          %6415 = vmatprep.mubr.f32.mxu0 0.0
          %6416 = vmatmul.mubr.f32.gmra.mrb[0].mxu0 %v6282
          %v6417 = vpop.f32.mrb[0].mxu0
          %v6418 = vadd.f32 %v6246, %v6417
          %v6419 = vpop.f32.mrb[0].mxu0
          %6420 = vmatprep.mubr.f32.mxu0 0.0
          %6421 = vmatmul.mubr.f32.gmra.mrb[0].mxu0 %v6285
          %v6422 = vpop.f32.mrb[0].mxu0
          %v6423 = vadd.f32 %v6246, %v6422
          %v6424 = vpop.f32.mrb[0].mxu0
          %6425 = vmatprep.mubr.f32.mxu0 0.0
          %6426 = vmatmul.mubr.f32.gmra.mrb[0].mxu0 %v6288
          %v6427 = vpop.f32.mrb[0].mxu0
          %v6428 = vadd.f32 %v6246, %v6427
          %v6429 = vpop.f32.mrb[0].mxu0
          %6430 = vmatprep.mubr.f32.mxu0 0.0
          %6431 = vmatmul.mubr.f32.gmra.mrb[0].mxu0 %v6291
          %v6432 = vpop.f32.mrb[0].mxu0
          %v6433 = vadd.f32 %v6246, %v6432
          %v6434 = vpop.f32.mrb[0].mxu0
          %6435 = vmatprep.mubr.f32.mxu0 0.0
          %6436 = vmatmul.mubr.f32.gmra.mrb[0].mxu0 %v6294
          %v6437 = vpop.f32.mrb[0].mxu0
          %v6438 = vadd.f32 %v6246, %v6437
          %v6439 = vpop.f32.mrb[0].mxu0
          %6440 = vdwg.mxu0
          %vm6441 = vcmp.gt.f32.partialorder %v6363, 0.0
          %vm6442 = vcmp.gt.f32.partialorder %v6368, 0.0
          %vm6443 = vcmp.gt.f32.partialorder %v6373, 0.0
          %vm6444 = vcmp.gt.f32.partialorder %v6378, 0.0
          %vm6445 = vcmp.gt.f32.partialorder %v6383, 0.0
          %vm6446 = vcmp.gt.f32.partialorder %v6388, 0.0
          %vm6447 = vcmp.gt.f32.partialorder %v6393, 0.0
          %vm6448 = vcmp.gt.f32.partialorder %v6398, 0.0
          %vm6449 = vcmp.gt.f32.partialorder %v6403, 0.0
          %vm6450 = vcmp.gt.f32.partialorder %v6408, 0.0
          %vm6451 = vcmp.gt.f32.partialorder %v6413, 0.0
          %vm6452 = vcmp.gt.f32.partialorder %v6418, 0.0
          %vm6453 = vcmp.gt.f32.partialorder %v6423, 0.0
          %vm6454 = vcmp.gt.f32.partialorder %v6428, 0.0
          %vm6455 = vcmp.gt.f32.partialorder %v6433, 0.0
          %vm6456 = vcmp.gt.f32.partialorder %v6438, 0.0
          %v6457 = vmul.f32 %v6363, 0.01
          %v6458 = vmul.f32 %v6368, 0.01
          %v6459 = vmul.f32 %v6373, 0.01
          %v6460 = vmul.f32 %v6378, 0.01
          %v6461 = vmul.f32 %v6383, 0.01
          %v6462 = vmul.f32 %v6388, 0.01
          %v6463 = vmul.f32 %v6393, 0.01
          %v6464 = vmul.f32 %v6398, 0.01
          %v6465 = vmul.f32 %v6403, 0.01
          %v6466 = vmul.f32 %v6408, 0.01
          %v6467 = vmul.f32 %v6413, 0.01
          %v6468 = vmul.f32 %v6418, 0.01
          %v6469 = vmul.f32 %v6423, 0.01
          %v6470 = vmul.f32 %v6428, 0.01
          %v6471 = vmul.f32 %v6433, 0.01
          %v6472 = vmul.f32 %v6438, 0.01
          %v6473 = vsel %vm6441, %v6363, %v6457
          %v6474 = vsel %vm6442, %v6368, %v6458
          %v6475 = vsel %vm6443, %v6373, %v6459
          %v6476 = vsel %vm6444, %v6378, %v6460
          %v6477 = vsel %vm6445, %v6383, %v6461
          %v6478 = vsel %vm6446, %v6388, %v6462
          %v6479 = vsel %vm6447, %v6393, %v6463
          %v6480 = vsel %vm6448, %v6398, %v6464
          %v6481 = vsel %vm6449, %v6403, %v6465
          %v6482 = vsel %vm6450, %v6408, %v6466
          %v6483 = vsel %vm6451, %v6413, %v6467
          %v6484 = vsel %vm6452, %v6418, %v6468
          %v6485 = vsel %vm6453, %v6423, %v6469
          %v6486 = vsel %vm6454, %v6428, %v6470
          %v6487 = vsel %vm6455, %v6433, %v6471
          %v6488 = vsel %vm6456, %v6438, %v6472
          %v6489 = vld [vmem:[%s27] sm:$0xff]
          %v6490 = vld [vmem:[%s27 + $0x8] sm:$0xff]
          %v6491 = vld [vmem:[%s27 + $0x10] sm:$0xff]
          %v6492 = vld [vmem:[%s27 + $0x18] sm:$0xff]
          %v6493 = vld [vmem:[%s29] sm:$0x1]
          %v6495 = vlaneseq
          %v6496 = vshrl.u32 %v6495, 7
          %v6497 = vsub.s32 0, %v6496
          %v6498 = vrot.slane %v6493, %v6497
          %v6501 = vsel %vm1829, %v6473, 0
          %v6504 = vsel %vm1829, %v6474, 0
          %v6507 = vsel %vm1829, %v6475, 0
          %v6510 = vsel %vm1829, %v6476, 0
          %v6513 = vsel %vm1829, %v6477, 0
          %v6516 = vsel %vm1829, %v6478, 0
          %v6519 = vsel %vm1829, %v6479, 0
          %v6522 = vsel %vm1829, %v6480, 0
          %v6525 = vsel %vm1829, %v6481, 0
          %v6528 = vsel %vm1829, %v6482, 0
          %v6531 = vsel %vm1829, %v6483, 0
          %v6534 = vsel %vm1829, %v6484, 0
          %v6537 = vsel %vm1829, %v6485, 0
          %v6540 = vsel %vm1829, %v6486, 0
          %v6543 = vsel %vm1829, %v6487, 0
          %v6546 = vsel %vm1829, %v6488, 0
          %6548 = vmatprep.subr.mxu0 0.0
          %6549 = vmatpush1.msra.mxu0 %v6489
          %6550 = vmatprep.subr.mxu0 0.0
          %6551 = vmatpush1.msra.mxu0 %v6490
          %6552 = vmatprep.subr.mxu0 0.0
          %6553 = vmatpush1.msra.mxu0 %v6491
          %6554 = vmatprep.subr.mxu0 0.0
          %6555 = vmatpush1.msra.mxu0 %v6492
          %6556 = vmatprep.subr.mxu0 0.0
          %6557 = vmatpush1.msra.mxu0 0.0
          %6558 = vmatprep.subr.mxu0 0.0
          %6559 = vmatpush1.msra.mxu0 0.0
          %6560 = vmatprep.subr.mxu0 0.0
          %6561 = vmatpush1.msra.mxu0 0.0
          %6562 = vmatprep.subr.mxu0 0.0
          %6563 = vmatpush1.msra.mxu0 0.0
          %6564 = vmatprep.subr.mxu0 0.0
          %6565 = vmatpush1.msra.mxu0 0.0
          %6566 = vmatprep.subr.mxu0 0.0
          %6567 = vmatpush1.msra.mxu0 0.0
          %6568 = vmatprep.subr.mxu0 0.0
          %6569 = vmatpush1.msra.mxu0 0.0
          %6570 = vmatprep.subr.mxu0 0.0
          %6571 = vmatpush1.msra.mxu0 0.0
          %6572 = vmatprep.subr.mxu0 0.0
          %6573 = vmatpush1.msra.mxu0 0.0
          %6574 = vmatprep.subr.mxu0 0.0
          %6575 = vmatpush1.msra.mxu0 0.0
          %6576 = vmatprep.subr.mxu0 0.0
          %6577 = vmatpush1.msra.mxu0 0.0
          %6578 = vmatprep.subr.mxu0 0.0
          %6579 = vmatpush1.msra.mxu0 0.0
          %6580 = vmatprep.subr.mxu0 0.0
          %6581 = vmatpush1.msra.mxu0 0.0
          %6582 = vmatprep.subr.mxu0 0.0
          %6583 = vmatpush1.msra.mxu0 0.0
          %6584 = vmatprep.subr.mxu0 0.0
          %6585 = vmatpush1.msra.mxu0 0.0
          %6586 = vmatprep.subr.mxu0 0.0
          %6587 = vmatpush1.msra.mxu0 0.0
          %6588 = vmatprep.subr.mxu0 0.0
          %6589 = vmatpush1.msra.mxu0 0.0
          %6590 = vmatprep.subr.mxu0 0.0
          %6591 = vmatpush1.msra.mxu0 0.0
          %6592 = vmatprep.subr.mxu0 0.0
          %6593 = vmatpush1.msra.mxu0 0.0
          %6594 = vmatprep.subr.mxu0 0.0
          %6595 = vmatpush1.msra.mxu0 0.0
          %6596 = vmatprep.subr.mxu0 0.0
          %6597 = vmatpush1.msra.mxu0 0.0
          %6598 = vmatprep.subr.mxu0 0.0
          %6599 = vmatpush1.msra.mxu0 0.0
          %6600 = vmatprep.subr.mxu0 0.0
          %6601 = vmatpush1.msra.mxu0 0.0
          %6602 = vmatprep.subr.mxu0 0.0
          %6603 = vmatpush1.msra.mxu0 0.0
          %6604 = vmatprep.subr.mxu0 0.0
          %6605 = vmatpush1.msra.mxu0 0.0
          %6606 = vmatprep.subr.mxu0 0.0
          %6607 = vmatpush1.msra.mxu0 0.0
          %6608 = vmatprep.subr.mxu0 0.0
          %6609 = vmatpush1.msra.mxu0 0.0
          %6610 = vmatprep.subr.mxu0 0.0
          %6611 = vmatpush1.msra.mxu0 0.0
          %6612 = vmatprep.mubr.f32.mxu0 0.0
          %6613 = vmatmul.mubr.f32.gmra.mrb[0].mxu0 %v6501
          %v6614 = vpop.f32.mrb[0].mxu0
          %v6615 = vadd.f32 %v6498, %v6614
          %v6616 = vpop.f32.mrb[0].mxu0
          %6617 = vmatprep.mubr.f32.mxu0 0.0
          %6618 = vmatmul.mubr.f32.gmra.mrb[0].mxu0 %v6504
          %v6619 = vpop.f32.mrb[0].mxu0
          %v6620 = vadd.f32 %v6498, %v6619
          %v6621 = vpop.f32.mrb[0].mxu0
          %6622 = vmatprep.mubr.f32.mxu0 0.0
          %6623 = vmatmul.mubr.f32.gmra.mrb[0].mxu0 %v6507
          %v6624 = vpop.f32.mrb[0].mxu0
          %v6625 = vadd.f32 %v6498, %v6624
          %v6626 = vpop.f32.mrb[0].mxu0
          %6627 = vmatprep.mubr.f32.mxu0 0.0
          %6628 = vmatmul.mubr.f32.gmra.mrb[0].mxu0 %v6510
          %v6629 = vpop.f32.mrb[0].mxu0
          %v6630 = vadd.f32 %v6498, %v6629
          %v6631 = vpop.f32.mrb[0].mxu0
          %6632 = vmatprep.mubr.f32.mxu0 0.0
          %6633 = vmatmul.mubr.f32.gmra.mrb[0].mxu0 %v6513
          %v6634 = vpop.f32.mrb[0].mxu0
          %v6635 = vadd.f32 %v6498, %v6634
          %v6636 = vpop.f32.mrb[0].mxu0
          %6637 = vmatprep.mubr.f32.mxu0 0.0
          %6638 = vmatmul.mubr.f32.gmra.mrb[0].mxu0 %v6516
          %v6639 = vpop.f32.mrb[0].mxu0
          %v6640 = vadd.f32 %v6498, %v6639
          %v6641 = vpop.f32.mrb[0].mxu0
          %6642 = vmatprep.mubr.f32.mxu0 0.0
          %6643 = vmatmul.mubr.f32.gmra.mrb[0].mxu0 %v6519
          %v6644 = vpop.f32.mrb[0].mxu0
          %v6645 = vadd.f32 %v6498, %v6644
          %v6646 = vpop.f32.mrb[0].mxu0
          %6647 = vmatprep.mubr.f32.mxu0 0.0
          %6648 = vmatmul.mubr.f32.gmra.mrb[0].mxu0 %v6522
          %v6649 = vpop.f32.mrb[0].mxu0
          %v6650 = vadd.f32 %v6498, %v6649
          %v6651 = vpop.f32.mrb[0].mxu0
          %6652 = vmatprep.mubr.f32.mxu0 0.0
          %6653 = vmatmul.mubr.f32.gmra.mrb[0].mxu0 %v6525
          %v6654 = vpop.f32.mrb[0].mxu0
          %v6655 = vadd.f32 %v6498, %v6654
          %v6656 = vpop.f32.mrb[0].mxu0
          %6657 = vmatprep.mubr.f32.mxu0 0.0
          %6658 = vmatmul.mubr.f32.gmra.mrb[0].mxu0 %v6528
          %v6659 = vpop.f32.mrb[0].mxu0
          %v6660 = vadd.f32 %v6498, %v6659
          %v6661 = vpop.f32.mrb[0].mxu0
          %6662 = vmatprep.mubr.f32.mxu0 0.0
          %6663 = vmatmul.mubr.f32.gmra.mrb[0].mxu0 %v6531
          %v6664 = vpop.f32.mrb[0].mxu0
          %v6665 = vadd.f32 %v6498, %v6664
          %v6666 = vpop.f32.mrb[0].mxu0
          %6667 = vmatprep.mubr.f32.mxu0 0.0
          %6668 = vmatmul.mubr.f32.gmra.mrb[0].mxu0 %v6534
          %v6669 = vpop.f32.mrb[0].mxu0
          %v6670 = vadd.f32 %v6498, %v6669
          %v6671 = vpop.f32.mrb[0].mxu0
          %6672 = vmatprep.mubr.f32.mxu0 0.0
          %6673 = vmatmul.mubr.f32.gmra.mrb[0].mxu0 %v6537
          %v6674 = vpop.f32.mrb[0].mxu0
          %v6675 = vadd.f32 %v6498, %v6674
          %v6676 = vpop.f32.mrb[0].mxu0
          %6677 = vmatprep.mubr.f32.mxu0 0.0
          %6678 = vmatmul.mubr.f32.gmra.mrb[0].mxu0 %v6540
          %v6679 = vpop.f32.mrb[0].mxu0
          %v6680 = vadd.f32 %v6498, %v6679
          %v6681 = vpop.f32.mrb[0].mxu0
          %6682 = vmatprep.mubr.f32.mxu0 0.0
          %6683 = vmatmul.mubr.f32.gmra.mrb[0].mxu0 %v6543
          %v6684 = vpop.f32.mrb[0].mxu0
          %v6685 = vadd.f32 %v6498, %v6684
          %v6686 = vpop.f32.mrb[0].mxu0
          %6687 = vmatprep.mubr.f32.mxu0 0.0
          %6688 = vmatmul.mubr.f32.gmra.mrb[0].mxu0 %v6546
          %v6689 = vpop.f32.mrb[0].mxu0
          %v6690 = vadd.f32 %v6498, %v6689
          %v6691 = vpop.f32.mrb[0].mxu0
          %6692 = vdwg.mxu0
          %vm6693 = vcmp.gt.f32.partialorder %v6615, 0.0
          %vm6694 = vcmp.gt.f32.partialorder %v6620, 0.0
          %vm6695 = vcmp.gt.f32.partialorder %v6625, 0.0
          %vm6696 = vcmp.gt.f32.partialorder %v6630, 0.0
          %vm6697 = vcmp.gt.f32.partialorder %v6635, 0.0
          %vm6698 = vcmp.gt.f32.partialorder %v6640, 0.0
          %vm6699 = vcmp.gt.f32.partialorder %v6645, 0.0
          %vm6700 = vcmp.gt.f32.partialorder %v6650, 0.0
          %vm6701 = vcmp.gt.f32.partialorder %v6655, 0.0
          %vm6702 = vcmp.gt.f32.partialorder %v6660, 0.0
          %vm6703 = vcmp.gt.f32.partialorder %v6665, 0.0
          %vm6704 = vcmp.gt.f32.partialorder %v6670, 0.0
          %vm6705 = vcmp.gt.f32.partialorder %v6675, 0.0
          %vm6706 = vcmp.gt.f32.partialorder %v6680, 0.0
          %vm6707 = vcmp.gt.f32.partialorder %v6685, 0.0
          %vm6708 = vcmp.gt.f32.partialorder %v6690, 0.0
          %v6709 = vmul.f32 %v6615, 0.01
          %v6710 = vmul.f32 %v6620, 0.01
          %v6711 = vmul.f32 %v6625, 0.01
          %v6712 = vmul.f32 %v6630, 0.01
          %v6713 = vmul.f32 %v6635, 0.01
          %v6714 = vmul.f32 %v6640, 0.01
          %v6715 = vmul.f32 %v6645, 0.01
          %v6716 = vmul.f32 %v6650, 0.01
          %v6717 = vmul.f32 %v6655, 0.01
          %v6718 = vmul.f32 %v6660, 0.01
          %v6719 = vmul.f32 %v6665, 0.01
          %v6720 = vmul.f32 %v6670, 0.01
          %v6721 = vmul.f32 %v6675, 0.01
          %v6722 = vmul.f32 %v6680, 0.01
          %v6723 = vmul.f32 %v6685, 0.01
          %v6724 = vmul.f32 %v6690, 0.01
          %v6725 = vsel %vm6693, %v6615, %v6709
          %v6726 = vsel %vm6694, %v6620, %v6710
          %v6727 = vsel %vm6695, %v6625, %v6711
          %v6728 = vsel %vm6696, %v6630, %v6712
          %v6729 = vsel %vm6697, %v6635, %v6713
          %v6730 = vsel %vm6698, %v6640, %v6714
          %v6731 = vsel %vm6699, %v6645, %v6715
          %v6732 = vsel %vm6700, %v6650, %v6716
          %v6733 = vsel %vm6701, %v6655, %v6717
          %v6734 = vsel %vm6702, %v6660, %v6718
          %v6735 = vsel %vm6703, %v6665, %v6719
          %v6736 = vsel %vm6704, %v6670, %v6720
          %v6737 = vsel %vm6705, %v6675, %v6721
          %v6738 = vsel %vm6706, %v6680, %v6722
          %v6739 = vsel %vm6707, %v6685, %v6723
          %v6740 = vsel %vm6708, %v6690, %v6724
          %v6741 = vld [vmem:[%s31] sm:$0xff]
          %v6742 = vld [vmem:[%s31 + $0x8] sm:$0xff]
          %v6743 = vld [vmem:[%s31 + $0x10] sm:$0xff]
          %v6744 = vld [vmem:[%s31 + $0x18] sm:$0xff]
          %v6745 = vld [vmem:[%s33] sm:$0x1]
          %v6747 = vlaneseq
          %v6748 = vshrl.u32 %v6747, 7
          %v6749 = vsub.s32 0, %v6748
          %v6750 = vrot.slane %v6745, %v6749
          %v6753 = vsel %vm1829, %v6725, 0
          %v6756 = vsel %vm1829, %v6726, 0
          %v6759 = vsel %vm1829, %v6727, 0
          %v6762 = vsel %vm1829, %v6728, 0
          %v6765 = vsel %vm1829, %v6729, 0
          %v6768 = vsel %vm1829, %v6730, 0
          %v6771 = vsel %vm1829, %v6731, 0
          %v6774 = vsel %vm1829, %v6732, 0
          %v6777 = vsel %vm1829, %v6733, 0
          %v6780 = vsel %vm1829, %v6734, 0
          %v6783 = vsel %vm1829, %v6735, 0
          %v6786 = vsel %vm1829, %v6736, 0
          %v6789 = vsel %vm1829, %v6737, 0
          %v6792 = vsel %vm1829, %v6738, 0
          %v6795 = vsel %vm1829, %v6739, 0
          %v6798 = vsel %vm1829, %v6740, 0
          %6800 = vmatprep.subr.mxu0 0.0
          %6801 = vmatpush1.msra.mxu0 %v6741
          %6802 = vmatprep.subr.mxu0 0.0
          %6803 = vmatpush1.msra.mxu0 %v6742
          %6804 = vmatprep.subr.mxu0 0.0
          %6805 = vmatpush1.msra.mxu0 %v6743
          %6806 = vmatprep.subr.mxu0 0.0
          %6807 = vmatpush1.msra.mxu0 %v6744
          %6808 = vmatprep.subr.mxu0 0.0
          %6809 = vmatpush1.msra.mxu0 0.0
          %6810 = vmatprep.subr.mxu0 0.0
          %6811 = vmatpush1.msra.mxu0 0.0
          %6812 = vmatprep.subr.mxu0 0.0
          %6813 = vmatpush1.msra.mxu0 0.0
          %6814 = vmatprep.subr.mxu0 0.0
          %6815 = vmatpush1.msra.mxu0 0.0
          %6816 = vmatprep.subr.mxu0 0.0
          %6817 = vmatpush1.msra.mxu0 0.0
          %6818 = vmatprep.subr.mxu0 0.0
          %6819 = vmatpush1.msra.mxu0 0.0
          %6820 = vmatprep.subr.mxu0 0.0
          %6821 = vmatpush1.msra.mxu0 0.0
          %6822 = vmatprep.subr.mxu0 0.0
          %6823 = vmatpush1.msra.mxu0 0.0
          %6824 = vmatprep.subr.mxu0 0.0
          %6825 = vmatpush1.msra.mxu0 0.0
          %6826 = vmatprep.subr.mxu0 0.0
          %6827 = vmatpush1.msra.mxu0 0.0
          %6828 = vmatprep.subr.mxu0 0.0
          %6829 = vmatpush1.msra.mxu0 0.0
          %6830 = vmatprep.subr.mxu0 0.0
          %6831 = vmatpush1.msra.mxu0 0.0
          %6832 = vmatprep.subr.mxu0 0.0
          %6833 = vmatpush1.msra.mxu0 0.0
          %6834 = vmatprep.subr.mxu0 0.0
          %6835 = vmatpush1.msra.mxu0 0.0
          %6836 = vmatprep.subr.mxu0 0.0
          %6837 = vmatpush1.msra.mxu0 0.0
          %6838 = vmatprep.subr.mxu0 0.0
          %6839 = vmatpush1.msra.mxu0 0.0
          %6840 = vmatprep.subr.mxu0 0.0
          %6841 = vmatpush1.msra.mxu0 0.0
          %6842 = vmatprep.subr.mxu0 0.0
          %6843 = vmatpush1.msra.mxu0 0.0
          %6844 = vmatprep.subr.mxu0 0.0
          %6845 = vmatpush1.msra.mxu0 0.0
          %6846 = vmatprep.subr.mxu0 0.0
          %6847 = vmatpush1.msra.mxu0 0.0
          %6848 = vmatprep.subr.mxu0 0.0
          %6849 = vmatpush1.msra.mxu0 0.0
          %6850 = vmatprep.subr.mxu0 0.0
          %6851 = vmatpush1.msra.mxu0 0.0
          %6852 = vmatprep.subr.mxu0 0.0
          %6853 = vmatpush1.msra.mxu0 0.0
          %6854 = vmatprep.subr.mxu0 0.0
          %6855 = vmatpush1.msra.mxu0 0.0
          %6856 = vmatprep.subr.mxu0 0.0
          %6857 = vmatpush1.msra.mxu0 0.0
          %6858 = vmatprep.subr.mxu0 0.0
          %6859 = vmatpush1.msra.mxu0 0.0
          %6860 = vmatprep.subr.mxu0 0.0
          %6861 = vmatpush1.msra.mxu0 0.0
          %6862 = vmatprep.subr.mxu0 0.0
          %6863 = vmatpush1.msra.mxu0 0.0
          %6864 = vmatprep.mubr.f32.mxu0 0.0
          %6865 = vmatmul.mubr.f32.gmra.mrb[0].mxu0 %v6753
          %v6866 = vpop.f32.mrb[0].mxu0
          %v6867 = vadd.f32 %v6750, %v6866
          %v6868 = vpop.f32.mrb[0].mxu0
          %6869 = vmatprep.mubr.f32.mxu0 0.0
          %6870 = vmatmul.mubr.f32.gmra.mrb[0].mxu0 %v6756
          %v6871 = vpop.f32.mrb[0].mxu0
          %v6872 = vadd.f32 %v6750, %v6871
          %v6873 = vpop.f32.mrb[0].mxu0
          %6874 = vmatprep.mubr.f32.mxu0 0.0
          %6875 = vmatmul.mubr.f32.gmra.mrb[0].mxu0 %v6759
          %v6876 = vpop.f32.mrb[0].mxu0
          %v6877 = vadd.f32 %v6750, %v6876
          %v6878 = vpop.f32.mrb[0].mxu0
          %6879 = vmatprep.mubr.f32.mxu0 0.0
          %6880 = vmatmul.mubr.f32.gmra.mrb[0].mxu0 %v6762
          %v6881 = vpop.f32.mrb[0].mxu0
          %v6882 = vadd.f32 %v6750, %v6881
          %v6883 = vpop.f32.mrb[0].mxu0
          %6884 = vmatprep.mubr.f32.mxu0 0.0
          %6885 = vmatmul.mubr.f32.gmra.mrb[0].mxu0 %v6765
          %v6886 = vpop.f32.mrb[0].mxu0
          %v6887 = vadd.f32 %v6750, %v6886
          %v6888 = vpop.f32.mrb[0].mxu0
          %6889 = vmatprep.mubr.f32.mxu0 0.0
          %6890 = vmatmul.mubr.f32.gmra.mrb[0].mxu0 %v6768
          %v6891 = vpop.f32.mrb[0].mxu0
          %v6892 = vadd.f32 %v6750, %v6891
          %v6893 = vpop.f32.mrb[0].mxu0
          %6894 = vmatprep.mubr.f32.mxu0 0.0
          %6895 = vmatmul.mubr.f32.gmra.mrb[0].mxu0 %v6771
          %v6896 = vpop.f32.mrb[0].mxu0
          %v6897 = vadd.f32 %v6750, %v6896
          %v6898 = vpop.f32.mrb[0].mxu0
          %6899 = vmatprep.mubr.f32.mxu0 0.0
          %6900 = vmatmul.mubr.f32.gmra.mrb[0].mxu0 %v6774
          %v6901 = vpop.f32.mrb[0].mxu0
          %v6902 = vadd.f32 %v6750, %v6901
          %v6903 = vpop.f32.mrb[0].mxu0
          %6904 = vmatprep.mubr.f32.mxu0 0.0
          %6905 = vmatmul.mubr.f32.gmra.mrb[0].mxu0 %v6777
          %v6906 = vpop.f32.mrb[0].mxu0
          %v6907 = vadd.f32 %v6750, %v6906
          %v6908 = vpop.f32.mrb[0].mxu0
          %6909 = vmatprep.mubr.f32.mxu0 0.0
          %6910 = vmatmul.mubr.f32.gmra.mrb[0].mxu0 %v6780
          %v6911 = vpop.f32.mrb[0].mxu0
          %v6912 = vadd.f32 %v6750, %v6911
          %v6913 = vpop.f32.mrb[0].mxu0
          %6914 = vmatprep.mubr.f32.mxu0 0.0
          %6915 = vmatmul.mubr.f32.gmra.mrb[0].mxu0 %v6783
          %v6916 = vpop.f32.mrb[0].mxu0
          %v6917 = vadd.f32 %v6750, %v6916
          %v6918 = vpop.f32.mrb[0].mxu0
          %6919 = vmatprep.mubr.f32.mxu0 0.0
          %6920 = vmatmul.mubr.f32.gmra.mrb[0].mxu0 %v6786
          %v6921 = vpop.f32.mrb[0].mxu0
          %v6922 = vadd.f32 %v6750, %v6921
          %v6923 = vpop.f32.mrb[0].mxu0
          %6924 = vmatprep.mubr.f32.mxu0 0.0
          %6925 = vmatmul.mubr.f32.gmra.mrb[0].mxu0 %v6789
          %v6926 = vpop.f32.mrb[0].mxu0
          %v6927 = vadd.f32 %v6750, %v6926
          %v6928 = vpop.f32.mrb[0].mxu0
          %6929 = vmatprep.mubr.f32.mxu0 0.0
          %6930 = vmatmul.mubr.f32.gmra.mrb[0].mxu0 %v6792
          %v6931 = vpop.f32.mrb[0].mxu0
          %v6932 = vadd.f32 %v6750, %v6931
          %v6933 = vpop.f32.mrb[0].mxu0
          %6934 = vmatprep.mubr.f32.mxu0 0.0
          %6935 = vmatmul.mubr.f32.gmra.mrb[0].mxu0 %v6795
          %v6936 = vpop.f32.mrb[0].mxu0
          %v6937 = vadd.f32 %v6750, %v6936
          %v6938 = vpop.f32.mrb[0].mxu0
          %6939 = vmatprep.mubr.f32.mxu0 0.0
          %6940 = vmatmul.mubr.f32.gmra.mrb[0].mxu0 %v6798
          %v6941 = vpop.f32.mrb[0].mxu0
          %v6942 = vadd.f32 %v6750, %v6941
          %v6943 = vpop.f32.mrb[0].mxu0
          %6944 = vdwg.mxu0
          %v6945 = vld [vmem:[%s35] sm:$0xff]
          %v6946 = vld [vmem:[%s35 + $0x8] sm:$0xf]
          %v6947 = vld [vmem:[%s37] sm:$0xff]
          %v6948 = vld [vmem:[%s37 + $0x8] sm:$0xff]
          %v6949 = vld [vmem:[%s37 + $0x10] sm:$0xff]
          %v6950 = vld [vmem:[%s37 + $0x18] sm:$0xff]
          %v6951 = vld [vmem:[%s37 + $0x20] sm:$0xff]
          %v6952 = vld [vmem:[%s37 + $0x28] sm:$0xff]
          %v6953 = vld [vmem:[%s37 + $0x30] sm:$0xff]
          %v6954 = vld [vmem:[%s37 + $0x38] sm:$0xff]
          %v6955 = vld [vmem:[%s37 + $0x40] sm:$0xff]
          %v6956 = vld [vmem:[%s37 + $0x48] sm:$0xff]
          %v6957 = vld [vmem:[%s37 + $0x50] sm:$0xff]
          %v6958 = vld [vmem:[%s37 + $0x58] sm:$0xff]
          %v6959 = vld [vmem:[%s37 + $0x60] sm:$0xff]
          %v6960 = vld [vmem:[%s37 + $0x68] sm:$0xff]
          %v6961 = vld [vmem:[%s37 + $0x70] sm:$0xff]
          %v6962 = vld [vmem:[%s37 + $0x78] sm:$0xff]
          %v6963 = vld [vmem:[%s37 + $0x80] sm:$0xff]
          %v6964 = vld [vmem:[%s37 + $0x88] sm:$0xff]
          %v6965 = vld [vmem:[%s37 + $0x90] sm:$0xff]
          %v6966 = vld [vmem:[%s37 + $0x98] sm:$0xff]
          %v6967 = vld [vmem:[%s37 + $0xa0] sm:$0xff]
          %v6968 = vld [vmem:[%s37 + $0xa8] sm:$0xff]
          %v6969 = vld [vmem:[%s37 + $0xb0] sm:$0xff]
          %v6970 = vld [vmem:[%s37 + $0xb8] sm:$0xff]
          %v6971 = vld [vmem:[%s37 + $0xc0] sm:$0xff]
          %v6972 = vld [vmem:[%s37 + $0xc8] sm:$0xff]
          %v6973 = vld [vmem:[%s37 + $0xd0] sm:$0xff]
          %v6974 = vld [vmem:[%s37 + $0xd8] sm:$0xff]
          %v6975 = vld [vmem:[%s37 + $0xe0] sm:$0xff]
          %v6976 = vld [vmem:[%s37 + $0xe8] sm:$0xff]
          %v6977 = vld [vmem:[%s37 + $0xf0] sm:$0xff]
          %v6978 = vld [vmem:[%s37 + $0xf8] sm:$0xff]
          %6979 = vmatprep.subr.mxu0 0.0
          %6980 = vmatpush1.msra.mxu0 %v6947
          %6981 = vmatprep.subr.mxu0 0.0
          %6982 = vmatpush1.msra.mxu0 %v6948
          %6983 = vmatprep.subr.mxu0 0.0
          %6984 = vmatpush1.msra.mxu0 %v6949
          %6985 = vmatprep.subr.mxu0 0.0
          %6986 = vmatpush1.msra.mxu0 %v6950
          %6987 = vmatprep.subr.mxu0 0.0
          %6988 = vmatpush1.msra.mxu0 %v6951
          %6989 = vmatprep.subr.mxu0 0.0
          %6990 = vmatpush1.msra.mxu0 %v6952
          %6991 = vmatprep.subr.mxu0 0.0
          %6992 = vmatpush1.msra.mxu0 %v6953
          %6993 = vmatprep.subr.mxu0 0.0
          %6994 = vmatpush1.msra.mxu0 %v6954
          %6995 = vmatprep.subr.mxu0 0.0
          %6996 = vmatpush1.msra.mxu0 %v6955
          %6997 = vmatprep.subr.mxu0 0.0
          %6998 = vmatpush1.msra.mxu0 %v6956
          %6999 = vmatprep.subr.mxu0 0.0
          %7000 = vmatpush1.msra.mxu0 %v6957
          %7001 = vmatprep.subr.mxu0 0.0
          %7002 = vmatpush1.msra.mxu0 %v6958
          %7003 = vmatprep.subr.mxu0 0.0
          %7004 = vmatpush1.msra.mxu0 %v6959
          %7005 = vmatprep.subr.mxu0 0.0
          %7006 = vmatpush1.msra.mxu0 %v6960
          %7007 = vmatprep.subr.mxu0 0.0
          %7008 = vmatpush1.msra.mxu0 %v6961
          %7009 = vmatprep.subr.mxu0 0.0
          %7010 = vmatpush1.msra.mxu0 %v6962
          %7011 = vmatprep.subr.mxu0 0.0
          %7012 = vmatpush1.msra.mxu0 %v6963
          %7013 = vmatprep.subr.mxu0 0.0
          %7014 = vmatpush1.msra.mxu0 %v6964
          %7015 = vmatprep.subr.mxu0 0.0
          %7016 = vmatpush1.msra.mxu0 %v6965
          %7017 = vmatprep.subr.mxu0 0.0
          %7018 = vmatpush1.msra.mxu0 %v6966
          %7019 = vmatprep.subr.mxu0 0.0
          %7020 = vmatpush1.msra.mxu0 %v6967
          %7021 = vmatprep.subr.mxu0 0.0
          %7022 = vmatpush1.msra.mxu0 %v6968
          %7023 = vmatprep.subr.mxu0 0.0
          %7024 = vmatpush1.msra.mxu0 %v6969
          %7025 = vmatprep.subr.mxu0 0.0
          %7026 = vmatpush1.msra.mxu0 %v6970
          %7027 = vmatprep.subr.mxu0 0.0
          %7028 = vmatpush1.msra.mxu0 %v6971
          %7029 = vmatprep.subr.mxu0 0.0
          %7030 = vmatpush1.msra.mxu0 %v6972
          %7031 = vmatprep.subr.mxu0 0.0
          %7032 = vmatpush1.msra.mxu0 %v6973
          %7033 = vmatprep.subr.mxu0 0.0
          %7034 = vmatpush1.msra.mxu0 %v6974
          %7035 = vmatprep.subr.mxu0 0.0
          %7036 = vmatpush1.msra.mxu0 %v6975
          %7037 = vmatprep.subr.mxu0 0.0
          %7038 = vmatpush1.msra.mxu0 %v6976
          %7039 = vmatprep.subr.mxu0 0.0
          %7040 = vmatpush1.msra.mxu0 %v6977
          %7041 = vmatprep.subr.mxu0 0.0
          %7042 = vmatpush1.msra.mxu0 %v6978
          %7043 = vmatprep.mubr.f32.mxu0 %v5808
          %7044 = vmatmul.mubr.f32.gmra.mrb[0].mxu0 %v5807
          %v7045 = vpop.f32.mrb[0].mxu0
          %v7046 = vadd.f32 0.0, %v7045
          %v7047 = vpop.f32.mrb[0].mxu0
          %7048 = vmatprep.mubr.f32.mxu0 %v5810
          %7049 = vmatmul.mubr.f32.gmra.mrb[0].mxu0 %v5809
          %v7050 = vpop.f32.mrb[0].mxu0
          %v7051 = vadd.f32 0.0, %v7050
          %v7052 = vpop.f32.mrb[0].mxu0
          %7053 = vmatprep.mubr.f32.mxu0 %v5812
          %7054 = vmatmul.mubr.f32.gmra.mrb[0].mxu0 %v5811
          %v7055 = vpop.f32.mrb[0].mxu0
          %v7056 = vadd.f32 0.0, %v7055
          %v7057 = vpop.f32.mrb[0].mxu0
          %7058 = vmatprep.mubr.f32.mxu0 %v5814
          %7059 = vmatmul.mubr.f32.gmra.mrb[0].mxu0 %v5813
          %v7060 = vpop.f32.mrb[0].mxu0
          %v7061 = vadd.f32 0.0, %v7060
          %v7062 = vpop.f32.mrb[0].mxu0
          %7063 = vmatprep.mubr.f32.mxu0 %v5816
          %7064 = vmatmul.mubr.f32.gmra.mrb[0].mxu0 %v5815
          %v7065 = vpop.f32.mrb[0].mxu0
          %v7066 = vadd.f32 0.0, %v7065
          %v7067 = vpop.f32.mrb[0].mxu0
          %7068 = vmatprep.mubr.f32.mxu0 %v5818
          %7069 = vmatmul.mubr.f32.gmra.mrb[0].mxu0 %v5817
          %v7070 = vpop.f32.mrb[0].mxu0
          %v7071 = vadd.f32 0.0, %v7070
          %v7072 = vpop.f32.mrb[0].mxu0
          %7073 = vmatprep.mubr.f32.mxu0 %v5820
          %7074 = vmatmul.mubr.f32.gmra.mrb[0].mxu0 %v5819
          %v7075 = vpop.f32.mrb[0].mxu0
          %v7076 = vadd.f32 0.0, %v7075
          %v7077 = vpop.f32.mrb[0].mxu0
          %7078 = vmatprep.mubr.f32.mxu0 %v5822
          %7079 = vmatmul.mubr.f32.gmra.mrb[0].mxu0 %v5821
          %v7080 = vpop.f32.mrb[0].mxu0
          %v7081 = vadd.f32 0.0, %v7080
          %v7082 = vpop.f32.mrb[0].mxu0
          %7083 = vmatprep.mubr.f32.mxu0 %v5824
          %7084 = vmatmul.mubr.f32.gmra.mrb[0].mxu0 %v5823
          %v7085 = vpop.f32.mrb[0].mxu0
          %v7086 = vadd.f32 0.0, %v7085
          %v7087 = vpop.f32.mrb[0].mxu0
          %7088 = vmatprep.mubr.f32.mxu0 %v5826
          %7089 = vmatmul.mubr.f32.gmra.mrb[0].mxu0 %v5825
          %v7090 = vpop.f32.mrb[0].mxu0
          %v7091 = vadd.f32 0.0, %v7090
          %v7092 = vpop.f32.mrb[0].mxu0
          %7093 = vmatprep.mubr.f32.mxu0 %v5828
          %7094 = vmatmul.mubr.f32.gmra.mrb[0].mxu0 %v5827
          %v7095 = vpop.f32.mrb[0].mxu0
          %v7096 = vadd.f32 0.0, %v7095
          %v7097 = vpop.f32.mrb[0].mxu0
          %7098 = vmatprep.mubr.f32.mxu0 %v5830
          %7099 = vmatmul.mubr.f32.gmra.mrb[0].mxu0 %v5829
          %v7100 = vpop.f32.mrb[0].mxu0
          %v7101 = vadd.f32 0.0, %v7100
          %v7102 = vpop.f32.mrb[0].mxu0
          %7103 = vmatprep.mubr.f32.mxu0 %v5832
          %7104 = vmatmul.mubr.f32.gmra.mrb[0].mxu0 %v5831
          %v7105 = vpop.f32.mrb[0].mxu0
          %v7106 = vadd.f32 0.0, %v7105
          %v7107 = vpop.f32.mrb[0].mxu0
          %7108 = vmatprep.mubr.f32.mxu0 %v5834
          %7109 = vmatmul.mubr.f32.gmra.mrb[0].mxu0 %v5833
          %v7110 = vpop.f32.mrb[0].mxu0
          %v7111 = vadd.f32 0.0, %v7110
          %v7112 = vpop.f32.mrb[0].mxu0
          %7113 = vmatprep.mubr.f32.mxu0 %v5836
          %7114 = vmatmul.mubr.f32.gmra.mrb[0].mxu0 %v5835
          %v7115 = vpop.f32.mrb[0].mxu0
          %v7116 = vadd.f32 0.0, %v7115
          %v7117 = vpop.f32.mrb[0].mxu0
          %7118 = vmatprep.mubr.f32.mxu0 %v5838
          %7119 = vmatmul.mubr.f32.gmra.mrb[0].mxu0 %v5837
          %v7120 = vpop.f32.mrb[0].mxu0
          %v7121 = vadd.f32 0.0, %v7120
          %v7122 = vpop.f32.mrb[0].mxu0
          %7123 = vdwg.mxu0
          %v7125 = vsel %vm5499, %v6946, 0
          %7127 = vmatprep.subr.mxu0 0.0
          %7128 = vmatpush1.msra.mxu0 %v6945
          %7129 = vmatprep.subr.mxu0 0.0
          %7130 = vmatpush1.msra.mxu0 %v7125
          %7131 = vmatprep.subr.mxu0 0.0
          %7132 = vmatpush1.msra.mxu0 0.0
          %7133 = vmatprep.subr.mxu0 0.0
          %7134 = vmatpush1.msra.mxu0 0.0
          %7135 = vmatprep.subr.mxu0 0.0
          %7136 = vmatpush1.msra.mxu0 0.0
          %7137 = vmatprep.subr.mxu0 0.0
          %7138 = vmatpush1.msra.mxu0 0.0
          %7139 = vmatprep.subr.mxu0 0.0
          %7140 = vmatpush1.msra.mxu0 0.0
          %7141 = vmatprep.subr.mxu0 0.0
          %7142 = vmatpush1.msra.mxu0 0.0
          %7143 = vmatprep.subr.mxu0 0.0
          %7144 = vmatpush1.msra.mxu0 0.0
          %7145 = vmatprep.subr.mxu0 0.0
          %7146 = vmatpush1.msra.mxu0 0.0
          %7147 = vmatprep.subr.mxu0 0.0
          %7148 = vmatpush1.msra.mxu0 0.0
          %7149 = vmatprep.subr.mxu0 0.0
          %7150 = vmatpush1.msra.mxu0 0.0
          %7151 = vmatprep.subr.mxu0 0.0
          %7152 = vmatpush1.msra.mxu0 0.0
          %7153 = vmatprep.subr.mxu0 0.0
          %7154 = vmatpush1.msra.mxu0 0.0
          %7155 = vmatprep.subr.mxu0 0.0
          %7156 = vmatpush1.msra.mxu0 0.0
          %7157 = vmatprep.subr.mxu0 0.0
          %7158 = vmatpush1.msra.mxu0 0.0
          %7159 = vmatprep.subr.mxu0 0.0
          %7160 = vmatpush1.msra.mxu0 0.0
          %7161 = vmatprep.subr.mxu0 0.0
          %7162 = vmatpush1.msra.mxu0 0.0
          %7163 = vmatprep.subr.mxu0 0.0
          %7164 = vmatpush1.msra.mxu0 0.0
          %7165 = vmatprep.subr.mxu0 0.0
          %7166 = vmatpush1.msra.mxu0 0.0
          %7167 = vmatprep.subr.mxu0 0.0
          %7168 = vmatpush1.msra.mxu0 0.0
          %7169 = vmatprep.subr.mxu0 0.0
          %7170 = vmatpush1.msra.mxu0 0.0
          %7171 = vmatprep.subr.mxu0 0.0
          %7172 = vmatpush1.msra.mxu0 0.0
          %7173 = vmatprep.subr.mxu0 0.0
          %7174 = vmatpush1.msra.mxu0 0.0
          %7175 = vmatprep.subr.mxu0 0.0
          %7176 = vmatpush1.msra.mxu0 0.0
          %7177 = vmatprep.subr.mxu0 0.0
          %7178 = vmatpush1.msra.mxu0 0.0
          %7179 = vmatprep.subr.mxu0 0.0
          %7180 = vmatpush1.msra.mxu0 0.0
          %7181 = vmatprep.subr.mxu0 0.0
          %7182 = vmatpush1.msra.mxu0 0.0
          %7183 = vmatprep.subr.mxu0 0.0
          %7184 = vmatpush1.msra.mxu0 0.0
          %7185 = vmatprep.subr.mxu0 0.0
          %7186 = vmatpush1.msra.mxu0 0.0
          %7187 = vmatprep.subr.mxu0 0.0
          %7188 = vmatpush1.msra.mxu0 0.0
          %7189 = vmatprep.subr.mxu0 0.0
          %7190 = vmatpush1.msra.mxu0 0.0
          %7191 = vmatprep.mubr.f32.mxu0 0.0
          %7192 = vmatmul.mubr.f32.gmra.mrb[0].mxu0 %v5452
          %v7193 = vpop.f32.mrb[0].mxu0
          %v7194 = vadd.f32 %v7046, %v7193
          %v7195 = vpop.f32.mrb[0].mxu0
          %7196 = vmatprep.mubr.f32.mxu0 0.0
          %7197 = vmatmul.mubr.f32.gmra.mrb[0].mxu0 %v5455
          %v7198 = vpop.f32.mrb[0].mxu0
          %v7199 = vadd.f32 %v7051, %v7198
          %v7200 = vpop.f32.mrb[0].mxu0
          %7201 = vmatprep.mubr.f32.mxu0 0.0
          %7202 = vmatmul.mubr.f32.gmra.mrb[0].mxu0 %v5458
          %v7203 = vpop.f32.mrb[0].mxu0
          %v7204 = vadd.f32 %v7056, %v7203
          %v7205 = vpop.f32.mrb[0].mxu0
          %7206 = vmatprep.mubr.f32.mxu0 0.0
          %7207 = vmatmul.mubr.f32.gmra.mrb[0].mxu0 %v5461
          %v7208 = vpop.f32.mrb[0].mxu0
          %v7209 = vadd.f32 %v7061, %v7208
          %v7210 = vpop.f32.mrb[0].mxu0
          %7211 = vmatprep.mubr.f32.mxu0 0.0
          %7212 = vmatmul.mubr.f32.gmra.mrb[0].mxu0 %v5464
          %v7213 = vpop.f32.mrb[0].mxu0
          %v7214 = vadd.f32 %v7066, %v7213
          %v7215 = vpop.f32.mrb[0].mxu0
          %7216 = vmatprep.mubr.f32.mxu0 0.0
          %7217 = vmatmul.mubr.f32.gmra.mrb[0].mxu0 %v5467
          %v7218 = vpop.f32.mrb[0].mxu0
          %v7219 = vadd.f32 %v7071, %v7218
          %v7220 = vpop.f32.mrb[0].mxu0
          %7221 = vmatprep.mubr.f32.mxu0 0.0
          %7222 = vmatmul.mubr.f32.gmra.mrb[0].mxu0 %v5470
          %v7223 = vpop.f32.mrb[0].mxu0
          %v7224 = vadd.f32 %v7076, %v7223
          %v7225 = vpop.f32.mrb[0].mxu0
          %7226 = vmatprep.mubr.f32.mxu0 0.0
          %7227 = vmatmul.mubr.f32.gmra.mrb[0].mxu0 %v5473
          %v7228 = vpop.f32.mrb[0].mxu0
          %v7229 = vadd.f32 %v7081, %v7228
          %v7230 = vpop.f32.mrb[0].mxu0
          %7231 = vmatprep.mubr.f32.mxu0 0.0
          %7232 = vmatmul.mubr.f32.gmra.mrb[0].mxu0 %v5476
          %v7233 = vpop.f32.mrb[0].mxu0
          %v7234 = vadd.f32 %v7086, %v7233
          %v7235 = vpop.f32.mrb[0].mxu0
          %7236 = vmatprep.mubr.f32.mxu0 0.0
          %7237 = vmatmul.mubr.f32.gmra.mrb[0].mxu0 %v5479
          %v7238 = vpop.f32.mrb[0].mxu0
          %v7239 = vadd.f32 %v7091, %v7238
          %v7240 = vpop.f32.mrb[0].mxu0
          %7241 = vmatprep.mubr.f32.mxu0 0.0
          %7242 = vmatmul.mubr.f32.gmra.mrb[0].mxu0 %v5482
          %v7243 = vpop.f32.mrb[0].mxu0
          %v7244 = vadd.f32 %v7096, %v7243
          %v7245 = vpop.f32.mrb[0].mxu0
          %7246 = vmatprep.mubr.f32.mxu0 0.0
          %7247 = vmatmul.mubr.f32.gmra.mrb[0].mxu0 %v5485
          %v7248 = vpop.f32.mrb[0].mxu0
          %v7249 = vadd.f32 %v7101, %v7248
          %v7250 = vpop.f32.mrb[0].mxu0
          %7251 = vmatprep.mubr.f32.mxu0 0.0
          %7252 = vmatmul.mubr.f32.gmra.mrb[0].mxu0 %v5488
          %v7253 = vpop.f32.mrb[0].mxu0
          %v7254 = vadd.f32 %v7106, %v7253
          %v7255 = vpop.f32.mrb[0].mxu0
          %7256 = vmatprep.mubr.f32.mxu0 0.0
          %7257 = vmatmul.mubr.f32.gmra.mrb[0].mxu0 %v5491
          %v7258 = vpop.f32.mrb[0].mxu0
          %v7259 = vadd.f32 %v7111, %v7258
          %v7260 = vpop.f32.mrb[0].mxu0
          %7261 = vmatprep.mubr.f32.mxu0 0.0
          %7262 = vmatmul.mubr.f32.gmra.mrb[0].mxu0 %v5494
          %v7263 = vpop.f32.mrb[0].mxu0
          %v7264 = vadd.f32 %v7116, %v7263
          %v7265 = vpop.f32.mrb[0].mxu0
          %7266 = vmatprep.mubr.f32.mxu0 0.0
          %7267 = vmatmul.mubr.f32.gmra.mrb[0].mxu0 %v5497
          %v7268 = vpop.f32.mrb[0].mxu0
          %v7269 = vadd.f32 %v7121, %v7268
          %v7270 = vpop.f32.mrb[0].mxu0
          %7271 = vdwg.mxu0
          %v7272 = vld [vmem:[%s39] sm:$0x3f]
          %v7274 = vsel %vm4122, %v6867, 0
          %v7277 = vsel %vm4122, %v6872, 0
          %v7280 = vsel %vm4122, %v6877, 0
          %v7283 = vsel %vm4122, %v6882, 0
          %v7286 = vsel %vm4122, %v6887, 0
          %v7289 = vsel %vm4122, %v6892, 0
          %v7292 = vsel %vm4122, %v6897, 0
          %v7295 = vsel %vm4122, %v6902, 0
          %v7298 = vsel %vm4122, %v6907, 0
          %v7301 = vsel %vm4122, %v6912, 0
          %v7304 = vsel %vm4122, %v6917, 0
          %v7307 = vsel %vm4122, %v6922, 0
          %v7310 = vsel %vm4122, %v6927, 0
          %v7313 = vsel %vm4122, %v6932, 0
          %v7316 = vsel %vm4122, %v6937, 0
          %v7319 = vsel %vm4122, %v6942, 0
          %vm7321 = vcmask 1045504
          %v7323 = vsel %vm7321, %v7272, 0
          %7325 = vmatprep.subr.mxu0 0.0
          %7326 = vmatpush1.msra.mxu0 %v7323
          %7327 = vmatprep.subr.mxu0 0.0
          %7328 = vmatpush1.msra.mxu0 0.0
          %7329 = vmatprep.subr.mxu0 0.0
          %7330 = vmatpush1.msra.mxu0 0.0
          %7331 = vmatprep.subr.mxu0 0.0
          %7332 = vmatpush1.msra.mxu0 0.0
          %7333 = vmatprep.subr.mxu0 0.0
          %7334 = vmatpush1.msra.mxu0 0.0
          %7335 = vmatprep.subr.mxu0 0.0
          %7336 = vmatpush1.msra.mxu0 0.0
          %7337 = vmatprep.subr.mxu0 0.0
          %7338 = vmatpush1.msra.mxu0 0.0
          %7339 = vmatprep.subr.mxu0 0.0
          %7340 = vmatpush1.msra.mxu0 0.0
          %7341 = vmatprep.subr.mxu0 0.0
          %7342 = vmatpush1.msra.mxu0 0.0
          %7343 = vmatprep.subr.mxu0 0.0
          %7344 = vmatpush1.msra.mxu0 0.0
          %7345 = vmatprep.subr.mxu0 0.0
          %7346 = vmatpush1.msra.mxu0 0.0
          %7347 = vmatprep.subr.mxu0 0.0
          %7348 = vmatpush1.msra.mxu0 0.0
          %7349 = vmatprep.subr.mxu0 0.0
          %7350 = vmatpush1.msra.mxu0 0.0
          %7351 = vmatprep.subr.mxu0 0.0
          %7352 = vmatpush1.msra.mxu0 0.0
          %7353 = vmatprep.subr.mxu0 0.0
          %7354 = vmatpush1.msra.mxu0 0.0
          %7355 = vmatprep.subr.mxu0 0.0
          %7356 = vmatpush1.msra.mxu0 0.0
          %7357 = vmatprep.subr.mxu0 0.0
          %7358 = vmatpush1.msra.mxu0 0.0
          %7359 = vmatprep.subr.mxu0 0.0
          %7360 = vmatpush1.msra.mxu0 0.0
          %7361 = vmatprep.subr.mxu0 0.0
          %7362 = vmatpush1.msra.mxu0 0.0
          %7363 = vmatprep.subr.mxu0 0.0
          %7364 = vmatpush1.msra.mxu0 0.0
          %7365 = vmatprep.subr.mxu0 0.0
          %7366 = vmatpush1.msra.mxu0 0.0
          %7367 = vmatprep.subr.mxu0 0.0
          %7368 = vmatpush1.msra.mxu0 0.0
          %7369 = vmatprep.subr.mxu0 0.0
          %7370 = vmatpush1.msra.mxu0 0.0
          %7371 = vmatprep.subr.mxu0 0.0
          %7372 = vmatpush1.msra.mxu0 0.0
          %7373 = vmatprep.subr.mxu0 0.0
          %7374 = vmatpush1.msra.mxu0 0.0
          %7375 = vmatprep.subr.mxu0 0.0
          %7376 = vmatpush1.msra.mxu0 0.0
          %7377 = vmatprep.subr.mxu0 0.0
          %7378 = vmatpush1.msra.mxu0 0.0
          %7379 = vmatprep.subr.mxu0 0.0
          %7380 = vmatpush1.msra.mxu0 0.0
          %7381 = vmatprep.subr.mxu0 0.0
          %7382 = vmatpush1.msra.mxu0 0.0
          %7383 = vmatprep.subr.mxu0 0.0
          %7384 = vmatpush1.msra.mxu0 0.0
          %7385 = vmatprep.subr.mxu0 0.0
          %7386 = vmatpush1.msra.mxu0 0.0
          %7387 = vmatprep.subr.mxu0 0.0
          %7388 = vmatpush1.msra.mxu0 0.0
          %7389 = vmatprep.mubr.f32.mxu0 0.0
          %7390 = vmatmul.mubr.f32.gmra.mrb[0].mxu0 %v7274
          %v7391 = vpop.f32.mrb[0].mxu0
          %v7392 = vadd.f32 0.0, %v7391
          %v7393 = vpop.f32.mrb[0].mxu0
          %7394 = vmatprep.mubr.f32.mxu0 0.0
          %7395 = vmatmul.mubr.f32.gmra.mrb[0].mxu0 %v7277
          %v7396 = vpop.f32.mrb[0].mxu0
          %v7397 = vadd.f32 0.0, %v7396
          %v7398 = vpop.f32.mrb[0].mxu0
          %7399 = vmatprep.mubr.f32.mxu0 0.0
          %7400 = vmatmul.mubr.f32.gmra.mrb[0].mxu0 %v7280
          %v7401 = vpop.f32.mrb[0].mxu0
          %v7402 = vadd.f32 0.0, %v7401
          %v7403 = vpop.f32.mrb[0].mxu0
          %7404 = vmatprep.mubr.f32.mxu0 0.0
          %7405 = vmatmul.mubr.f32.gmra.mrb[0].mxu0 %v7283
          %v7406 = vpop.f32.mrb[0].mxu0
          %v7407 = vadd.f32 0.0, %v7406
          %v7408 = vpop.f32.mrb[0].mxu0
          %7409 = vmatprep.mubr.f32.mxu0 0.0
          %7410 = vmatmul.mubr.f32.gmra.mrb[0].mxu0 %v7286
          %v7411 = vpop.f32.mrb[0].mxu0
          %v7412 = vadd.f32 0.0, %v7411
          %v7413 = vpop.f32.mrb[0].mxu0
          %7414 = vmatprep.mubr.f32.mxu0 0.0
          %7415 = vmatmul.mubr.f32.gmra.mrb[0].mxu0 %v7289
          %v7416 = vpop.f32.mrb[0].mxu0
          %v7417 = vadd.f32 0.0, %v7416
          %v7418 = vpop.f32.mrb[0].mxu0
          %7419 = vmatprep.mubr.f32.mxu0 0.0
          %7420 = vmatmul.mubr.f32.gmra.mrb[0].mxu0 %v7292
          %v7421 = vpop.f32.mrb[0].mxu0
          %v7422 = vadd.f32 0.0, %v7421
          %v7423 = vpop.f32.mrb[0].mxu0
          %7424 = vmatprep.mubr.f32.mxu0 0.0
          %7425 = vmatmul.mubr.f32.gmra.mrb[0].mxu0 %v7295
          %v7426 = vpop.f32.mrb[0].mxu0
          %v7427 = vadd.f32 0.0, %v7426
          %v7428 = vpop.f32.mrb[0].mxu0
          %7429 = vmatprep.mubr.f32.mxu0 0.0
          %7430 = vmatmul.mubr.f32.gmra.mrb[0].mxu0 %v7298
          %v7431 = vpop.f32.mrb[0].mxu0
          %v7432 = vadd.f32 0.0, %v7431
          %v7433 = vpop.f32.mrb[0].mxu0
          %7434 = vmatprep.mubr.f32.mxu0 0.0
          %7435 = vmatmul.mubr.f32.gmra.mrb[0].mxu0 %v7301
          %v7436 = vpop.f32.mrb[0].mxu0
          %v7437 = vadd.f32 0.0, %v7436
          %v7438 = vpop.f32.mrb[0].mxu0
          %7439 = vmatprep.mubr.f32.mxu0 0.0
          %7440 = vmatmul.mubr.f32.gmra.mrb[0].mxu0 %v7304
          %v7441 = vpop.f32.mrb[0].mxu0
          %v7442 = vadd.f32 0.0, %v7441
          %v7443 = vpop.f32.mrb[0].mxu0
          %7444 = vmatprep.mubr.f32.mxu0 0.0
          %7445 = vmatmul.mubr.f32.gmra.mrb[0].mxu0 %v7307
          %v7446 = vpop.f32.mrb[0].mxu0
          %v7447 = vadd.f32 0.0, %v7446
          %v7448 = vpop.f32.mrb[0].mxu0
          %7449 = vmatprep.mubr.f32.mxu0 0.0
          %7450 = vmatmul.mubr.f32.gmra.mrb[0].mxu0 %v7310
          %v7451 = vpop.f32.mrb[0].mxu0
          %v7452 = vadd.f32 0.0, %v7451
          %v7453 = vpop.f32.mrb[0].mxu0
          %7454 = vmatprep.mubr.f32.mxu0 0.0
          %7455 = vmatmul.mubr.f32.gmra.mrb[0].mxu0 %v7313
          %v7456 = vpop.f32.mrb[0].mxu0
          %v7457 = vadd.f32 0.0, %v7456
          %v7458 = vpop.f32.mrb[0].mxu0
          %7459 = vmatprep.mubr.f32.mxu0 0.0
          %7460 = vmatmul.mubr.f32.gmra.mrb[0].mxu0 %v7316
          %v7461 = vpop.f32.mrb[0].mxu0
          %v7462 = vadd.f32 0.0, %v7461
          %v7463 = vpop.f32.mrb[0].mxu0
          %7464 = vmatprep.mubr.f32.mxu0 0.0
          %7465 = vmatmul.mubr.f32.gmra.mrb[0].mxu0 %v7319
          %v7466 = vpop.f32.mrb[0].mxu0
          %v7467 = vadd.f32 0.0, %v7466
          %v7468 = vpop.f32.mrb[0].mxu0
          %7469 = vdwg.mxu0
          %v7470 = vadd.f32 %v7194, %v7392
          %v7471 = vadd.f32 %v7199, %v7397
          %v7472 = vadd.f32 %v7204, %v7402
          %v7473 = vadd.f32 %v7209, %v7407
          %v7474 = vadd.f32 %v7214, %v7412
          %v7475 = vadd.f32 %v7219, %v7417
          %v7476 = vadd.f32 %v7224, %v7422
          %v7477 = vadd.f32 %v7229, %v7427
          %v7478 = vadd.f32 %v7234, %v7432
          %v7479 = vadd.f32 %v7239, %v7437
          %v7480 = vadd.f32 %v7244, %v7442
          %v7481 = vadd.f32 %v7249, %v7447
          %v7482 = vadd.f32 %v7254, %v7452
          %v7483 = vadd.f32 %v7259, %v7457
          %v7484 = vadd.f32 %v7264, %v7462
          %v7485 = vadd.f32 %v7269, %v7467
          %v7486 = vld [vmem:[%s41] sm:$0x1]
          %v7488 = vlaneseq
          %v7489 = vshrl.u32 %v7488, 7
          %v7490 = vsub.s32 0, %v7489
          %v7491 = vrot.slane %v7486, %v7490
          %v7493 = vadd.f32 %v7470, %v7491
          %v7494 = vadd.f32 %v7471, %v7491
          %v7495 = vadd.f32 %v7472, %v7491
          %v7496 = vadd.f32 %v7473, %v7491
          %v7497 = vadd.f32 %v7474, %v7491
          %v7498 = vadd.f32 %v7475, %v7491
          %v7499 = vadd.f32 %v7476, %v7491
          %v7500 = vadd.f32 %v7477, %v7491
          %v7501 = vadd.f32 %v7478, %v7491
          %v7502 = vadd.f32 %v7479, %v7491
          %v7503 = vadd.f32 %v7480, %v7491
          %v7504 = vadd.f32 %v7481, %v7491
          %v7505 = vadd.f32 %v7482, %v7491
          %v7506 = vadd.f32 %v7483, %v7491
          %v7507 = vadd.f32 %v7484, %v7491
          %v7508 = vadd.f32 %v7485, %v7491
          %vm7509 = vcmp.gt.f32.partialorder %v7493, 0.0
          %vm7510 = vcmp.gt.f32.partialorder %v7494, 0.0
          %vm7511 = vcmp.gt.f32.partialorder %v7495, 0.0
          %vm7512 = vcmp.gt.f32.partialorder %v7496, 0.0
          %vm7513 = vcmp.gt.f32.partialorder %v7497, 0.0
          %vm7514 = vcmp.gt.f32.partialorder %v7498, 0.0
          %vm7515 = vcmp.gt.f32.partialorder %v7499, 0.0
          %vm7516 = vcmp.gt.f32.partialorder %v7500, 0.0
          %vm7517 = vcmp.gt.f32.partialorder %v7501, 0.0
          %vm7518 = vcmp.gt.f32.partialorder %v7502, 0.0
          %vm7519 = vcmp.gt.f32.partialorder %v7503, 0.0
          %vm7520 = vcmp.gt.f32.partialorder %v7504, 0.0
          %vm7521 = vcmp.gt.f32.partialorder %v7505, 0.0
          %vm7522 = vcmp.gt.f32.partialorder %v7506, 0.0
          %vm7523 = vcmp.gt.f32.partialorder %v7507, 0.0
          %vm7524 = vcmp.gt.f32.partialorder %v7508, 0.0
          %v7525 = vmul.f32 %v7493, 0.01
          %v7526 = vmul.f32 %v7494, 0.01
          %v7527 = vmul.f32 %v7495, 0.01
          %v7528 = vmul.f32 %v7496, 0.01
          %v7529 = vmul.f32 %v7497, 0.01
          %v7530 = vmul.f32 %v7498, 0.01
          %v7531 = vmul.f32 %v7499, 0.01
          %v7532 = vmul.f32 %v7500, 0.01
          %v7533 = vmul.f32 %v7501, 0.01
          %v7534 = vmul.f32 %v7502, 0.01
          %v7535 = vmul.f32 %v7503, 0.01
          %v7536 = vmul.f32 %v7504, 0.01
          %v7537 = vmul.f32 %v7505, 0.01
          %v7538 = vmul.f32 %v7506, 0.01
          %v7539 = vmul.f32 %v7507, 0.01
          %v7540 = vmul.f32 %v7508, 0.01
          %v7541 = vsel %vm7509, %v7493, %v7525
          %v7542 = vsel %vm7510, %v7494, %v7526
          %v7543 = vsel %vm7511, %v7495, %v7527
          %v7544 = vsel %vm7512, %v7496, %v7528
          %v7545 = vsel %vm7513, %v7497, %v7529
          %v7546 = vsel %vm7514, %v7498, %v7530
          %v7547 = vsel %vm7515, %v7499, %v7531
          %v7548 = vsel %vm7516, %v7500, %v7532
          %v7549 = vsel %vm7517, %v7501, %v7533
          %v7550 = vsel %vm7518, %v7502, %v7534
          %v7551 = vsel %vm7519, %v7503, %v7535
          %v7552 = vsel %vm7520, %v7504, %v7536
          %v7553 = vsel %vm7521, %v7505, %v7537
          %v7554 = vsel %vm7522, %v7506, %v7538
          %v7555 = vsel %vm7523, %v7507, %v7539
          %v7556 = vsel %vm7524, %v7508, %v7540
          %v7557 = vld [vmem:[%s43] sm:$0xff]
          %v7558 = vld [vmem:[%s43 + $0x8] sm:$0xff]
          %v7559 = vld [vmem:[%s43 + $0x10] sm:$0xff]
          %v7560 = vld [vmem:[%s43 + $0x18] sm:$0xff]
          %v7561 = vld [vmem:[%s45] sm:$0x1]
          %v7563 = vlaneseq
          %v7564 = vshrl.u32 %v7563, 7
          %v7565 = vsub.s32 0, %v7564
          %v7566 = vrot.slane %v7561, %v7565
          %v7569 = vsel %vm1829, %v7541, 0
          %v7572 = vsel %vm1829, %v7542, 0
          %v7575 = vsel %vm1829, %v7543, 0
          %v7578 = vsel %vm1829, %v7544, 0
          %v7581 = vsel %vm1829, %v7545, 0
          %v7584 = vsel %vm1829, %v7546, 0
          %v7587 = vsel %vm1829, %v7547, 0
          %v7590 = vsel %vm1829, %v7548, 0
          %v7593 = vsel %vm1829, %v7549, 0
          %v7596 = vsel %vm1829, %v7550, 0
          %v7599 = vsel %vm1829, %v7551, 0
          %v7602 = vsel %vm1829, %v7552, 0
          %v7605 = vsel %vm1829, %v7553, 0
          %v7608 = vsel %vm1829, %v7554, 0
          %v7611 = vsel %vm1829, %v7555, 0
          %v7614 = vsel %vm1829, %v7556, 0
          %7616 = vmatprep.subr.mxu0 0.0
          %7617 = vmatpush1.msra.mxu0 %v7557
          %7618 = vmatprep.subr.mxu0 0.0
          %7619 = vmatpush1.msra.mxu0 %v7558
          %7620 = vmatprep.subr.mxu0 0.0
          %7621 = vmatpush1.msra.mxu0 %v7559
          %7622 = vmatprep.subr.mxu0 0.0
          %7623 = vmatpush1.msra.mxu0 %v7560
          %7624 = vmatprep.subr.mxu0 0.0
          %7625 = vmatpush1.msra.mxu0 0.0
          %7626 = vmatprep.subr.mxu0 0.0
          %7627 = vmatpush1.msra.mxu0 0.0
          %7628 = vmatprep.subr.mxu0 0.0
          %7629 = vmatpush1.msra.mxu0 0.0
          %7630 = vmatprep.subr.mxu0 0.0
          %7631 = vmatpush1.msra.mxu0 0.0
          %7632 = vmatprep.subr.mxu0 0.0
          %7633 = vmatpush1.msra.mxu0 0.0
          %7634 = vmatprep.subr.mxu0 0.0
          %7635 = vmatpush1.msra.mxu0 0.0
          %7636 = vmatprep.subr.mxu0 0.0
          %7637 = vmatpush1.msra.mxu0 0.0
          %7638 = vmatprep.subr.mxu0 0.0
          %7639 = vmatpush1.msra.mxu0 0.0
          %7640 = vmatprep.subr.mxu0 0.0
          %7641 = vmatpush1.msra.mxu0 0.0
          %7642 = vmatprep.subr.mxu0 0.0
          %7643 = vmatpush1.msra.mxu0 0.0
          %7644 = vmatprep.subr.mxu0 0.0
          %7645 = vmatpush1.msra.mxu0 0.0
          %7646 = vmatprep.subr.mxu0 0.0
          %7647 = vmatpush1.msra.mxu0 0.0
          %7648 = vmatprep.subr.mxu0 0.0
          %7649 = vmatpush1.msra.mxu0 0.0
          %7650 = vmatprep.subr.mxu0 0.0
          %7651 = vmatpush1.msra.mxu0 0.0
          %7652 = vmatprep.subr.mxu0 0.0
          %7653 = vmatpush1.msra.mxu0 0.0
          %7654 = vmatprep.subr.mxu0 0.0
          %7655 = vmatpush1.msra.mxu0 0.0
          %7656 = vmatprep.subr.mxu0 0.0
          %7657 = vmatpush1.msra.mxu0 0.0
          %7658 = vmatprep.subr.mxu0 0.0
          %7659 = vmatpush1.msra.mxu0 0.0
          %7660 = vmatprep.subr.mxu0 0.0
          %7661 = vmatpush1.msra.mxu0 0.0
          %7662 = vmatprep.subr.mxu0 0.0
          %7663 = vmatpush1.msra.mxu0 0.0
          %7664 = vmatprep.subr.mxu0 0.0
          %7665 = vmatpush1.msra.mxu0 0.0
          %7666 = vmatprep.subr.mxu0 0.0
          %7667 = vmatpush1.msra.mxu0 0.0
          %7668 = vmatprep.subr.mxu0 0.0
          %7669 = vmatpush1.msra.mxu0 0.0
          %7670 = vmatprep.subr.mxu0 0.0
          %7671 = vmatpush1.msra.mxu0 0.0
          %7672 = vmatprep.subr.mxu0 0.0
          %7673 = vmatpush1.msra.mxu0 0.0
          %7674 = vmatprep.subr.mxu0 0.0
          %7675 = vmatpush1.msra.mxu0 0.0
          %7676 = vmatprep.subr.mxu0 0.0
          %7677 = vmatpush1.msra.mxu0 0.0
          %7678 = vmatprep.subr.mxu0 0.0
          %7679 = vmatpush1.msra.mxu0 0.0
          %7680 = vmatprep.mubr.f32.mxu0 0.0
          %7681 = vmatmul.mubr.f32.gmra.mrb[0].mxu0 %v7569
          %v7682 = vpop.f32.mrb[0].mxu0
          %v7683 = vadd.f32 %v7566, %v7682
          %v7684 = vpop.f32.mrb[0].mxu0
          %7685 = vmatprep.mubr.f32.mxu0 0.0
          %7686 = vmatmul.mubr.f32.gmra.mrb[0].mxu0 %v7572
          %v7687 = vpop.f32.mrb[0].mxu0
          %v7688 = vadd.f32 %v7566, %v7687
          %v7689 = vpop.f32.mrb[0].mxu0
          %7690 = vmatprep.mubr.f32.mxu0 0.0
          %7691 = vmatmul.mubr.f32.gmra.mrb[0].mxu0 %v7575
          %v7692 = vpop.f32.mrb[0].mxu0
          %v7693 = vadd.f32 %v7566, %v7692
          %v7694 = vpop.f32.mrb[0].mxu0
          %7695 = vmatprep.mubr.f32.mxu0 0.0
          %7696 = vmatmul.mubr.f32.gmra.mrb[0].mxu0 %v7578
          %v7697 = vpop.f32.mrb[0].mxu0
          %v7698 = vadd.f32 %v7566, %v7697
          %v7699 = vpop.f32.mrb[0].mxu0
          %7700 = vmatprep.mubr.f32.mxu0 0.0
          %7701 = vmatmul.mubr.f32.gmra.mrb[0].mxu0 %v7581
          %v7702 = vpop.f32.mrb[0].mxu0
          %v7703 = vadd.f32 %v7566, %v7702
          %v7704 = vpop.f32.mrb[0].mxu0
          %7705 = vmatprep.mubr.f32.mxu0 0.0
          %7706 = vmatmul.mubr.f32.gmra.mrb[0].mxu0 %v7584
          %v7707 = vpop.f32.mrb[0].mxu0
          %v7708 = vadd.f32 %v7566, %v7707
          %v7709 = vpop.f32.mrb[0].mxu0
          %7710 = vmatprep.mubr.f32.mxu0 0.0
          %7711 = vmatmul.mubr.f32.gmra.mrb[0].mxu0 %v7587
          %v7712 = vpop.f32.mrb[0].mxu0
          %v7713 = vadd.f32 %v7566, %v7712
          %v7714 = vpop.f32.mrb[0].mxu0
          %7715 = vmatprep.mubr.f32.mxu0 0.0
          %7716 = vmatmul.mubr.f32.gmra.mrb[0].mxu0 %v7590
          %v7717 = vpop.f32.mrb[0].mxu0
          %v7718 = vadd.f32 %v7566, %v7717
          %v7719 = vpop.f32.mrb[0].mxu0
          %7720 = vmatprep.mubr.f32.mxu0 0.0
          %7721 = vmatmul.mubr.f32.gmra.mrb[0].mxu0 %v7593
          %v7722 = vpop.f32.mrb[0].mxu0
          %v7723 = vadd.f32 %v7566, %v7722
          %v7724 = vpop.f32.mrb[0].mxu0
          %7725 = vmatprep.mubr.f32.mxu0 0.0
          %7726 = vmatmul.mubr.f32.gmra.mrb[0].mxu0 %v7596
          %v7727 = vpop.f32.mrb[0].mxu0
          %v7728 = vadd.f32 %v7566, %v7727
          %v7729 = vpop.f32.mrb[0].mxu0
          %7730 = vmatprep.mubr.f32.mxu0 0.0
          %7731 = vmatmul.mubr.f32.gmra.mrb[0].mxu0 %v7599
          %v7732 = vpop.f32.mrb[0].mxu0
          %v7733 = vadd.f32 %v7566, %v7732
          %v7734 = vpop.f32.mrb[0].mxu0
          %7735 = vmatprep.mubr.f32.mxu0 0.0
          %7736 = vmatmul.mubr.f32.gmra.mrb[0].mxu0 %v7602
          %v7737 = vpop.f32.mrb[0].mxu0
          %v7738 = vadd.f32 %v7566, %v7737
          %v7739 = vpop.f32.mrb[0].mxu0
          %7740 = vmatprep.mubr.f32.mxu0 0.0
          %7741 = vmatmul.mubr.f32.gmra.mrb[0].mxu0 %v7605
          %v7742 = vpop.f32.mrb[0].mxu0
          %v7743 = vadd.f32 %v7566, %v7742
          %v7744 = vpop.f32.mrb[0].mxu0
          %7745 = vmatprep.mubr.f32.mxu0 0.0
          %7746 = vmatmul.mubr.f32.gmra.mrb[0].mxu0 %v7608
          %v7747 = vpop.f32.mrb[0].mxu0
          %v7748 = vadd.f32 %v7566, %v7747
          %v7749 = vpop.f32.mrb[0].mxu0
          %7750 = vmatprep.mubr.f32.mxu0 0.0
          %7751 = vmatmul.mubr.f32.gmra.mrb[0].mxu0 %v7611
          %v7752 = vpop.f32.mrb[0].mxu0
          %v7753 = vadd.f32 %v7566, %v7752
          %v7754 = vpop.f32.mrb[0].mxu0
          %7755 = vmatprep.mubr.f32.mxu0 0.0
          %7756 = vmatmul.mubr.f32.gmra.mrb[0].mxu0 %v7614
          %v7757 = vpop.f32.mrb[0].mxu0
          %v7758 = vadd.f32 %v7566, %v7757
          %v7759 = vpop.f32.mrb[0].mxu0
          %7760 = vdwg.mxu0
          %vm7761 = vcmp.gt.f32.partialorder %v7683, 0.0
          %vm7762 = vcmp.gt.f32.partialorder %v7688, 0.0
          %vm7763 = vcmp.gt.f32.partialorder %v7693, 0.0
          %vm7764 = vcmp.gt.f32.partialorder %v7698, 0.0
          %vm7765 = vcmp.gt.f32.partialorder %v7703, 0.0
          %vm7766 = vcmp.gt.f32.partialorder %v7708, 0.0
          %vm7767 = vcmp.gt.f32.partialorder %v7713, 0.0
          %vm7768 = vcmp.gt.f32.partialorder %v7718, 0.0
          %vm7769 = vcmp.gt.f32.partialorder %v7723, 0.0
          %vm7770 = vcmp.gt.f32.partialorder %v7728, 0.0
          %vm7771 = vcmp.gt.f32.partialorder %v7733, 0.0
          %vm7772 = vcmp.gt.f32.partialorder %v7738, 0.0
          %vm7773 = vcmp.gt.f32.partialorder %v7743, 0.0
          %vm7774 = vcmp.gt.f32.partialorder %v7748, 0.0
          %vm7775 = vcmp.gt.f32.partialorder %v7753, 0.0
          %vm7776 = vcmp.gt.f32.partialorder %v7758, 0.0
          %v7777 = vmul.f32 %v7683, 0.01
          %v7778 = vmul.f32 %v7688, 0.01
          %v7779 = vmul.f32 %v7693, 0.01
          %v7780 = vmul.f32 %v7698, 0.01
          %v7781 = vmul.f32 %v7703, 0.01
          %v7782 = vmul.f32 %v7708, 0.01
          %v7783 = vmul.f32 %v7713, 0.01
          %v7784 = vmul.f32 %v7718, 0.01
          %v7785 = vmul.f32 %v7723, 0.01
          %v7786 = vmul.f32 %v7728, 0.01
          %v7787 = vmul.f32 %v7733, 0.01
          %v7788 = vmul.f32 %v7738, 0.01
          %v7789 = vmul.f32 %v7743, 0.01
          %v7790 = vmul.f32 %v7748, 0.01
          %v7791 = vmul.f32 %v7753, 0.01
          %v7792 = vmul.f32 %v7758, 0.01
          %v7793 = vsel %vm7761, %v7683, %v7777
          %v7794 = vsel %vm7762, %v7688, %v7778
          %v7795 = vsel %vm7763, %v7693, %v7779
          %v7796 = vsel %vm7764, %v7698, %v7780
          %v7797 = vsel %vm7765, %v7703, %v7781
          %v7798 = vsel %vm7766, %v7708, %v7782
          %v7799 = vsel %vm7767, %v7713, %v7783
          %v7800 = vsel %vm7768, %v7718, %v7784
          %v7801 = vsel %vm7769, %v7723, %v7785
          %v7802 = vsel %vm7770, %v7728, %v7786
          %v7803 = vsel %vm7771, %v7733, %v7787
          %v7804 = vsel %vm7772, %v7738, %v7788
          %v7805 = vsel %vm7773, %v7743, %v7789
          %v7806 = vsel %vm7774, %v7748, %v7790
          %v7807 = vsel %vm7775, %v7753, %v7791
          %v7808 = vsel %vm7776, %v7758, %v7792
          %v7809 = vld [vmem:[%s47] sm:$0xff]
          %v7810 = vld [vmem:[%s47 + $0x8] sm:$0xff]
          %v7811 = vld [vmem:[%s47 + $0x10] sm:$0xff]
          %v7812 = vld [vmem:[%s47 + $0x18] sm:$0xff]
          %v7813 = vld [vmem:[%s49] sm:$0x1]
          %v7815 = vlaneseq
          %v7816 = vshrl.u32 %v7815, 7
          %v7817 = vsub.s32 0, %v7816
          %v7818 = vrot.slane %v7813, %v7817
          %v7821 = vsel %vm1829, %v7793, 0
          %v7824 = vsel %vm1829, %v7794, 0
          %v7827 = vsel %vm1829, %v7795, 0
          %v7830 = vsel %vm1829, %v7796, 0
          %v7833 = vsel %vm1829, %v7797, 0
          %v7836 = vsel %vm1829, %v7798, 0
          %v7839 = vsel %vm1829, %v7799, 0
          %v7842 = vsel %vm1829, %v7800, 0
          %v7845 = vsel %vm1829, %v7801, 0
          %v7848 = vsel %vm1829, %v7802, 0
          %v7851 = vsel %vm1829, %v7803, 0
          %v7854 = vsel %vm1829, %v7804, 0
          %v7857 = vsel %vm1829, %v7805, 0
          %v7860 = vsel %vm1829, %v7806, 0
          %v7863 = vsel %vm1829, %v7807, 0
          %v7866 = vsel %vm1829, %v7808, 0
          %7868 = vmatprep.subr.mxu0 0.0
          %7869 = vmatpush1.msra.mxu0 %v7809
          %7870 = vmatprep.subr.mxu0 0.0
          %7871 = vmatpush1.msra.mxu0 %v7810
          %7872 = vmatprep.subr.mxu0 0.0
          %7873 = vmatpush1.msra.mxu0 %v7811
          %7874 = vmatprep.subr.mxu0 0.0
          %7875 = vmatpush1.msra.mxu0 %v7812
          %7876 = vmatprep.subr.mxu0 0.0
          %7877 = vmatpush1.msra.mxu0 0.0
          %7878 = vmatprep.subr.mxu0 0.0
          %7879 = vmatpush1.msra.mxu0 0.0
          %7880 = vmatprep.subr.mxu0 0.0
          %7881 = vmatpush1.msra.mxu0 0.0
          %7882 = vmatprep.subr.mxu0 0.0
          %7883 = vmatpush1.msra.mxu0 0.0
          %7884 = vmatprep.subr.mxu0 0.0
          %7885 = vmatpush1.msra.mxu0 0.0
          %7886 = vmatprep.subr.mxu0 0.0
          %7887 = vmatpush1.msra.mxu0 0.0
          %7888 = vmatprep.subr.mxu0 0.0
          %7889 = vmatpush1.msra.mxu0 0.0
          %7890 = vmatprep.subr.mxu0 0.0
          %7891 = vmatpush1.msra.mxu0 0.0
          %7892 = vmatprep.subr.mxu0 0.0
          %7893 = vmatpush1.msra.mxu0 0.0
          %7894 = vmatprep.subr.mxu0 0.0
          %7895 = vmatpush1.msra.mxu0 0.0
          %7896 = vmatprep.subr.mxu0 0.0
          %7897 = vmatpush1.msra.mxu0 0.0
          %7898 = vmatprep.subr.mxu0 0.0
          %7899 = vmatpush1.msra.mxu0 0.0
          %7900 = vmatprep.subr.mxu0 0.0
          %7901 = vmatpush1.msra.mxu0 0.0
          %7902 = vmatprep.subr.mxu0 0.0
          %7903 = vmatpush1.msra.mxu0 0.0
          %7904 = vmatprep.subr.mxu0 0.0
          %7905 = vmatpush1.msra.mxu0 0.0
          %7906 = vmatprep.subr.mxu0 0.0
          %7907 = vmatpush1.msra.mxu0 0.0
          %7908 = vmatprep.subr.mxu0 0.0
          %7909 = vmatpush1.msra.mxu0 0.0
          %7910 = vmatprep.subr.mxu0 0.0
          %7911 = vmatpush1.msra.mxu0 0.0
          %7912 = vmatprep.subr.mxu0 0.0
          %7913 = vmatpush1.msra.mxu0 0.0
          %7914 = vmatprep.subr.mxu0 0.0
          %7915 = vmatpush1.msra.mxu0 0.0
          %7916 = vmatprep.subr.mxu0 0.0
          %7917 = vmatpush1.msra.mxu0 0.0
          %7918 = vmatprep.subr.mxu0 0.0
          %7919 = vmatpush1.msra.mxu0 0.0
          %7920 = vmatprep.subr.mxu0 0.0
          %7921 = vmatpush1.msra.mxu0 0.0
          %7922 = vmatprep.subr.mxu0 0.0
          %7923 = vmatpush1.msra.mxu0 0.0
          %7924 = vmatprep.subr.mxu0 0.0
          %7925 = vmatpush1.msra.mxu0 0.0
          %7926 = vmatprep.subr.mxu0 0.0
          %7927 = vmatpush1.msra.mxu0 0.0
          %7928 = vmatprep.subr.mxu0 0.0
          %7929 = vmatpush1.msra.mxu0 0.0
          %7930 = vmatprep.subr.mxu0 0.0
          %7931 = vmatpush1.msra.mxu0 0.0
          %7932 = vmatprep.mubr.f32.mxu0 0.0
          %7933 = vmatmul.mubr.f32.gmra.mrb[0].mxu0 %v7821
          %v7934 = vpop.f32.mrb[0].mxu0
          %v7935 = vadd.f32 %v7818, %v7934
          %v7936 = vpop.f32.mrb[0].mxu0
          %7937 = vmatprep.mubr.f32.mxu0 0.0
          %7938 = vmatmul.mubr.f32.gmra.mrb[0].mxu0 %v7824
          %v7939 = vpop.f32.mrb[0].mxu0
          %v7940 = vadd.f32 %v7818, %v7939
          %v7941 = vpop.f32.mrb[0].mxu0
          %7942 = vmatprep.mubr.f32.mxu0 0.0
          %7943 = vmatmul.mubr.f32.gmra.mrb[0].mxu0 %v7827
          %v7944 = vpop.f32.mrb[0].mxu0
          %v7945 = vadd.f32 %v7818, %v7944
          %v7946 = vpop.f32.mrb[0].mxu0
          %7947 = vmatprep.mubr.f32.mxu0 0.0
          %7948 = vmatmul.mubr.f32.gmra.mrb[0].mxu0 %v7830
          %v7949 = vpop.f32.mrb[0].mxu0
          %v7950 = vadd.f32 %v7818, %v7949
          %v7951 = vpop.f32.mrb[0].mxu0
          %7952 = vmatprep.mubr.f32.mxu0 0.0
          %7953 = vmatmul.mubr.f32.gmra.mrb[0].mxu0 %v7833
          %v7954 = vpop.f32.mrb[0].mxu0
          %v7955 = vadd.f32 %v7818, %v7954
          %v7956 = vpop.f32.mrb[0].mxu0
          %7957 = vmatprep.mubr.f32.mxu0 0.0
          %7958 = vmatmul.mubr.f32.gmra.mrb[0].mxu0 %v7836
          %v7959 = vpop.f32.mrb[0].mxu0
          %v7960 = vadd.f32 %v7818, %v7959
          %v7961 = vpop.f32.mrb[0].mxu0
          %7962 = vmatprep.mubr.f32.mxu0 0.0
          %7963 = vmatmul.mubr.f32.gmra.mrb[0].mxu0 %v7839
          %v7964 = vpop.f32.mrb[0].mxu0
          %v7965 = vadd.f32 %v7818, %v7964
          %v7966 = vpop.f32.mrb[0].mxu0
          %7967 = vmatprep.mubr.f32.mxu0 0.0
          %7968 = vmatmul.mubr.f32.gmra.mrb[0].mxu0 %v7842
          %v7969 = vpop.f32.mrb[0].mxu0
          %v7970 = vadd.f32 %v7818, %v7969
          %v7971 = vpop.f32.mrb[0].mxu0
          %7972 = vmatprep.mubr.f32.mxu0 0.0
          %7973 = vmatmul.mubr.f32.gmra.mrb[0].mxu0 %v7845
          %v7974 = vpop.f32.mrb[0].mxu0
          %v7975 = vadd.f32 %v7818, %v7974
          %v7976 = vpop.f32.mrb[0].mxu0
          %7977 = vmatprep.mubr.f32.mxu0 0.0
          %7978 = vmatmul.mubr.f32.gmra.mrb[0].mxu0 %v7848
          %v7979 = vpop.f32.mrb[0].mxu0
          %v7980 = vadd.f32 %v7818, %v7979
          %v7981 = vpop.f32.mrb[0].mxu0
          %7982 = vmatprep.mubr.f32.mxu0 0.0
          %7983 = vmatmul.mubr.f32.gmra.mrb[0].mxu0 %v7851
          %v7984 = vpop.f32.mrb[0].mxu0
          %v7985 = vadd.f32 %v7818, %v7984
          %v7986 = vpop.f32.mrb[0].mxu0
          %7987 = vmatprep.mubr.f32.mxu0 0.0
          %7988 = vmatmul.mubr.f32.gmra.mrb[0].mxu0 %v7854
          %v7989 = vpop.f32.mrb[0].mxu0
          %v7990 = vadd.f32 %v7818, %v7989
          %v7991 = vpop.f32.mrb[0].mxu0
          %7992 = vmatprep.mubr.f32.mxu0 0.0
          %7993 = vmatmul.mubr.f32.gmra.mrb[0].mxu0 %v7857
          %v7994 = vpop.f32.mrb[0].mxu0
          %v7995 = vadd.f32 %v7818, %v7994
          %v7996 = vpop.f32.mrb[0].mxu0
          %7997 = vmatprep.mubr.f32.mxu0 0.0
          %7998 = vmatmul.mubr.f32.gmra.mrb[0].mxu0 %v7860
          %v7999 = vpop.f32.mrb[0].mxu0
          %v8000 = vadd.f32 %v7818, %v7999
          %v8001 = vpop.f32.mrb[0].mxu0
          %8002 = vmatprep.mubr.f32.mxu0 0.0
          %8003 = vmatmul.mubr.f32.gmra.mrb[0].mxu0 %v7863
          %v8004 = vpop.f32.mrb[0].mxu0
          %v8005 = vadd.f32 %v7818, %v8004
          %v8006 = vpop.f32.mrb[0].mxu0
          %8007 = vmatprep.mubr.f32.mxu0 0.0
          %8008 = vmatmul.mubr.f32.gmra.mrb[0].mxu0 %v7866
          %v8009 = vpop.f32.mrb[0].mxu0
          %v8010 = vadd.f32 %v7818, %v8009
          %v8011 = vpop.f32.mrb[0].mxu0
          %8012 = vdwg.mxu0
          %vm8013 = vcmp.gt.f32.partialorder %v7935, 0.0
          %vm8014 = vcmp.gt.f32.partialorder %v7940, 0.0
          %vm8015 = vcmp.gt.f32.partialorder %v7945, 0.0
          %vm8016 = vcmp.gt.f32.partialorder %v7950, 0.0
          %vm8017 = vcmp.gt.f32.partialorder %v7955, 0.0
          %vm8018 = vcmp.gt.f32.partialorder %v7960, 0.0
          %vm8019 = vcmp.gt.f32.partialorder %v7965, 0.0
          %vm8020 = vcmp.gt.f32.partialorder %v7970, 0.0
          %vm8021 = vcmp.gt.f32.partialorder %v7975, 0.0
          %vm8022 = vcmp.gt.f32.partialorder %v7980, 0.0
          %vm8023 = vcmp.gt.f32.partialorder %v7985, 0.0
          %vm8024 = vcmp.gt.f32.partialorder %v7990, 0.0
          %vm8025 = vcmp.gt.f32.partialorder %v7995, 0.0
          %vm8026 = vcmp.gt.f32.partialorder %v8000, 0.0
          %vm8027 = vcmp.gt.f32.partialorder %v8005, 0.0
          %vm8028 = vcmp.gt.f32.partialorder %v8010, 0.0
          %v8029 = vmul.f32 %v7935, 0.01
          %v8030 = vmul.f32 %v7940, 0.01
          %v8031 = vmul.f32 %v7945, 0.01
          %v8032 = vmul.f32 %v7950, 0.01
          %v8033 = vmul.f32 %v7955, 0.01
          %v8034 = vmul.f32 %v7960, 0.01
          %v8035 = vmul.f32 %v7965, 0.01
          %v8036 = vmul.f32 %v7970, 0.01
          %v8037 = vmul.f32 %v7975, 0.01
          %v8038 = vmul.f32 %v7980, 0.01
          %v8039 = vmul.f32 %v7985, 0.01
          %v8040 = vmul.f32 %v7990, 0.01
          %v8041 = vmul.f32 %v7995, 0.01
          %v8042 = vmul.f32 %v8000, 0.01
          %v8043 = vmul.f32 %v8005, 0.01
          %v8044 = vmul.f32 %v8010, 0.01
          %v8045 = vsel %vm8013, %v7935, %v8029
          %v8046 = vsel %vm8014, %v7940, %v8030
          %v8047 = vsel %vm8015, %v7945, %v8031
          %v8048 = vsel %vm8016, %v7950, %v8032
          %v8049 = vsel %vm8017, %v7955, %v8033
          %v8050 = vsel %vm8018, %v7960, %v8034
          %v8051 = vsel %vm8019, %v7965, %v8035
          %v8052 = vsel %vm8020, %v7970, %v8036
          %v8053 = vsel %vm8021, %v7975, %v8037
          %v8054 = vsel %vm8022, %v7980, %v8038
          %v8055 = vsel %vm8023, %v7985, %v8039
          %v8056 = vsel %vm8024, %v7990, %v8040
          %v8057 = vsel %vm8025, %v7995, %v8041
          %v8058 = vsel %vm8026, %v8000, %v8042
          %v8059 = vsel %vm8027, %v8005, %v8043
          %v8060 = vsel %vm8028, %v8010, %v8044
          %v8061 = vld [vmem:[%s51] sm:$0xff]
          %v8062 = vld [vmem:[%s51 + $0x8] sm:$0xff]
          %v8063 = vld [vmem:[%s51 + $0x10] sm:$0xff]
          %v8064 = vld [vmem:[%s51 + $0x18] sm:$0xff]
          %v8065 = vld [vmem:[%s53] sm:$0xff]
          %v8066 = vld [vmem:[%s53 + $0x8] sm:$0xff]
          %v8067 = vld [vmem:[%s53 + $0x10] sm:$0xff]
          %v8068 = vld [vmem:[%s53 + $0x18] sm:$0xff]
          %v8070 = vsel %vm1829, %v8045, 0
          %v8073 = vsel %vm1829, %v8046, 0
          %v8076 = vsel %vm1829, %v8047, 0
          %v8079 = vsel %vm1829, %v8048, 0
          %v8082 = vsel %vm1829, %v8049, 0
          %v8085 = vsel %vm1829, %v8050, 0
          %v8088 = vsel %vm1829, %v8051, 0
          %v8091 = vsel %vm1829, %v8052, 0
          %v8094 = vsel %vm1829, %v8053, 0
          %v8097 = vsel %vm1829, %v8054, 0
          %v8100 = vsel %vm1829, %v8055, 0
          %v8103 = vsel %vm1829, %v8056, 0
          %v8106 = vsel %vm1829, %v8057, 0
          %v8109 = vsel %vm1829, %v8058, 0
          %v8112 = vsel %vm1829, %v8059, 0
          %v8115 = vsel %vm1829, %v8060, 0
          %8117 = vmatprep.subr.mxu0 0.0
          %8118 = vmatpush1.msra.mxu0 %v8065
          %8119 = vmatprep.subr.mxu0 0.0
          %8120 = vmatpush1.msra.mxu0 %v8066
          %8121 = vmatprep.subr.mxu0 0.0
          %8122 = vmatpush1.msra.mxu0 %v8067
          %8123 = vmatprep.subr.mxu0 0.0
          %8124 = vmatpush1.msra.mxu0 %v8068
          %8125 = vmatprep.subr.mxu0 0.0
          %8126 = vmatpush1.msra.mxu0 0.0
          %8127 = vmatprep.subr.mxu0 0.0
          %8128 = vmatpush1.msra.mxu0 0.0
          %8129 = vmatprep.subr.mxu0 0.0
          %8130 = vmatpush1.msra.mxu0 0.0
          %8131 = vmatprep.subr.mxu0 0.0
          %8132 = vmatpush1.msra.mxu0 0.0
          %8133 = vmatprep.subr.mxu0 0.0
          %8134 = vmatpush1.msra.mxu0 0.0
          %8135 = vmatprep.subr.mxu0 0.0
          %8136 = vmatpush1.msra.mxu0 0.0
          %8137 = vmatprep.subr.mxu0 0.0
          %8138 = vmatpush1.msra.mxu0 0.0
          %8139 = vmatprep.subr.mxu0 0.0
          %8140 = vmatpush1.msra.mxu0 0.0
          %8141 = vmatprep.subr.mxu0 0.0
          %8142 = vmatpush1.msra.mxu0 0.0
          %8143 = vmatprep.subr.mxu0 0.0
          %8144 = vmatpush1.msra.mxu0 0.0
          %8145 = vmatprep.subr.mxu0 0.0
          %8146 = vmatpush1.msra.mxu0 0.0
          %8147 = vmatprep.subr.mxu0 0.0
          %8148 = vmatpush1.msra.mxu0 0.0
          %8149 = vmatprep.subr.mxu0 0.0
          %8150 = vmatpush1.msra.mxu0 0.0
          %8151 = vmatprep.subr.mxu0 0.0
          %8152 = vmatpush1.msra.mxu0 0.0
          %8153 = vmatprep.subr.mxu0 0.0
          %8154 = vmatpush1.msra.mxu0 0.0
          %8155 = vmatprep.subr.mxu0 0.0
          %8156 = vmatpush1.msra.mxu0 0.0
          %8157 = vmatprep.subr.mxu0 0.0
          %8158 = vmatpush1.msra.mxu0 0.0
          %8159 = vmatprep.subr.mxu0 0.0
          %8160 = vmatpush1.msra.mxu0 0.0
          %8161 = vmatprep.subr.mxu0 0.0
          %8162 = vmatpush1.msra.mxu0 0.0
          %8163 = vmatprep.subr.mxu0 0.0
          %8164 = vmatpush1.msra.mxu0 0.0
          %8165 = vmatprep.subr.mxu0 0.0
          %8166 = vmatpush1.msra.mxu0 0.0
          %8167 = vmatprep.subr.mxu0 0.0
          %8168 = vmatpush1.msra.mxu0 0.0
          %8169 = vmatprep.subr.mxu0 0.0
          %8170 = vmatpush1.msra.mxu0 0.0
          %8171 = vmatprep.subr.mxu0 0.0
          %8172 = vmatpush1.msra.mxu0 0.0
          %8173 = vmatprep.subr.mxu0 0.0
          %8174 = vmatpush1.msra.mxu0 0.0
          %8175 = vmatprep.subr.mxu0 0.0
          %8176 = vmatpush1.msra.mxu0 0.0
          %8177 = vmatprep.subr.mxu0 0.0
          %8178 = vmatpush1.msra.mxu0 0.0
          %8179 = vmatprep.subr.mxu0 0.0
          %8180 = vmatpush1.msra.mxu0 0.0
          %8181 = vmatprep.mubr.f32.mxu0 0.0
          %8182 = vmatmul.mubr.f32.gmra.mrb[0].mxu0 %v8070
          %v8183 = vpop.f32.mrb[0].mxu0
          %v8184 = vadd.f32 0.0, %v8183
          %v8185 = vpop.f32.mrb[0].mxu0
          %8186 = vmatprep.mubr.f32.mxu0 0.0
          %8187 = vmatmul.mubr.f32.gmra.mrb[0].mxu0 %v8073
          %v8188 = vpop.f32.mrb[0].mxu0
          %v8189 = vadd.f32 0.0, %v8188
          %v8190 = vpop.f32.mrb[0].mxu0
          %8191 = vmatprep.mubr.f32.mxu0 0.0
          %8192 = vmatmul.mubr.f32.gmra.mrb[0].mxu0 %v8076
          %v8193 = vpop.f32.mrb[0].mxu0
          %v8194 = vadd.f32 0.0, %v8193
          %v8195 = vpop.f32.mrb[0].mxu0
          %8196 = vmatprep.mubr.f32.mxu0 0.0
          %8197 = vmatmul.mubr.f32.gmra.mrb[0].mxu0 %v8079
          %v8198 = vpop.f32.mrb[0].mxu0
          %v8199 = vadd.f32 0.0, %v8198
          %v8200 = vpop.f32.mrb[0].mxu0
          %8201 = vmatprep.mubr.f32.mxu0 0.0
          %8202 = vmatmul.mubr.f32.gmra.mrb[0].mxu0 %v8082
          %v8203 = vpop.f32.mrb[0].mxu0
          %v8204 = vadd.f32 0.0, %v8203
          %v8205 = vpop.f32.mrb[0].mxu0
          %8206 = vmatprep.mubr.f32.mxu0 0.0
          %8207 = vmatmul.mubr.f32.gmra.mrb[0].mxu0 %v8085
          %v8208 = vpop.f32.mrb[0].mxu0
          %v8209 = vadd.f32 0.0, %v8208
          %v8210 = vpop.f32.mrb[0].mxu0
          %8211 = vmatprep.mubr.f32.mxu0 0.0
          %8212 = vmatmul.mubr.f32.gmra.mrb[0].mxu0 %v8088
          %v8213 = vpop.f32.mrb[0].mxu0
          %v8214 = vadd.f32 0.0, %v8213
          %v8215 = vpop.f32.mrb[0].mxu0
          %8216 = vmatprep.mubr.f32.mxu0 0.0
          %8217 = vmatmul.mubr.f32.gmra.mrb[0].mxu0 %v8091
          %v8218 = vpop.f32.mrb[0].mxu0
          %v8219 = vadd.f32 0.0, %v8218
          %v8220 = vpop.f32.mrb[0].mxu0
          %8221 = vmatprep.mubr.f32.mxu0 0.0
          %8222 = vmatmul.mubr.f32.gmra.mrb[0].mxu0 %v8094
          %v8223 = vpop.f32.mrb[0].mxu0
          %v8224 = vadd.f32 0.0, %v8223
          %v8225 = vpop.f32.mrb[0].mxu0
          %8226 = vmatprep.mubr.f32.mxu0 0.0
          %8227 = vmatmul.mubr.f32.gmra.mrb[0].mxu0 %v8097
          %v8228 = vpop.f32.mrb[0].mxu0
          %v8229 = vadd.f32 0.0, %v8228
          %v8230 = vpop.f32.mrb[0].mxu0
          %8231 = vmatprep.mubr.f32.mxu0 0.0
          %8232 = vmatmul.mubr.f32.gmra.mrb[0].mxu0 %v8100
          %v8233 = vpop.f32.mrb[0].mxu0
          %v8234 = vadd.f32 0.0, %v8233
          %v8235 = vpop.f32.mrb[0].mxu0
          %8236 = vmatprep.mubr.f32.mxu0 0.0
          %8237 = vmatmul.mubr.f32.gmra.mrb[0].mxu0 %v8103
          %v8238 = vpop.f32.mrb[0].mxu0
          %v8239 = vadd.f32 0.0, %v8238
          %v8240 = vpop.f32.mrb[0].mxu0
          %8241 = vmatprep.mubr.f32.mxu0 0.0
          %8242 = vmatmul.mubr.f32.gmra.mrb[0].mxu0 %v8106
          %v8243 = vpop.f32.mrb[0].mxu0
          %v8244 = vadd.f32 0.0, %v8243
          %v8245 = vpop.f32.mrb[0].mxu0
          %8246 = vmatprep.mubr.f32.mxu0 0.0
          %8247 = vmatmul.mubr.f32.gmra.mrb[0].mxu0 %v8109
          %v8248 = vpop.f32.mrb[0].mxu0
          %v8249 = vadd.f32 0.0, %v8248
          %v8250 = vpop.f32.mrb[0].mxu0
          %8251 = vmatprep.mubr.f32.mxu0 0.0
          %8252 = vmatmul.mubr.f32.gmra.mrb[0].mxu0 %v8112
          %v8253 = vpop.f32.mrb[0].mxu0
          %v8254 = vadd.f32 0.0, %v8253
          %v8255 = vpop.f32.mrb[0].mxu0
          %8256 = vmatprep.mubr.f32.mxu0 0.0
          %8257 = vmatmul.mubr.f32.gmra.mrb[0].mxu0 %v8115
          %v8258 = vpop.f32.mrb[0].mxu0
          %v8259 = vadd.f32 0.0, %v8258
          %v8260 = vpop.f32.mrb[0].mxu0
          %8261 = vdwg.mxu0
          %8262 = vmatprep.subr.mxu0 0.0
          %8263 = vmatpush1.msra.mxu0 %v8061
          %8264 = vmatprep.subr.mxu0 0.0
          %8265 = vmatpush1.msra.mxu0 %v8062
          %8266 = vmatprep.subr.mxu0 0.0
          %8267 = vmatpush1.msra.mxu0 %v8063
          %8268 = vmatprep.subr.mxu0 0.0
          %8269 = vmatpush1.msra.mxu0 %v8064
          %8270 = vmatprep.subr.mxu0 0.0
          %8271 = vmatpush1.msra.mxu0 0.0
          %8272 = vmatprep.subr.mxu0 0.0
          %8273 = vmatpush1.msra.mxu0 0.0
          %8274 = vmatprep.subr.mxu0 0.0
          %8275 = vmatpush1.msra.mxu0 0.0
          %8276 = vmatprep.subr.mxu0 0.0
          %8277 = vmatpush1.msra.mxu0 0.0
          %8278 = vmatprep.subr.mxu0 0.0
          %8279 = vmatpush1.msra.mxu0 0.0
          %8280 = vmatprep.subr.mxu0 0.0
          %8281 = vmatpush1.msra.mxu0 0.0
          %8282 = vmatprep.subr.mxu0 0.0
          %8283 = vmatpush1.msra.mxu0 0.0
          %8284 = vmatprep.subr.mxu0 0.0
          %8285 = vmatpush1.msra.mxu0 0.0
          %8286 = vmatprep.subr.mxu0 0.0
          %8287 = vmatpush1.msra.mxu0 0.0
          %8288 = vmatprep.subr.mxu0 0.0
          %8289 = vmatpush1.msra.mxu0 0.0
          %8290 = vmatprep.subr.mxu0 0.0
          %8291 = vmatpush1.msra.mxu0 0.0
          %8292 = vmatprep.subr.mxu0 0.0
          %8293 = vmatpush1.msra.mxu0 0.0
          %8294 = vmatprep.subr.mxu0 0.0
          %8295 = vmatpush1.msra.mxu0 0.0
          %8296 = vmatprep.subr.mxu0 0.0
          %8297 = vmatpush1.msra.mxu0 0.0
          %8298 = vmatprep.subr.mxu0 0.0
          %8299 = vmatpush1.msra.mxu0 0.0
          %8300 = vmatprep.subr.mxu0 0.0
          %8301 = vmatpush1.msra.mxu0 0.0
          %8302 = vmatprep.subr.mxu0 0.0
          %8303 = vmatpush1.msra.mxu0 0.0
          %8304 = vmatprep.subr.mxu0 0.0
          %8305 = vmatpush1.msra.mxu0 0.0
          %8306 = vmatprep.subr.mxu0 0.0
          %8307 = vmatpush1.msra.mxu0 0.0
          %8308 = vmatprep.subr.mxu0 0.0
          %8309 = vmatpush1.msra.mxu0 0.0
          %8310 = vmatprep.subr.mxu0 0.0
          %8311 = vmatpush1.msra.mxu0 0.0
          %8312 = vmatprep.subr.mxu0 0.0
          %8313 = vmatpush1.msra.mxu0 0.0
          %8314 = vmatprep.subr.mxu0 0.0
          %8315 = vmatpush1.msra.mxu0 0.0
          %8316 = vmatprep.subr.mxu0 0.0
          %8317 = vmatpush1.msra.mxu0 0.0
          %8318 = vmatprep.subr.mxu0 0.0
          %8319 = vmatpush1.msra.mxu0 0.0
          %8320 = vmatprep.subr.mxu0 0.0
          %8321 = vmatpush1.msra.mxu0 0.0
          %8322 = vmatprep.subr.mxu0 0.0
          %8323 = vmatpush1.msra.mxu0 0.0
          %8324 = vmatprep.subr.mxu0 0.0
          %8325 = vmatpush1.msra.mxu0 0.0
          %8326 = vmatprep.mubr.f32.mxu0 0.0
          %8327 = vmatmul.mubr.f32.gmra.mrb[0].mxu0 %v6753
          %v8328 = vpop.f32.mrb[0].mxu0
          %v8329 = vadd.f32 %v8184, %v8328
          %v8330 = vpop.f32.mrb[0].mxu0
          %8331 = vmatprep.mubr.f32.mxu0 0.0
          %8332 = vmatmul.mubr.f32.gmra.mrb[0].mxu0 %v6756
          %v8333 = vpop.f32.mrb[0].mxu0
          %v8334 = vadd.f32 %v8189, %v8333
          %v8335 = vpop.f32.mrb[0].mxu0
          %8336 = vmatprep.mubr.f32.mxu0 0.0
          %8337 = vmatmul.mubr.f32.gmra.mrb[0].mxu0 %v6759
          %v8338 = vpop.f32.mrb[0].mxu0
          %v8339 = vadd.f32 %v8194, %v8338
          %v8340 = vpop.f32.mrb[0].mxu0
          %8341 = vmatprep.mubr.f32.mxu0 0.0
          %8342 = vmatmul.mubr.f32.gmra.mrb[0].mxu0 %v6762
          %v8343 = vpop.f32.mrb[0].mxu0
          %v8344 = vadd.f32 %v8199, %v8343
          %v8345 = vpop.f32.mrb[0].mxu0
          %8346 = vmatprep.mubr.f32.mxu0 0.0
          %8347 = vmatmul.mubr.f32.gmra.mrb[0].mxu0 %v6765
          %v8348 = vpop.f32.mrb[0].mxu0
          %v8349 = vadd.f32 %v8204, %v8348
          %v8350 = vpop.f32.mrb[0].mxu0
          %8351 = vmatprep.mubr.f32.mxu0 0.0
          %8352 = vmatmul.mubr.f32.gmra.mrb[0].mxu0 %v6768
          %v8353 = vpop.f32.mrb[0].mxu0
          %v8354 = vadd.f32 %v8209, %v8353
          %v8355 = vpop.f32.mrb[0].mxu0
          %8356 = vmatprep.mubr.f32.mxu0 0.0
          %8357 = vmatmul.mubr.f32.gmra.mrb[0].mxu0 %v6771
          %v8358 = vpop.f32.mrb[0].mxu0
          %v8359 = vadd.f32 %v8214, %v8358
          %v8360 = vpop.f32.mrb[0].mxu0
          %8361 = vmatprep.mubr.f32.mxu0 0.0
          %8362 = vmatmul.mubr.f32.gmra.mrb[0].mxu0 %v6774
          %v8363 = vpop.f32.mrb[0].mxu0
          %v8364 = vadd.f32 %v8219, %v8363
          %v8365 = vpop.f32.mrb[0].mxu0
          %8366 = vmatprep.mubr.f32.mxu0 0.0
          %8367 = vmatmul.mubr.f32.gmra.mrb[0].mxu0 %v6777
          %v8368 = vpop.f32.mrb[0].mxu0
          %v8369 = vadd.f32 %v8224, %v8368
          %v8370 = vpop.f32.mrb[0].mxu0
          %8371 = vmatprep.mubr.f32.mxu0 0.0
          %8372 = vmatmul.mubr.f32.gmra.mrb[0].mxu0 %v6780
          %v8373 = vpop.f32.mrb[0].mxu0
          %v8374 = vadd.f32 %v8229, %v8373
          %v8375 = vpop.f32.mrb[0].mxu0
          %8376 = vmatprep.mubr.f32.mxu0 0.0
          %8377 = vmatmul.mubr.f32.gmra.mrb[0].mxu0 %v6783
          %v8378 = vpop.f32.mrb[0].mxu0
          %v8379 = vadd.f32 %v8234, %v8378
          %v8380 = vpop.f32.mrb[0].mxu0
          %8381 = vmatprep.mubr.f32.mxu0 0.0
          %8382 = vmatmul.mubr.f32.gmra.mrb[0].mxu0 %v6786
          %v8383 = vpop.f32.mrb[0].mxu0
          %v8384 = vadd.f32 %v8239, %v8383
          %v8385 = vpop.f32.mrb[0].mxu0
          %8386 = vmatprep.mubr.f32.mxu0 0.0
          %8387 = vmatmul.mubr.f32.gmra.mrb[0].mxu0 %v6789
          %v8388 = vpop.f32.mrb[0].mxu0
          %v8389 = vadd.f32 %v8244, %v8388
          %v8390 = vpop.f32.mrb[0].mxu0
          %8391 = vmatprep.mubr.f32.mxu0 0.0
          %8392 = vmatmul.mubr.f32.gmra.mrb[0].mxu0 %v6792
          %v8393 = vpop.f32.mrb[0].mxu0
          %v8394 = vadd.f32 %v8249, %v8393
          %v8395 = vpop.f32.mrb[0].mxu0
          %8396 = vmatprep.mubr.f32.mxu0 0.0
          %8397 = vmatmul.mubr.f32.gmra.mrb[0].mxu0 %v6795
          %v8398 = vpop.f32.mrb[0].mxu0
          %v8399 = vadd.f32 %v8254, %v8398
          %v8400 = vpop.f32.mrb[0].mxu0
          %8401 = vmatprep.mubr.f32.mxu0 0.0
          %8402 = vmatmul.mubr.f32.gmra.mrb[0].mxu0 %v6798
          %v8403 = vpop.f32.mrb[0].mxu0
          %v8404 = vadd.f32 %v8259, %v8403
          %v8405 = vpop.f32.mrb[0].mxu0
          %8406 = vdwg.mxu0
          %v8407 = vld [vmem:[%s55] sm:$0xff]
          %v8408 = vld [vmem:[%s55 + $0x8] sm:$0xf]
          %v8410 = vsel %vm5499, %v8408, 0
          %8412 = vmatprep.subr.mxu0 0.0
          %8413 = vmatpush1.msra.mxu0 %v8407
          %8414 = vmatprep.subr.mxu0 0.0
          %8415 = vmatpush1.msra.mxu0 %v8410
          %8416 = vmatprep.subr.mxu0 0.0
          %8417 = vmatpush1.msra.mxu0 0.0
          %8418 = vmatprep.subr.mxu0 0.0
          %8419 = vmatpush1.msra.mxu0 0.0
          %8420 = vmatprep.subr.mxu0 0.0
          %8421 = vmatpush1.msra.mxu0 0.0
          %8422 = vmatprep.subr.mxu0 0.0
          %8423 = vmatpush1.msra.mxu0 0.0
          %8424 = vmatprep.subr.mxu0 0.0
          %8425 = vmatpush1.msra.mxu0 0.0
          %8426 = vmatprep.subr.mxu0 0.0
          %8427 = vmatpush1.msra.mxu0 0.0
          %8428 = vmatprep.subr.mxu0 0.0
          %8429 = vmatpush1.msra.mxu0 0.0
          %8430 = vmatprep.subr.mxu0 0.0
          %8431 = vmatpush1.msra.mxu0 0.0
          %8432 = vmatprep.subr.mxu0 0.0
          %8433 = vmatpush1.msra.mxu0 0.0
          %8434 = vmatprep.subr.mxu0 0.0
          %8435 = vmatpush1.msra.mxu0 0.0
          %8436 = vmatprep.subr.mxu0 0.0
          %8437 = vmatpush1.msra.mxu0 0.0
          %8438 = vmatprep.subr.mxu0 0.0
          %8439 = vmatpush1.msra.mxu0 0.0
          %8440 = vmatprep.subr.mxu0 0.0
          %8441 = vmatpush1.msra.mxu0 0.0
          %8442 = vmatprep.subr.mxu0 0.0
          %8443 = vmatpush1.msra.mxu0 0.0
          %8444 = vmatprep.subr.mxu0 0.0
          %8445 = vmatpush1.msra.mxu0 0.0
          %8446 = vmatprep.subr.mxu0 0.0
          %8447 = vmatpush1.msra.mxu0 0.0
          %8448 = vmatprep.subr.mxu0 0.0
          %8449 = vmatpush1.msra.mxu0 0.0
          %8450 = vmatprep.subr.mxu0 0.0
          %8451 = vmatpush1.msra.mxu0 0.0
          %8452 = vmatprep.subr.mxu0 0.0
          %8453 = vmatpush1.msra.mxu0 0.0
          %8454 = vmatprep.subr.mxu0 0.0
          %8455 = vmatpush1.msra.mxu0 0.0
          %8456 = vmatprep.subr.mxu0 0.0
          %8457 = vmatpush1.msra.mxu0 0.0
          %8458 = vmatprep.subr.mxu0 0.0
          %8459 = vmatpush1.msra.mxu0 0.0
          %8460 = vmatprep.subr.mxu0 0.0
          %8461 = vmatpush1.msra.mxu0 0.0
          %8462 = vmatprep.subr.mxu0 0.0
          %8463 = vmatpush1.msra.mxu0 0.0
          %8464 = vmatprep.subr.mxu0 0.0
          %8465 = vmatpush1.msra.mxu0 0.0
          %8466 = vmatprep.subr.mxu0 0.0
          %8467 = vmatpush1.msra.mxu0 0.0
          %8468 = vmatprep.subr.mxu0 0.0
          %8469 = vmatpush1.msra.mxu0 0.0
          %8470 = vmatprep.subr.mxu0 0.0
          %8471 = vmatpush1.msra.mxu0 0.0
          %8472 = vmatprep.subr.mxu0 0.0
          %8473 = vmatpush1.msra.mxu0 0.0
          %8474 = vmatprep.subr.mxu0 0.0
          %8475 = vmatpush1.msra.mxu0 0.0
          %8476 = vmatprep.mubr.f32.mxu0 0.0
          %8477 = vmatmul.mubr.f32.gmra.mrb[0].mxu0 %v5452
          %v8478 = vpop.f32.mrb[0].mxu0
          %v8479 = vadd.f32 0.0, %v8478
          %v8480 = vpop.f32.mrb[0].mxu0
          %8481 = vmatprep.mubr.f32.mxu0 0.0
          %8482 = vmatmul.mubr.f32.gmra.mrb[0].mxu0 %v5455
          %v8483 = vpop.f32.mrb[0].mxu0
          %v8484 = vadd.f32 0.0, %v8483
          %v8485 = vpop.f32.mrb[0].mxu0
          %8486 = vmatprep.mubr.f32.mxu0 0.0
          %8487 = vmatmul.mubr.f32.gmra.mrb[0].mxu0 %v5458
          %v8488 = vpop.f32.mrb[0].mxu0
          %v8489 = vadd.f32 0.0, %v8488
          %v8490 = vpop.f32.mrb[0].mxu0
          %8491 = vmatprep.mubr.f32.mxu0 0.0
          %8492 = vmatmul.mubr.f32.gmra.mrb[0].mxu0 %v5461
          %v8493 = vpop.f32.mrb[0].mxu0
          %v8494 = vadd.f32 0.0, %v8493
          %v8495 = vpop.f32.mrb[0].mxu0
          %8496 = vmatprep.mubr.f32.mxu0 0.0
          %8497 = vmatmul.mubr.f32.gmra.mrb[0].mxu0 %v5464
          %v8498 = vpop.f32.mrb[0].mxu0
          %v8499 = vadd.f32 0.0, %v8498
          %v8500 = vpop.f32.mrb[0].mxu0
          %8501 = vmatprep.mubr.f32.mxu0 0.0
          %8502 = vmatmul.mubr.f32.gmra.mrb[0].mxu0 %v5467
          %v8503 = vpop.f32.mrb[0].mxu0
          %v8504 = vadd.f32 0.0, %v8503
          %v8505 = vpop.f32.mrb[0].mxu0
          %8506 = vmatprep.mubr.f32.mxu0 0.0
          %8507 = vmatmul.mubr.f32.gmra.mrb[0].mxu0 %v5470
          %v8508 = vpop.f32.mrb[0].mxu0
          %v8509 = vadd.f32 0.0, %v8508
          %v8510 = vpop.f32.mrb[0].mxu0
          %8511 = vmatprep.mubr.f32.mxu0 0.0
          %8512 = vmatmul.mubr.f32.gmra.mrb[0].mxu0 %v5473
          %v8513 = vpop.f32.mrb[0].mxu0
          %v8514 = vadd.f32 0.0, %v8513
          %v8515 = vpop.f32.mrb[0].mxu0
          %8516 = vmatprep.mubr.f32.mxu0 0.0
          %8517 = vmatmul.mubr.f32.gmra.mrb[0].mxu0 %v5476
          %v8518 = vpop.f32.mrb[0].mxu0
          %v8519 = vadd.f32 0.0, %v8518
          %v8520 = vpop.f32.mrb[0].mxu0
          %8521 = vmatprep.mubr.f32.mxu0 0.0
          %8522 = vmatmul.mubr.f32.gmra.mrb[0].mxu0 %v5479
          %v8523 = vpop.f32.mrb[0].mxu0
          %v8524 = vadd.f32 0.0, %v8523
          %v8525 = vpop.f32.mrb[0].mxu0
          %8526 = vmatprep.mubr.f32.mxu0 0.0
          %8527 = vmatmul.mubr.f32.gmra.mrb[0].mxu0 %v5482
          %v8528 = vpop.f32.mrb[0].mxu0
          %v8529 = vadd.f32 0.0, %v8528
          %v8530 = vpop.f32.mrb[0].mxu0
          %8531 = vmatprep.mubr.f32.mxu0 0.0
          %8532 = vmatmul.mubr.f32.gmra.mrb[0].mxu0 %v5485
          %v8533 = vpop.f32.mrb[0].mxu0
          %v8534 = vadd.f32 0.0, %v8533
          %v8535 = vpop.f32.mrb[0].mxu0
          %8536 = vmatprep.mubr.f32.mxu0 0.0
          %8537 = vmatmul.mubr.f32.gmra.mrb[0].mxu0 %v5488
          %v8538 = vpop.f32.mrb[0].mxu0
          %v8539 = vadd.f32 0.0, %v8538
          %v8540 = vpop.f32.mrb[0].mxu0
          %8541 = vmatprep.mubr.f32.mxu0 0.0
          %8542 = vmatmul.mubr.f32.gmra.mrb[0].mxu0 %v5491
          %v8543 = vpop.f32.mrb[0].mxu0
          %v8544 = vadd.f32 0.0, %v8543
          %v8545 = vpop.f32.mrb[0].mxu0
          %8546 = vmatprep.mubr.f32.mxu0 0.0
          %8547 = vmatmul.mubr.f32.gmra.mrb[0].mxu0 %v5494
          %v8548 = vpop.f32.mrb[0].mxu0
          %v8549 = vadd.f32 0.0, %v8548
          %v8550 = vpop.f32.mrb[0].mxu0
          %8551 = vmatprep.mubr.f32.mxu0 0.0
          %8552 = vmatmul.mubr.f32.gmra.mrb[0].mxu0 %v5497
          %v8553 = vpop.f32.mrb[0].mxu0
          %v8554 = vadd.f32 0.0, %v8553
          %v8555 = vpop.f32.mrb[0].mxu0
          %8556 = vdwg.mxu0
          %v8557 = vadd.f32 %v8329, %v8479
          %v8558 = vadd.f32 %v8334, %v8484
          %v8559 = vadd.f32 %v8339, %v8489
          %v8560 = vadd.f32 %v8344, %v8494
          %v8561 = vadd.f32 %v8349, %v8499
          %v8562 = vadd.f32 %v8354, %v8504
          %v8563 = vadd.f32 %v8359, %v8509
          %v8564 = vadd.f32 %v8364, %v8514
          %v8565 = vadd.f32 %v8369, %v8519
          %v8566 = vadd.f32 %v8374, %v8524
          %v8567 = vadd.f32 %v8379, %v8529
          %v8568 = vadd.f32 %v8384, %v8534
          %v8569 = vadd.f32 %v8389, %v8539
          %v8570 = vadd.f32 %v8394, %v8544
          %v8571 = vadd.f32 %v8399, %v8549
          %v8572 = vadd.f32 %v8404, %v8554
          %v8573 = vld [vmem:[%s57] sm:$0x1]
          %v8575 = vlaneseq
          %v8576 = vshrl.u32 %v8575, 7
          %v8577 = vsub.s32 0, %v8576
          %v8578 = vrot.slane %v8573, %v8577
          %v8580 = vadd.f32 %v8557, %v8578
          %v8581 = vadd.f32 %v8558, %v8578
          %v8582 = vadd.f32 %v8559, %v8578
          %v8583 = vadd.f32 %v8560, %v8578
          %v8584 = vadd.f32 %v8561, %v8578
          %v8585 = vadd.f32 %v8562, %v8578
          %v8586 = vadd.f32 %v8563, %v8578
          %v8587 = vadd.f32 %v8564, %v8578
          %v8588 = vadd.f32 %v8565, %v8578
          %v8589 = vadd.f32 %v8566, %v8578
          %v8590 = vadd.f32 %v8567, %v8578
          %v8591 = vadd.f32 %v8568, %v8578
          %v8592 = vadd.f32 %v8569, %v8578
          %v8593 = vadd.f32 %v8570, %v8578
          %v8594 = vadd.f32 %v8571, %v8578
          %v8595 = vadd.f32 %v8572, %v8578
          %8596 = vst [vmem:[%s1044] sm:$0xff] %v8580
          %8597 = vst [vmem:[%s1044 + $0x8] sm:$0xff] %v8581
          %8598 = vst [vmem:[%s1044 + $0x10] sm:$0xff] %v8582
          %8599 = vst [vmem:[%s1044 + $0x18] sm:$0xff] %v8583
          %8600 = vst [vmem:[%s1044 + $0x20] sm:$0xff] %v8584
          %8601 = vst [vmem:[%s1044 + $0x28] sm:$0xff] %v8585
          %8602 = vst [vmem:[%s1044 + $0x30] sm:$0xff] %v8586
          %8603 = vst [vmem:[%s1044 + $0x38] sm:$0xff] %v8587
          %8604 = vst [vmem:[%s1044 + $0x40] sm:$0xff] %v8588
          %8605 = vst [vmem:[%s1044 + $0x48] sm:$0xff] %v8589
          %8606 = vst [vmem:[%s1044 + $0x50] sm:$0xff] %v8590
          %8607 = vst [vmem:[%s1044 + $0x58] sm:$0xff] %v8591
          %8608 = vst [vmem:[%s1044 + $0x60] sm:$0xff] %v8592
          %8609 = vst [vmem:[%s1044 + $0x68] sm:$0xff] %v8593
          %8610 = vst [vmem:[%s1044 + $0x70] sm:$0xff] %v8594
          %8611 = vst [vmem:[%s1044 + $0x78] sm:$0xff] %v8595
        $region182: #{tpu_custom_call.1} parent=169 // pred_fallthru
          _
        %s8612 = sand.u32 %s730, 1
        %s8613 = scalar_lea.sflag [#allocation7], %s8612
        %s8614 = sand.u32 %s730, 1
        %s8615 = smul.addr %s8614, 32
        %s8616 = scalar_lea.vmem [#allocation6], %s8615
        %s8617 = sand.u32 %s756, 1
        %s8618 = scalar_lea.sflag [#allocation9], %s8617
        %s8619 = sand.u32 %s756, 1
        %s8620 = smul.addr %s8619, 128
        %s8621 = scalar_lea.vmem [#allocation8], %s8620
        // Predicated region
        $region183: #{tpu_custom_call.1} parent=169 // pred_check
          %p8622 = pneg %p740
        $region184: #{tpu_custom_call.1} parent=169 // pred_check_branch
          %8624 = sbr.rel (%p8622) target = $region186
        $region185: #{tpu_custom_call.1} parent=169 // pred_region
          %s8625 = smul.u32 4, %s83
          %s8627 = ssub.s32 512, 512
          %8628 = vsyncadd %s8613, %s8627
          %s8629 = smul.addr %s8625, 2
          %s8630 = sadd.s32 %s84, %s8629
          %s8631 = smul.addr %s8630, 128
          %s8632 = scalar_lea.hbm %s59, %s8631
          %s8633 = sshll.u32 %s8616, 4
          %s8634 = int_to_ptr.vmem [resolvable:$true] %s8633
          %8639 = dma.vmem_to_hbm [thread:$0]  %s8634, 512, %s8632, %s8613, 128, 256, 8
        $region186: #{tpu_custom_call.1} parent=169 // pred_fallthru
          _
        // Predicated region
        $region187: #{tpu_custom_call.1} parent=169 // pred_check
          %p8640 = pneg %p766
        $region188: #{tpu_custom_call.1} parent=169 // pred_check_branch
          %8642 = sbr.rel (%p8640) target = $region190
        $region189: #{tpu_custom_call.1} parent=169 // pred_region
          %s8643 = smul.u32 16, %s83
          %s8645 = ssub.s32 2048, 2048
          %8646 = vsyncadd %s8618, %s8645
          %s8647 = smul.addr %s8643, 128
          %s8648 = scalar_lea.hbm %s61, %s8647
          %s8649 = sshll.u32 %s8621, 4
          %s8650 = int_to_ptr.vmem [resolvable:$true] %s8649
          %8655 = dma.vmem_to_hbm [thread:$0]  %s8650, 2048, %s8648, %s8618, 128, 128, 8
        $region190: #{tpu_custom_call.1} parent=169 // pred_fallthru
          _
      $region170: #{tpu_custom_call.1} parent=5 // pred_fallthru
        _
      %p8656 = scmp.le.s32.totalorder 2, %s74
      // Predicated region
      $region191: #{tpu_custom_call.1} parent=5 // pred_check
        %p8657 = pneg %p8656
      $region192: #{tpu_custom_call.1} parent=5 // pred_check_branch
        %8659 = sbr.rel (%p8657) target = $region194
      $region193: #{tpu_custom_call.1} parent=5 // pred_region
        %s8660 = ssub.s32 %s74, 2
        // Predicated region
        $region195: #{tpu_custom_call.1} parent=193 // pred_check
          %p8661 = pneg %p746
        $region196: #{tpu_custom_call.1} parent=193 // pred_check_branch
          %8663 = sbr.rel (%p8661) target = $region198
        $region197: #{tpu_custom_call.1} parent=193 // pred_region
          %s8664 = sand.u32 %s731, 1
          %s8665 = scalar_lea.sflag [#allocation7], %s8664
          %s8666 = sand.u32 %s731, 1
          %s8667 = smul.addr %s8666, 32
          %s8668 = scalar_lea.vmem [#allocation6], %s8667
          %8669 = dma.done %s8665, 512
        $region198: #{tpu_custom_call.1} parent=193 // pred_fallthru
          _
        // Predicated region
        $region199: #{tpu_custom_call.1} parent=193 // pred_check
          %p8670 = pneg %p772
        $region200: #{tpu_custom_call.1} parent=193 // pred_check_branch
          %8672 = sbr.rel (%p8670) target = $region202
        $region201: #{tpu_custom_call.1} parent=193 // pred_region
          %s8673 = sand.u32 %s757, 1
          %s8674 = scalar_lea.sflag [#allocation9], %s8673
          %s8675 = sand.u32 %s757, 1
          %s8676 = smul.addr %s8675, 128
          %s8677 = scalar_lea.vmem [#allocation8], %s8676
          %8678 = dma.done %s8674, 2048
        $region202: #{tpu_custom_call.1} parent=193 // pred_fallthru
          _
      $region194: #{tpu_custom_call.1} parent=5 // pred_fallthru
        _
    $region6: #{tpu_custom_call.1} parent=1 // loop_footer
      %s78 = sadd.s32 1, %s74
    $region7: #{tpu_custom_call.1} parent=1 // loop_footer_branch
      %73 = sbr.rel target = $region3
    $region8: #{tpu_custom_call.1} parent=1 // loop_exit
      _
    %8679 = vsyncpa [#allocation7], 1
    %s8680 = scalar_lea.sflag [#allocation7], 1
    %8681 = vsyncpa %s8680, 1
    %8682 = vsyncpa [#allocation9], 1
    %s8683 = scalar_lea.sflag [#allocation9], 1
    %8684 = vsyncpa %s8683, 1

</llo_original>
